<compile_context>
chip_gen: v7x
topology: tpu7x:2x2x1
jax: 0.10.0
libtpu: 0.0.40
codegen_flags: <defaults>
</compile_context>

<pallas_src>
import functools

import jax
import jax.numpy as jnp
import numpy as np
from jax.experimental import pallas as pl
from jax.experimental.pallas import tpu as pltpu


def _pendulum_kernel(xg_ref,
                     w_hh1_ref, w_ih2_ref, w_hh2_ref, w_ih3_ref, w_hh3_ref,
                     b2_ref, b3_ref,
                     w_roll_ref, b1r_ref,
                     w_post_ref, b_post_ref,
                     out_ref, *, T, future, N, H):
    f32 = jnp.float32

    # Hoist only the small per-step biases; large (H, 4H) weights are loaded
    # at their use site (VMEM vld issue 3/cycle and hide under MXU latency),
    # keeping the vreg file free for the 6 state arrays + live h3 history.
    b2 = b2_ref[...]
    b3 = b3_ref[...]

    def gate_act(gates, c):
        # g-gate pre-activations were pre-scaled by 2 in the wrapper:
        # one full-width (N, 4H) sigmoid gives i, f, o directly and
        # g = tanh(x) = 2*sigmoid(2x) - 1.  tanh(c_new) uses the same identity.
        s = jax.nn.sigmoid(gates)
        i = s[:, 0 * H:1 * H]
        f = s[:, 1 * H:2 * H]
        g = 2.0 * s[:, 2 * H:3 * H] - 1.0
        o = s[:, 3 * H:4 * H]
        c_new = f * c + i * g
        h_new = o * (2.0 * jax.nn.sigmoid(2.0 * c_new) - 1.0)
        return h_new, c_new

    h1 = c1 = h2 = c2 = h3 = c3 = jnp.zeros((N, H), f32)
    h3_seq = []

    # Fully unrolled time loop: T + future is small and static, so every index
    # is static and the scheduler sees across iterations.
    for t in range(T + future):
        # Recurrent contributions depend only on the previous step's state:
        # issue them first so the MXU work overlaps the activation chain.
        r1 = jnp.dot(h1, w_hh1_ref[...], preferred_element_type=f32)
        r2 = jnp.dot(h2, w_hh2_ref[...], preferred_element_type=f32)
        r3 = jnp.dot(h3, w_hh3_ref[...], preferred_element_type=f32)

        if t < T:
            # Observed phase: x_t * w_ih1 + b1 precomputed in the wrapper.
            gates1 = xg_ref[t] + r1
        else:
            # Rollout phase: feedback fused straight into the layer-1 gates,
            # gates1 = (h3 @ w_post + b_post) * w_ih1 + r1 + b1
            #        = h3 @ w_roll + r1 + b1r.
            gates1 = (jnp.dot(h3, w_roll_ref[...], preferred_element_type=f32)
                      + r1 + b1r_ref[...])
        h1, c1 = gate_act(gates1, c1)

        gates2 = jnp.dot(h1, w_ih2_ref[...], preferred_element_type=f32) + r2 + b2
        h2, c2 = gate_act(gates2, c2)

        gates3 = jnp.dot(h2, w_ih3_ref[...], preferred_element_type=f32) + r3 + b3
        h3, c3 = gate_act(gates3, c3)

        h3_seq.append(h3)

    # Output head, once, off the critical path:
    # MultiheadAttention(num_heads=1) on a length-1 sequence has softmax == 1,
    # so attn == v; v -> out_proj -> Dropout(p=0) -> Linear(H, 1) is the single
    # precomputed (H, 1) matmul w_post / bias b_post, applied to all steps in
    # one batched MXU call and stored with a single store.
    h3_all = jnp.concatenate(h3_seq, axis=0)                 # ((T+future)*N, H)
    y = (jnp.dot(h3_all, w_post_ref[...], preferred_element_type=f32)
         + b_post_ref[...])                                  # ((T+future)*N, 1)
    out_ref[...] = y


def init_params(key, hidden_dim):
    H = hidden_dim
    k_lstm = 1.0 / np.sqrt(H)
    keys = jax.random.split(key, 24)

    def u(k, shape, scale):
        return jax.random.uniform(k, shape, jnp.float32, -scale, scale)

    p = {}
    # LSTMCell 1: input_size=1
    p["w_ih1"] = u(keys[0], (4 * H, 1), k_lstm)
    p["w_hh1"] = u(keys[1], (4 * H, H), k_lstm)
    p["b_ih1"] = u(keys[2], (4 * H,), k_lstm)
    p["b_hh1"] = u(keys[3], (4 * H,), k_lstm)
    # LSTMCell 2 / 3: input_size=H
    p["w_ih2"] = u(keys[4], (4 * H, H), k_lstm)
    p["w_hh2"] = u(keys[5], (4 * H, H), k_lstm)
    p["b_ih2"] = u(keys[6], (4 * H,), k_lstm)
    p["b_hh2"] = u(keys[7], (4 * H,), k_lstm)
    p["w_ih3"] = u(keys[8], (4 * H, H), k_lstm)
    p["w_hh3"] = u(keys[9], (4 * H, H), k_lstm)
    p["b_ih3"] = u(keys[10], (4 * H,), k_lstm)
    p["b_hh3"] = u(keys[11], (4 * H,), k_lstm)
    # MultiheadAttention (packed in_proj, like PyTorch)
    xav = np.sqrt(6.0 / (H + H))
    p["in_proj_w"] = u(keys[12], (3 * H, H), xav)
    p["in_proj_b"] = jnp.zeros((3 * H,), jnp.float32)
    p["out_proj_w"] = u(keys[13], (H, H), k_lstm)
    p["out_proj_b"] = jnp.zeros((H,), jnp.float32)
    # Final Linear(H, 1)
    p["lin_w"] = u(keys[14], (1, H), k_lstm)
    p["lin_b"] = u(keys[15], (1,), k_lstm)
    return p


def pendulum_rnn_mha(x, params, future=0):
    """x: (N, T) float32 -> (N, T + future) float32."""
    N, T = x.shape
    H = params["w_hh1"].shape[1]
    f32 = jnp.float32

    def tr(w):
        return jnp.transpose(w).astype(f32)

    # Scale the g-gate block (tanh gate) pre-activations by 2 so the kernel can
    # use a single sigmoid per cell: tanh(x) = 2*sigmoid(2x) - 1.
    g_scale = jnp.ones((4 * H,), f32).at[2 * H:3 * H].set(2.0)

    def gate_prep(w_ih, w_hh, b_ih, b_hh):
        w_ih_t = tr(w_ih) * g_scale                    # (in, 4H)
        w_hh_t = tr(w_hh) * g_scale                    # (H, 4H)
        b = ((b_ih + b_hh).astype(f32).reshape(1, 4 * H) * g_scale)
        return w_ih_t, w_hh_t, b

    w_ih1, w_hh1, b1 = gate_prep(params["w_ih1"], params["w_hh1"],
                                 params["b_ih1"], params["b_hh1"])   # w_ih1: (1, 4H)
    w_ih2, w_hh2, b2 = gate_prep(params["w_ih2"], params["w_hh2"],
                                 params["b_ih2"], params["b_hh2"])
    w_ih3, w_hh3, b3 = gate_prep(params["w_ih3"], params["w_hh3"],
                                 params["b_ih3"], params["b_hh3"])

    # MHA (num_heads=1, length-1 sequence): softmax == 1, attn == v.
    # Fold v projection -> out_proj -> Dropout(p=0) -> Linear(H,1) into one
    # (H, 1) weight and a (1, 1) bias.
    _, _, wv = jnp.split(params["in_proj_w"], 3, axis=0)          # (H, H)
    _, _, bv = jnp.split(params["in_proj_b"], 3, axis=0)          # (H,)
    wo_t = tr(params["out_proj_w"])                               # (H, H)
    wl_t = tr(params["lin_w"])                                    # (H, 1)
    w_post = (tr(wv) @ wo_t @ wl_t).astype(f32)                   # (H, 1)
    b_post = ((bv.reshape(1, H) @ wo_t
               + params["out_proj_b"].reshape(1, H)) @ wl_t
              + params["lin_b"].reshape(1, 1)).astype(f32)        # (1, 1)

    # Rollout-feedback fusion: prev_out never appears in the kernel.
    # gates1(t>=T) = h3 @ w_roll + r1 + b1r.
    w_roll = (w_post @ w_ih1).astype(f32)                         # (H, 4H)
    b1r = (b1 + b_post * w_ih1).astype(f32)                       # (1, 4H)

    # Observed-phase layer-1 input term (state independent): x_t * w_ih1 + b1.
    x3 = jnp.transpose(x).astype(f32)[:, :, None]                 # (T, N, 1)
    x_gates = (x3 * w_ih1.reshape(1, 1, 4 * H)
               + b1.reshape(1, 1, 4 * H)).astype(f32)             # (T, N, 4H)

    args = (
        x_gates,
        w_hh1, w_ih2, w_hh2, w_ih3, w_hh3,
        b2, b3,
        w_roll, b1r,
        w_post, b_post,
    )

    kernel = functools.partial(_pendulum_kernel, T=T, future=future, N=N, H=H)
    vmem = pl.BlockSpec(memory_space=pltpu.MemorySpace.VMEM)
    out = pl.pallas_call(
        kernel,
        out_shape=jax.ShapeDtypeStruct(((T + future) * N, 1), jnp.float32),
        in_specs=[vmem] * len(args),
        out_specs=vmem,
    )(*args)
    # Rows are ordered [t0: n0..nN-1, t1: ...]; reshape + transpose to (N, T+future).
    return jnp.transpose(out.reshape(T + future, N))


def reference(x, params, future=0):
    """Pure-JAX reference mirroring the PyTorch forward (for correctness check)."""
    N, T = x.shape
    H = params["w_hh1"].shape[1]
    h1 = c1 = h2 = c2 = h3 = c3 = jnp.zeros((N, H), jnp.float32)

    def cell(xx, h, c, w_ih, w_hh, b_ih, b_hh):
        gates = xx @ w_ih.T + b_ih + h @ w_hh.T + b_hh
        i, f, g, o = jnp.split(gates, 4, axis=1)
        i = jax.nn.sigmoid(i); f = jax.nn.sigmoid(f)
        g = jnp.tanh(g); o = jax.nn.sigmoid(o)
        c = f * c + i * g
        h = o * jnp.tanh(c)
        return h, c

    wq, wk, wv = jnp.split(params["in_proj_w"], 3, axis=0)
    bq, bk, bv = jnp.split(params["in_proj_b"], 3, axis=0)
    outputs, out = [], None
    for t in range(T + future):
        inp = x[:, t:t + 1] if t < T else out
        h1, c1 = cell(inp, h1, c1, params["w_ih1"], params["w_hh1"],
                      params["b_ih1"], params["b_hh1"])
        h2, c2 = cell(h1, h2, c2, params["w_ih2"], params["w_hh2"],
                      params["b_ih2"], params["b_hh2"])
        h3, c3 = cell(h2, h3, c3, params["w_ih3"], params["w_hh3"],
                      params["b_ih3"], params["b_hh3"])
        v = h3 @ wv.T + bv
        attn = v                                      # softmax over 1 key == 1
        a = attn @ params["out_proj_w"].T + params["out_proj_b"]
        out = a @ params["lin_w"].T + params["lin_b"]
        outputs.append(out)
    return jnp.concatenate(outputs, axis=1)


if __name__ == "__main__":
    N, T, H, FUTURE = 2, 8, 32, 4
    key = jax.random.PRNGKey(0)
    k_x, k_p = jax.random.split(key)
    x = jax.random.normal(k_x, (N, T), dtype=jnp.float32)
    params = init_params(k_p, H)

    out = pendulum_rnn_mha(x, params, future=FUTURE)
    out = jax.block_until_ready(out)

    ref = reference(x, params, future=FUTURE)
    assert out.shape == (N, T + FUTURE)
    np.testing.assert_allclose(np.asarray(out), np.asarray(ref),
                               rtol=2e-4, atol=1e-4)
    print("KERNEL_OK")
</pallas_src>

<mosaic_0001>
module attributes {stable_mosaic.version = 11 : i64} {
  func.func @_pendulum_kernel(%arg0: memref<8x2x128xf32, #tpu.memory_space<vmem>>, %arg1: memref<32x128xf32, #tpu.memory_space<vmem>>, %arg2: memref<32x128xf32, #tpu.memory_space<vmem>>, %arg3: memref<32x128xf32, #tpu.memory_space<vmem>>, %arg4: memref<32x128xf32, #tpu.memory_space<vmem>>, %arg5: memref<32x128xf32, #tpu.memory_space<vmem>>, %arg6: memref<1x128xf32, #tpu.memory_space<vmem>>, %arg7: memref<1x128xf32, #tpu.memory_space<vmem>>, %arg8: memref<32x128xf32, #tpu.memory_space<vmem>>, %arg9: memref<1x128xf32, #tpu.memory_space<vmem>>, %arg10: memref<32x1xf32, #tpu.memory_space<vmem>>, %arg11: memref<1x1xf32, #tpu.memory_space<vmem>>, %arg12: memref<24x1xf32, #tpu.memory_space<vmem>>) attributes {dimension_semantics = [], scalar_prefetch = 0 : i64, scratch_operands = 0 : i64, tpu.core_type = #tpu.core_type<tc>} {
    %c0 = arith.constant 0 : index
    %c0_0 = arith.constant 0 : index
    %0 = vector.load %arg6[%c0, %c0_0] : memref<1x128xf32, #tpu.memory_space<vmem>>, vector<1x128xf32>
    %c0_1 = arith.constant 0 : index
    %c0_2 = arith.constant 0 : index
    %1 = vector.load %arg7[%c0_1, %c0_2] : memref<1x128xf32, #tpu.memory_space<vmem>>, vector<1x128xf32>
    %cst = arith.constant 0.000000e+00 : f32
    %2 = vector.broadcast %cst : f32 to vector<2x32xf32>
    %c0_3 = arith.constant 0 : index
    %c0_4 = arith.constant 0 : index
    %3 = vector.load %arg1[%c0_3, %c0_4] : memref<32x128xf32, #tpu.memory_space<vmem>>, vector<32x128xf32>
    %cst_5 = arith.constant dense<0.000000e+00> : vector<2x128xf32>
    %4 = tpu.matmul %2, %3, %cst_5 {dimension_numbers = #tpu.dot_dimension_numbers<[1], [0], [0], [1], [0, 0, 1, 1], [], []>} : vector<2x32xf32>, vector<32x128xf32>, vector<2x128xf32> -> vector<2x128xf32>
    %c0_6 = arith.constant 0 : index
    %c0_7 = arith.constant 0 : index
    %5 = vector.load %arg3[%c0_6, %c0_7] : memref<32x128xf32, #tpu.memory_space<vmem>>, vector<32x128xf32>
    %cst_8 = arith.constant dense<0.000000e+00> : vector<2x128xf32>
    %6 = tpu.matmul %2, %5, %cst_8 {dimension_numbers = #tpu.dot_dimension_numbers<[1], [0], [0], [1], [0, 0, 1, 1], [], []>} : vector<2x32xf32>, vector<32x128xf32>, vector<2x128xf32> -> vector<2x128xf32>
    %c0_9 = arith.constant 0 : index
    %c0_10 = arith.constant 0 : index
    %7 = vector.load %arg5[%c0_9, %c0_10] : memref<32x128xf32, #tpu.memory_space<vmem>>, vector<32x128xf32>
    %cst_11 = arith.constant dense<0.000000e+00> : vector<2x128xf32>
    %8 = tpu.matmul %2, %7, %cst_11 {dimension_numbers = #tpu.dot_dimension_numbers<[1], [0], [0], [1], [0, 0, 1, 1], [], []>} : vector<2x32xf32>, vector<32x128xf32>, vector<2x128xf32> -> vector<2x128xf32>
    %c0_12 = arith.constant 0 : index
    %c0_13 = arith.constant 0 : index
    %c0_14 = arith.constant 0 : index
    %9 = vector.load %arg0[%c0_12, %c0_13, %c0_14] : memref<8x2x128xf32, #tpu.memory_space<vmem>>, vector<1x2x128xf32>
    %10 = vector.shape_cast %9 : vector<1x2x128xf32> to vector<2x128xf32>
    %11 = arith.addf %10, %4 : vector<2x128xf32>
    %12 = arith.negf %11 : vector<2x128xf32>
    %13 = math.exp %12 : vector<2x128xf32>
    %cst_15 = arith.constant 1.000000e+00 : f32
    %14 = vector.broadcast %cst_15 : f32 to vector<2x128xf32>
    %15 = arith.addf %14, %13 : vector<2x128xf32>
    %16 = arith.divf %14, %15 : vector<2x128xf32>
    %17 = vector.extract_strided_slice %16 {offsets = [0, 0], sizes = [2, 32], strides = [1, 1]} : vector<2x128xf32> to vector<2x32xf32>
    %18 = vector.extract_strided_slice %16 {offsets = [0, 32], sizes = [2, 32], strides = [1, 1]} : vector<2x128xf32> to vector<2x32xf32>
    %19 = vector.extract_strided_slice %16 {offsets = [0, 64], sizes = [2, 32], strides = [1, 1]} : vector<2x128xf32> to vector<2x32xf32>
    %cst_16 = arith.constant 2.000000e+00 : f32
    %20 = vector.broadcast %cst_16 : f32 to vector<2x32xf32>
    %21 = arith.mulf %20, %19 : vector<2x32xf32>
    %cst_17 = arith.constant 1.000000e+00 : f32
    %22 = vector.broadcast %cst_17 : f32 to vector<2x32xf32>
    %23 = arith.subf %21, %22 : vector<2x32xf32>
    %24 = vector.extract_strided_slice %16 {offsets = [0, 96], sizes = [2, 32], strides = [1, 1]} : vector<2x128xf32> to vector<2x32xf32>
    %25 = arith.mulf %18, %2 : vector<2x32xf32>
    %26 = arith.mulf %17, %23 : vector<2x32xf32>
    %27 = arith.addf %25, %26 : vector<2x32xf32>
    %cst_18 = arith.constant 2.000000e+00 : f32
    %28 = vector.broadcast %cst_18 : f32 to vector<2x32xf32>
    %29 = arith.mulf %28, %27 : vector<2x32xf32>
    %30 = arith.negf %29 : vector<2x32xf32>
    %31 = math.exp %30 : vector<2x32xf32>
    %cst_19 = arith.constant 1.000000e+00 : f32
    %32 = vector.broadcast %cst_19 : f32 to vector<2x32xf32>
    %33 = arith.addf %32, %31 : vector<2x32xf32>
    %34 = arith.divf %32, %33 : vector<2x32xf32>
    %cst_20 = arith.constant 2.000000e+00 : f32
    %35 = vector.broadcast %cst_20 : f32 to vector<2x32xf32>
    %36 = arith.mulf %35, %34 : vector<2x32xf32>
    %cst_21 = arith.constant 1.000000e+00 : f32
    %37 = vector.broadcast %cst_21 : f32 to vector<2x32xf32>
    %38 = arith.subf %36, %37 : vector<2x32xf32>
    %39 = arith.mulf %24, %38 : vector<2x32xf32>
    %c0_22 = arith.constant 0 : index
    %c0_23 = arith.constant 0 : index
    %40 = vector.load %arg2[%c0_22, %c0_23] : memref<32x128xf32, #tpu.memory_space<vmem>>, vector<32x128xf32>
    %cst_24 = arith.constant dense<0.000000e+00> : vector<2x128xf32>
    %41 = tpu.matmul %39, %40, %cst_24 {dimension_numbers = #tpu.dot_dimension_numbers<[1], [0], [0], [1], [0, 0, 1, 1], [], []>} : vector<2x32xf32>, vector<32x128xf32>, vector<2x128xf32> -> vector<2x128xf32>
    %42 = arith.addf %41, %6 : vector<2x128xf32>
    %43 = vector.broadcast %0 : vector<1x128xf32> to vector<2x128xf32>
    %44 = arith.addf %42, %43 : vector<2x128xf32>
    %45 = arith.negf %44 : vector<2x128xf32>
    %46 = math.exp %45 : vector<2x128xf32>
    %cst_25 = arith.constant 1.000000e+00 : f32
    %47 = vector.broadcast %cst_25 : f32 to vector<2x128xf32>
    %48 = arith.addf %47, %46 : vector<2x128xf32>
    %49 = arith.divf %47, %48 : vector<2x128xf32>
    %50 = vector.extract_strided_slice %49 {offsets = [0, 0], sizes = [2, 32], strides = [1, 1]} : vector<2x128xf32> to vector<2x32xf32>
    %51 = vector.extract_strided_slice %49 {offsets = [0, 32], sizes = [2, 32], strides = [1, 1]} : vector<2x128xf32> to vector<2x32xf32>
    %52 = vector.extract_strided_slice %49 {offsets = [0, 64], sizes = [2, 32], strides = [1, 1]} : vector<2x128xf32> to vector<2x32xf32>
    %cst_26 = arith.constant 2.000000e+00 : f32
    %53 = vector.broadcast %cst_26 : f32 to vector<2x32xf32>
    %54 = arith.mulf %53, %52 : vector<2x32xf32>
    %cst_27 = arith.constant 1.000000e+00 : f32
    %55 = vector.broadcast %cst_27 : f32 to vector<2x32xf32>
    %56 = arith.subf %54, %55 : vector<2x32xf32>
    %57 = vector.extract_strided_slice %49 {offsets = [0, 96], sizes = [2, 32], strides = [1, 1]} : vector<2x128xf32> to vector<2x32xf32>
    %58 = arith.mulf %51, %2 : vector<2x32xf32>
    %59 = arith.mulf %50, %56 : vector<2x32xf32>
    %60 = arith.addf %58, %59 : vector<2x32xf32>
    %cst_28 = arith.constant 2.000000e+00 : f32
    %61 = vector.broadcast %cst_28 : f32 to vector<2x32xf32>
    %62 = arith.mulf %61, %60 : vector<2x32xf32>
    %63 = arith.negf %62 : vector<2x32xf32>
    %64 = math.exp %63 : vector<2x32xf32>
    %cst_29 = arith.constant 1.000000e+00 : f32
    %65 = vector.broadcast %cst_29 : f32 to vector<2x32xf32>
    %66 = arith.addf %65, %64 : vector<2x32xf32>
    %67 = arith.divf %65, %66 : vector<2x32xf32>
    %cst_30 = arith.constant 2.000000e+00 : f32
    %68 = vector.broadcast %cst_30 : f32 to vector<2x32xf32>
    %69 = arith.mulf %68, %67 : vector<2x32xf32>
    %cst_31 = arith.constant 1.000000e+00 : f32
    %70 = vector.broadcast %cst_31 : f32 to vector<2x32xf32>
    %71 = arith.subf %69, %70 : vector<2x32xf32>
    %72 = arith.mulf %57, %71 : vector<2x32xf32>
    %c0_32 = arith.constant 0 : index
    %c0_33 = arith.constant 0 : index
    %73 = vector.load %arg4[%c0_32, %c0_33] : memref<32x128xf32, #tpu.memory_space<vmem>>, vector<32x128xf32>
    %cst_34 = arith.constant dense<0.000000e+00> : vector<2x128xf32>
    %74 = tpu.matmul %72, %73, %cst_34 {dimension_numbers = #tpu.dot_dimension_numbers<[1], [0], [0], [1], [0, 0, 1, 1], [], []>} : vector<2x32xf32>, vector<32x128xf32>, vector<2x128xf32> -> vector<2x128xf32>
    %75 = arith.addf %74, %8 : vector<2x128xf32>
    %76 = vector.broadcast %1 : vector<1x128xf32> to vector<2x128xf32>
    %77 = arith.addf %75, %76 : vector<2x128xf32>
    %78 = arith.negf %77 : vector<2x128xf32>
    %79 = math.exp %78 : vector<2x128xf32>
    %cst_35 = arith.constant 1.000000e+00 : f32
    %80 = vector.broadcast %cst_35 : f32 to vector<2x128xf32>
    %81 = arith.addf %80, %79 : vector<2x128xf32>
    %82 = arith.divf %80, %81 : vector<2x128xf32>
    %83 = vector.extract_strided_slice %82 {offsets = [0, 0], sizes = [2, 32], strides = [1, 1]} : vector<2x128xf32> to vector<2x32xf32>
    %84 = vector.extract_strided_slice %82 {offsets = [0, 32], sizes = [2, 32], strides = [1, 1]} : vector<2x128xf32> to vector<2x32xf32>
    %85 = vector.extract_strided_slice %82 {offsets = [0, 64], sizes = [2, 32], strides = [1, 1]} : vector<2x128xf32> to vector<2x32xf32>
    %cst_36 = arith.constant 2.000000e+00 : f32
    %86 = vector.broadcast %cst_36 : f32 to vector<2x32xf32>
    %87 = arith.mulf %86, %85 : vector<2x32xf32>
    %cst_37 = arith.constant 1.000000e+00 : f32
    %88 = vector.broadcast %cst_37 : f32 to vector<2x32xf32>
    %89 = arith.subf %87, %88 : vector<2x32xf32>
    %90 = vector.extract_strided_slice %82 {offsets = [0, 96], sizes = [2, 32], strides = [1, 1]} : vector<2x128xf32> to vector<2x32xf32>
    %91 = arith.mulf %84, %2 : vector<2x32xf32>
    %92 = arith.mulf %83, %89 : vector<2x32xf32>
    %93 = arith.addf %91, %92 : vector<2x32xf32>
    %cst_38 = arith.constant 2.000000e+00 : f32
    %94 = vector.broadcast %cst_38 : f32 to vector<2x32xf32>
    %95 = arith.mulf %94, %93 : vector<2x32xf32>
    %96 = arith.negf %95 : vector<2x32xf32>
    %97 = math.exp %96 : vector<2x32xf32>
    %cst_39 = arith.constant 1.000000e+00 : f32
    %98 = vector.broadcast %cst_39 : f32 to vector<2x32xf32>
    %99 = arith.addf %98, %97 : vector<2x32xf32>
    %100 = arith.divf %98, %99 : vector<2x32xf32>
    %cst_40 = arith.constant 2.000000e+00 : f32
    %101 = vector.broadcast %cst_40 : f32 to vector<2x32xf32>
    %102 = arith.mulf %101, %100 : vector<2x32xf32>
    %cst_41 = arith.constant 1.000000e+00 : f32
    %103 = vector.broadcast %cst_41 : f32 to vector<2x32xf32>
    %104 = arith.subf %102, %103 : vector<2x32xf32>
    %105 = arith.mulf %90, %104 : vector<2x32xf32>
    %c0_42 = arith.constant 0 : index
    %c0_43 = arith.constant 0 : index
    %106 = vector.load %arg1[%c0_42, %c0_43] : memref<32x128xf32, #tpu.memory_space<vmem>>, vector<32x128xf32>
    %cst_44 = arith.constant dense<0.000000e+00> : vector<2x128xf32>
    %107 = tpu.matmul %39, %106, %cst_44 {dimension_numbers = #tpu.dot_dimension_numbers<[1], [0], [0], [1], [0, 0, 1, 1], [], []>} : vector<2x32xf32>, vector<32x128xf32>, vector<2x128xf32> -> vector<2x128xf32>
    %c0_45 = arith.constant 0 : index
    %c0_46 = arith.constant 0 : index
    %108 = vector.load %arg3[%c0_45, %c0_46] : memref<32x128xf32, #tpu.memory_space<vmem>>, vector<32x128xf32>
    %cst_47 = arith.constant dense<0.000000e+00> : vector<2x128xf32>
    %109 = tpu.matmul %72, %108, %cst_47 {dimension_numbers = #tpu.dot_dimension_numbers<[1], [0], [0], [1], [0, 0, 1, 1], [], []>} : vector<2x32xf32>, vector<32x128xf32>, vector<2x128xf32> -> vector<2x128xf32>
    %c0_48 = arith.constant 0 : index
    %c0_49 = arith.constant 0 : index
    %110 = vector.load %arg5[%c0_48, %c0_49] : memref<32x128xf32, #tpu.memory_space<vmem>>, vector<32x128xf32>
    %cst_50 = arith.constant dense<0.000000e+00> : vector<2x128xf32>
    %111 = tpu.matmul %105, %110, %cst_50 {dimension_numbers = #tpu.dot_dimension_numbers<[1], [0], [0], [1], [0, 0, 1, 1], [], []>} : vector<2x32xf32>, vector<32x128xf32>, vector<2x128xf32> -> vector<2x128xf32>
    %c1 = arith.constant 1 : index
    %c0_51 = arith.constant 0 : index
    %c0_52 = arith.constant 0 : index
    %112 = vector.load %arg0[%c1, %c0_51, %c0_52] : memref<8x2x128xf32, #tpu.memory_space<vmem>>, vector<1x2x128xf32>
    %113 = vector.shape_cast %112 : vector<1x2x128xf32> to vector<2x128xf32>
    %114 = arith.addf %113, %107 : vector<2x128xf32>
    %115 = arith.negf %114 : vector<2x128xf32>
    %116 = math.exp %115 : vector<2x128xf32>
    %cst_53 = arith.constant 1.000000e+00 : f32
    %117 = vector.broadcast %cst_53 : f32 to vector<2x128xf32>
    %118 = arith.addf %117, %116 : vector<2x128xf32>
    %119 = arith.divf %117, %118 : vector<2x128xf32>
    %120 = vector.extract_strided_slice %119 {offsets = [0, 0], sizes = [2, 32], strides = [1, 1]} : vector<2x128xf32> to vector<2x32xf32>
    %121 = vector.extract_strided_slice %119 {offsets = [0, 32], sizes = [2, 32], strides = [1, 1]} : vector<2x128xf32> to vector<2x32xf32>
    %122 = vector.extract_strided_slice %119 {offsets = [0, 64], sizes = [2, 32], strides = [1, 1]} : vector<2x128xf32> to vector<2x32xf32>
    %cst_54 = arith.constant 2.000000e+00 : f32
    %123 = vector.broadcast %cst_54 : f32 to vector<2x32xf32>
    %124 = arith.mulf %123, %122 : vector<2x32xf32>
    %cst_55 = arith.constant 1.000000e+00 : f32
    %125 = vector.broadcast %cst_55 : f32 to vector<2x32xf32>
    %126 = arith.subf %124, %125 : vector<2x32xf32>
    %127 = vector.extract_strided_slice %119 {offsets = [0, 96], sizes = [2, 32], strides = [1, 1]} : vector<2x128xf32> to vector<2x32xf32>
    %128 = arith.mulf %121, %27 : vector<2x32xf32>
    %129 = arith.mulf %120, %126 : vector<2x32xf32>
    %130 = arith.addf %128, %129 : vector<2x32xf32>
    %cst_56 = arith.constant 2.000000e+00 : f32
    %131 = vector.broadcast %cst_56 : f32 to vector<2x32xf32>
    %132 = arith.mulf %131, %130 : vector<2x32xf32>
    %133 = arith.negf %132 : vector<2x32xf32>
    %134 = math.exp %133 : vector<2x32xf32>
    %cst_57 = arith.constant 1.000000e+00 : f32
    %135 = vector.broadcast %cst_57 : f32 to vector<2x32xf32>
    %136 = arith.addf %135, %134 : vector<2x32xf32>
    %137 = arith.divf %135, %136 : vector<2x32xf32>
    %cst_58 = arith.constant 2.000000e+00 : f32
    %138 = vector.broadcast %cst_58 : f32 to vector<2x32xf32>
    %139 = arith.mulf %138, %137 : vector<2x32xf32>
    %cst_59 = arith.constant 1.000000e+00 : f32
    %140 = vector.broadcast %cst_59 : f32 to vector<2x32xf32>
    %141 = arith.subf %139, %140 : vector<2x32xf32>
    %142 = arith.mulf %127, %141 : vector<2x32xf32>
    %c0_60 = arith.constant 0 : index
    %c0_61 = arith.constant 0 : index
    %143 = vector.load %arg2[%c0_60, %c0_61] : memref<32x128xf32, #tpu.memory_space<vmem>>, vector<32x128xf32>
    %cst_62 = arith.constant dense<0.000000e+00> : vector<2x128xf32>
    %144 = tpu.matmul %142, %143, %cst_62 {dimension_numbers = #tpu.dot_dimension_numbers<[1], [0], [0], [1], [0, 0, 1, 1], [], []>} : vector<2x32xf32>, vector<32x128xf32>, vector<2x128xf32> -> vector<2x128xf32>
    %145 = arith.addf %144, %109 : vector<2x128xf32>
    %146 = vector.broadcast %0 : vector<1x128xf32> to vector<2x128xf32>
    %147 = arith.addf %145, %146 : vector<2x128xf32>
    %148 = arith.negf %147 : vector<2x128xf32>
    %149 = math.exp %148 : vector<2x128xf32>
    %cst_63 = arith.constant 1.000000e+00 : f32
    %150 = vector.broadcast %cst_63 : f32 to vector<2x128xf32>
    %151 = arith.addf %150, %149 : vector<2x128xf32>
    %152 = arith.divf %150, %151 : vector<2x128xf32>
    %153 = vector.extract_strided_slice %152 {offsets = [0, 0], sizes = [2, 32], strides = [1, 1]} : vector<2x128xf32> to vector<2x32xf32>
    %154 = vector.extract_strided_slice %152 {offsets = [0, 32], sizes = [2, 32], strides = [1, 1]} : vector<2x128xf32> to vector<2x32xf32>
    %155 = vector.extract_strided_slice %152 {offsets = [0, 64], sizes = [2, 32], strides = [1, 1]} : vector<2x128xf32> to vector<2x32xf32>
    %cst_64 = arith.constant 2.000000e+00 : f32
    %156 = vector.broadcast %cst_64 : f32 to vector<2x32xf32>
    %157 = arith.mulf %156, %155 : vector<2x32xf32>
    %cst_65 = arith.constant 1.000000e+00 : f32
    %158 = vector.broadcast %cst_65 : f32 to vector<2x32xf32>
    %159 = arith.subf %157, %158 : vector<2x32xf32>
    %160 = vector.extract_strided_slice %152 {offsets = [0, 96], sizes = [2, 32], strides = [1, 1]} : vector<2x128xf32> to vector<2x32xf32>
    %161 = arith.mulf %154, %60 : vector<2x32xf32>
    %162 = arith.mulf %153, %159 : vector<2x32xf32>
    %163 = arith.addf %161, %162 : vector<2x32xf32>
    %cst_66 = arith.constant 2.000000e+00 : f32
    %164 = vector.broadcast %cst_66 : f32 to vector<2x32xf32>
    %165 = arith.mulf %164, %163 : vector<2x32xf32>
    %166 = arith.negf %165 : vector<2x32xf32>
    %167 = math.exp %166 : vector<2x32xf32>
    %cst_67 = arith.constant 1.000000e+00 : f32
    %168 = vector.broadcast %cst_67 : f32 to vector<2x32xf32>
    %169 = arith.addf %168, %167 : vector<2x32xf32>
    %170 = arith.divf %168, %169 : vector<2x32xf32>
    %cst_68 = arith.constant 2.000000e+00 : f32
    %171 = vector.broadcast %cst_68 : f32 to vector<2x32xf32>
    %172 = arith.mulf %171, %170 : vector<2x32xf32>
    %cst_69 = arith.constant 1.000000e+00 : f32
    %173 = vector.broadcast %cst_69 : f32 to vector<2x32xf32>
    %174 = arith.subf %172, %173 : vector<2x32xf32>
    %175 = arith.mulf %160, %174 : vector<2x32xf32>
    %c0_70 = arith.constant 0 : index
    %c0_71 = arith.constant 0 : index
    %176 = vector.load %arg4[%c0_70, %c0_71] : memref<32x128xf32, #tpu.memory_space<vmem>>, vector<32x128xf32>
    %cst_72 = arith.constant dense<0.000000e+00> : vector<2x128xf32>
    %177 = tpu.matmul %175, %176, %cst_72 {dimension_numbers = #tpu.dot_dimension_numbers<[1], [0], [0], [1], [0, 0, 1, 1], [], []>} : vector<2x32xf32>, vector<32x128xf32>, vector<2x128xf32> -> vector<2x128xf32>
    %178 = arith.addf %177, %111 : vector<2x128xf32>
    %179 = vector.broadcast %1 : vector<1x128xf32> to vector<2x128xf32>
    %180 = arith.addf %178, %179 : vector<2x128xf32>
    %181 = arith.negf %180 : vector<2x128xf32>
    %182 = math.exp %181 : vector<2x128xf32>
    %cst_73 = arith.constant 1.000000e+00 : f32
    %183 = vector.broadcast %cst_73 : f32 to vector<2x128xf32>
    %184 = arith.addf %183, %182 : vector<2x128xf32>
    %185 = arith.divf %183, %184 : vector<2x128xf32>
    %186 = vector.extract_strided_slice %185 {offsets = [0, 0], sizes = [2, 32], strides = [1, 1]} : vector<2x128xf32> to vector<2x32xf32>
    %187 = vector.extract_strided_slice %185 {offsets = [0, 32], sizes = [2, 32], strides = [1, 1]} : vector<2x128xf32> to vector<2x32xf32>
    %188 = vector.extract_strided_slice %185 {offsets = [0, 64], sizes = [2, 32], strides = [1, 1]} : vector<2x128xf32> to vector<2x32xf32>
    %cst_74 = arith.constant 2.000000e+00 : f32
    %189 = vector.broadcast %cst_74 : f32 to vector<2x32xf32>
    %190 = arith.mulf %189, %188 : vector<2x32xf32>
    %cst_75 = arith.constant 1.000000e+00 : f32
    %191 = vector.broadcast %cst_75 : f32 to vector<2x32xf32>
    %192 = arith.subf %190, %191 : vector<2x32xf32>
    %193 = vector.extract_strided_slice %185 {offsets = [0, 96], sizes = [2, 32], strides = [1, 1]} : vector<2x128xf32> to vector<2x32xf32>
    %194 = arith.mulf %187, %93 : vector<2x32xf32>
    %195 = arith.mulf %186, %192 : vector<2x32xf32>
    %196 = arith.addf %194, %195 : vector<2x32xf32>
    %cst_76 = arith.constant 2.000000e+00 : f32
    %197 = vector.broadcast %cst_76 : f32 to vector<2x32xf32>
    %198 = arith.mulf %197, %196 : vector<2x32xf32>
    %199 = arith.negf %198 : vector<2x32xf32>
    %200 = math.exp %199 : vector<2x32xf32>
    %cst_77 = arith.constant 1.000000e+00 : f32
    %201 = vector.broadcast %cst_77 : f32 to vector<2x32xf32>
    %202 = arith.addf %201, %200 : vector<2x32xf32>
    %203 = arith.divf %201, %202 : vector<2x32xf32>
    %cst_78 = arith.constant 2.000000e+00 : f32
    %204 = vector.broadcast %cst_78 : f32 to vector<2x32xf32>
    %205 = arith.mulf %204, %203 : vector<2x32xf32>
    %cst_79 = arith.constant 1.000000e+00 : f32
    %206 = vector.broadcast %cst_79 : f32 to vector<2x32xf32>
    %207 = arith.subf %205, %206 : vector<2x32xf32>
    %208 = arith.mulf %193, %207 : vector<2x32xf32>
    %c0_80 = arith.constant 0 : index
    %c0_81 = arith.constant 0 : index
    %209 = vector.load %arg1[%c0_80, %c0_81] : memref<32x128xf32, #tpu.memory_space<vmem>>, vector<32x128xf32>
    %cst_82 = arith.constant dense<0.000000e+00> : vector<2x128xf32>
    %210 = tpu.matmul %142, %209, %cst_82 {dimension_numbers = #tpu.dot_dimension_numbers<[1], [0], [0], [1], [0, 0, 1, 1], [], []>} : vector<2x32xf32>, vector<32x128xf32>, vector<2x128xf32> -> vector<2x128xf32>
    %c0_83 = arith.constant 0 : index
    %c0_84 = arith.constant 0 : index
    %211 = vector.load %arg3[%c0_83, %c0_84] : memref<32x128xf32, #tpu.memory_space<vmem>>, vector<32x128xf32>
    %cst_85 = arith.constant dense<0.000000e+00> : vector<2x128xf32>
    %212 = tpu.matmul %175, %211, %cst_85 {dimension_numbers = #tpu.dot_dimension_numbers<[1], [0], [0], [1], [0, 0, 1, 1], [], []>} : vector<2x32xf32>, vector<32x128xf32>, vector<2x128xf32> -> vector<2x128xf32>
    %c0_86 = arith.constant 0 : index
    %c0_87 = arith.constant 0 : index
    %213 = vector.load %arg5[%c0_86, %c0_87] : memref<32x128xf32, #tpu.memory_space<vmem>>, vector<32x128xf32>
    %cst_88 = arith.constant dense<0.000000e+00> : vector<2x128xf32>
    %214 = tpu.matmul %208, %213, %cst_88 {dimension_numbers = #tpu.dot_dimension_numbers<[1], [0], [0], [1], [0, 0, 1, 1], [], []>} : vector<2x32xf32>, vector<32x128xf32>, vector<2x128xf32> -> vector<2x128xf32>
    %c2 = arith.constant 2 : index
    %c0_89 = arith.constant 0 : index
    %c0_90 = arith.constant 0 : index
    %215 = vector.load %arg0[%c2, %c0_89, %c0_90] : memref<8x2x128xf32, #tpu.memory_space<vmem>>, vector<1x2x128xf32>
    %216 = vector.shape_cast %215 : vector<1x2x128xf32> to vector<2x128xf32>
    %217 = arith.addf %216, %210 : vector<2x128xf32>
    %218 = arith.negf %217 : vector<2x128xf32>
    %219 = math.exp %218 : vector<2x128xf32>
    %cst_91 = arith.constant 1.000000e+00 : f32
    %220 = vector.broadcast %cst_91 : f32 to vector<2x128xf32>
    %221 = arith.addf %220, %219 : vector<2x128xf32>
    %222 = arith.divf %220, %221 : vector<2x128xf32>
    %223 = vector.extract_strided_slice %222 {offsets = [0, 0], sizes = [2, 32], strides = [1, 1]} : vector<2x128xf32> to vector<2x32xf32>
    %224 = vector.extract_strided_slice %222 {offsets = [0, 32], sizes = [2, 32], strides = [1, 1]} : vector<2x128xf32> to vector<2x32xf32>
    %225 = vector.extract_strided_slice %222 {offsets = [0, 64], sizes = [2, 32], strides = [1, 1]} : vector<2x128xf32> to vector<2x32xf32>
    %cst_92 = arith.constant 2.000000e+00 : f32
    %226 = vector.broadcast %cst_92 : f32 to vector<2x32xf32>
    %227 = arith.mulf %226, %225 : vector<2x32xf32>
    %cst_93 = arith.constant 1.000000e+00 : f32
    %228 = vector.broadcast %cst_93 : f32 to vector<2x32xf32>
    %229 = arith.subf %227, %228 : vector<2x32xf32>
    %230 = vector.extract_strided_slice %222 {offsets = [0, 96], sizes = [2, 32], strides = [1, 1]} : vector<2x128xf32> to vector<2x32xf32>
    %231 = arith.mulf %224, %130 : vector<2x32xf32>
    %232 = arith.mulf %223, %229 : vector<2x32xf32>
    %233 = arith.addf %231, %232 : vector<2x32xf32>
    %cst_94 = arith.constant 2.000000e+00 : f32
    %234 = vector.broadcast %cst_94 : f32 to vector<2x32xf32>
    %235 = arith.mulf %234, %233 : vector<2x32xf32>
    %236 = arith.negf %235 : vector<2x32xf32>
    %237 = math.exp %236 : vector<2x32xf32>
    %cst_95 = arith.constant 1.000000e+00 : f32
    %238 = vector.broadcast %cst_95 : f32 to vector<2x32xf32>
    %239 = arith.addf %238, %237 : vector<2x32xf32>
    %240 = arith.divf %238, %239 : vector<2x32xf32>
    %cst_96 = arith.constant 2.000000e+00 : f32
    %241 = vector.broadcast %cst_96 : f32 to vector<2x32xf32>
    %242 = arith.mulf %241, %240 : vector<2x32xf32>
    %cst_97 = arith.constant 1.000000e+00 : f32
    %243 = vector.broadcast %cst_97 : f32 to vector<2x32xf32>
    %244 = arith.subf %242, %243 : vector<2x32xf32>
    %245 = arith.mulf %230, %244 : vector<2x32xf32>
    %c0_98 = arith.constant 0 : index
    %c0_99 = arith.constant 0 : index
    %246 = vector.load %arg2[%c0_98, %c0_99] : memref<32x128xf32, #tpu.memory_space<vmem>>, vector<32x128xf32>
    %cst_100 = arith.constant dense<0.000000e+00> : vector<2x128xf32>
    %247 = tpu.matmul %245, %246, %cst_100 {dimension_numbers = #tpu.dot_dimension_numbers<[1], [0], [0], [1], [0, 0, 1, 1], [], []>} : vector<2x32xf32>, vector<32x128xf32>, vector<2x128xf32> -> vector<2x128xf32>
    %248 = arith.addf %247, %212 : vector<2x128xf32>
    %249 = vector.broadcast %0 : vector<1x128xf32> to vector<2x128xf32>
    %250 = arith.addf %248, %249 : vector<2x128xf32>
    %251 = arith.negf %250 : vector<2x128xf32>
    %252 = math.exp %251 : vector<2x128xf32>
    %cst_101 = arith.constant 1.000000e+00 : f32
    %253 = vector.broadcast %cst_101 : f32 to vector<2x128xf32>
    %254 = arith.addf %253, %252 : vector<2x128xf32>
    %255 = arith.divf %253, %254 : vector<2x128xf32>
    %256 = vector.extract_strided_slice %255 {offsets = [0, 0], sizes = [2, 32], strides = [1, 1]} : vector<2x128xf32> to vector<2x32xf32>
    %257 = vector.extract_strided_slice %255 {offsets = [0, 32], sizes = [2, 32], strides = [1, 1]} : vector<2x128xf32> to vector<2x32xf32>
    %258 = vector.extract_strided_slice %255 {offsets = [0, 64], sizes = [2, 32], strides = [1, 1]} : vector<2x128xf32> to vector<2x32xf32>
    %cst_102 = arith.constant 2.000000e+00 : f32
    %259 = vector.broadcast %cst_102 : f32 to vector<2x32xf32>
    %260 = arith.mulf %259, %258 : vector<2x32xf32>
    %cst_103 = arith.constant 1.000000e+00 : f32
    %261 = vector.broadcast %cst_103 : f32 to vector<2x32xf32>
    %262 = arith.subf %260, %261 : vector<2x32xf32>
    %263 = vector.extract_strided_slice %255 {offsets = [0, 96], sizes = [2, 32], strides = [1, 1]} : vector<2x128xf32> to vector<2x32xf32>
    %264 = arith.mulf %257, %163 : vector<2x32xf32>
    %265 = arith.mulf %256, %262 : vector<2x32xf32>
    %266 = arith.addf %264, %265 : vector<2x32xf32>
    %cst_104 = arith.constant 2.000000e+00 : f32
    %267 = vector.broadcast %cst_104 : f32 to vector<2x32xf32>
    %268 = arith.mulf %267, %266 : vector<2x32xf32>
    %269 = arith.negf %268 : vector<2x32xf32>
    %270 = math.exp %269 : vector<2x32xf32>
    %cst_105 = arith.constant 1.000000e+00 : f32
    %271 = vector.broadcast %cst_105 : f32 to vector<2x32xf32>
    %272 = arith.addf %271, %270 : vector<2x32xf32>
    %273 = arith.divf %271, %272 : vector<2x32xf32>
    %cst_106 = arith.constant 2.000000e+00 : f32
    %274 = vector.broadcast %cst_106 : f32 to vector<2x32xf32>
    %275 = arith.mulf %274, %273 : vector<2x32xf32>
    %cst_107 = arith.constant 1.000000e+00 : f32
    %276 = vector.broadcast %cst_107 : f32 to vector<2x32xf32>
    %277 = arith.subf %275, %276 : vector<2x32xf32>
    %278 = arith.mulf %263, %277 : vector<2x32xf32>
    %c0_108 = arith.constant 0 : index
    %c0_109 = arith.constant 0 : index
    %279 = vector.load %arg4[%c0_108, %c0_109] : memref<32x128xf32, #tpu.memory_space<vmem>>, vector<32x128xf32>
    %cst_110 = arith.constant dense<0.000000e+00> : vector<2x128xf32>
    %280 = tpu.matmul %278, %279, %cst_110 {dimension_numbers = #tpu.dot_dimension_numbers<[1], [0], [0], [1], [0, 0, 1, 1], [], []>} : vector<2x32xf32>, vector<32x128xf32>, vector<2x128xf32> -> vector<2x128xf32>
    %281 = arith.addf %280, %214 : vector<2x128xf32>
    %282 = vector.broadcast %1 : vector<1x128xf32> to vector<2x128xf32>
    %283 = arith.addf %281, %282 : vector<2x128xf32>
    %284 = arith.negf %283 : vector<2x128xf32>
    %285 = math.exp %284 : vector<2x128xf32>
    %cst_111 = arith.constant 1.000000e+00 : f32
    %286 = vector.broadcast %cst_111 : f32 to vector<2x128xf32>
    %287 = arith.addf %286, %285 : vector<2x128xf32>
    %288 = arith.divf %286, %287 : vector<2x128xf32>
    %289 = vector.extract_strided_slice %288 {offsets = [0, 0], sizes = [2, 32], strides = [1, 1]} : vector<2x128xf32> to vector<2x32xf32>
    %290 = vector.extract_strided_slice %288 {offsets = [0, 32], sizes = [2, 32], strides = [1, 1]} : vector<2x128xf32> to vector<2x32xf32>
    %291 = vector.extract_strided_slice %288 {offsets = [0, 64], sizes = [2, 32], strides = [1, 1]} : vector<2x128xf32> to vector<2x32xf32>
    %cst_112 = arith.constant 2.000000e+00 : f32
    %292 = vector.broadcast %cst_112 : f32 to vector<2x32xf32>
    %293 = arith.mulf %292, %291 : vector<2x32xf32>
    %cst_113 = arith.constant 1.000000e+00 : f32
    %294 = vector.broadcast %cst_113 : f32 to vector<2x32xf32>
    %295 = arith.subf %293, %294 : vector<2x32xf32>
    %296 = vector.extract_strided_slice %288 {offsets = [0, 96], sizes = [2, 32], strides = [1, 1]} : vector<2x128xf32> to vector<2x32xf32>
    %297 = arith.mulf %290, %196 : vector<2x32xf32>
    %298 = arith.mulf %289, %295 : vector<2x32xf32>
    %299 = arith.addf %297, %298 : vector<2x32xf32>
    %cst_114 = arith.constant 2.000000e+00 : f32
    %300 = vector.broadcast %cst_114 : f32 to vector<2x32xf32>
    %301 = arith.mulf %300, %299 : vector<2x32xf32>
    %302 = arith.negf %301 : vector<2x32xf32>
    %303 = math.exp %302 : vector<2x32xf32>
    %cst_115 = arith.constant 1.000000e+00 : f32
    %304 = vector.broadcast %cst_115 : f32 to vector<2x32xf32>
    %305 = arith.addf %304, %303 : vector<2x32xf32>
    %306 = arith.divf %304, %305 : vector<2x32xf32>
    %cst_116 = arith.constant 2.000000e+00 : f32
    %307 = vector.broadcast %cst_116 : f32 to vector<2x32xf32>
    %308 = arith.mulf %307, %306 : vector<2x32xf32>
    %cst_117 = arith.constant 1.000000e+00 : f32
    %309 = vector.broadcast %cst_117 : f32 to vector<2x32xf32>
    %310 = arith.subf %308, %309 : vector<2x32xf32>
    %311 = arith.mulf %296, %310 : vector<2x32xf32>
    %c0_118 = arith.constant 0 : index
    %c0_119 = arith.constant 0 : index
    %312 = vector.load %arg1[%c0_118, %c0_119] : memref<32x128xf32, #tpu.memory_space<vmem>>, vector<32x128xf32>
    %cst_120 = arith.constant dense<0.000000e+00> : vector<2x128xf32>
    %313 = tpu.matmul %245, %312, %cst_120 {dimension_numbers = #tpu.dot_dimension_numbers<[1], [0], [0], [1], [0, 0, 1, 1], [], []>} : vector<2x32xf32>, vector<32x128xf32>, vector<2x128xf32> -> vector<2x128xf32>
    %c0_121 = arith.constant 0 : index
    %c0_122 = arith.constant 0 : index
    %314 = vector.load %arg3[%c0_121, %c0_122] : memref<32x128xf32, #tpu.memory_space<vmem>>, vector<32x128xf32>
    %cst_123 = arith.constant dense<0.000000e+00> : vector<2x128xf32>
    %315 = tpu.matmul %278, %314, %cst_123 {dimension_numbers = #tpu.dot_dimension_numbers<[1], [0], [0], [1], [0, 0, 1, 1], [], []>} : vector<2x32xf32>, vector<32x128xf32>, vector<2x128xf32> -> vector<2x128xf32>
    %c0_124 = arith.constant 0 : index
    %c0_125 = arith.constant 0 : index
    %316 = vector.load %arg5[%c0_124, %c0_125] : memref<32x128xf32, #tpu.memory_space<vmem>>, vector<32x128xf32>
    %cst_126 = arith.constant dense<0.000000e+00> : vector<2x128xf32>
    %317 = tpu.matmul %311, %316, %cst_126 {dimension_numbers = #tpu.dot_dimension_numbers<[1], [0], [0], [1], [0, 0, 1, 1], [], []>} : vector<2x32xf32>, vector<32x128xf32>, vector<2x128xf32> -> vector<2x128xf32>
    %c3 = arith.constant 3 : index
    %c0_127 = arith.constant 0 : index
    %c0_128 = arith.constant 0 : index
    %318 = vector.load %arg0[%c3, %c0_127, %c0_128] : memref<8x2x128xf32, #tpu.memory_space<vmem>>, vector<1x2x128xf32>
    %319 = vector.shape_cast %318 : vector<1x2x128xf32> to vector<2x128xf32>
    %320 = arith.addf %319, %313 : vector<2x128xf32>
    %321 = arith.negf %320 : vector<2x128xf32>
    %322 = math.exp %321 : vector<2x128xf32>
    %cst_129 = arith.constant 1.000000e+00 : f32
    %323 = vector.broadcast %cst_129 : f32 to vector<2x128xf32>
    %324 = arith.addf %323, %322 : vector<2x128xf32>
    %325 = arith.divf %323, %324 : vector<2x128xf32>
    %326 = vector.extract_strided_slice %325 {offsets = [0, 0], sizes = [2, 32], strides = [1, 1]} : vector<2x128xf32> to vector<2x32xf32>
    %327 = vector.extract_strided_slice %325 {offsets = [0, 32], sizes = [2, 32], strides = [1, 1]} : vector<2x128xf32> to vector<2x32xf32>
    %328 = vector.extract_strided_slice %325 {offsets = [0, 64], sizes = [2, 32], strides = [1, 1]} : vector<2x128xf32> to vector<2x32xf32>
    %cst_130 = arith.constant 2.000000e+00 : f32
    %329 = vector.broadcast %cst_130 : f32 to vector<2x32xf32>
    %330 = arith.mulf %329, %328 : vector<2x32xf32>
    %cst_131 = arith.constant 1.000000e+00 : f32
    %331 = vector.broadcast %cst_131 : f32 to vector<2x32xf32>
    %332 = arith.subf %330, %331 : vector<2x32xf32>
    %333 = vector.extract_strided_slice %325 {offsets = [0, 96], sizes = [2, 32], strides = [1, 1]} : vector<2x128xf32> to vector<2x32xf32>
    %334 = arith.mulf %327, %233 : vector<2x32xf32>
    %335 = arith.mulf %326, %332 : vector<2x32xf32>
    %336 = arith.addf %334, %335 : vector<2x32xf32>
    %cst_132 = arith.constant 2.000000e+00 : f32
    %337 = vector.broadcast %cst_132 : f32 to vector<2x32xf32>
    %338 = arith.mulf %337, %336 : vector<2x32xf32>
    %339 = arith.negf %338 : vector<2x32xf32>
    %340 = math.exp %339 : vector<2x32xf32>
    %cst_133 = arith.constant 1.000000e+00 : f32
    %341 = vector.broadcast %cst_133 : f32 to vector<2x32xf32>
    %342 = arith.addf %341, %340 : vector<2x32xf32>
    %343 = arith.divf %341, %342 : vector<2x32xf32>
    %cst_134 = arith.constant 2.000000e+00 : f32
    %344 = vector.broadcast %cst_134 : f32 to vector<2x32xf32>
    %345 = arith.mulf %344, %343 : vector<2x32xf32>
    %cst_135 = arith.constant 1.000000e+00 : f32
    %346 = vector.broadcast %cst_135 : f32 to vector<2x32xf32>
    %347 = arith.subf %345, %346 : vector<2x32xf32>
    %348 = arith.mulf %333, %347 : vector<2x32xf32>
    %c0_136 = arith.constant 0 : index
    %c0_137 = arith.constant 0 : index
    %349 = vector.load %arg2[%c0_136, %c0_137] : memref<32x128xf32, #tpu.memory_space<vmem>>, vector<32x128xf32>
    %cst_138 = arith.constant dense<0.000000e+00> : vector<2x128xf32>
    %350 = tpu.matmul %348, %349, %cst_138 {dimension_numbers = #tpu.dot_dimension_numbers<[1], [0], [0], [1], [0, 0, 1, 1], [], []>} : vector<2x32xf32>, vector<32x128xf32>, vector<2x128xf32> -> vector<2x128xf32>
    %351 = arith.addf %350, %315 : vector<2x128xf32>
    %352 = vector.broadcast %0 : vector<1x128xf32> to vector<2x128xf32>
    %353 = arith.addf %351, %352 : vector<2x128xf32>
    %354 = arith.negf %353 : vector<2x128xf32>
    %355 = math.exp %354 : vector<2x128xf32>
    %cst_139 = arith.constant 1.000000e+00 : f32
    %356 = vector.broadcast %cst_139 : f32 to vector<2x128xf32>
    %357 = arith.addf %356, %355 : vector<2x128xf32>
    %358 = arith.divf %356, %357 : vector<2x128xf32>
    %359 = vector.extract_strided_slice %358 {offsets = [0, 0], sizes = [2, 32], strides = [1, 1]} : vector<2x128xf32> to vector<2x32xf32>
    %360 = vector.extract_strided_slice %358 {offsets = [0, 32], sizes = [2, 32], strides = [1, 1]} : vector<2x128xf32> to vector<2x32xf32>
    %361 = vector.extract_strided_slice %358 {offsets = [0, 64], sizes = [2, 32], strides = [1, 1]} : vector<2x128xf32> to vector<2x32xf32>
    %cst_140 = arith.constant 2.000000e+00 : f32
    %362 = vector.broadcast %cst_140 : f32 to vector<2x32xf32>
    %363 = arith.mulf %362, %361 : vector<2x32xf32>
    %cst_141 = arith.constant 1.000000e+00 : f32
    %364 = vector.broadcast %cst_141 : f32 to vector<2x32xf32>
    %365 = arith.subf %363, %364 : vector<2x32xf32>
    %366 = vector.extract_strided_slice %358 {offsets = [0, 96], sizes = [2, 32], strides = [1, 1]} : vector<2x128xf32> to vector<2x32xf32>
    %367 = arith.mulf %360, %266 : vector<2x32xf32>
    %368 = arith.mulf %359, %365 : vector<2x32xf32>
    %369 = arith.addf %367, %368 : vector<2x32xf32>
    %cst_142 = arith.constant 2.000000e+00 : f32
    %370 = vector.broadcast %cst_142 : f32 to vector<2x32xf32>
    %371 = arith.mulf %370, %369 : vector<2x32xf32>
    %372 = arith.negf %371 : vector<2x32xf32>
    %373 = math.exp %372 : vector<2x32xf32>
    %cst_143 = arith.constant 1.000000e+00 : f32
    %374 = vector.broadcast %cst_143 : f32 to vector<2x32xf32>
    %375 = arith.addf %374, %373 : vector<2x32xf32>
    %376 = arith.divf %374, %375 : vector<2x32xf32>
    %cst_144 = arith.constant 2.000000e+00 : f32
    %377 = vector.broadcast %cst_144 : f32 to vector<2x32xf32>
    %378 = arith.mulf %377, %376 : vector<2x32xf32>
    %cst_145 = arith.constant 1.000000e+00 : f32
    %379 = vector.broadcast %cst_145 : f32 to vector<2x32xf32>
    %380 = arith.subf %378, %379 : vector<2x32xf32>
    %381 = arith.mulf %366, %380 : vector<2x32xf32>
    %c0_146 = arith.constant 0 : index
    %c0_147 = arith.constant 0 : index
    %382 = vector.load %arg4[%c0_146, %c0_147] : memref<32x128xf32, #tpu.memory_space<vmem>>, vector<32x128xf32>
    %cst_148 = arith.constant dense<0.000000e+00> : vector<2x128xf32>
    %383 = tpu.matmul %381, %382, %cst_148 {dimension_numbers = #tpu.dot_dimension_numbers<[1], [0], [0], [1], [0, 0, 1, 1], [], []>} : vector<2x32xf32>, vector<32x128xf32>, vector<2x128xf32> -> vector<2x128xf32>
    %384 = arith.addf %383, %317 : vector<2x128xf32>
    %385 = vector.broadcast %1 : vector<1x128xf32> to vector<2x128xf32>
    %386 = arith.addf %384, %385 : vector<2x128xf32>
    %387 = arith.negf %386 : vector<2x128xf32>
    %388 = math.exp %387 : vector<2x128xf32>
    %cst_149 = arith.constant 1.000000e+00 : f32
    %389 = vector.broadcast %cst_149 : f32 to vector<2x128xf32>
    %390 = arith.addf %389, %388 : vector<2x128xf32>
    %391 = arith.divf %389, %390 : vector<2x128xf32>
    %392 = vector.extract_strided_slice %391 {offsets = [0, 0], sizes = [2, 32], strides = [1, 1]} : vector<2x128xf32> to vector<2x32xf32>
    %393 = vector.extract_strided_slice %391 {offsets = [0, 32], sizes = [2, 32], strides = [1, 1]} : vector<2x128xf32> to vector<2x32xf32>
    %394 = vector.extract_strided_slice %391 {offsets = [0, 64], sizes = [2, 32], strides = [1, 1]} : vector<2x128xf32> to vector<2x32xf32>
    %cst_150 = arith.constant 2.000000e+00 : f32
    %395 = vector.broadcast %cst_150 : f32 to vector<2x32xf32>
    %396 = arith.mulf %395, %394 : vector<2x32xf32>
    %cst_151 = arith.constant 1.000000e+00 : f32
    %397 = vector.broadcast %cst_151 : f32 to vector<2x32xf32>
    %398 = arith.subf %396, %397 : vector<2x32xf32>
    %399 = vector.extract_strided_slice %391 {offsets = [0, 96], sizes = [2, 32], strides = [1, 1]} : vector<2x128xf32> to vector<2x32xf32>
    %400 = arith.mulf %393, %299 : vector<2x32xf32>
    %401 = arith.mulf %392, %398 : vector<2x32xf32>
    %402 = arith.addf %400, %401 : vector<2x32xf32>
    %cst_152 = arith.constant 2.000000e+00 : f32
    %403 = vector.broadcast %cst_152 : f32 to vector<2x32xf32>
    %404 = arith.mulf %403, %402 : vector<2x32xf32>
    %405 = arith.negf %404 : vector<2x32xf32>
    %406 = math.exp %405 : vector<2x32xf32>
    %cst_153 = arith.constant 1.000000e+00 : f32
    %407 = vector.broadcast %cst_153 : f32 to vector<2x32xf32>
    %408 = arith.addf %407, %406 : vector<2x32xf32>
    %409 = arith.divf %407, %408 : vector<2x32xf32>
    %cst_154 = arith.constant 2.000000e+00 : f32
    %410 = vector.broadcast %cst_154 : f32 to vector<2x32xf32>
    %411 = arith.mulf %410, %409 : vector<2x32xf32>
    %cst_155 = arith.constant 1.000000e+00 : f32
    %412 = vector.broadcast %cst_155 : f32 to vector<2x32xf32>
    %413 = arith.subf %411, %412 : vector<2x32xf32>
    %414 = arith.mulf %399, %413 : vector<2x32xf32>
    %c0_156 = arith.constant 0 : index
    %c0_157 = arith.constant 0 : index
    %415 = vector.load %arg1[%c0_156, %c0_157] : memref<32x128xf32, #tpu.memory_space<vmem>>, vector<32x128xf32>
    %cst_158 = arith.constant dense<0.000000e+00> : vector<2x128xf32>
    %416 = tpu.matmul %348, %415, %cst_158 {dimension_numbers = #tpu.dot_dimension_numbers<[1], [0], [0], [1], [0, 0, 1, 1], [], []>} : vector<2x32xf32>, vector<32x128xf32>, vector<2x128xf32> -> vector<2x128xf32>
    %c0_159 = arith.constant 0 : index
    %c0_160 = arith.constant 0 : index
    %417 = vector.load %arg3[%c0_159, %c0_160] : memref<32x128xf32, #tpu.memory_space<vmem>>, vector<32x128xf32>
    %cst_161 = arith.constant dense<0.000000e+00> : vector<2x128xf32>
    %418 = tpu.matmul %381, %417, %cst_161 {dimension_numbers = #tpu.dot_dimension_numbers<[1], [0], [0], [1], [0, 0, 1, 1], [], []>} : vector<2x32xf32>, vector<32x128xf32>, vector<2x128xf32> -> vector<2x128xf32>
    %c0_162 = arith.constant 0 : index
    %c0_163 = arith.constant 0 : index
    %419 = vector.load %arg5[%c0_162, %c0_163] : memref<32x128xf32, #tpu.memory_space<vmem>>, vector<32x128xf32>
    %cst_164 = arith.constant dense<0.000000e+00> : vector<2x128xf32>
    %420 = tpu.matmul %414, %419, %cst_164 {dimension_numbers = #tpu.dot_dimension_numbers<[1], [0], [0], [1], [0, 0, 1, 1], [], []>} : vector<2x32xf32>, vector<32x128xf32>, vector<2x128xf32> -> vector<2x128xf32>
    %c4 = arith.constant 4 : index
    %c0_165 = arith.constant 0 : index
    %c0_166 = arith.constant 0 : index
    %421 = vector.load %arg0[%c4, %c0_165, %c0_166] : memref<8x2x128xf32, #tpu.memory_space<vmem>>, vector<1x2x128xf32>
    %422 = vector.shape_cast %421 : vector<1x2x128xf32> to vector<2x128xf32>
    %423 = arith.addf %422, %416 : vector<2x128xf32>
    %424 = arith.negf %423 : vector<2x128xf32>
    %425 = math.exp %424 : vector<2x128xf32>
    %cst_167 = arith.constant 1.000000e+00 : f32
    %426 = vector.broadcast %cst_167 : f32 to vector<2x128xf32>
    %427 = arith.addf %426, %425 : vector<2x128xf32>
    %428 = arith.divf %426, %427 : vector<2x128xf32>
    %429 = vector.extract_strided_slice %428 {offsets = [0, 0], sizes = [2, 32], strides = [1, 1]} : vector<2x128xf32> to vector<2x32xf32>
    %430 = vector.extract_strided_slice %428 {offsets = [0, 32], sizes = [2, 32], strides = [1, 1]} : vector<2x128xf32> to vector<2x32xf32>
    %431 = vector.extract_strided_slice %428 {offsets = [0, 64], sizes = [2, 32], strides = [1, 1]} : vector<2x128xf32> to vector<2x32xf32>
    %cst_168 = arith.constant 2.000000e+00 : f32
    %432 = vector.broadcast %cst_168 : f32 to vector<2x32xf32>
    %433 = arith.mulf %432, %431 : vector<2x32xf32>
    %cst_169 = arith.constant 1.000000e+00 : f32
    %434 = vector.broadcast %cst_169 : f32 to vector<2x32xf32>
    %435 = arith.subf %433, %434 : vector<2x32xf32>
    %436 = vector.extract_strided_slice %428 {offsets = [0, 96], sizes = [2, 32], strides = [1, 1]} : vector<2x128xf32> to vector<2x32xf32>
    %437 = arith.mulf %430, %336 : vector<2x32xf32>
    %438 = arith.mulf %429, %435 : vector<2x32xf32>
    %439 = arith.addf %437, %438 : vector<2x32xf32>
    %cst_170 = arith.constant 2.000000e+00 : f32
    %440 = vector.broadcast %cst_170 : f32 to vector<2x32xf32>
    %441 = arith.mulf %440, %439 : vector<2x32xf32>
    %442 = arith.negf %441 : vector<2x32xf32>
    %443 = math.exp %442 : vector<2x32xf32>
    %cst_171 = arith.constant 1.000000e+00 : f32
    %444 = vector.broadcast %cst_171 : f32 to vector<2x32xf32>
    %445 = arith.addf %444, %443 : vector<2x32xf32>
    %446 = arith.divf %444, %445 : vector<2x32xf32>
    %cst_172 = arith.constant 2.000000e+00 : f32
    %447 = vector.broadcast %cst_172 : f32 to vector<2x32xf32>
    %448 = arith.mulf %447, %446 : vector<2x32xf32>
    %cst_173 = arith.constant 1.000000e+00 : f32
    %449 = vector.broadcast %cst_173 : f32 to vector<2x32xf32>
    %450 = arith.subf %448, %449 : vector<2x32xf32>
    %451 = arith.mulf %436, %450 : vector<2x32xf32>
    %c0_174 = arith.constant 0 : index
    %c0_175 = arith.constant 0 : index
    %452 = vector.load %arg2[%c0_174, %c0_175] : memref<32x128xf32, #tpu.memory_space<vmem>>, vector<32x128xf32>
    %cst_176 = arith.constant dense<0.000000e+00> : vector<2x128xf32>
    %453 = tpu.matmul %451, %452, %cst_176 {dimension_numbers = #tpu.dot_dimension_numbers<[1], [0], [0], [1], [0, 0, 1, 1], [], []>} : vector<2x32xf32>, vector<32x128xf32>, vector<2x128xf32> -> vector<2x128xf32>
    %454 = arith.addf %453, %418 : vector<2x128xf32>
    %455 = vector.broadcast %0 : vector<1x128xf32> to vector<2x128xf32>
    %456 = arith.addf %454, %455 : vector<2x128xf32>
    %457 = arith.negf %456 : vector<2x128xf32>
    %458 = math.exp %457 : vector<2x128xf32>
    %cst_177 = arith.constant 1.000000e+00 : f32
    %459 = vector.broadcast %cst_177 : f32 to vector<2x128xf32>
    %460 = arith.addf %459, %458 : vector<2x128xf32>
    %461 = arith.divf %459, %460 : vector<2x128xf32>
    %462 = vector.extract_strided_slice %461 {offsets = [0, 0], sizes = [2, 32], strides = [1, 1]} : vector<2x128xf32> to vector<2x32xf32>
    %463 = vector.extract_strided_slice %461 {offsets = [0, 32], sizes = [2, 32], strides = [1, 1]} : vector<2x128xf32> to vector<2x32xf32>
    %464 = vector.extract_strided_slice %461 {offsets = [0, 64], sizes = [2, 32], strides = [1, 1]} : vector<2x128xf32> to vector<2x32xf32>
    %cst_178 = arith.constant 2.000000e+00 : f32
    %465 = vector.broadcast %cst_178 : f32 to vector<2x32xf32>
    %466 = arith.mulf %465, %464 : vector<2x32xf32>
    %cst_179 = arith.constant 1.000000e+00 : f32
    %467 = vector.broadcast %cst_179 : f32 to vector<2x32xf32>
    %468 = arith.subf %466, %467 : vector<2x32xf32>
    %469 = vector.extract_strided_slice %461 {offsets = [0, 96], sizes = [2, 32], strides = [1, 1]} : vector<2x128xf32> to vector<2x32xf32>
    %470 = arith.mulf %463, %369 : vector<2x32xf32>
    %471 = arith.mulf %462, %468 : vector<2x32xf32>
    %472 = arith.addf %470, %471 : vector<2x32xf32>
    %cst_180 = arith.constant 2.000000e+00 : f32
    %473 = vector.broadcast %cst_180 : f32 to vector<2x32xf32>
    %474 = arith.mulf %473, %472 : vector<2x32xf32>
    %475 = arith.negf %474 : vector<2x32xf32>
    %476 = math.exp %475 : vector<2x32xf32>
    %cst_181 = arith.constant 1.000000e+00 : f32
    %477 = vector.broadcast %cst_181 : f32 to vector<2x32xf32>
    %478 = arith.addf %477, %476 : vector<2x32xf32>
    %479 = arith.divf %477, %478 : vector<2x32xf32>
    %cst_182 = arith.constant 2.000000e+00 : f32
    %480 = vector.broadcast %cst_182 : f32 to vector<2x32xf32>
    %481 = arith.mulf %480, %479 : vector<2x32xf32>
    %cst_183 = arith.constant 1.000000e+00 : f32
    %482 = vector.broadcast %cst_183 : f32 to vector<2x32xf32>
    %483 = arith.subf %481, %482 : vector<2x32xf32>
    %484 = arith.mulf %469, %483 : vector<2x32xf32>
    %c0_184 = arith.constant 0 : index
    %c0_185 = arith.constant 0 : index
    %485 = vector.load %arg4[%c0_184, %c0_185] : memref<32x128xf32, #tpu.memory_space<vmem>>, vector<32x128xf32>
    %cst_186 = arith.constant dense<0.000000e+00> : vector<2x128xf32>
    %486 = tpu.matmul %484, %485, %cst_186 {dimension_numbers = #tpu.dot_dimension_numbers<[1], [0], [0], [1], [0, 0, 1, 1], [], []>} : vector<2x32xf32>, vector<32x128xf32>, vector<2x128xf32> -> vector<2x128xf32>
    %487 = arith.addf %486, %420 : vector<2x128xf32>
    %488 = vector.broadcast %1 : vector<1x128xf32> to vector<2x128xf32>
    %489 = arith.addf %487, %488 : vector<2x128xf32>
    %490 = arith.negf %489 : vector<2x128xf32>
    %491 = math.exp %490 : vector<2x128xf32>
    %cst_187 = arith.constant 1.000000e+00 : f32
    %492 = vector.broadcast %cst_187 : f32 to vector<2x128xf32>
    %493 = arith.addf %492, %491 : vector<2x128xf32>
    %494 = arith.divf %492, %493 : vector<2x128xf32>
    %495 = vector.extract_strided_slice %494 {offsets = [0, 0], sizes = [2, 32], strides = [1, 1]} : vector<2x128xf32> to vector<2x32xf32>
    %496 = vector.extract_strided_slice %494 {offsets = [0, 32], sizes = [2, 32], strides = [1, 1]} : vector<2x128xf32> to vector<2x32xf32>
    %497 = vector.extract_strided_slice %494 {offsets = [0, 64], sizes = [2, 32], strides = [1, 1]} : vector<2x128xf32> to vector<2x32xf32>
    %cst_188 = arith.constant 2.000000e+00 : f32
    %498 = vector.broadcast %cst_188 : f32 to vector<2x32xf32>
    %499 = arith.mulf %498, %497 : vector<2x32xf32>
    %cst_189 = arith.constant 1.000000e+00 : f32
    %500 = vector.broadcast %cst_189 : f32 to vector<2x32xf32>
    %501 = arith.subf %499, %500 : vector<2x32xf32>
    %502 = vector.extract_strided_slice %494 {offsets = [0, 96], sizes = [2, 32], strides = [1, 1]} : vector<2x128xf32> to vector<2x32xf32>
    %503 = arith.mulf %496, %402 : vector<2x32xf32>
    %504 = arith.mulf %495, %501 : vector<2x32xf32>
    %505 = arith.addf %503, %504 : vector<2x32xf32>
    %cst_190 = arith.constant 2.000000e+00 : f32
    %506 = vector.broadcast %cst_190 : f32 to vector<2x32xf32>
    %507 = arith.mulf %506, %505 : vector<2x32xf32>
    %508 = arith.negf %507 : vector<2x32xf32>
    %509 = math.exp %508 : vector<2x32xf32>
    %cst_191 = arith.constant 1.000000e+00 : f32
    %510 = vector.broadcast %cst_191 : f32 to vector<2x32xf32>
    %511 = arith.addf %510, %509 : vector<2x32xf32>
    %512 = arith.divf %510, %511 : vector<2x32xf32>
    %cst_192 = arith.constant 2.000000e+00 : f32
    %513 = vector.broadcast %cst_192 : f32 to vector<2x32xf32>
    %514 = arith.mulf %513, %512 : vector<2x32xf32>
    %cst_193 = arith.constant 1.000000e+00 : f32
    %515 = vector.broadcast %cst_193 : f32 to vector<2x32xf32>
    %516 = arith.subf %514, %515 : vector<2x32xf32>
    %517 = arith.mulf %502, %516 : vector<2x32xf32>
    %c0_194 = arith.constant 0 : index
    %c0_195 = arith.constant 0 : index
    %518 = vector.load %arg1[%c0_194, %c0_195] : memref<32x128xf32, #tpu.memory_space<vmem>>, vector<32x128xf32>
    %cst_196 = arith.constant dense<0.000000e+00> : vector<2x128xf32>
    %519 = tpu.matmul %451, %518, %cst_196 {dimension_numbers = #tpu.dot_dimension_numbers<[1], [0], [0], [1], [0, 0, 1, 1], [], []>} : vector<2x32xf32>, vector<32x128xf32>, vector<2x128xf32> -> vector<2x128xf32>
    %c0_197 = arith.constant 0 : index
    %c0_198 = arith.constant 0 : index
    %520 = vector.load %arg3[%c0_197, %c0_198] : memref<32x128xf32, #tpu.memory_space<vmem>>, vector<32x128xf32>
    %cst_199 = arith.constant dense<0.000000e+00> : vector<2x128xf32>
    %521 = tpu.matmul %484, %520, %cst_199 {dimension_numbers = #tpu.dot_dimension_numbers<[1], [0], [0], [1], [0, 0, 1, 1], [], []>} : vector<2x32xf32>, vector<32x128xf32>, vector<2x128xf32> -> vector<2x128xf32>
    %c0_200 = arith.constant 0 : index
    %c0_201 = arith.constant 0 : index
    %522 = vector.load %arg5[%c0_200, %c0_201] : memref<32x128xf32, #tpu.memory_space<vmem>>, vector<32x128xf32>
    %cst_202 = arith.constant dense<0.000000e+00> : vector<2x128xf32>
    %523 = tpu.matmul %517, %522, %cst_202 {dimension_numbers = #tpu.dot_dimension_numbers<[1], [0], [0], [1], [0, 0, 1, 1], [], []>} : vector<2x32xf32>, vector<32x128xf32>, vector<2x128xf32> -> vector<2x128xf32>
    %c5 = arith.constant 5 : index
    %c0_203 = arith.constant 0 : index
    %c0_204 = arith.constant 0 : index
    %524 = vector.load %arg0[%c5, %c0_203, %c0_204] : memref<8x2x128xf32, #tpu.memory_space<vmem>>, vector<1x2x128xf32>
    %525 = vector.shape_cast %524 : vector<1x2x128xf32> to vector<2x128xf32>
    %526 = arith.addf %525, %519 : vector<2x128xf32>
    %527 = arith.negf %526 : vector<2x128xf32>
    %528 = math.exp %527 : vector<2x128xf32>
    %cst_205 = arith.constant 1.000000e+00 : f32
    %529 = vector.broadcast %cst_205 : f32 to vector<2x128xf32>
    %530 = arith.addf %529, %528 : vector<2x128xf32>
    %531 = arith.divf %529, %530 : vector<2x128xf32>
    %532 = vector.extract_strided_slice %531 {offsets = [0, 0], sizes = [2, 32], strides = [1, 1]} : vector<2x128xf32> to vector<2x32xf32>
    %533 = vector.extract_strided_slice %531 {offsets = [0, 32], sizes = [2, 32], strides = [1, 1]} : vector<2x128xf32> to vector<2x32xf32>
    %534 = vector.extract_strided_slice %531 {offsets = [0, 64], sizes = [2, 32], strides = [1, 1]} : vector<2x128xf32> to vector<2x32xf32>
    %cst_206 = arith.constant 2.000000e+00 : f32
    %535 = vector.broadcast %cst_206 : f32 to vector<2x32xf32>
    %536 = arith.mulf %535, %534 : vector<2x32xf32>
    %cst_207 = arith.constant 1.000000e+00 : f32
    %537 = vector.broadcast %cst_207 : f32 to vector<2x32xf32>
    %538 = arith.subf %536, %537 : vector<2x32xf32>
    %539 = vector.extract_strided_slice %531 {offsets = [0, 96], sizes = [2, 32], strides = [1, 1]} : vector<2x128xf32> to vector<2x32xf32>
    %540 = arith.mulf %533, %439 : vector<2x32xf32>
    %541 = arith.mulf %532, %538 : vector<2x32xf32>
    %542 = arith.addf %540, %541 : vector<2x32xf32>
    %cst_208 = arith.constant 2.000000e+00 : f32
    %543 = vector.broadcast %cst_208 : f32 to vector<2x32xf32>
    %544 = arith.mulf %543, %542 : vector<2x32xf32>
    %545 = arith.negf %544 : vector<2x32xf32>
    %546 = math.exp %545 : vector<2x32xf32>
    %cst_209 = arith.constant 1.000000e+00 : f32
    %547 = vector.broadcast %cst_209 : f32 to vector<2x32xf32>
    %548 = arith.addf %547, %546 : vector<2x32xf32>
    %549 = arith.divf %547, %548 : vector<2x32xf32>
    %cst_210 = arith.constant 2.000000e+00 : f32
    %550 = vector.broadcast %cst_210 : f32 to vector<2x32xf32>
    %551 = arith.mulf %550, %549 : vector<2x32xf32>
    %cst_211 = arith.constant 1.000000e+00 : f32
    %552 = vector.broadcast %cst_211 : f32 to vector<2x32xf32>
    %553 = arith.subf %551, %552 : vector<2x32xf32>
    %554 = arith.mulf %539, %553 : vector<2x32xf32>
    %c0_212 = arith.constant 0 : index
    %c0_213 = arith.constant 0 : index
    %555 = vector.load %arg2[%c0_212, %c0_213] : memref<32x128xf32, #tpu.memory_space<vmem>>, vector<32x128xf32>
    %cst_214 = arith.constant dense<0.000000e+00> : vector<2x128xf32>
    %556 = tpu.matmul %554, %555, %cst_214 {dimension_numbers = #tpu.dot_dimension_numbers<[1], [0], [0], [1], [0, 0, 1, 1], [], []>} : vector<2x32xf32>, vector<32x128xf32>, vector<2x128xf32> -> vector<2x128xf32>
    %557 = arith.addf %556, %521 : vector<2x128xf32>
    %558 = vector.broadcast %0 : vector<1x128xf32> to vector<2x128xf32>
    %559 = arith.addf %557, %558 : vector<2x128xf32>
    %560 = arith.negf %559 : vector<2x128xf32>
    %561 = math.exp %560 : vector<2x128xf32>
    %cst_215 = arith.constant 1.000000e+00 : f32
    %562 = vector.broadcast %cst_215 : f32 to vector<2x128xf32>
    %563 = arith.addf %562, %561 : vector<2x128xf32>
    %564 = arith.divf %562, %563 : vector<2x128xf32>
    %565 = vector.extract_strided_slice %564 {offsets = [0, 0], sizes = [2, 32], strides = [1, 1]} : vector<2x128xf32> to vector<2x32xf32>
    %566 = vector.extract_strided_slice %564 {offsets = [0, 32], sizes = [2, 32], strides = [1, 1]} : vector<2x128xf32> to vector<2x32xf32>
    %567 = vector.extract_strided_slice %564 {offsets = [0, 64], sizes = [2, 32], strides = [1, 1]} : vector<2x128xf32> to vector<2x32xf32>
    %cst_216 = arith.constant 2.000000e+00 : f32
    %568 = vector.broadcast %cst_216 : f32 to vector<2x32xf32>
    %569 = arith.mulf %568, %567 : vector<2x32xf32>
    %cst_217 = arith.constant 1.000000e+00 : f32
    %570 = vector.broadcast %cst_217 : f32 to vector<2x32xf32>
    %571 = arith.subf %569, %570 : vector<2x32xf32>
    %572 = vector.extract_strided_slice %564 {offsets = [0, 96], sizes = [2, 32], strides = [1, 1]} : vector<2x128xf32> to vector<2x32xf32>
    %573 = arith.mulf %566, %472 : vector<2x32xf32>
    %574 = arith.mulf %565, %571 : vector<2x32xf32>
    %575 = arith.addf %573, %574 : vector<2x32xf32>
    %cst_218 = arith.constant 2.000000e+00 : f32
    %576 = vector.broadcast %cst_218 : f32 to vector<2x32xf32>
    %577 = arith.mulf %576, %575 : vector<2x32xf32>
    %578 = arith.negf %577 : vector<2x32xf32>
    %579 = math.exp %578 : vector<2x32xf32>
    %cst_219 = arith.constant 1.000000e+00 : f32
    %580 = vector.broadcast %cst_219 : f32 to vector<2x32xf32>
    %581 = arith.addf %580, %579 : vector<2x32xf32>
    %582 = arith.divf %580, %581 : vector<2x32xf32>
    %cst_220 = arith.constant 2.000000e+00 : f32
    %583 = vector.broadcast %cst_220 : f32 to vector<2x32xf32>
    %584 = arith.mulf %583, %582 : vector<2x32xf32>
    %cst_221 = arith.constant 1.000000e+00 : f32
    %585 = vector.broadcast %cst_221 : f32 to vector<2x32xf32>
    %586 = arith.subf %584, %585 : vector<2x32xf32>
    %587 = arith.mulf %572, %586 : vector<2x32xf32>
    %c0_222 = arith.constant 0 : index
    %c0_223 = arith.constant 0 : index
    %588 = vector.load %arg4[%c0_222, %c0_223] : memref<32x128xf32, #tpu.memory_space<vmem>>, vector<32x128xf32>
    %cst_224 = arith.constant dense<0.000000e+00> : vector<2x128xf32>
    %589 = tpu.matmul %587, %588, %cst_224 {dimension_numbers = #tpu.dot_dimension_numbers<[1], [0], [0], [1], [0, 0, 1, 1], [], []>} : vector<2x32xf32>, vector<32x128xf32>, vector<2x128xf32> -> vector<2x128xf32>
    %590 = arith.addf %589, %523 : vector<2x128xf32>
    %591 = vector.broadcast %1 : vector<1x128xf32> to vector<2x128xf32>
    %592 = arith.addf %590, %591 : vector<2x128xf32>
    %593 = arith.negf %592 : vector<2x128xf32>
    %594 = math.exp %593 : vector<2x128xf32>
    %cst_225 = arith.constant 1.000000e+00 : f32
    %595 = vector.broadcast %cst_225 : f32 to vector<2x128xf32>
    %596 = arith.addf %595, %594 : vector<2x128xf32>
    %597 = arith.divf %595, %596 : vector<2x128xf32>
    %598 = vector.extract_strided_slice %597 {offsets = [0, 0], sizes = [2, 32], strides = [1, 1]} : vector<2x128xf32> to vector<2x32xf32>
    %599 = vector.extract_strided_slice %597 {offsets = [0, 32], sizes = [2, 32], strides = [1, 1]} : vector<2x128xf32> to vector<2x32xf32>
    %600 = vector.extract_strided_slice %597 {offsets = [0, 64], sizes = [2, 32], strides = [1, 1]} : vector<2x128xf32> to vector<2x32xf32>
    %cst_226 = arith.constant 2.000000e+00 : f32
    %601 = vector.broadcast %cst_226 : f32 to vector<2x32xf32>
    %602 = arith.mulf %601, %600 : vector<2x32xf32>
    %cst_227 = arith.constant 1.000000e+00 : f32
    %603 = vector.broadcast %cst_227 : f32 to vector<2x32xf32>
    %604 = arith.subf %602, %603 : vector<2x32xf32>
    %605 = vector.extract_strided_slice %597 {offsets = [0, 96], sizes = [2, 32], strides = [1, 1]} : vector<2x128xf32> to vector<2x32xf32>
    %606 = arith.mulf %599, %505 : vector<2x32xf32>
    %607 = arith.mulf %598, %604 : vector<2x32xf32>
    %608 = arith.addf %606, %607 : vector<2x32xf32>
    %cst_228 = arith.constant 2.000000e+00 : f32
    %609 = vector.broadcast %cst_228 : f32 to vector<2x32xf32>
    %610 = arith.mulf %609, %608 : vector<2x32xf32>
    %611 = arith.negf %610 : vector<2x32xf32>
    %612 = math.exp %611 : vector<2x32xf32>
    %cst_229 = arith.constant 1.000000e+00 : f32
    %613 = vector.broadcast %cst_229 : f32 to vector<2x32xf32>
    %614 = arith.addf %613, %612 : vector<2x32xf32>
    %615 = arith.divf %613, %614 : vector<2x32xf32>
    %cst_230 = arith.constant 2.000000e+00 : f32
    %616 = vector.broadcast %cst_230 : f32 to vector<2x32xf32>
    %617 = arith.mulf %616, %615 : vector<2x32xf32>
    %cst_231 = arith.constant 1.000000e+00 : f32
    %618 = vector.broadcast %cst_231 : f32 to vector<2x32xf32>
    %619 = arith.subf %617, %618 : vector<2x32xf32>
    %620 = arith.mulf %605, %619 : vector<2x32xf32>
    %c0_232 = arith.constant 0 : index
    %c0_233 = arith.constant 0 : index
    %621 = vector.load %arg1[%c0_232, %c0_233] : memref<32x128xf32, #tpu.memory_space<vmem>>, vector<32x128xf32>
    %cst_234 = arith.constant dense<0.000000e+00> : vector<2x128xf32>
    %622 = tpu.matmul %554, %621, %cst_234 {dimension_numbers = #tpu.dot_dimension_numbers<[1], [0], [0], [1], [0, 0, 1, 1], [], []>} : vector<2x32xf32>, vector<32x128xf32>, vector<2x128xf32> -> vector<2x128xf32>
    %c0_235 = arith.constant 0 : index
    %c0_236 = arith.constant 0 : index
    %623 = vector.load %arg3[%c0_235, %c0_236] : memref<32x128xf32, #tpu.memory_space<vmem>>, vector<32x128xf32>
    %cst_237 = arith.constant dense<0.000000e+00> : vector<2x128xf32>
    %624 = tpu.matmul %587, %623, %cst_237 {dimension_numbers = #tpu.dot_dimension_numbers<[1], [0], [0], [1], [0, 0, 1, 1], [], []>} : vector<2x32xf32>, vector<32x128xf32>, vector<2x128xf32> -> vector<2x128xf32>
    %c0_238 = arith.constant 0 : index
    %c0_239 = arith.constant 0 : index
    %625 = vector.load %arg5[%c0_238, %c0_239] : memref<32x128xf32, #tpu.memory_space<vmem>>, vector<32x128xf32>
    %cst_240 = arith.constant dense<0.000000e+00> : vector<2x128xf32>
    %626 = tpu.matmul %620, %625, %cst_240 {dimension_numbers = #tpu.dot_dimension_numbers<[1], [0], [0], [1], [0, 0, 1, 1], [], []>} : vector<2x32xf32>, vector<32x128xf32>, vector<2x128xf32> -> vector<2x128xf32>
    %c6 = arith.constant 6 : index
    %c0_241 = arith.constant 0 : index
    %c0_242 = arith.constant 0 : index
    %627 = vector.load %arg0[%c6, %c0_241, %c0_242] : memref<8x2x128xf32, #tpu.memory_space<vmem>>, vector<1x2x128xf32>
    %628 = vector.shape_cast %627 : vector<1x2x128xf32> to vector<2x128xf32>
    %629 = arith.addf %628, %622 : vector<2x128xf32>
    %630 = arith.negf %629 : vector<2x128xf32>
    %631 = math.exp %630 : vector<2x128xf32>
    %cst_243 = arith.constant 1.000000e+00 : f32
    %632 = vector.broadcast %cst_243 : f32 to vector<2x128xf32>
    %633 = arith.addf %632, %631 : vector<2x128xf32>
    %634 = arith.divf %632, %633 : vector<2x128xf32>
    %635 = vector.extract_strided_slice %634 {offsets = [0, 0], sizes = [2, 32], strides = [1, 1]} : vector<2x128xf32> to vector<2x32xf32>
    %636 = vector.extract_strided_slice %634 {offsets = [0, 32], sizes = [2, 32], strides = [1, 1]} : vector<2x128xf32> to vector<2x32xf32>
    %637 = vector.extract_strided_slice %634 {offsets = [0, 64], sizes = [2, 32], strides = [1, 1]} : vector<2x128xf32> to vector<2x32xf32>
    %cst_244 = arith.constant 2.000000e+00 : f32
    %638 = vector.broadcast %cst_244 : f32 to vector<2x32xf32>
    %639 = arith.mulf %638, %637 : vector<2x32xf32>
    %cst_245 = arith.constant 1.000000e+00 : f32
    %640 = vector.broadcast %cst_245 : f32 to vector<2x32xf32>
    %641 = arith.subf %639, %640 : vector<2x32xf32>
    %642 = vector.extract_strided_slice %634 {offsets = [0, 96], sizes = [2, 32], strides = [1, 1]} : vector<2x128xf32> to vector<2x32xf32>
    %643 = arith.mulf %636, %542 : vector<2x32xf32>
    %644 = arith.mulf %635, %641 : vector<2x32xf32>
    %645 = arith.addf %643, %644 : vector<2x32xf32>
    %cst_246 = arith.constant 2.000000e+00 : f32
    %646 = vector.broadcast %cst_246 : f32 to vector<2x32xf32>
    %647 = arith.mulf %646, %645 : vector<2x32xf32>
    %648 = arith.negf %647 : vector<2x32xf32>
    %649 = math.exp %648 : vector<2x32xf32>
    %cst_247 = arith.constant 1.000000e+00 : f32
    %650 = vector.broadcast %cst_247 : f32 to vector<2x32xf32>
    %651 = arith.addf %650, %649 : vector<2x32xf32>
    %652 = arith.divf %650, %651 : vector<2x32xf32>
    %cst_248 = arith.constant 2.000000e+00 : f32
    %653 = vector.broadcast %cst_248 : f32 to vector<2x32xf32>
    %654 = arith.mulf %653, %652 : vector<2x32xf32>
    %cst_249 = arith.constant 1.000000e+00 : f32
    %655 = vector.broadcast %cst_249 : f32 to vector<2x32xf32>
    %656 = arith.subf %654, %655 : vector<2x32xf32>
    %657 = arith.mulf %642, %656 : vector<2x32xf32>
    %c0_250 = arith.constant 0 : index
    %c0_251 = arith.constant 0 : index
    %658 = vector.load %arg2[%c0_250, %c0_251] : memref<32x128xf32, #tpu.memory_space<vmem>>, vector<32x128xf32>
    %cst_252 = arith.constant dense<0.000000e+00> : vector<2x128xf32>
    %659 = tpu.matmul %657, %658, %cst_252 {dimension_numbers = #tpu.dot_dimension_numbers<[1], [0], [0], [1], [0, 0, 1, 1], [], []>} : vector<2x32xf32>, vector<32x128xf32>, vector<2x128xf32> -> vector<2x128xf32>
    %660 = arith.addf %659, %624 : vector<2x128xf32>
    %661 = vector.broadcast %0 : vector<1x128xf32> to vector<2x128xf32>
    %662 = arith.addf %660, %661 : vector<2x128xf32>
    %663 = arith.negf %662 : vector<2x128xf32>
    %664 = math.exp %663 : vector<2x128xf32>
    %cst_253 = arith.constant 1.000000e+00 : f32
    %665 = vector.broadcast %cst_253 : f32 to vector<2x128xf32>
    %666 = arith.addf %665, %664 : vector<2x128xf32>
    %667 = arith.divf %665, %666 : vector<2x128xf32>
    %668 = vector.extract_strided_slice %667 {offsets = [0, 0], sizes = [2, 32], strides = [1, 1]} : vector<2x128xf32> to vector<2x32xf32>
    %669 = vector.extract_strided_slice %667 {offsets = [0, 32], sizes = [2, 32], strides = [1, 1]} : vector<2x128xf32> to vector<2x32xf32>
    %670 = vector.extract_strided_slice %667 {offsets = [0, 64], sizes = [2, 32], strides = [1, 1]} : vector<2x128xf32> to vector<2x32xf32>
    %cst_254 = arith.constant 2.000000e+00 : f32
    %671 = vector.broadcast %cst_254 : f32 to vector<2x32xf32>
    %672 = arith.mulf %671, %670 : vector<2x32xf32>
    %cst_255 = arith.constant 1.000000e+00 : f32
    %673 = vector.broadcast %cst_255 : f32 to vector<2x32xf32>
    %674 = arith.subf %672, %673 : vector<2x32xf32>
    %675 = vector.extract_strided_slice %667 {offsets = [0, 96], sizes = [2, 32], strides = [1, 1]} : vector<2x128xf32> to vector<2x32xf32>
    %676 = arith.mulf %669, %575 : vector<2x32xf32>
    %677 = arith.mulf %668, %674 : vector<2x32xf32>
    %678 = arith.addf %676, %677 : vector<2x32xf32>
    %cst_256 = arith.constant 2.000000e+00 : f32
    %679 = vector.broadcast %cst_256 : f32 to vector<2x32xf32>
    %680 = arith.mulf %679, %678 : vector<2x32xf32>
    %681 = arith.negf %680 : vector<2x32xf32>
    %682 = math.exp %681 : vector<2x32xf32>
    %cst_257 = arith.constant 1.000000e+00 : f32
    %683 = vector.broadcast %cst_257 : f32 to vector<2x32xf32>
    %684 = arith.addf %683, %682 : vector<2x32xf32>
    %685 = arith.divf %683, %684 : vector<2x32xf32>
    %cst_258 = arith.constant 2.000000e+00 : f32
    %686 = vector.broadcast %cst_258 : f32 to vector<2x32xf32>
    %687 = arith.mulf %686, %685 : vector<2x32xf32>
    %cst_259 = arith.constant 1.000000e+00 : f32
    %688 = vector.broadcast %cst_259 : f32 to vector<2x32xf32>
    %689 = arith.subf %687, %688 : vector<2x32xf32>
    %690 = arith.mulf %675, %689 : vector<2x32xf32>
    %c0_260 = arith.constant 0 : index
    %c0_261 = arith.constant 0 : index
    %691 = vector.load %arg4[%c0_260, %c0_261] : memref<32x128xf32, #tpu.memory_space<vmem>>, vector<32x128xf32>
    %cst_262 = arith.constant dense<0.000000e+00> : vector<2x128xf32>
    %692 = tpu.matmul %690, %691, %cst_262 {dimension_numbers = #tpu.dot_dimension_numbers<[1], [0], [0], [1], [0, 0, 1, 1], [], []>} : vector<2x32xf32>, vector<32x128xf32>, vector<2x128xf32> -> vector<2x128xf32>
    %693 = arith.addf %692, %626 : vector<2x128xf32>
    %694 = vector.broadcast %1 : vector<1x128xf32> to vector<2x128xf32>
    %695 = arith.addf %693, %694 : vector<2x128xf32>
    %696 = arith.negf %695 : vector<2x128xf32>
    %697 = math.exp %696 : vector<2x128xf32>
    %cst_263 = arith.constant 1.000000e+00 : f32
    %698 = vector.broadcast %cst_263 : f32 to vector<2x128xf32>
    %699 = arith.addf %698, %697 : vector<2x128xf32>
    %700 = arith.divf %698, %699 : vector<2x128xf32>
    %701 = vector.extract_strided_slice %700 {offsets = [0, 0], sizes = [2, 32], strides = [1, 1]} : vector<2x128xf32> to vector<2x32xf32>
    %702 = vector.extract_strided_slice %700 {offsets = [0, 32], sizes = [2, 32], strides = [1, 1]} : vector<2x128xf32> to vector<2x32xf32>
    %703 = vector.extract_strided_slice %700 {offsets = [0, 64], sizes = [2, 32], strides = [1, 1]} : vector<2x128xf32> to vector<2x32xf32>
    %cst_264 = arith.constant 2.000000e+00 : f32
    %704 = vector.broadcast %cst_264 : f32 to vector<2x32xf32>
    %705 = arith.mulf %704, %703 : vector<2x32xf32>
    %cst_265 = arith.constant 1.000000e+00 : f32
    %706 = vector.broadcast %cst_265 : f32 to vector<2x32xf32>
    %707 = arith.subf %705, %706 : vector<2x32xf32>
    %708 = vector.extract_strided_slice %700 {offsets = [0, 96], sizes = [2, 32], strides = [1, 1]} : vector<2x128xf32> to vector<2x32xf32>
    %709 = arith.mulf %702, %608 : vector<2x32xf32>
    %710 = arith.mulf %701, %707 : vector<2x32xf32>
    %711 = arith.addf %709, %710 : vector<2x32xf32>
    %cst_266 = arith.constant 2.000000e+00 : f32
    %712 = vector.broadcast %cst_266 : f32 to vector<2x32xf32>
    %713 = arith.mulf %712, %711 : vector<2x32xf32>
    %714 = arith.negf %713 : vector<2x32xf32>
    %715 = math.exp %714 : vector<2x32xf32>
    %cst_267 = arith.constant 1.000000e+00 : f32
    %716 = vector.broadcast %cst_267 : f32 to vector<2x32xf32>
    %717 = arith.addf %716, %715 : vector<2x32xf32>
    %718 = arith.divf %716, %717 : vector<2x32xf32>
    %cst_268 = arith.constant 2.000000e+00 : f32
    %719 = vector.broadcast %cst_268 : f32 to vector<2x32xf32>
    %720 = arith.mulf %719, %718 : vector<2x32xf32>
    %cst_269 = arith.constant 1.000000e+00 : f32
    %721 = vector.broadcast %cst_269 : f32 to vector<2x32xf32>
    %722 = arith.subf %720, %721 : vector<2x32xf32>
    %723 = arith.mulf %708, %722 : vector<2x32xf32>
    %c0_270 = arith.constant 0 : index
    %c0_271 = arith.constant 0 : index
    %724 = vector.load %arg1[%c0_270, %c0_271] : memref<32x128xf32, #tpu.memory_space<vmem>>, vector<32x128xf32>
    %cst_272 = arith.constant dense<0.000000e+00> : vector<2x128xf32>
    %725 = tpu.matmul %657, %724, %cst_272 {dimension_numbers = #tpu.dot_dimension_numbers<[1], [0], [0], [1], [0, 0, 1, 1], [], []>} : vector<2x32xf32>, vector<32x128xf32>, vector<2x128xf32> -> vector<2x128xf32>
    %c0_273 = arith.constant 0 : index
    %c0_274 = arith.constant 0 : index
    %726 = vector.load %arg3[%c0_273, %c0_274] : memref<32x128xf32, #tpu.memory_space<vmem>>, vector<32x128xf32>
    %cst_275 = arith.constant dense<0.000000e+00> : vector<2x128xf32>
    %727 = tpu.matmul %690, %726, %cst_275 {dimension_numbers = #tpu.dot_dimension_numbers<[1], [0], [0], [1], [0, 0, 1, 1], [], []>} : vector<2x32xf32>, vector<32x128xf32>, vector<2x128xf32> -> vector<2x128xf32>
    %c0_276 = arith.constant 0 : index
    %c0_277 = arith.constant 0 : index
    %728 = vector.load %arg5[%c0_276, %c0_277] : memref<32x128xf32, #tpu.memory_space<vmem>>, vector<32x128xf32>
    %cst_278 = arith.constant dense<0.000000e+00> : vector<2x128xf32>
    %729 = tpu.matmul %723, %728, %cst_278 {dimension_numbers = #tpu.dot_dimension_numbers<[1], [0], [0], [1], [0, 0, 1, 1], [], []>} : vector<2x32xf32>, vector<32x128xf32>, vector<2x128xf32> -> vector<2x128xf32>
    %c7 = arith.constant 7 : index
    %c0_279 = arith.constant 0 : index
    %c0_280 = arith.constant 0 : index
    %730 = vector.load %arg0[%c7, %c0_279, %c0_280] : memref<8x2x128xf32, #tpu.memory_space<vmem>>, vector<1x2x128xf32>
    %731 = vector.shape_cast %730 : vector<1x2x128xf32> to vector<2x128xf32>
    %732 = arith.addf %731, %725 : vector<2x128xf32>
    %733 = arith.negf %732 : vector<2x128xf32>
    %734 = math.exp %733 : vector<2x128xf32>
    %cst_281 = arith.constant 1.000000e+00 : f32
    %735 = vector.broadcast %cst_281 : f32 to vector<2x128xf32>
    %736 = arith.addf %735, %734 : vector<2x128xf32>
    %737 = arith.divf %735, %736 : vector<2x128xf32>
    %738 = vector.extract_strided_slice %737 {offsets = [0, 0], sizes = [2, 32], strides = [1, 1]} : vector<2x128xf32> to vector<2x32xf32>
    %739 = vector.extract_strided_slice %737 {offsets = [0, 32], sizes = [2, 32], strides = [1, 1]} : vector<2x128xf32> to vector<2x32xf32>
    %740 = vector.extract_strided_slice %737 {offsets = [0, 64], sizes = [2, 32], strides = [1, 1]} : vector<2x128xf32> to vector<2x32xf32>
    %cst_282 = arith.constant 2.000000e+00 : f32
    %741 = vector.broadcast %cst_282 : f32 to vector<2x32xf32>
    %742 = arith.mulf %741, %740 : vector<2x32xf32>
    %cst_283 = arith.constant 1.000000e+00 : f32
    %743 = vector.broadcast %cst_283 : f32 to vector<2x32xf32>
    %744 = arith.subf %742, %743 : vector<2x32xf32>
    %745 = vector.extract_strided_slice %737 {offsets = [0, 96], sizes = [2, 32], strides = [1, 1]} : vector<2x128xf32> to vector<2x32xf32>
    %746 = arith.mulf %739, %645 : vector<2x32xf32>
    %747 = arith.mulf %738, %744 : vector<2x32xf32>
    %748 = arith.addf %746, %747 : vector<2x32xf32>
    %cst_284 = arith.constant 2.000000e+00 : f32
    %749 = vector.broadcast %cst_284 : f32 to vector<2x32xf32>
    %750 = arith.mulf %749, %748 : vector<2x32xf32>
    %751 = arith.negf %750 : vector<2x32xf32>
    %752 = math.exp %751 : vector<2x32xf32>
    %cst_285 = arith.constant 1.000000e+00 : f32
    %753 = vector.broadcast %cst_285 : f32 to vector<2x32xf32>
    %754 = arith.addf %753, %752 : vector<2x32xf32>
    %755 = arith.divf %753, %754 : vector<2x32xf32>
    %cst_286 = arith.constant 2.000000e+00 : f32
    %756 = vector.broadcast %cst_286 : f32 to vector<2x32xf32>
    %757 = arith.mulf %756, %755 : vector<2x32xf32>
    %cst_287 = arith.constant 1.000000e+00 : f32
    %758 = vector.broadcast %cst_287 : f32 to vector<2x32xf32>
    %759 = arith.subf %757, %758 : vector<2x32xf32>
    %760 = arith.mulf %745, %759 : vector<2x32xf32>
    %c0_288 = arith.constant 0 : index
    %c0_289 = arith.constant 0 : index
    %761 = vector.load %arg2[%c0_288, %c0_289] : memref<32x128xf32, #tpu.memory_space<vmem>>, vector<32x128xf32>
    %cst_290 = arith.constant dense<0.000000e+00> : vector<2x128xf32>
    %762 = tpu.matmul %760, %761, %cst_290 {dimension_numbers = #tpu.dot_dimension_numbers<[1], [0], [0], [1], [0, 0, 1, 1], [], []>} : vector<2x32xf32>, vector<32x128xf32>, vector<2x128xf32> -> vector<2x128xf32>
    %763 = arith.addf %762, %727 : vector<2x128xf32>
    %764 = vector.broadcast %0 : vector<1x128xf32> to vector<2x128xf32>
    %765 = arith.addf %763, %764 : vector<2x128xf32>
    %766 = arith.negf %765 : vector<2x128xf32>
    %767 = math.exp %766 : vector<2x128xf32>
    %cst_291 = arith.constant 1.000000e+00 : f32
    %768 = vector.broadcast %cst_291 : f32 to vector<2x128xf32>
    %769 = arith.addf %768, %767 : vector<2x128xf32>
    %770 = arith.divf %768, %769 : vector<2x128xf32>
    %771 = vector.extract_strided_slice %770 {offsets = [0, 0], sizes = [2, 32], strides = [1, 1]} : vector<2x128xf32> to vector<2x32xf32>
    %772 = vector.extract_strided_slice %770 {offsets = [0, 32], sizes = [2, 32], strides = [1, 1]} : vector<2x128xf32> to vector<2x32xf32>
    %773 = vector.extract_strided_slice %770 {offsets = [0, 64], sizes = [2, 32], strides = [1, 1]} : vector<2x128xf32> to vector<2x32xf32>
    %cst_292 = arith.constant 2.000000e+00 : f32
    %774 = vector.broadcast %cst_292 : f32 to vector<2x32xf32>
    %775 = arith.mulf %774, %773 : vector<2x32xf32>
    %cst_293 = arith.constant 1.000000e+00 : f32
    %776 = vector.broadcast %cst_293 : f32 to vector<2x32xf32>
    %777 = arith.subf %775, %776 : vector<2x32xf32>
    %778 = vector.extract_strided_slice %770 {offsets = [0, 96], sizes = [2, 32], strides = [1, 1]} : vector<2x128xf32> to vector<2x32xf32>
    %779 = arith.mulf %772, %678 : vector<2x32xf32>
    %780 = arith.mulf %771, %777 : vector<2x32xf32>
    %781 = arith.addf %779, %780 : vector<2x32xf32>
    %cst_294 = arith.constant 2.000000e+00 : f32
    %782 = vector.broadcast %cst_294 : f32 to vector<2x32xf32>
    %783 = arith.mulf %782, %781 : vector<2x32xf32>
    %784 = arith.negf %783 : vector<2x32xf32>
    %785 = math.exp %784 : vector<2x32xf32>
    %cst_295 = arith.constant 1.000000e+00 : f32
    %786 = vector.broadcast %cst_295 : f32 to vector<2x32xf32>
    %787 = arith.addf %786, %785 : vector<2x32xf32>
    %788 = arith.divf %786, %787 : vector<2x32xf32>
    %cst_296 = arith.constant 2.000000e+00 : f32
    %789 = vector.broadcast %cst_296 : f32 to vector<2x32xf32>
    %790 = arith.mulf %789, %788 : vector<2x32xf32>
    %cst_297 = arith.constant 1.000000e+00 : f32
    %791 = vector.broadcast %cst_297 : f32 to vector<2x32xf32>
    %792 = arith.subf %790, %791 : vector<2x32xf32>
    %793 = arith.mulf %778, %792 : vector<2x32xf32>
    %c0_298 = arith.constant 0 : index
    %c0_299 = arith.constant 0 : index
    %794 = vector.load %arg4[%c0_298, %c0_299] : memref<32x128xf32, #tpu.memory_space<vmem>>, vector<32x128xf32>
    %cst_300 = arith.constant dense<0.000000e+00> : vector<2x128xf32>
    %795 = tpu.matmul %793, %794, %cst_300 {dimension_numbers = #tpu.dot_dimension_numbers<[1], [0], [0], [1], [0, 0, 1, 1], [], []>} : vector<2x32xf32>, vector<32x128xf32>, vector<2x128xf32> -> vector<2x128xf32>
    %796 = arith.addf %795, %729 : vector<2x128xf32>
    %797 = vector.broadcast %1 : vector<1x128xf32> to vector<2x128xf32>
    %798 = arith.addf %796, %797 : vector<2x128xf32>
    %799 = arith.negf %798 : vector<2x128xf32>
    %800 = math.exp %799 : vector<2x128xf32>
    %cst_301 = arith.constant 1.000000e+00 : f32
    %801 = vector.broadcast %cst_301 : f32 to vector<2x128xf32>
    %802 = arith.addf %801, %800 : vector<2x128xf32>
    %803 = arith.divf %801, %802 : vector<2x128xf32>
    %804 = vector.extract_strided_slice %803 {offsets = [0, 0], sizes = [2, 32], strides = [1, 1]} : vector<2x128xf32> to vector<2x32xf32>
    %805 = vector.extract_strided_slice %803 {offsets = [0, 32], sizes = [2, 32], strides = [1, 1]} : vector<2x128xf32> to vector<2x32xf32>
    %806 = vector.extract_strided_slice %803 {offsets = [0, 64], sizes = [2, 32], strides = [1, 1]} : vector<2x128xf32> to vector<2x32xf32>
    %cst_302 = arith.constant 2.000000e+00 : f32
    %807 = vector.broadcast %cst_302 : f32 to vector<2x32xf32>
    %808 = arith.mulf %807, %806 : vector<2x32xf32>
    %cst_303 = arith.constant 1.000000e+00 : f32
    %809 = vector.broadcast %cst_303 : f32 to vector<2x32xf32>
    %810 = arith.subf %808, %809 : vector<2x32xf32>
    %811 = vector.extract_strided_slice %803 {offsets = [0, 96], sizes = [2, 32], strides = [1, 1]} : vector<2x128xf32> to vector<2x32xf32>
    %812 = arith.mulf %805, %711 : vector<2x32xf32>
    %813 = arith.mulf %804, %810 : vector<2x32xf32>
    %814 = arith.addf %812, %813 : vector<2x32xf32>
    %cst_304 = arith.constant 2.000000e+00 : f32
    %815 = vector.broadcast %cst_304 : f32 to vector<2x32xf32>
    %816 = arith.mulf %815, %814 : vector<2x32xf32>
    %817 = arith.negf %816 : vector<2x32xf32>
    %818 = math.exp %817 : vector<2x32xf32>
    %cst_305 = arith.constant 1.000000e+00 : f32
    %819 = vector.broadcast %cst_305 : f32 to vector<2x32xf32>
    %820 = arith.addf %819, %818 : vector<2x32xf32>
    %821 = arith.divf %819, %820 : vector<2x32xf32>
    %cst_306 = arith.constant 2.000000e+00 : f32
    %822 = vector.broadcast %cst_306 : f32 to vector<2x32xf32>
    %823 = arith.mulf %822, %821 : vector<2x32xf32>
    %cst_307 = arith.constant 1.000000e+00 : f32
    %824 = vector.broadcast %cst_307 : f32 to vector<2x32xf32>
    %825 = arith.subf %823, %824 : vector<2x32xf32>
    %826 = arith.mulf %811, %825 : vector<2x32xf32>
    %c0_308 = arith.constant 0 : index
    %c0_309 = arith.constant 0 : index
    %827 = vector.load %arg1[%c0_308, %c0_309] : memref<32x128xf32, #tpu.memory_space<vmem>>, vector<32x128xf32>
    %cst_310 = arith.constant dense<0.000000e+00> : vector<2x128xf32>
    %828 = tpu.matmul %760, %827, %cst_310 {dimension_numbers = #tpu.dot_dimension_numbers<[1], [0], [0], [1], [0, 0, 1, 1], [], []>} : vector<2x32xf32>, vector<32x128xf32>, vector<2x128xf32> -> vector<2x128xf32>
    %c0_311 = arith.constant 0 : index
    %c0_312 = arith.constant 0 : index
    %829 = vector.load %arg3[%c0_311, %c0_312] : memref<32x128xf32, #tpu.memory_space<vmem>>, vector<32x128xf32>
    %cst_313 = arith.constant dense<0.000000e+00> : vector<2x128xf32>
    %830 = tpu.matmul %793, %829, %cst_313 {dimension_numbers = #tpu.dot_dimension_numbers<[1], [0], [0], [1], [0, 0, 1, 1], [], []>} : vector<2x32xf32>, vector<32x128xf32>, vector<2x128xf32> -> vector<2x128xf32>
    %c0_314 = arith.constant 0 : index
    %c0_315 = arith.constant 0 : index
    %831 = vector.load %arg5[%c0_314, %c0_315] : memref<32x128xf32, #tpu.memory_space<vmem>>, vector<32x128xf32>
    %cst_316 = arith.constant dense<0.000000e+00> : vector<2x128xf32>
    %832 = tpu.matmul %826, %831, %cst_316 {dimension_numbers = #tpu.dot_dimension_numbers<[1], [0], [0], [1], [0, 0, 1, 1], [], []>} : vector<2x32xf32>, vector<32x128xf32>, vector<2x128xf32> -> vector<2x128xf32>
    %c0_317 = arith.constant 0 : index
    %c0_318 = arith.constant 0 : index
    %833 = vector.load %arg8[%c0_317, %c0_318] : memref<32x128xf32, #tpu.memory_space<vmem>>, vector<32x128xf32>
    %cst_319 = arith.constant dense<0.000000e+00> : vector<2x128xf32>
    %834 = tpu.matmul %826, %833, %cst_319 {dimension_numbers = #tpu.dot_dimension_numbers<[1], [0], [0], [1], [0, 0, 1, 1], [], []>} : vector<2x32xf32>, vector<32x128xf32>, vector<2x128xf32> -> vector<2x128xf32>
    %835 = arith.addf %834, %828 : vector<2x128xf32>
    %c0_320 = arith.constant 0 : index
    %c0_321 = arith.constant 0 : index
    %836 = vector.load %arg9[%c0_320, %c0_321] : memref<1x128xf32, #tpu.memory_space<vmem>>, vector<1x128xf32>
    %837 = vector.broadcast %836 : vector<1x128xf32> to vector<2x128xf32>
    %838 = arith.addf %835, %837 : vector<2x128xf32>
    %839 = arith.negf %838 : vector<2x128xf32>
    %840 = math.exp %839 : vector<2x128xf32>
    %cst_322 = arith.constant 1.000000e+00 : f32
    %841 = vector.broadcast %cst_322 : f32 to vector<2x128xf32>
    %842 = arith.addf %841, %840 : vector<2x128xf32>
    %843 = arith.divf %841, %842 : vector<2x128xf32>
    %844 = vector.extract_strided_slice %843 {offsets = [0, 0], sizes = [2, 32], strides = [1, 1]} : vector<2x128xf32> to vector<2x32xf32>
    %845 = vector.extract_strided_slice %843 {offsets = [0, 32], sizes = [2, 32], strides = [1, 1]} : vector<2x128xf32> to vector<2x32xf32>
    %846 = vector.extract_strided_slice %843 {offsets = [0, 64], sizes = [2, 32], strides = [1, 1]} : vector<2x128xf32> to vector<2x32xf32>
    %cst_323 = arith.constant 2.000000e+00 : f32
    %847 = vector.broadcast %cst_323 : f32 to vector<2x32xf32>
    %848 = arith.mulf %847, %846 : vector<2x32xf32>
    %cst_324 = arith.constant 1.000000e+00 : f32
    %849 = vector.broadcast %cst_324 : f32 to vector<2x32xf32>
    %850 = arith.subf %848, %849 : vector<2x32xf32>
    %851 = vector.extract_strided_slice %843 {offsets = [0, 96], sizes = [2, 32], strides = [1, 1]} : vector<2x128xf32> to vector<2x32xf32>
    %852 = arith.mulf %845, %748 : vector<2x32xf32>
    %853 = arith.mulf %844, %850 : vector<2x32xf32>
    %854 = arith.addf %852, %853 : vector<2x32xf32>
    %cst_325 = arith.constant 2.000000e+00 : f32
    %855 = vector.broadcast %cst_325 : f32 to vector<2x32xf32>
    %856 = arith.mulf %855, %854 : vector<2x32xf32>
    %857 = arith.negf %856 : vector<2x32xf32>
    %858 = math.exp %857 : vector<2x32xf32>
    %cst_326 = arith.constant 1.000000e+00 : f32
    %859 = vector.broadcast %cst_326 : f32 to vector<2x32xf32>
    %860 = arith.addf %859, %858 : vector<2x32xf32>
    %861 = arith.divf %859, %860 : vector<2x32xf32>
    %cst_327 = arith.constant 2.000000e+00 : f32
    %862 = vector.broadcast %cst_327 : f32 to vector<2x32xf32>
    %863 = arith.mulf %862, %861 : vector<2x32xf32>
    %cst_328 = arith.constant 1.000000e+00 : f32
    %864 = vector.broadcast %cst_328 : f32 to vector<2x32xf32>
    %865 = arith.subf %863, %864 : vector<2x32xf32>
    %866 = arith.mulf %851, %865 : vector<2x32xf32>
    %c0_329 = arith.constant 0 : index
    %c0_330 = arith.constant 0 : index
    %867 = vector.load %arg2[%c0_329, %c0_330] : memref<32x128xf32, #tpu.memory_space<vmem>>, vector<32x128xf32>
    %cst_331 = arith.constant dense<0.000000e+00> : vector<2x128xf32>
    %868 = tpu.matmul %866, %867, %cst_331 {dimension_numbers = #tpu.dot_dimension_numbers<[1], [0], [0], [1], [0, 0, 1, 1], [], []>} : vector<2x32xf32>, vector<32x128xf32>, vector<2x128xf32> -> vector<2x128xf32>
    %869 = arith.addf %868, %830 : vector<2x128xf32>
    %870 = vector.broadcast %0 : vector<1x128xf32> to vector<2x128xf32>
    %871 = arith.addf %869, %870 : vector<2x128xf32>
    %872 = arith.negf %871 : vector<2x128xf32>
    %873 = math.exp %872 : vector<2x128xf32>
    %cst_332 = arith.constant 1.000000e+00 : f32
    %874 = vector.broadcast %cst_332 : f32 to vector<2x128xf32>
    %875 = arith.addf %874, %873 : vector<2x128xf32>
    %876 = arith.divf %874, %875 : vector<2x128xf32>
    %877 = vector.extract_strided_slice %876 {offsets = [0, 0], sizes = [2, 32], strides = [1, 1]} : vector<2x128xf32> to vector<2x32xf32>
    %878 = vector.extract_strided_slice %876 {offsets = [0, 32], sizes = [2, 32], strides = [1, 1]} : vector<2x128xf32> to vector<2x32xf32>
    %879 = vector.extract_strided_slice %876 {offsets = [0, 64], sizes = [2, 32], strides = [1, 1]} : vector<2x128xf32> to vector<2x32xf32>
    %cst_333 = arith.constant 2.000000e+00 : f32
    %880 = vector.broadcast %cst_333 : f32 to vector<2x32xf32>
    %881 = arith.mulf %880, %879 : vector<2x32xf32>
    %cst_334 = arith.constant 1.000000e+00 : f32
    %882 = vector.broadcast %cst_334 : f32 to vector<2x32xf32>
    %883 = arith.subf %881, %882 : vector<2x32xf32>
    %884 = vector.extract_strided_slice %876 {offsets = [0, 96], sizes = [2, 32], strides = [1, 1]} : vector<2x128xf32> to vector<2x32xf32>
    %885 = arith.mulf %878, %781 : vector<2x32xf32>
    %886 = arith.mulf %877, %883 : vector<2x32xf32>
    %887 = arith.addf %885, %886 : vector<2x32xf32>
    %cst_335 = arith.constant 2.000000e+00 : f32
    %888 = vector.broadcast %cst_335 : f32 to vector<2x32xf32>
    %889 = arith.mulf %888, %887 : vector<2x32xf32>
    %890 = arith.negf %889 : vector<2x32xf32>
    %891 = math.exp %890 : vector<2x32xf32>
    %cst_336 = arith.constant 1.000000e+00 : f32
    %892 = vector.broadcast %cst_336 : f32 to vector<2x32xf32>
    %893 = arith.addf %892, %891 : vector<2x32xf32>
    %894 = arith.divf %892, %893 : vector<2x32xf32>
    %cst_337 = arith.constant 2.000000e+00 : f32
    %895 = vector.broadcast %cst_337 : f32 to vector<2x32xf32>
    %896 = arith.mulf %895, %894 : vector<2x32xf32>
    %cst_338 = arith.constant 1.000000e+00 : f32
    %897 = vector.broadcast %cst_338 : f32 to vector<2x32xf32>
    %898 = arith.subf %896, %897 : vector<2x32xf32>
    %899 = arith.mulf %884, %898 : vector<2x32xf32>
    %c0_339 = arith.constant 0 : index
    %c0_340 = arith.constant 0 : index
    %900 = vector.load %arg4[%c0_339, %c0_340] : memref<32x128xf32, #tpu.memory_space<vmem>>, vector<32x128xf32>
    %cst_341 = arith.constant dense<0.000000e+00> : vector<2x128xf32>
    %901 = tpu.matmul %899, %900, %cst_341 {dimension_numbers = #tpu.dot_dimension_numbers<[1], [0], [0], [1], [0, 0, 1, 1], [], []>} : vector<2x32xf32>, vector<32x128xf32>, vector<2x128xf32> -> vector<2x128xf32>
    %902 = arith.addf %901, %832 : vector<2x128xf32>
    %903 = vector.broadcast %1 : vector<1x128xf32> to vector<2x128xf32>
    %904 = arith.addf %902, %903 : vector<2x128xf32>
    %905 = arith.negf %904 : vector<2x128xf32>
    %906 = math.exp %905 : vector<2x128xf32>
    %cst_342 = arith.constant 1.000000e+00 : f32
    %907 = vector.broadcast %cst_342 : f32 to vector<2x128xf32>
    %908 = arith.addf %907, %906 : vector<2x128xf32>
    %909 = arith.divf %907, %908 : vector<2x128xf32>
    %910 = vector.extract_strided_slice %909 {offsets = [0, 0], sizes = [2, 32], strides = [1, 1]} : vector<2x128xf32> to vector<2x32xf32>
    %911 = vector.extract_strided_slice %909 {offsets = [0, 32], sizes = [2, 32], strides = [1, 1]} : vector<2x128xf32> to vector<2x32xf32>
    %912 = vector.extract_strided_slice %909 {offsets = [0, 64], sizes = [2, 32], strides = [1, 1]} : vector<2x128xf32> to vector<2x32xf32>
    %cst_343 = arith.constant 2.000000e+00 : f32
    %913 = vector.broadcast %cst_343 : f32 to vector<2x32xf32>
    %914 = arith.mulf %913, %912 : vector<2x32xf32>
    %cst_344 = arith.constant 1.000000e+00 : f32
    %915 = vector.broadcast %cst_344 : f32 to vector<2x32xf32>
    %916 = arith.subf %914, %915 : vector<2x32xf32>
    %917 = vector.extract_strided_slice %909 {offsets = [0, 96], sizes = [2, 32], strides = [1, 1]} : vector<2x128xf32> to vector<2x32xf32>
    %918 = arith.mulf %911, %814 : vector<2x32xf32>
    %919 = arith.mulf %910, %916 : vector<2x32xf32>
    %920 = arith.addf %918, %919 : vector<2x32xf32>
    %cst_345 = arith.constant 2.000000e+00 : f32
    %921 = vector.broadcast %cst_345 : f32 to vector<2x32xf32>
    %922 = arith.mulf %921, %920 : vector<2x32xf32>
    %923 = arith.negf %922 : vector<2x32xf32>
    %924 = math.exp %923 : vector<2x32xf32>
    %cst_346 = arith.constant 1.000000e+00 : f32
    %925 = vector.broadcast %cst_346 : f32 to vector<2x32xf32>
    %926 = arith.addf %925, %924 : vector<2x32xf32>
    %927 = arith.divf %925, %926 : vector<2x32xf32>
    %cst_347 = arith.constant 2.000000e+00 : f32
    %928 = vector.broadcast %cst_347 : f32 to vector<2x32xf32>
    %929 = arith.mulf %928, %927 : vector<2x32xf32>
    %cst_348 = arith.constant 1.000000e+00 : f32
    %930 = vector.broadcast %cst_348 : f32 to vector<2x32xf32>
    %931 = arith.subf %929, %930 : vector<2x32xf32>
    %932 = arith.mulf %917, %931 : vector<2x32xf32>
    %c0_349 = arith.constant 0 : index
    %c0_350 = arith.constant 0 : index
    %933 = vector.load %arg1[%c0_349, %c0_350] : memref<32x128xf32, #tpu.memory_space<vmem>>, vector<32x128xf32>
    %cst_351 = arith.constant dense<0.000000e+00> : vector<2x128xf32>
    %934 = tpu.matmul %866, %933, %cst_351 {dimension_numbers = #tpu.dot_dimension_numbers<[1], [0], [0], [1], [0, 0, 1, 1], [], []>} : vector<2x32xf32>, vector<32x128xf32>, vector<2x128xf32> -> vector<2x128xf32>
    %c0_352 = arith.constant 0 : index
    %c0_353 = arith.constant 0 : index
    %935 = vector.load %arg3[%c0_352, %c0_353] : memref<32x128xf32, #tpu.memory_space<vmem>>, vector<32x128xf32>
    %cst_354 = arith.constant dense<0.000000e+00> : vector<2x128xf32>
    %936 = tpu.matmul %899, %935, %cst_354 {dimension_numbers = #tpu.dot_dimension_numbers<[1], [0], [0], [1], [0, 0, 1, 1], [], []>} : vector<2x32xf32>, vector<32x128xf32>, vector<2x128xf32> -> vector<2x128xf32>
    %c0_355 = arith.constant 0 : index
    %c0_356 = arith.constant 0 : index
    %937 = vector.load %arg5[%c0_355, %c0_356] : memref<32x128xf32, #tpu.memory_space<vmem>>, vector<32x128xf32>
    %cst_357 = arith.constant dense<0.000000e+00> : vector<2x128xf32>
    %938 = tpu.matmul %932, %937, %cst_357 {dimension_numbers = #tpu.dot_dimension_numbers<[1], [0], [0], [1], [0, 0, 1, 1], [], []>} : vector<2x32xf32>, vector<32x128xf32>, vector<2x128xf32> -> vector<2x128xf32>
    %c0_358 = arith.constant 0 : index
    %c0_359 = arith.constant 0 : index
    %939 = vector.load %arg8[%c0_358, %c0_359] : memref<32x128xf32, #tpu.memory_space<vmem>>, vector<32x128xf32>
    %cst_360 = arith.constant dense<0.000000e+00> : vector<2x128xf32>
    %940 = tpu.matmul %932, %939, %cst_360 {dimension_numbers = #tpu.dot_dimension_numbers<[1], [0], [0], [1], [0, 0, 1, 1], [], []>} : vector<2x32xf32>, vector<32x128xf32>, vector<2x128xf32> -> vector<2x128xf32>
    %941 = arith.addf %940, %934 : vector<2x128xf32>
    %c0_361 = arith.constant 0 : index
    %c0_362 = arith.constant 0 : index
    %942 = vector.load %arg9[%c0_361, %c0_362] : memref<1x128xf32, #tpu.memory_space<vmem>>, vector<1x128xf32>
    %943 = vector.broadcast %942 : vector<1x128xf32> to vector<2x128xf32>
    %944 = arith.addf %941, %943 : vector<2x128xf32>
    %945 = arith.negf %944 : vector<2x128xf32>
    %946 = math.exp %945 : vector<2x128xf32>
    %cst_363 = arith.constant 1.000000e+00 : f32
    %947 = vector.broadcast %cst_363 : f32 to vector<2x128xf32>
    %948 = arith.addf %947, %946 : vector<2x128xf32>
    %949 = arith.divf %947, %948 : vector<2x128xf32>
    %950 = vector.extract_strided_slice %949 {offsets = [0, 0], sizes = [2, 32], strides = [1, 1]} : vector<2x128xf32> to vector<2x32xf32>
    %951 = vector.extract_strided_slice %949 {offsets = [0, 32], sizes = [2, 32], strides = [1, 1]} : vector<2x128xf32> to vector<2x32xf32>
    %952 = vector.extract_strided_slice %949 {offsets = [0, 64], sizes = [2, 32], strides = [1, 1]} : vector<2x128xf32> to vector<2x32xf32>
    %cst_364 = arith.constant 2.000000e+00 : f32
    %953 = vector.broadcast %cst_364 : f32 to vector<2x32xf32>
    %954 = arith.mulf %953, %952 : vector<2x32xf32>
    %cst_365 = arith.constant 1.000000e+00 : f32
    %955 = vector.broadcast %cst_365 : f32 to vector<2x32xf32>
    %956 = arith.subf %954, %955 : vector<2x32xf32>
    %957 = vector.extract_strided_slice %949 {offsets = [0, 96], sizes = [2, 32], strides = [1, 1]} : vector<2x128xf32> to vector<2x32xf32>
    %958 = arith.mulf %951, %854 : vector<2x32xf32>
    %959 = arith.mulf %950, %956 : vector<2x32xf32>
    %960 = arith.addf %958, %959 : vector<2x32xf32>
    %cst_366 = arith.constant 2.000000e+00 : f32
    %961 = vector.broadcast %cst_366 : f32 to vector<2x32xf32>
    %962 = arith.mulf %961, %960 : vector<2x32xf32>
    %963 = arith.negf %962 : vector<2x32xf32>
    %964 = math.exp %963 : vector<2x32xf32>
    %cst_367 = arith.constant 1.000000e+00 : f32
    %965 = vector.broadcast %cst_367 : f32 to vector<2x32xf32>
    %966 = arith.addf %965, %964 : vector<2x32xf32>
    %967 = arith.divf %965, %966 : vector<2x32xf32>
    %cst_368 = arith.constant 2.000000e+00 : f32
    %968 = vector.broadcast %cst_368 : f32 to vector<2x32xf32>
    %969 = arith.mulf %968, %967 : vector<2x32xf32>
    %cst_369 = arith.constant 1.000000e+00 : f32
    %970 = vector.broadcast %cst_369 : f32 to vector<2x32xf32>
    %971 = arith.subf %969, %970 : vector<2x32xf32>
    %972 = arith.mulf %957, %971 : vector<2x32xf32>
    %c0_370 = arith.constant 0 : index
    %c0_371 = arith.constant 0 : index
    %973 = vector.load %arg2[%c0_370, %c0_371] : memref<32x128xf32, #tpu.memory_space<vmem>>, vector<32x128xf32>
    %cst_372 = arith.constant dense<0.000000e+00> : vector<2x128xf32>
    %974 = tpu.matmul %972, %973, %cst_372 {dimension_numbers = #tpu.dot_dimension_numbers<[1], [0], [0], [1], [0, 0, 1, 1], [], []>} : vector<2x32xf32>, vector<32x128xf32>, vector<2x128xf32> -> vector<2x128xf32>
    %975 = arith.addf %974, %936 : vector<2x128xf32>
    %976 = vector.broadcast %0 : vector<1x128xf32> to vector<2x128xf32>
    %977 = arith.addf %975, %976 : vector<2x128xf32>
    %978 = arith.negf %977 : vector<2x128xf32>
    %979 = math.exp %978 : vector<2x128xf32>
    %cst_373 = arith.constant 1.000000e+00 : f32
    %980 = vector.broadcast %cst_373 : f32 to vector<2x128xf32>
    %981 = arith.addf %980, %979 : vector<2x128xf32>
    %982 = arith.divf %980, %981 : vector<2x128xf32>
    %983 = vector.extract_strided_slice %982 {offsets = [0, 0], sizes = [2, 32], strides = [1, 1]} : vector<2x128xf32> to vector<2x32xf32>
    %984 = vector.extract_strided_slice %982 {offsets = [0, 32], sizes = [2, 32], strides = [1, 1]} : vector<2x128xf32> to vector<2x32xf32>
    %985 = vector.extract_strided_slice %982 {offsets = [0, 64], sizes = [2, 32], strides = [1, 1]} : vector<2x128xf32> to vector<2x32xf32>
    %cst_374 = arith.constant 2.000000e+00 : f32
    %986 = vector.broadcast %cst_374 : f32 to vector<2x32xf32>
    %987 = arith.mulf %986, %985 : vector<2x32xf32>
    %cst_375 = arith.constant 1.000000e+00 : f32
    %988 = vector.broadcast %cst_375 : f32 to vector<2x32xf32>
    %989 = arith.subf %987, %988 : vector<2x32xf32>
    %990 = vector.extract_strided_slice %982 {offsets = [0, 96], sizes = [2, 32], strides = [1, 1]} : vector<2x128xf32> to vector<2x32xf32>
    %991 = arith.mulf %984, %887 : vector<2x32xf32>
    %992 = arith.mulf %983, %989 : vector<2x32xf32>
    %993 = arith.addf %991, %992 : vector<2x32xf32>
    %cst_376 = arith.constant 2.000000e+00 : f32
    %994 = vector.broadcast %cst_376 : f32 to vector<2x32xf32>
    %995 = arith.mulf %994, %993 : vector<2x32xf32>
    %996 = arith.negf %995 : vector<2x32xf32>
    %997 = math.exp %996 : vector<2x32xf32>
    %cst_377 = arith.constant 1.000000e+00 : f32
    %998 = vector.broadcast %cst_377 : f32 to vector<2x32xf32>
    %999 = arith.addf %998, %997 : vector<2x32xf32>
    %1000 = arith.divf %998, %999 : vector<2x32xf32>
    %cst_378 = arith.constant 2.000000e+00 : f32
    %1001 = vector.broadcast %cst_378 : f32 to vector<2x32xf32>
    %1002 = arith.mulf %1001, %1000 : vector<2x32xf32>
    %cst_379 = arith.constant 1.000000e+00 : f32
    %1003 = vector.broadcast %cst_379 : f32 to vector<2x32xf32>
    %1004 = arith.subf %1002, %1003 : vector<2x32xf32>
    %1005 = arith.mulf %990, %1004 : vector<2x32xf32>
    %c0_380 = arith.constant 0 : index
    %c0_381 = arith.constant 0 : index
    %1006 = vector.load %arg4[%c0_380, %c0_381] : memref<32x128xf32, #tpu.memory_space<vmem>>, vector<32x128xf32>
    %cst_382 = arith.constant dense<0.000000e+00> : vector<2x128xf32>
    %1007 = tpu.matmul %1005, %1006, %cst_382 {dimension_numbers = #tpu.dot_dimension_numbers<[1], [0], [0], [1], [0, 0, 1, 1], [], []>} : vector<2x32xf32>, vector<32x128xf32>, vector<2x128xf32> -> vector<2x128xf32>
    %1008 = arith.addf %1007, %938 : vector<2x128xf32>
    %1009 = vector.broadcast %1 : vector<1x128xf32> to vector<2x128xf32>
    %1010 = arith.addf %1008, %1009 : vector<2x128xf32>
    %1011 = arith.negf %1010 : vector<2x128xf32>
    %1012 = math.exp %1011 : vector<2x128xf32>
    %cst_383 = arith.constant 1.000000e+00 : f32
    %1013 = vector.broadcast %cst_383 : f32 to vector<2x128xf32>
    %1014 = arith.addf %1013, %1012 : vector<2x128xf32>
    %1015 = arith.divf %1013, %1014 : vector<2x128xf32>
    %1016 = vector.extract_strided_slice %1015 {offsets = [0, 0], sizes = [2, 32], strides = [1, 1]} : vector<2x128xf32> to vector<2x32xf32>
    %1017 = vector.extract_strided_slice %1015 {offsets = [0, 32], sizes = [2, 32], strides = [1, 1]} : vector<2x128xf32> to vector<2x32xf32>
    %1018 = vector.extract_strided_slice %1015 {offsets = [0, 64], sizes = [2, 32], strides = [1, 1]} : vector<2x128xf32> to vector<2x32xf32>
    %cst_384 = arith.constant 2.000000e+00 : f32
    %1019 = vector.broadcast %cst_384 : f32 to vector<2x32xf32>
    %1020 = arith.mulf %1019, %1018 : vector<2x32xf32>
    %cst_385 = arith.constant 1.000000e+00 : f32
    %1021 = vector.broadcast %cst_385 : f32 to vector<2x32xf32>
    %1022 = arith.subf %1020, %1021 : vector<2x32xf32>
    %1023 = vector.extract_strided_slice %1015 {offsets = [0, 96], sizes = [2, 32], strides = [1, 1]} : vector<2x128xf32> to vector<2x32xf32>
    %1024 = arith.mulf %1017, %920 : vector<2x32xf32>
    %1025 = arith.mulf %1016, %1022 : vector<2x32xf32>
    %1026 = arith.addf %1024, %1025 : vector<2x32xf32>
    %cst_386 = arith.constant 2.000000e+00 : f32
    %1027 = vector.broadcast %cst_386 : f32 to vector<2x32xf32>
    %1028 = arith.mulf %1027, %1026 : vector<2x32xf32>
    %1029 = arith.negf %1028 : vector<2x32xf32>
    %1030 = math.exp %1029 : vector<2x32xf32>
    %cst_387 = arith.constant 1.000000e+00 : f32
    %1031 = vector.broadcast %cst_387 : f32 to vector<2x32xf32>
    %1032 = arith.addf %1031, %1030 : vector<2x32xf32>
    %1033 = arith.divf %1031, %1032 : vector<2x32xf32>
    %cst_388 = arith.constant 2.000000e+00 : f32
    %1034 = vector.broadcast %cst_388 : f32 to vector<2x32xf32>
    %1035 = arith.mulf %1034, %1033 : vector<2x32xf32>
    %cst_389 = arith.constant 1.000000e+00 : f32
    %1036 = vector.broadcast %cst_389 : f32 to vector<2x32xf32>
    %1037 = arith.subf %1035, %1036 : vector<2x32xf32>
    %1038 = arith.mulf %1023, %1037 : vector<2x32xf32>
    %c0_390 = arith.constant 0 : index
    %c0_391 = arith.constant 0 : index
    %1039 = vector.load %arg1[%c0_390, %c0_391] : memref<32x128xf32, #tpu.memory_space<vmem>>, vector<32x128xf32>
    %cst_392 = arith.constant dense<0.000000e+00> : vector<2x128xf32>
    %1040 = tpu.matmul %972, %1039, %cst_392 {dimension_numbers = #tpu.dot_dimension_numbers<[1], [0], [0], [1], [0, 0, 1, 1], [], []>} : vector<2x32xf32>, vector<32x128xf32>, vector<2x128xf32> -> vector<2x128xf32>
    %c0_393 = arith.constant 0 : index
    %c0_394 = arith.constant 0 : index
    %1041 = vector.load %arg3[%c0_393, %c0_394] : memref<32x128xf32, #tpu.memory_space<vmem>>, vector<32x128xf32>
    %cst_395 = arith.constant dense<0.000000e+00> : vector<2x128xf32>
    %1042 = tpu.matmul %1005, %1041, %cst_395 {dimension_numbers = #tpu.dot_dimension_numbers<[1], [0], [0], [1], [0, 0, 1, 1], [], []>} : vector<2x32xf32>, vector<32x128xf32>, vector<2x128xf32> -> vector<2x128xf32>
    %c0_396 = arith.constant 0 : index
    %c0_397 = arith.constant 0 : index
    %1043 = vector.load %arg5[%c0_396, %c0_397] : memref<32x128xf32, #tpu.memory_space<vmem>>, vector<32x128xf32>
    %cst_398 = arith.constant dense<0.000000e+00> : vector<2x128xf32>
    %1044 = tpu.matmul %1038, %1043, %cst_398 {dimension_numbers = #tpu.dot_dimension_numbers<[1], [0], [0], [1], [0, 0, 1, 1], [], []>} : vector<2x32xf32>, vector<32x128xf32>, vector<2x128xf32> -> vector<2x128xf32>
    %c0_399 = arith.constant 0 : index
    %c0_400 = arith.constant 0 : index
    %1045 = vector.load %arg8[%c0_399, %c0_400] : memref<32x128xf32, #tpu.memory_space<vmem>>, vector<32x128xf32>
    %cst_401 = arith.constant dense<0.000000e+00> : vector<2x128xf32>
    %1046 = tpu.matmul %1038, %1045, %cst_401 {dimension_numbers = #tpu.dot_dimension_numbers<[1], [0], [0], [1], [0, 0, 1, 1], [], []>} : vector<2x32xf32>, vector<32x128xf32>, vector<2x128xf32> -> vector<2x128xf32>
    %1047 = arith.addf %1046, %1040 : vector<2x128xf32>
    %c0_402 = arith.constant 0 : index
    %c0_403 = arith.constant 0 : index
    %1048 = vector.load %arg9[%c0_402, %c0_403] : memref<1x128xf32, #tpu.memory_space<vmem>>, vector<1x128xf32>
    %1049 = vector.broadcast %1048 : vector<1x128xf32> to vector<2x128xf32>
    %1050 = arith.addf %1047, %1049 : vector<2x128xf32>
    %1051 = arith.negf %1050 : vector<2x128xf32>
    %1052 = math.exp %1051 : vector<2x128xf32>
    %cst_404 = arith.constant 1.000000e+00 : f32
    %1053 = vector.broadcast %cst_404 : f32 to vector<2x128xf32>
    %1054 = arith.addf %1053, %1052 : vector<2x128xf32>
    %1055 = arith.divf %1053, %1054 : vector<2x128xf32>
    %1056 = vector.extract_strided_slice %1055 {offsets = [0, 0], sizes = [2, 32], strides = [1, 1]} : vector<2x128xf32> to vector<2x32xf32>
    %1057 = vector.extract_strided_slice %1055 {offsets = [0, 32], sizes = [2, 32], strides = [1, 1]} : vector<2x128xf32> to vector<2x32xf32>
    %1058 = vector.extract_strided_slice %1055 {offsets = [0, 64], sizes = [2, 32], strides = [1, 1]} : vector<2x128xf32> to vector<2x32xf32>
    %cst_405 = arith.constant 2.000000e+00 : f32
    %1059 = vector.broadcast %cst_405 : f32 to vector<2x32xf32>
    %1060 = arith.mulf %1059, %1058 : vector<2x32xf32>
    %cst_406 = arith.constant 1.000000e+00 : f32
    %1061 = vector.broadcast %cst_406 : f32 to vector<2x32xf32>
    %1062 = arith.subf %1060, %1061 : vector<2x32xf32>
    %1063 = vector.extract_strided_slice %1055 {offsets = [0, 96], sizes = [2, 32], strides = [1, 1]} : vector<2x128xf32> to vector<2x32xf32>
    %1064 = arith.mulf %1057, %960 : vector<2x32xf32>
    %1065 = arith.mulf %1056, %1062 : vector<2x32xf32>
    %1066 = arith.addf %1064, %1065 : vector<2x32xf32>
    %cst_407 = arith.constant 2.000000e+00 : f32
    %1067 = vector.broadcast %cst_407 : f32 to vector<2x32xf32>
    %1068 = arith.mulf %1067, %1066 : vector<2x32xf32>
    %1069 = arith.negf %1068 : vector<2x32xf32>
    %1070 = math.exp %1069 : vector<2x32xf32>
    %cst_408 = arith.constant 1.000000e+00 : f32
    %1071 = vector.broadcast %cst_408 : f32 to vector<2x32xf32>
    %1072 = arith.addf %1071, %1070 : vector<2x32xf32>
    %1073 = arith.divf %1071, %1072 : vector<2x32xf32>
    %cst_409 = arith.constant 2.000000e+00 : f32
    %1074 = vector.broadcast %cst_409 : f32 to vector<2x32xf32>
    %1075 = arith.mulf %1074, %1073 : vector<2x32xf32>
    %cst_410 = arith.constant 1.000000e+00 : f32
    %1076 = vector.broadcast %cst_410 : f32 to vector<2x32xf32>
    %1077 = arith.subf %1075, %1076 : vector<2x32xf32>
    %1078 = arith.mulf %1063, %1077 : vector<2x32xf32>
    %c0_411 = arith.constant 0 : index
    %c0_412 = arith.constant 0 : index
    %1079 = vector.load %arg2[%c0_411, %c0_412] : memref<32x128xf32, #tpu.memory_space<vmem>>, vector<32x128xf32>
    %cst_413 = arith.constant dense<0.000000e+00> : vector<2x128xf32>
    %1080 = tpu.matmul %1078, %1079, %cst_413 {dimension_numbers = #tpu.dot_dimension_numbers<[1], [0], [0], [1], [0, 0, 1, 1], [], []>} : vector<2x32xf32>, vector<32x128xf32>, vector<2x128xf32> -> vector<2x128xf32>
    %1081 = arith.addf %1080, %1042 : vector<2x128xf32>
    %1082 = vector.broadcast %0 : vector<1x128xf32> to vector<2x128xf32>
    %1083 = arith.addf %1081, %1082 : vector<2x128xf32>
    %1084 = arith.negf %1083 : vector<2x128xf32>
    %1085 = math.exp %1084 : vector<2x128xf32>
    %cst_414 = arith.constant 1.000000e+00 : f32
    %1086 = vector.broadcast %cst_414 : f32 to vector<2x128xf32>
    %1087 = arith.addf %1086, %1085 : vector<2x128xf32>
    %1088 = arith.divf %1086, %1087 : vector<2x128xf32>
    %1089 = vector.extract_strided_slice %1088 {offsets = [0, 0], sizes = [2, 32], strides = [1, 1]} : vector<2x128xf32> to vector<2x32xf32>
    %1090 = vector.extract_strided_slice %1088 {offsets = [0, 32], sizes = [2, 32], strides = [1, 1]} : vector<2x128xf32> to vector<2x32xf32>
    %1091 = vector.extract_strided_slice %1088 {offsets = [0, 64], sizes = [2, 32], strides = [1, 1]} : vector<2x128xf32> to vector<2x32xf32>
    %cst_415 = arith.constant 2.000000e+00 : f32
    %1092 = vector.broadcast %cst_415 : f32 to vector<2x32xf32>
    %1093 = arith.mulf %1092, %1091 : vector<2x32xf32>
    %cst_416 = arith.constant 1.000000e+00 : f32
    %1094 = vector.broadcast %cst_416 : f32 to vector<2x32xf32>
    %1095 = arith.subf %1093, %1094 : vector<2x32xf32>
    %1096 = vector.extract_strided_slice %1088 {offsets = [0, 96], sizes = [2, 32], strides = [1, 1]} : vector<2x128xf32> to vector<2x32xf32>
    %1097 = arith.mulf %1090, %993 : vector<2x32xf32>
    %1098 = arith.mulf %1089, %1095 : vector<2x32xf32>
    %1099 = arith.addf %1097, %1098 : vector<2x32xf32>
    %cst_417 = arith.constant 2.000000e+00 : f32
    %1100 = vector.broadcast %cst_417 : f32 to vector<2x32xf32>
    %1101 = arith.mulf %1100, %1099 : vector<2x32xf32>
    %1102 = arith.negf %1101 : vector<2x32xf32>
    %1103 = math.exp %1102 : vector<2x32xf32>
    %cst_418 = arith.constant 1.000000e+00 : f32
    %1104 = vector.broadcast %cst_418 : f32 to vector<2x32xf32>
    %1105 = arith.addf %1104, %1103 : vector<2x32xf32>
    %1106 = arith.divf %1104, %1105 : vector<2x32xf32>
    %cst_419 = arith.constant 2.000000e+00 : f32
    %1107 = vector.broadcast %cst_419 : f32 to vector<2x32xf32>
    %1108 = arith.mulf %1107, %1106 : vector<2x32xf32>
    %cst_420 = arith.constant 1.000000e+00 : f32
    %1109 = vector.broadcast %cst_420 : f32 to vector<2x32xf32>
    %1110 = arith.subf %1108, %1109 : vector<2x32xf32>
    %1111 = arith.mulf %1096, %1110 : vector<2x32xf32>
    %c0_421 = arith.constant 0 : index
    %c0_422 = arith.constant 0 : index
    %1112 = vector.load %arg4[%c0_421, %c0_422] : memref<32x128xf32, #tpu.memory_space<vmem>>, vector<32x128xf32>
    %cst_423 = arith.constant dense<0.000000e+00> : vector<2x128xf32>
    %1113 = tpu.matmul %1111, %1112, %cst_423 {dimension_numbers = #tpu.dot_dimension_numbers<[1], [0], [0], [1], [0, 0, 1, 1], [], []>} : vector<2x32xf32>, vector<32x128xf32>, vector<2x128xf32> -> vector<2x128xf32>
    %1114 = arith.addf %1113, %1044 : vector<2x128xf32>
    %1115 = vector.broadcast %1 : vector<1x128xf32> to vector<2x128xf32>
    %1116 = arith.addf %1114, %1115 : vector<2x128xf32>
    %1117 = arith.negf %1116 : vector<2x128xf32>
    %1118 = math.exp %1117 : vector<2x128xf32>
    %cst_424 = arith.constant 1.000000e+00 : f32
    %1119 = vector.broadcast %cst_424 : f32 to vector<2x128xf32>
    %1120 = arith.addf %1119, %1118 : vector<2x128xf32>
    %1121 = arith.divf %1119, %1120 : vector<2x128xf32>
    %1122 = vector.extract_strided_slice %1121 {offsets = [0, 0], sizes = [2, 32], strides = [1, 1]} : vector<2x128xf32> to vector<2x32xf32>
    %1123 = vector.extract_strided_slice %1121 {offsets = [0, 32], sizes = [2, 32], strides = [1, 1]} : vector<2x128xf32> to vector<2x32xf32>
    %1124 = vector.extract_strided_slice %1121 {offsets = [0, 64], sizes = [2, 32], strides = [1, 1]} : vector<2x128xf32> to vector<2x32xf32>
    %cst_425 = arith.constant 2.000000e+00 : f32
    %1125 = vector.broadcast %cst_425 : f32 to vector<2x32xf32>
    %1126 = arith.mulf %1125, %1124 : vector<2x32xf32>
    %cst_426 = arith.constant 1.000000e+00 : f32
    %1127 = vector.broadcast %cst_426 : f32 to vector<2x32xf32>
    %1128 = arith.subf %1126, %1127 : vector<2x32xf32>
    %1129 = vector.extract_strided_slice %1121 {offsets = [0, 96], sizes = [2, 32], strides = [1, 1]} : vector<2x128xf32> to vector<2x32xf32>
    %1130 = arith.mulf %1123, %1026 : vector<2x32xf32>
    %1131 = arith.mulf %1122, %1128 : vector<2x32xf32>
    %1132 = arith.addf %1130, %1131 : vector<2x32xf32>
    %cst_427 = arith.constant 2.000000e+00 : f32
    %1133 = vector.broadcast %cst_427 : f32 to vector<2x32xf32>
    %1134 = arith.mulf %1133, %1132 : vector<2x32xf32>
    %1135 = arith.negf %1134 : vector<2x32xf32>
    %1136 = math.exp %1135 : vector<2x32xf32>
    %cst_428 = arith.constant 1.000000e+00 : f32
    %1137 = vector.broadcast %cst_428 : f32 to vector<2x32xf32>
    %1138 = arith.addf %1137, %1136 : vector<2x32xf32>
    %1139 = arith.divf %1137, %1138 : vector<2x32xf32>
    %cst_429 = arith.constant 2.000000e+00 : f32
    %1140 = vector.broadcast %cst_429 : f32 to vector<2x32xf32>
    %1141 = arith.mulf %1140, %1139 : vector<2x32xf32>
    %cst_430 = arith.constant 1.000000e+00 : f32
    %1142 = vector.broadcast %cst_430 : f32 to vector<2x32xf32>
    %1143 = arith.subf %1141, %1142 : vector<2x32xf32>
    %1144 = arith.mulf %1129, %1143 : vector<2x32xf32>
    %c0_431 = arith.constant 0 : index
    %c0_432 = arith.constant 0 : index
    %1145 = vector.load %arg1[%c0_431, %c0_432] : memref<32x128xf32, #tpu.memory_space<vmem>>, vector<32x128xf32>
    %cst_433 = arith.constant dense<0.000000e+00> : vector<2x128xf32>
    %1146 = tpu.matmul %1078, %1145, %cst_433 {dimension_numbers = #tpu.dot_dimension_numbers<[1], [0], [0], [1], [0, 0, 1, 1], [], []>} : vector<2x32xf32>, vector<32x128xf32>, vector<2x128xf32> -> vector<2x128xf32>
    %c0_434 = arith.constant 0 : index
    %c0_435 = arith.constant 0 : index
    %1147 = vector.load %arg3[%c0_434, %c0_435] : memref<32x128xf32, #tpu.memory_space<vmem>>, vector<32x128xf32>
    %cst_436 = arith.constant dense<0.000000e+00> : vector<2x128xf32>
    %1148 = tpu.matmul %1111, %1147, %cst_436 {dimension_numbers = #tpu.dot_dimension_numbers<[1], [0], [0], [1], [0, 0, 1, 1], [], []>} : vector<2x32xf32>, vector<32x128xf32>, vector<2x128xf32> -> vector<2x128xf32>
    %c0_437 = arith.constant 0 : index
    %c0_438 = arith.constant 0 : index
    %1149 = vector.load %arg5[%c0_437, %c0_438] : memref<32x128xf32, #tpu.memory_space<vmem>>, vector<32x128xf32>
    %cst_439 = arith.constant dense<0.000000e+00> : vector<2x128xf32>
    %1150 = tpu.matmul %1144, %1149, %cst_439 {dimension_numbers = #tpu.dot_dimension_numbers<[1], [0], [0], [1], [0, 0, 1, 1], [], []>} : vector<2x32xf32>, vector<32x128xf32>, vector<2x128xf32> -> vector<2x128xf32>
    %c0_440 = arith.constant 0 : index
    %c0_441 = arith.constant 0 : index
    %1151 = vector.load %arg8[%c0_440, %c0_441] : memref<32x128xf32, #tpu.memory_space<vmem>>, vector<32x128xf32>
    %cst_442 = arith.constant dense<0.000000e+00> : vector<2x128xf32>
    %1152 = tpu.matmul %1144, %1151, %cst_442 {dimension_numbers = #tpu.dot_dimension_numbers<[1], [0], [0], [1], [0, 0, 1, 1], [], []>} : vector<2x32xf32>, vector<32x128xf32>, vector<2x128xf32> -> vector<2x128xf32>
    %1153 = arith.addf %1152, %1146 : vector<2x128xf32>
    %c0_443 = arith.constant 0 : index
    %c0_444 = arith.constant 0 : index
    %1154 = vector.load %arg9[%c0_443, %c0_444] : memref<1x128xf32, #tpu.memory_space<vmem>>, vector<1x128xf32>
    %1155 = vector.broadcast %1154 : vector<1x128xf32> to vector<2x128xf32>
    %1156 = arith.addf %1153, %1155 : vector<2x128xf32>
    %1157 = arith.negf %1156 : vector<2x128xf32>
    %1158 = math.exp %1157 : vector<2x128xf32>
    %cst_445 = arith.constant 1.000000e+00 : f32
    %1159 = vector.broadcast %cst_445 : f32 to vector<2x128xf32>
    %1160 = arith.addf %1159, %1158 : vector<2x128xf32>
    %1161 = arith.divf %1159, %1160 : vector<2x128xf32>
    %1162 = vector.extract_strided_slice %1161 {offsets = [0, 0], sizes = [2, 32], strides = [1, 1]} : vector<2x128xf32> to vector<2x32xf32>
    %1163 = vector.extract_strided_slice %1161 {offsets = [0, 32], sizes = [2, 32], strides = [1, 1]} : vector<2x128xf32> to vector<2x32xf32>
    %1164 = vector.extract_strided_slice %1161 {offsets = [0, 64], sizes = [2, 32], strides = [1, 1]} : vector<2x128xf32> to vector<2x32xf32>
    %cst_446 = arith.constant 2.000000e+00 : f32
    %1165 = vector.broadcast %cst_446 : f32 to vector<2x32xf32>
    %1166 = arith.mulf %1165, %1164 : vector<2x32xf32>
    %cst_447 = arith.constant 1.000000e+00 : f32
    %1167 = vector.broadcast %cst_447 : f32 to vector<2x32xf32>
    %1168 = arith.subf %1166, %1167 : vector<2x32xf32>
    %1169 = vector.extract_strided_slice %1161 {offsets = [0, 96], sizes = [2, 32], strides = [1, 1]} : vector<2x128xf32> to vector<2x32xf32>
    %1170 = arith.mulf %1163, %1066 : vector<2x32xf32>
    %1171 = arith.mulf %1162, %1168 : vector<2x32xf32>
    %1172 = arith.addf %1170, %1171 : vector<2x32xf32>
    %cst_448 = arith.constant 2.000000e+00 : f32
    %1173 = vector.broadcast %cst_448 : f32 to vector<2x32xf32>
    %1174 = arith.mulf %1173, %1172 : vector<2x32xf32>
    %1175 = arith.negf %1174 : vector<2x32xf32>
    %1176 = math.exp %1175 : vector<2x32xf32>
    %cst_449 = arith.constant 1.000000e+00 : f32
    %1177 = vector.broadcast %cst_449 : f32 to vector<2x32xf32>
    %1178 = arith.addf %1177, %1176 : vector<2x32xf32>
    %1179 = arith.divf %1177, %1178 : vector<2x32xf32>
    %cst_450 = arith.constant 2.000000e+00 : f32
    %1180 = vector.broadcast %cst_450 : f32 to vector<2x32xf32>
    %1181 = arith.mulf %1180, %1179 : vector<2x32xf32>
    %cst_451 = arith.constant 1.000000e+00 : f32
    %1182 = vector.broadcast %cst_451 : f32 to vector<2x32xf32>
    %1183 = arith.subf %1181, %1182 : vector<2x32xf32>
    %1184 = arith.mulf %1169, %1183 : vector<2x32xf32>
    %c0_452 = arith.constant 0 : index
    %c0_453 = arith.constant 0 : index
    %1185 = vector.load %arg2[%c0_452, %c0_453] : memref<32x128xf32, #tpu.memory_space<vmem>>, vector<32x128xf32>
    %cst_454 = arith.constant dense<0.000000e+00> : vector<2x128xf32>
    %1186 = tpu.matmul %1184, %1185, %cst_454 {dimension_numbers = #tpu.dot_dimension_numbers<[1], [0], [0], [1], [0, 0, 1, 1], [], []>} : vector<2x32xf32>, vector<32x128xf32>, vector<2x128xf32> -> vector<2x128xf32>
    %1187 = arith.addf %1186, %1148 : vector<2x128xf32>
    %1188 = vector.broadcast %0 : vector<1x128xf32> to vector<2x128xf32>
    %1189 = arith.addf %1187, %1188 : vector<2x128xf32>
    %1190 = arith.negf %1189 : vector<2x128xf32>
    %1191 = math.exp %1190 : vector<2x128xf32>
    %cst_455 = arith.constant 1.000000e+00 : f32
    %1192 = vector.broadcast %cst_455 : f32 to vector<2x128xf32>
    %1193 = arith.addf %1192, %1191 : vector<2x128xf32>
    %1194 = arith.divf %1192, %1193 : vector<2x128xf32>
    %1195 = vector.extract_strided_slice %1194 {offsets = [0, 0], sizes = [2, 32], strides = [1, 1]} : vector<2x128xf32> to vector<2x32xf32>
    %1196 = vector.extract_strided_slice %1194 {offsets = [0, 32], sizes = [2, 32], strides = [1, 1]} : vector<2x128xf32> to vector<2x32xf32>
    %1197 = vector.extract_strided_slice %1194 {offsets = [0, 64], sizes = [2, 32], strides = [1, 1]} : vector<2x128xf32> to vector<2x32xf32>
    %cst_456 = arith.constant 2.000000e+00 : f32
    %1198 = vector.broadcast %cst_456 : f32 to vector<2x32xf32>
    %1199 = arith.mulf %1198, %1197 : vector<2x32xf32>
    %cst_457 = arith.constant 1.000000e+00 : f32
    %1200 = vector.broadcast %cst_457 : f32 to vector<2x32xf32>
    %1201 = arith.subf %1199, %1200 : vector<2x32xf32>
    %1202 = vector.extract_strided_slice %1194 {offsets = [0, 96], sizes = [2, 32], strides = [1, 1]} : vector<2x128xf32> to vector<2x32xf32>
    %1203 = arith.mulf %1196, %1099 : vector<2x32xf32>
    %1204 = arith.mulf %1195, %1201 : vector<2x32xf32>
    %1205 = arith.addf %1203, %1204 : vector<2x32xf32>
    %cst_458 = arith.constant 2.000000e+00 : f32
    %1206 = vector.broadcast %cst_458 : f32 to vector<2x32xf32>
    %1207 = arith.mulf %1206, %1205 : vector<2x32xf32>
    %1208 = arith.negf %1207 : vector<2x32xf32>
    %1209 = math.exp %1208 : vector<2x32xf32>
    %cst_459 = arith.constant 1.000000e+00 : f32
    %1210 = vector.broadcast %cst_459 : f32 to vector<2x32xf32>
    %1211 = arith.addf %1210, %1209 : vector<2x32xf32>
    %1212 = arith.divf %1210, %1211 : vector<2x32xf32>
    %cst_460 = arith.constant 2.000000e+00 : f32
    %1213 = vector.broadcast %cst_460 : f32 to vector<2x32xf32>
    %1214 = arith.mulf %1213, %1212 : vector<2x32xf32>
    %cst_461 = arith.constant 1.000000e+00 : f32
    %1215 = vector.broadcast %cst_461 : f32 to vector<2x32xf32>
    %1216 = arith.subf %1214, %1215 : vector<2x32xf32>
    %1217 = arith.mulf %1202, %1216 : vector<2x32xf32>
    %c0_462 = arith.constant 0 : index
    %c0_463 = arith.constant 0 : index
    %1218 = vector.load %arg4[%c0_462, %c0_463] : memref<32x128xf32, #tpu.memory_space<vmem>>, vector<32x128xf32>
    %cst_464 = arith.constant dense<0.000000e+00> : vector<2x128xf32>
    %1219 = tpu.matmul %1217, %1218, %cst_464 {dimension_numbers = #tpu.dot_dimension_numbers<[1], [0], [0], [1], [0, 0, 1, 1], [], []>} : vector<2x32xf32>, vector<32x128xf32>, vector<2x128xf32> -> vector<2x128xf32>
    %1220 = arith.addf %1219, %1150 : vector<2x128xf32>
    %1221 = vector.broadcast %1 : vector<1x128xf32> to vector<2x128xf32>
    %1222 = arith.addf %1220, %1221 : vector<2x128xf32>
    %1223 = arith.negf %1222 : vector<2x128xf32>
    %1224 = math.exp %1223 : vector<2x128xf32>
    %cst_465 = arith.constant 1.000000e+00 : f32
    %1225 = vector.broadcast %cst_465 : f32 to vector<2x128xf32>
    %1226 = arith.addf %1225, %1224 : vector<2x128xf32>
    %1227 = arith.divf %1225, %1226 : vector<2x128xf32>
    %1228 = vector.extract_strided_slice %1227 {offsets = [0, 0], sizes = [2, 32], strides = [1, 1]} : vector<2x128xf32> to vector<2x32xf32>
    %1229 = vector.extract_strided_slice %1227 {offsets = [0, 32], sizes = [2, 32], strides = [1, 1]} : vector<2x128xf32> to vector<2x32xf32>
    %1230 = vector.extract_strided_slice %1227 {offsets = [0, 64], sizes = [2, 32], strides = [1, 1]} : vector<2x128xf32> to vector<2x32xf32>
    %cst_466 = arith.constant 2.000000e+00 : f32
    %1231 = vector.broadcast %cst_466 : f32 to vector<2x32xf32>
    %1232 = arith.mulf %1231, %1230 : vector<2x32xf32>
    %cst_467 = arith.constant 1.000000e+00 : f32
    %1233 = vector.broadcast %cst_467 : f32 to vector<2x32xf32>
    %1234 = arith.subf %1232, %1233 : vector<2x32xf32>
    %1235 = vector.extract_strided_slice %1227 {offsets = [0, 96], sizes = [2, 32], strides = [1, 1]} : vector<2x128xf32> to vector<2x32xf32>
    %1236 = arith.mulf %1229, %1132 : vector<2x32xf32>
    %1237 = arith.mulf %1228, %1234 : vector<2x32xf32>
    %1238 = arith.addf %1236, %1237 : vector<2x32xf32>
    %cst_468 = arith.constant 2.000000e+00 : f32
    %1239 = vector.broadcast %cst_468 : f32 to vector<2x32xf32>
    %1240 = arith.mulf %1239, %1238 : vector<2x32xf32>
    %1241 = arith.negf %1240 : vector<2x32xf32>
    %1242 = math.exp %1241 : vector<2x32xf32>
    %cst_469 = arith.constant 1.000000e+00 : f32
    %1243 = vector.broadcast %cst_469 : f32 to vector<2x32xf32>
    %1244 = arith.addf %1243, %1242 : vector<2x32xf32>
    %1245 = arith.divf %1243, %1244 : vector<2x32xf32>
    %cst_470 = arith.constant 2.000000e+00 : f32
    %1246 = vector.broadcast %cst_470 : f32 to vector<2x32xf32>
    %1247 = arith.mulf %1246, %1245 : vector<2x32xf32>
    %cst_471 = arith.constant 1.000000e+00 : f32
    %1248 = vector.broadcast %cst_471 : f32 to vector<2x32xf32>
    %1249 = arith.subf %1247, %1248 : vector<2x32xf32>
    %1250 = arith.mulf %1235, %1249 : vector<2x32xf32>
    %1251 = tpu.concatenate %105, %208, %311, %414, %517, %620, %723, %826, %932, %1038, %1144, %1250 in 0 : vector<2x32xf32>, vector<2x32xf32>, vector<2x32xf32>, vector<2x32xf32>, vector<2x32xf32>, vector<2x32xf32>, vector<2x32xf32>, vector<2x32xf32>, vector<2x32xf32>, vector<2x32xf32>, vector<2x32xf32>, vector<2x32xf32> -> vector<24x32xf32>
    %c0_472 = arith.constant 0 : index
    %c0_473 = arith.constant 0 : index
    %1252 = vector.load %arg10[%c0_472, %c0_473] : memref<32x1xf32, #tpu.memory_space<vmem>>, vector<32x1xf32>
    %cst_474 = arith.constant dense<0.000000e+00> : vector<24x1xf32>
    %1253 = tpu.matmul %1251, %1252, %cst_474 {dimension_numbers = #tpu.dot_dimension_numbers<[1], [0], [0], [1], [0, 0, 1, 1], [], []>} : vector<24x32xf32>, vector<32x1xf32>, vector<24x1xf32> -> vector<24x1xf32>
    %c0_475 = arith.constant 0 : index
    %c0_476 = arith.constant 0 : index
    %1254 = vector.load %arg11[%c0_475, %c0_476] : memref<1x1xf32, #tpu.memory_space<vmem>>, vector<1x1xf32>
    %1255 = vector.broadcast %1254 : vector<1x1xf32> to vector<24x1xf32>
    %1256 = arith.addf %1253, %1255 : vector<24x1xf32>
    %c0_477 = arith.constant 0 : index
    %c0_478 = arith.constant 0 : index
    %1257 = vector.load %arg12[%c0_477, %c0_478] : memref<24x1xf32, #tpu.memory_space<vmem>>, vector<24x1xf32>
    tpu.vector_store %arg12[%c0_477, %c0_478], %1256 {strides = array<i32>} : memref<24x1xf32, #tpu.memory_space<vmem>>, vector<24x1xf32>,
    return
  }
}

</mosaic_0001>

<llo_original>
// kernel: tpu_custom_call.1
$region0: #{tpu_custom_call.1}
  #allocation0 [shape = 'u32[]', space=smem, size = 0x4, offset = 0x4, fixed_abs, tag = 'smem constant byte address 0x4 - core index']
  #allocation1 [shape = 'u32[144,128]{1,0:T(1,128)}', space=vmem, size = 0x12000, scoped, tag = 'internal scratch']
  #allocation2 [shape = 'f32[1,1]{1,0:T(1,128)S(1)}', space=vmem, size = 0x200, scoped, tag = 'scoped memory for tpu_custom_call.1']
  %s0 = inlined_call_operand.hbm [shape: f32[8,2,128], index: 0, kind: input, shape index: {}]
  %s1 = inlined_call_operand.vmem [shape: f32[32,128], index: 1, kind: input, shape index: {}]
  %s2 = inlined_call_operand.hbm [shape: f32[32,128], index: 2, kind: input, shape index: {}]
  %s3 = inlined_call_operand.hbm [shape: f32[32,128], index: 3, kind: input, shape index: {}]
  %s4 = inlined_call_operand.hbm [shape: f32[32,128], index: 4, kind: input, shape index: {}]
  %s5 = inlined_call_operand.hbm [shape: f32[32,128], index: 5, kind: input, shape index: {}]
  %s6 = inlined_call_operand.vmem [shape: f32[1,128], index: 6, kind: input, shape index: {}]
  %s7 = inlined_call_operand.vmem [shape: f32[1,128], index: 7, kind: input, shape index: {}]
  %s8 = inlined_call_operand.vmem [shape: f32[32,128], index: 8, kind: input, shape index: {}]
  %s9 = inlined_call_operand.vmem [shape: f32[1,128], index: 9, kind: input, shape index: {}]
  %s10 = inlined_call_operand.vmem [shape: f32[32,1], index: 10, kind: input, shape index: {}]
  %s11 = inlined_call_operand.<no memory space> [shape: f32[1,1], index: 11, kind: input, shape index: {}]
  %s12 = inlined_call_operand.vmem [shape: f32[24,1], index: 12, kind: output, shape index: {}]
  %s13 = sld [smem:[#allocation0]]
  $region78: #{tpu_custom_call.1} parent=0
    _
  %s15 = ssub.s32 1, %s13
  %s16 = scalar_select 0, %s15, %s13
  %v17 = vstv %s11
  %18 = vst [vmem:[#allocation2] sm:$0x1] %v17
  $region1: #{tpu_custom_call.1} parent=0
    #allocation3 [shape = 'u8[8192]{0}', space=vmem, size = 0x2000, scoped, tag = 'input window, operand 0, single buffered']
    #allocation4 [shape = 's32[1]{0}', space=sflag, size = 0x4, scoped, tag = 'scoped memory for tpu_custom_call.1']
    #allocation5 [shape = 'u8[16384]{0}', space=vmem, size = 0x4000, scoped, tag = 'input window, operand 2, single buffered']
    #allocation6 [shape = 's32[1]{0}', space=sflag, size = 0x4, scoped, tag = 'scoped memory for tpu_custom_call.1']
    #allocation7 [shape = 'u8[16384]{0}', space=vmem, size = 0x4000, scoped, tag = 'input window, operand 3, single buffered']
    #allocation8 [shape = 'u8[16384]{0}', space=vmem, size = 0x4000, scoped, tag = 'input window, operand 4, single buffered']
    #allocation9 [shape = 's32[1]{0}', space=sflag, size = 0x4, scoped, tag = 'scoped memory for tpu_custom_call.1']
    #allocation10 [shape = 'u8[16384]{0}', space=vmem, size = 0x4000, scoped, tag = 'input window, operand 5, single buffered']
    %19 = vsyncpa [#allocation4], 0
    %20 = vsyncpa [#allocation6], 0
    %21 = vsyncpa [#allocation9], 0
    // Predicated region
    $region2: #{tpu_custom_call.1} parent=1 // pred_check
      _
    $region3: #{tpu_custom_call.1} parent=1 // pred_check_branch
      %23 = sbr.rel (0) target = $region5
    $region4: #{tpu_custom_call.1} parent=1 // pred_region
      %s25 = ssub.s32 256, 256
      %26 = vsyncadd [#allocation4], %s25
      %s27 = sshll.u32 [#allocation3], 4
      %s28 = int_to_ptr.vmem [resolvable:$true] %s27
      %33 = dma.hbm_to_vmem [thread:$0]  %s0, 256, %s28, [#allocation4], 32, 32, 2
    $region5: #{tpu_custom_call.1} parent=1 // pred_fallthru
      _
    // Predicated region
    $region6: #{tpu_custom_call.1} parent=1 // pred_check
      _
    $region7: #{tpu_custom_call.1} parent=1 // pred_check_branch
      %35 = sbr.rel (0) target = $region9
    $region8: #{tpu_custom_call.1} parent=1 // pred_region
      _
    $region9: #{tpu_custom_call.1} parent=1 // pred_fallthru
      _
    // Predicated region
    $region10: #{tpu_custom_call.1} parent=1 // pred_check
      _
    $region11: #{tpu_custom_call.1} parent=1 // pred_check_branch
      %37 = sbr.rel (0) target = $region13
    $region12: #{tpu_custom_call.1} parent=1 // pred_region
      %s39 = ssub.s32 512, 512
      %40 = vsyncadd [#allocation6], %s39
      %s41 = sshll.u32 [#allocation5], 4
      %s42 = int_to_ptr.vmem [resolvable:$true] %s41
      %47 = dma.hbm_to_vmem [thread:$0]  %s2, 512, %s42, [#allocation6], 128, 128, 8
    $region13: #{tpu_custom_call.1} parent=1 // pred_fallthru
      _
    // Predicated region
    $region14: #{tpu_custom_call.1} parent=1 // pred_check
      _
    $region15: #{tpu_custom_call.1} parent=1 // pred_check_branch
      %49 = sbr.rel (0) target = $region17
    $region16: #{tpu_custom_call.1} parent=1 // pred_region
      %s51 = ssub.s32 512, 512
      %52 = vsyncadd [#allocation6], %s51
      %s53 = sshll.u32 [#allocation7], 4
      %s54 = int_to_ptr.vmem [resolvable:$true] %s53
      %59 = dma.hbm_to_vmem [thread:$0]  %s3, 512, %s54, [#allocation6], 128, 128, 8
    $region17: #{tpu_custom_call.1} parent=1 // pred_fallthru
      _
    // Predicated region
    $region18: #{tpu_custom_call.1} parent=1 // pred_check
      _
    $region19: #{tpu_custom_call.1} parent=1 // pred_check_branch
      %61 = sbr.rel (0) target = $region21
    $region20: #{tpu_custom_call.1} parent=1 // pred_region
      %s63 = ssub.s32 512, 512
      %64 = vsyncadd [#allocation9], %s63
      %s65 = sshll.u32 [#allocation8], 4
      %s66 = int_to_ptr.vmem [resolvable:$true] %s65
      %71 = dma.hbm_to_vmem [thread:$0]  %s4, 512, %s66, [#allocation9], 128, 128, 8
    $region21: #{tpu_custom_call.1} parent=1 // pred_fallthru
      _
    // Predicated region
    $region22: #{tpu_custom_call.1} parent=1 // pred_check
      _
    $region23: #{tpu_custom_call.1} parent=1 // pred_check_branch
      %73 = sbr.rel (0) target = $region25
    $region24: #{tpu_custom_call.1} parent=1 // pred_region
      %s75 = ssub.s32 512, 512
      %76 = vsyncadd [#allocation9], %s75
      %s77 = sshll.u32 [#allocation10], 4
      %s78 = int_to_ptr.vmem [resolvable:$true] %s77
      %83 = dma.hbm_to_vmem [thread:$0]  %s5, 512, %s78, [#allocation9], 128, 128, 8
    $region25: #{tpu_custom_call.1} parent=1 // pred_fallthru
      _
    // Predicated region
    $region26: #{tpu_custom_call.1} parent=1 // pred_check
      _
    $region27: #{tpu_custom_call.1} parent=1 // pred_check_branch
      %85 = sbr.rel (0) target = $region29
    $region28: #{tpu_custom_call.1} parent=1 // pred_region
      _
    $region29: #{tpu_custom_call.1} parent=1 // pred_fallthru
      _
    // Predicated region
    $region30: #{tpu_custom_call.1} parent=1 // pred_check
      _
    $region31: #{tpu_custom_call.1} parent=1 // pred_check_branch
      %87 = sbr.rel (0) target = $region33
    $region32: #{tpu_custom_call.1} parent=1 // pred_region
      _
    $region33: #{tpu_custom_call.1} parent=1 // pred_fallthru
      _
    // Predicated region
    $region34: #{tpu_custom_call.1} parent=1 // pred_check
      _
    $region35: #{tpu_custom_call.1} parent=1 // pred_check_branch
      %89 = sbr.rel (0) target = $region37
    $region36: #{tpu_custom_call.1} parent=1 // pred_region
      _
    $region37: #{tpu_custom_call.1} parent=1 // pred_fallthru
      _
    // Predicated region
    $region38: #{tpu_custom_call.1} parent=1 // pred_check
      _
    $region39: #{tpu_custom_call.1} parent=1 // pred_check_branch
      %91 = sbr.rel (0) target = $region41
    $region40: #{tpu_custom_call.1} parent=1 // pred_region
      _
    $region41: #{tpu_custom_call.1} parent=1 // pred_fallthru
      _
    // Predicated region
    $region42: #{tpu_custom_call.1} parent=1 // pred_check
      _
    $region43: #{tpu_custom_call.1} parent=1 // pred_check_branch
      %93 = sbr.rel (0) target = $region45
    $region44: #{tpu_custom_call.1} parent=1 // pred_region
      _
    $region45: #{tpu_custom_call.1} parent=1 // pred_fallthru
      _
    // Predicated region
    $region46: #{tpu_custom_call.1} parent=1 // pred_check
      _
    $region47: #{tpu_custom_call.1} parent=1 // pred_check_branch
      %95 = sbr.rel (0) target = $region49
    $region48: #{tpu_custom_call.1} parent=1 // pred_region
      _
    $region49: #{tpu_custom_call.1} parent=1 // pred_fallthru
      _
    // Predicated region
    $region50: #{tpu_custom_call.1} parent=1 // pred_check
      _
    $region51: #{tpu_custom_call.1} parent=1 // pred_check_branch
      %97 = sbr.rel (0) target = $region53
    $region52: #{tpu_custom_call.1} parent=1 // pred_region
      %98 = dma.done [#allocation4], 256
    $region53: #{tpu_custom_call.1} parent=1 // pred_fallthru
      _
    // Predicated region
    $region54: #{tpu_custom_call.1} parent=1 // pred_check
      _
    $region55: #{tpu_custom_call.1} parent=1 // pred_check_branch
      %100 = sbr.rel (0) target = $region57
    $region56: #{tpu_custom_call.1} parent=1 // pred_region
      %101 = dma.done [#allocation6], 512
    $region57: #{tpu_custom_call.1} parent=1 // pred_fallthru
      _
    // Predicated region
    $region58: #{tpu_custom_call.1} parent=1 // pred_check
      _
    $region59: #{tpu_custom_call.1} parent=1 // pred_check_branch
      %103 = sbr.rel (0) target = $region61
    $region60: #{tpu_custom_call.1} parent=1 // pred_region
      %104 = dma.done [#allocation6], 512
    $region61: #{tpu_custom_call.1} parent=1 // pred_fallthru
      _
    // Predicated region
    $region62: #{tpu_custom_call.1} parent=1 // pred_check
      _
    $region63: #{tpu_custom_call.1} parent=1 // pred_check_branch
      %106 = sbr.rel (0) target = $region65
    $region64: #{tpu_custom_call.1} parent=1 // pred_region
      %107 = dma.done [#allocation9], 512
    $region65: #{tpu_custom_call.1} parent=1 // pred_fallthru
      _
    // Predicated region
    $region66: #{tpu_custom_call.1} parent=1 // pred_check
      _
    $region67: #{tpu_custom_call.1} parent=1 // pred_check_branch
      %109 = sbr.rel (0) target = $region69
    $region68: #{tpu_custom_call.1} parent=1 // pred_region
      %110 = dma.done [#allocation9], 512
    $region69: #{tpu_custom_call.1} parent=1 // pred_fallthru
      _
    %v111 = vld [vmem:[%s6] sm:$0x1]
    %v112 = vld [vmem:[%s7] sm:$0x1]
    %v113 = vld [vmem:[%s1] sm:$0xff]
    %v114 = vld [vmem:[%s1 + $0x8] sm:$0xff]
    %v115 = vld [vmem:[%s1 + $0x10] sm:$0xff]
    %v116 = vld [vmem:[%s1 + $0x18] sm:$0xff]
    %vm117 = vcmask 261120
    %v119 = vsel %vm117, 0.0, 0
    %121 = vmatprep.subr.mxu0 0.0
    %122 = vmatpush1.msra.mxu0 %v113
    %123 = vmatprep.subr.mxu0 0.0
    %124 = vmatpush1.msra.mxu0 %v114
    %125 = vmatprep.subr.mxu0 0.0
    %126 = vmatpush1.msra.mxu0 %v115
    %127 = vmatprep.subr.mxu0 0.0
    %128 = vmatpush1.msra.mxu0 %v116
    %129 = vmatprep.subr.mxu0 0.0
    %130 = vmatpush1.msra.mxu0 0.0
    %131 = vmatprep.subr.mxu0 0.0
    %132 = vmatpush1.msra.mxu0 0.0
    %133 = vmatprep.subr.mxu0 0.0
    %134 = vmatpush1.msra.mxu0 0.0
    %135 = vmatprep.subr.mxu0 0.0
    %136 = vmatpush1.msra.mxu0 0.0
    %137 = vmatprep.subr.mxu0 0.0
    %138 = vmatpush1.msra.mxu0 0.0
    %139 = vmatprep.subr.mxu0 0.0
    %140 = vmatpush1.msra.mxu0 0.0
    %141 = vmatprep.subr.mxu0 0.0
    %142 = vmatpush1.msra.mxu0 0.0
    %143 = vmatprep.subr.mxu0 0.0
    %144 = vmatpush1.msra.mxu0 0.0
    %145 = vmatprep.subr.mxu0 0.0
    %146 = vmatpush1.msra.mxu0 0.0
    %147 = vmatprep.subr.mxu0 0.0
    %148 = vmatpush1.msra.mxu0 0.0
    %149 = vmatprep.subr.mxu0 0.0
    %150 = vmatpush1.msra.mxu0 0.0
    %151 = vmatprep.subr.mxu0 0.0
    %152 = vmatpush1.msra.mxu0 0.0
    %153 = vmatprep.subr.mxu0 0.0
    %154 = vmatpush1.msra.mxu0 0.0
    %155 = vmatprep.subr.mxu0 0.0
    %156 = vmatpush1.msra.mxu0 0.0
    %157 = vmatprep.subr.mxu0 0.0
    %158 = vmatpush1.msra.mxu0 0.0
    %159 = vmatprep.subr.mxu0 0.0
    %160 = vmatpush1.msra.mxu0 0.0
    %161 = vmatprep.subr.mxu0 0.0
    %162 = vmatpush1.msra.mxu0 0.0
    %163 = vmatprep.subr.mxu0 0.0
    %164 = vmatpush1.msra.mxu0 0.0
    %165 = vmatprep.subr.mxu0 0.0
    %166 = vmatpush1.msra.mxu0 0.0
    %167 = vmatprep.subr.mxu0 0.0
    %168 = vmatpush1.msra.mxu0 0.0
    %169 = vmatprep.subr.mxu0 0.0
    %170 = vmatpush1.msra.mxu0 0.0
    %171 = vmatprep.subr.mxu0 0.0
    %172 = vmatpush1.msra.mxu0 0.0
    %173 = vmatprep.subr.mxu0 0.0
    %174 = vmatpush1.msra.mxu0 0.0
    %175 = vmatprep.subr.mxu0 0.0
    %176 = vmatpush1.msra.mxu0 0.0
    %177 = vmatprep.subr.mxu0 0.0
    %178 = vmatpush1.msra.mxu0 0.0
    %179 = vmatprep.subr.mxu0 0.0
    %180 = vmatpush1.msra.mxu0 0.0
    %181 = vmatprep.subr.mxu0 0.0
    %182 = vmatpush1.msra.mxu0 0.0
    %183 = vmatprep.subr.mxu0 0.0
    %184 = vmatpush1.msra.mxu0 0.0
    %185 = vmatprep.mubr.f32.mxu0 0.0
    %186 = vmatmul.mubr.f32.gmra.mrb[0].mxu0 %v119
    %v187 = vpop.f32.mrb[0].mxu0
    %v188 = vadd.f32 0.0, %v187
    %v189 = vpop.f32.mrb[0].mxu0
    %190 = vdwg.mxu0
    %v191 = vld [vmem:[#allocation7] sm:$0xff]
    %v192 = vld [vmem:[#allocation7 + $0x8] sm:$0xff]
    %v193 = vld [vmem:[#allocation7 + $0x10] sm:$0xff]
    %v194 = vld [vmem:[#allocation7 + $0x18] sm:$0xff]
    %195 = vmatprep.subr.mxu0 0.0
    %196 = vmatpush1.msra.mxu0 %v191
    %197 = vmatprep.subr.mxu0 0.0
    %198 = vmatpush1.msra.mxu0 %v192
    %199 = vmatprep.subr.mxu0 0.0
    %200 = vmatpush1.msra.mxu0 %v193
    %201 = vmatprep.subr.mxu0 0.0
    %202 = vmatpush1.msra.mxu0 %v194
    %203 = vmatprep.subr.mxu0 0.0
    %204 = vmatpush1.msra.mxu0 0.0
    %205 = vmatprep.subr.mxu0 0.0
    %206 = vmatpush1.msra.mxu0 0.0
    %207 = vmatprep.subr.mxu0 0.0
    %208 = vmatpush1.msra.mxu0 0.0
    %209 = vmatprep.subr.mxu0 0.0
    %210 = vmatpush1.msra.mxu0 0.0
    %211 = vmatprep.subr.mxu0 0.0
    %212 = vmatpush1.msra.mxu0 0.0
    %213 = vmatprep.subr.mxu0 0.0
    %214 = vmatpush1.msra.mxu0 0.0
    %215 = vmatprep.subr.mxu0 0.0
    %216 = vmatpush1.msra.mxu0 0.0
    %217 = vmatprep.subr.mxu0 0.0
    %218 = vmatpush1.msra.mxu0 0.0
    %219 = vmatprep.subr.mxu0 0.0
    %220 = vmatpush1.msra.mxu0 0.0
    %221 = vmatprep.subr.mxu0 0.0
    %222 = vmatpush1.msra.mxu0 0.0
    %223 = vmatprep.subr.mxu0 0.0
    %224 = vmatpush1.msra.mxu0 0.0
    %225 = vmatprep.subr.mxu0 0.0
    %226 = vmatpush1.msra.mxu0 0.0
    %227 = vmatprep.subr.mxu0 0.0
    %228 = vmatpush1.msra.mxu0 0.0
    %229 = vmatprep.subr.mxu0 0.0
    %230 = vmatpush1.msra.mxu0 0.0
    %231 = vmatprep.subr.mxu0 0.0
    %232 = vmatpush1.msra.mxu0 0.0
    %233 = vmatprep.subr.mxu0 0.0
    %234 = vmatpush1.msra.mxu0 0.0
    %235 = vmatprep.subr.mxu0 0.0
    %236 = vmatpush1.msra.mxu0 0.0
    %237 = vmatprep.subr.mxu0 0.0
    %238 = vmatpush1.msra.mxu0 0.0
    %239 = vmatprep.subr.mxu0 0.0
    %240 = vmatpush1.msra.mxu0 0.0
    %241 = vmatprep.subr.mxu0 0.0
    %242 = vmatpush1.msra.mxu0 0.0
    %243 = vmatprep.subr.mxu0 0.0
    %244 = vmatpush1.msra.mxu0 0.0
    %245 = vmatprep.subr.mxu0 0.0
    %246 = vmatpush1.msra.mxu0 0.0
    %247 = vmatprep.subr.mxu0 0.0
    %248 = vmatpush1.msra.mxu0 0.0
    %249 = vmatprep.subr.mxu0 0.0
    %250 = vmatpush1.msra.mxu0 0.0
    %251 = vmatprep.subr.mxu0 0.0
    %252 = vmatpush1.msra.mxu0 0.0
    %253 = vmatprep.subr.mxu0 0.0
    %254 = vmatpush1.msra.mxu0 0.0
    %255 = vmatprep.subr.mxu0 0.0
    %256 = vmatpush1.msra.mxu0 0.0
    %257 = vmatprep.subr.mxu0 0.0
    %258 = vmatpush1.msra.mxu0 0.0
    %259 = vmatprep.mubr.f32.mxu0 0.0
    %260 = vmatmul.mubr.f32.gmra.mrb[0].mxu0 %v119
    %v261 = vpop.f32.mrb[0].mxu0
    %v262 = vadd.f32 0.0, %v261
    %v263 = vpop.f32.mrb[0].mxu0
    %264 = vdwg.mxu0
    %v265 = vld [vmem:[#allocation10] sm:$0xff]
    %v266 = vld [vmem:[#allocation10 + $0x8] sm:$0xff]
    %v267 = vld [vmem:[#allocation10 + $0x10] sm:$0xff]
    %v268 = vld [vmem:[#allocation10 + $0x18] sm:$0xff]
    %269 = vmatprep.subr.mxu0 0.0
    %270 = vmatpush1.msra.mxu0 %v265
    %271 = vmatprep.subr.mxu0 0.0
    %272 = vmatpush1.msra.mxu0 %v266
    %273 = vmatprep.subr.mxu0 0.0
    %274 = vmatpush1.msra.mxu0 %v267
    %275 = vmatprep.subr.mxu0 0.0
    %276 = vmatpush1.msra.mxu0 %v268
    %277 = vmatprep.subr.mxu0 0.0
    %278 = vmatpush1.msra.mxu0 0.0
    %279 = vmatprep.subr.mxu0 0.0
    %280 = vmatpush1.msra.mxu0 0.0
    %281 = vmatprep.subr.mxu0 0.0
    %282 = vmatpush1.msra.mxu0 0.0
    %283 = vmatprep.subr.mxu0 0.0
    %284 = vmatpush1.msra.mxu0 0.0
    %285 = vmatprep.subr.mxu0 0.0
    %286 = vmatpush1.msra.mxu0 0.0
    %287 = vmatprep.subr.mxu0 0.0
    %288 = vmatpush1.msra.mxu0 0.0
    %289 = vmatprep.subr.mxu0 0.0
    %290 = vmatpush1.msra.mxu0 0.0
    %291 = vmatprep.subr.mxu0 0.0
    %292 = vmatpush1.msra.mxu0 0.0
    %293 = vmatprep.subr.mxu0 0.0
    %294 = vmatpush1.msra.mxu0 0.0
    %295 = vmatprep.subr.mxu0 0.0
    %296 = vmatpush1.msra.mxu0 0.0
    %297 = vmatprep.subr.mxu0 0.0
    %298 = vmatpush1.msra.mxu0 0.0
    %299 = vmatprep.subr.mxu0 0.0
    %300 = vmatpush1.msra.mxu0 0.0
    %301 = vmatprep.subr.mxu0 0.0
    %302 = vmatpush1.msra.mxu0 0.0
    %303 = vmatprep.subr.mxu0 0.0
    %304 = vmatpush1.msra.mxu0 0.0
    %305 = vmatprep.subr.mxu0 0.0
    %306 = vmatpush1.msra.mxu0 0.0
    %307 = vmatprep.subr.mxu0 0.0
    %308 = vmatpush1.msra.mxu0 0.0
    %309 = vmatprep.subr.mxu0 0.0
    %310 = vmatpush1.msra.mxu0 0.0
    %311 = vmatprep.subr.mxu0 0.0
    %312 = vmatpush1.msra.mxu0 0.0
    %313 = vmatprep.subr.mxu0 0.0
    %314 = vmatpush1.msra.mxu0 0.0
    %315 = vmatprep.subr.mxu0 0.0
    %316 = vmatpush1.msra.mxu0 0.0
    %317 = vmatprep.subr.mxu0 0.0
    %318 = vmatpush1.msra.mxu0 0.0
    %319 = vmatprep.subr.mxu0 0.0
    %320 = vmatpush1.msra.mxu0 0.0
    %321 = vmatprep.subr.mxu0 0.0
    %322 = vmatpush1.msra.mxu0 0.0
    %323 = vmatprep.subr.mxu0 0.0
    %324 = vmatpush1.msra.mxu0 0.0
    %325 = vmatprep.subr.mxu0 0.0
    %326 = vmatpush1.msra.mxu0 0.0
    %327 = vmatprep.subr.mxu0 0.0
    %328 = vmatpush1.msra.mxu0 0.0
    %329 = vmatprep.subr.mxu0 0.0
    %330 = vmatpush1.msra.mxu0 0.0
    %331 = vmatprep.subr.mxu0 0.0
    %332 = vmatpush1.msra.mxu0 0.0
    %333 = vmatprep.mubr.f32.mxu0 0.0
    %334 = vmatmul.mubr.f32.gmra.mrb[0].mxu0 %v119
    %v335 = vpop.f32.mrb[0].mxu0
    %v336 = vadd.f32 0.0, %v335
    %v337 = vpop.f32.mrb[0].mxu0
    %338 = vdwg.mxu0
    %v339 = vld [vmem:[#allocation3] sm:$0x3]
    %v340 = vadd.f32 %v339, %v188
    %v341 = vxor.u32 %v340, 2147483648
    %v342 = vmul.f32 %v341, 1.442695
    %v343 = vpow.pop %v342
    %v344 = vadd.f32 %v343, 1.0
    %v345 = vrcp.pop %v344
    %v346 = vmul.f32 1.0, %v345
    %v347 = vmul.f32 %v346, 2.0
    %v348 = vsub.f32 %v347, 1.0
    %v349 = vmul.f32 %v346, 0.0
    %351 = vrot.lane.b32.xlu0 %v348, 64
    %v352 = vpop.permute.xlu0 %351
    %v354 = vmul.f32 %v346, %v352
    %356 = vrot.lane.b32.xlu0 %v354, 32
    %v357 = vpop.permute.xlu0 %356
    %v359 = vadd.f32 %v349, %v357
    %v360 = vmul.f32 %v359, 2.0
    %v361 = vxor.u32 %v360, 2147483648
    %v362 = vmul.f32 %v361, 1.442695
    %v363 = vpow.pop %v362
    %v364 = vadd.f32 %v363, 1.0
    %v365 = vrcp.pop %v364
    %v366 = vmul.f32 1.0, %v365
    %v367 = vmul.f32 %v366, 2.0
    %v368 = vsub.f32 %v367, 1.0
    %370 = vrot.lane.b32.xlu0 %v368, 64
    %v371 = vpop.permute.xlu0 %370
    %v373 = vmul.f32 %v346, %v371
    %v374 = vld [vmem:[#allocation5] sm:$0xff]
    %v375 = vld [vmem:[#allocation5 + $0x8] sm:$0xff]
    %v376 = vld [vmem:[#allocation5 + $0x10] sm:$0xff]
    %v377 = vld [vmem:[#allocation5 + $0x18] sm:$0xff]
    %379 = vrot.lane.b32.xlu0 %v373, 32
    %v380 = vpop.permute.xlu0 %379
    %v381 = vsel %vm117, %v380, 0
    %383 = vmatprep.subr.mxu0 0.0
    %384 = vmatpush1.msra.mxu0 %v374
    %385 = vmatprep.subr.mxu0 0.0
    %386 = vmatpush1.msra.mxu0 %v375
    %387 = vmatprep.subr.mxu0 0.0
    %388 = vmatpush1.msra.mxu0 %v376
    %389 = vmatprep.subr.mxu0 0.0
    %390 = vmatpush1.msra.mxu0 %v377
    %391 = vmatprep.subr.mxu0 0.0
    %392 = vmatpush1.msra.mxu0 0.0
    %393 = vmatprep.subr.mxu0 0.0
    %394 = vmatpush1.msra.mxu0 0.0
    %395 = vmatprep.subr.mxu0 0.0
    %396 = vmatpush1.msra.mxu0 0.0
    %397 = vmatprep.subr.mxu0 0.0
    %398 = vmatpush1.msra.mxu0 0.0
    %399 = vmatprep.subr.mxu0 0.0
    %400 = vmatpush1.msra.mxu0 0.0
    %401 = vmatprep.subr.mxu0 0.0
    %402 = vmatpush1.msra.mxu0 0.0
    %403 = vmatprep.subr.mxu0 0.0
    %404 = vmatpush1.msra.mxu0 0.0
    %405 = vmatprep.subr.mxu0 0.0
    %406 = vmatpush1.msra.mxu0 0.0
    %407 = vmatprep.subr.mxu0 0.0
    %408 = vmatpush1.msra.mxu0 0.0
    %409 = vmatprep.subr.mxu0 0.0
    %410 = vmatpush1.msra.mxu0 0.0
    %411 = vmatprep.subr.mxu0 0.0
    %412 = vmatpush1.msra.mxu0 0.0
    %413 = vmatprep.subr.mxu0 0.0
    %414 = vmatpush1.msra.mxu0 0.0
    %415 = vmatprep.subr.mxu0 0.0
    %416 = vmatpush1.msra.mxu0 0.0
    %417 = vmatprep.subr.mxu0 0.0
    %418 = vmatpush1.msra.mxu0 0.0
    %419 = vmatprep.subr.mxu0 0.0
    %420 = vmatpush1.msra.mxu0 0.0
    %421 = vmatprep.subr.mxu0 0.0
    %422 = vmatpush1.msra.mxu0 0.0
    %423 = vmatprep.subr.mxu0 0.0
    %424 = vmatpush1.msra.mxu0 0.0
    %425 = vmatprep.subr.mxu0 0.0
    %426 = vmatpush1.msra.mxu0 0.0
    %427 = vmatprep.subr.mxu0 0.0
    %428 = vmatpush1.msra.mxu0 0.0
    %429 = vmatprep.subr.mxu0 0.0
    %430 = vmatpush1.msra.mxu0 0.0
    %431 = vmatprep.subr.mxu0 0.0
    %432 = vmatpush1.msra.mxu0 0.0
    %433 = vmatprep.subr.mxu0 0.0
    %434 = vmatpush1.msra.mxu0 0.0
    %435 = vmatprep.subr.mxu0 0.0
    %436 = vmatpush1.msra.mxu0 0.0
    %437 = vmatprep.subr.mxu0 0.0
    %438 = vmatpush1.msra.mxu0 0.0
    %439 = vmatprep.subr.mxu0 0.0
    %440 = vmatpush1.msra.mxu0 0.0
    %441 = vmatprep.subr.mxu0 0.0
    %442 = vmatpush1.msra.mxu0 0.0
    %443 = vmatprep.subr.mxu0 0.0
    %444 = vmatpush1.msra.mxu0 0.0
    %445 = vmatprep.subr.mxu0 0.0
    %446 = vmatpush1.msra.mxu0 0.0
    %447 = vmatprep.mubr.f32.mxu0 0.0
    %448 = vmatmul.mubr.f32.gmra.mrb[0].mxu0 %v381
    %v449 = vpop.f32.mrb[0].mxu0
    %v450 = vadd.f32 %v262, %v449
    %v451 = vpop.f32.mrb[0].mxu0
    %452 = vdwg.mxu0
    %v454 = vlaneseq
    %v455 = vshrl.u32 %v454, 7
    %v456 = vsub.s32 0, %v455
    %v457 = vrot.slane %v111, %v456
    %v459 = vadd.f32 %v450, %v457
    %v460 = vxor.u32 %v459, 2147483648
    %v461 = vmul.f32 %v460, 1.442695
    %v462 = vpow.pop %v461
    %v463 = vadd.f32 %v462, 1.0
    %v464 = vrcp.pop %v463
    %v465 = vmul.f32 1.0, %v464
    %v466 = vmul.f32 %v465, 2.0
    %v467 = vsub.f32 %v466, 1.0
    %v468 = vmul.f32 %v465, 0.0
    %470 = vrot.lane.b32.xlu0 %v467, 64
    %v471 = vpop.permute.xlu0 %470
    %v473 = vmul.f32 %v465, %v471
    %475 = vrot.lane.b32.xlu0 %v473, 32
    %v476 = vpop.permute.xlu0 %475
    %v478 = vadd.f32 %v468, %v476
    %v479 = vmul.f32 %v478, 2.0
    %v480 = vxor.u32 %v479, 2147483648
    %v481 = vmul.f32 %v480, 1.442695
    %v482 = vpow.pop %v481
    %v483 = vadd.f32 %v482, 1.0
    %v484 = vrcp.pop %v483
    %v485 = vmul.f32 1.0, %v484
    %v486 = vmul.f32 %v485, 2.0
    %v487 = vsub.f32 %v486, 1.0
    %489 = vrot.lane.b32.xlu0 %v487, 64
    %v490 = vpop.permute.xlu0 %489
    %v492 = vmul.f32 %v465, %v490
    %v493 = vld [vmem:[#allocation8] sm:$0xff]
    %v494 = vld [vmem:[#allocation8 + $0x8] sm:$0xff]
    %v495 = vld [vmem:[#allocation8 + $0x10] sm:$0xff]
    %v496 = vld [vmem:[#allocation8 + $0x18] sm:$0xff]
    %498 = vrot.lane.b32.xlu0 %v492, 32
    %v499 = vpop.permute.xlu0 %498
    %v500 = vsel %vm117, %v499, 0
    %502 = vmatprep.subr.mxu0 0.0
    %503 = vmatpush1.msra.mxu0 %v493
    %504 = vmatprep.subr.mxu0 0.0
    %505 = vmatpush1.msra.mxu0 %v494
    %506 = vmatprep.subr.mxu0 0.0
    %507 = vmatpush1.msra.mxu0 %v495
    %508 = vmatprep.subr.mxu0 0.0
    %509 = vmatpush1.msra.mxu0 %v496
    %510 = vmatprep.subr.mxu0 0.0
    %511 = vmatpush1.msra.mxu0 0.0
    %512 = vmatprep.subr.mxu0 0.0
    %513 = vmatpush1.msra.mxu0 0.0
    %514 = vmatprep.subr.mxu0 0.0
    %515 = vmatpush1.msra.mxu0 0.0
    %516 = vmatprep.subr.mxu0 0.0
    %517 = vmatpush1.msra.mxu0 0.0
    %518 = vmatprep.subr.mxu0 0.0
    %519 = vmatpush1.msra.mxu0 0.0
    %520 = vmatprep.subr.mxu0 0.0
    %521 = vmatpush1.msra.mxu0 0.0
    %522 = vmatprep.subr.mxu0 0.0
    %523 = vmatpush1.msra.mxu0 0.0
    %524 = vmatprep.subr.mxu0 0.0
    %525 = vmatpush1.msra.mxu0 0.0
    %526 = vmatprep.subr.mxu0 0.0
    %527 = vmatpush1.msra.mxu0 0.0
    %528 = vmatprep.subr.mxu0 0.0
    %529 = vmatpush1.msra.mxu0 0.0
    %530 = vmatprep.subr.mxu0 0.0
    %531 = vmatpush1.msra.mxu0 0.0
    %532 = vmatprep.subr.mxu0 0.0
    %533 = vmatpush1.msra.mxu0 0.0
    %534 = vmatprep.subr.mxu0 0.0
    %535 = vmatpush1.msra.mxu0 0.0
    %536 = vmatprep.subr.mxu0 0.0
    %537 = vmatpush1.msra.mxu0 0.0
    %538 = vmatprep.subr.mxu0 0.0
    %539 = vmatpush1.msra.mxu0 0.0
    %540 = vmatprep.subr.mxu0 0.0
    %541 = vmatpush1.msra.mxu0 0.0
    %542 = vmatprep.subr.mxu0 0.0
    %543 = vmatpush1.msra.mxu0 0.0
    %544 = vmatprep.subr.mxu0 0.0
    %545 = vmatpush1.msra.mxu0 0.0
    %546 = vmatprep.subr.mxu0 0.0
    %547 = vmatpush1.msra.mxu0 0.0
    %548 = vmatprep.subr.mxu0 0.0
    %549 = vmatpush1.msra.mxu0 0.0
    %550 = vmatprep.subr.mxu0 0.0
    %551 = vmatpush1.msra.mxu0 0.0
    %552 = vmatprep.subr.mxu0 0.0
    %553 = vmatpush1.msra.mxu0 0.0
    %554 = vmatprep.subr.mxu0 0.0
    %555 = vmatpush1.msra.mxu0 0.0
    %556 = vmatprep.subr.mxu0 0.0
    %557 = vmatpush1.msra.mxu0 0.0
    %558 = vmatprep.subr.mxu0 0.0
    %559 = vmatpush1.msra.mxu0 0.0
    %560 = vmatprep.subr.mxu0 0.0
    %561 = vmatpush1.msra.mxu0 0.0
    %562 = vmatprep.subr.mxu0 0.0
    %563 = vmatpush1.msra.mxu0 0.0
    %564 = vmatprep.subr.mxu0 0.0
    %565 = vmatpush1.msra.mxu0 0.0
    %566 = vmatprep.mubr.f32.mxu0 0.0
    %567 = vmatmul.mubr.f32.gmra.mrb[0].mxu0 %v500
    %v568 = vpop.f32.mrb[0].mxu0
    %v569 = vadd.f32 %v336, %v568
    %v570 = vpop.f32.mrb[0].mxu0
    %571 = vdwg.mxu0
    %v573 = vlaneseq
    %v574 = vshrl.u32 %v573, 7
    %v575 = vsub.s32 0, %v574
    %v576 = vrot.slane %v112, %v575
    %v578 = vadd.f32 %v569, %v576
    %v579 = vxor.u32 %v578, 2147483648
    %v580 = vmul.f32 %v579, 1.442695
    %v581 = vpow.pop %v580
    %v582 = vadd.f32 %v581, 1.0
    %v583 = vrcp.pop %v582
    %v584 = vmul.f32 1.0, %v583
    %v585 = vmul.f32 %v584, 2.0
    %v586 = vsub.f32 %v585, 1.0
    %v587 = vmul.f32 %v584, 0.0
    %589 = vrot.lane.b32.xlu0 %v586, 64
    %v590 = vpop.permute.xlu0 %589
    %v592 = vmul.f32 %v584, %v590
    %594 = vrot.lane.b32.xlu0 %v592, 32
    %v595 = vpop.permute.xlu0 %594
    %v597 = vadd.f32 %v587, %v595
    %v598 = vmul.f32 %v597, 2.0
    %v599 = vxor.u32 %v598, 2147483648
    %v600 = vmul.f32 %v599, 1.442695
    %v601 = vpow.pop %v600
    %v602 = vadd.f32 %v601, 1.0
    %v603 = vrcp.pop %v602
    %v604 = vmul.f32 1.0, %v603
    %v605 = vmul.f32 %v604, 2.0
    %v606 = vsub.f32 %v605, 1.0
    %608 = vrot.lane.b32.xlu0 %v606, 64
    %v609 = vpop.permute.xlu0 %608
    %v611 = vmul.f32 %v584, %v609
    %612 = vmatprep.subr.mxu0 0.0
    %613 = vmatpush1.msra.mxu0 %v113
    %614 = vmatprep.subr.mxu0 0.0
    %615 = vmatpush1.msra.mxu0 %v114
    %616 = vmatprep.subr.mxu0 0.0
    %617 = vmatpush1.msra.mxu0 %v115
    %618 = vmatprep.subr.mxu0 0.0
    %619 = vmatpush1.msra.mxu0 %v116
    %620 = vmatprep.subr.mxu0 0.0
    %621 = vmatpush1.msra.mxu0 0.0
    %622 = vmatprep.subr.mxu0 0.0
    %623 = vmatpush1.msra.mxu0 0.0
    %624 = vmatprep.subr.mxu0 0.0
    %625 = vmatpush1.msra.mxu0 0.0
    %626 = vmatprep.subr.mxu0 0.0
    %627 = vmatpush1.msra.mxu0 0.0
    %628 = vmatprep.subr.mxu0 0.0
    %629 = vmatpush1.msra.mxu0 0.0
    %630 = vmatprep.subr.mxu0 0.0
    %631 = vmatpush1.msra.mxu0 0.0
    %632 = vmatprep.subr.mxu0 0.0
    %633 = vmatpush1.msra.mxu0 0.0
    %634 = vmatprep.subr.mxu0 0.0
    %635 = vmatpush1.msra.mxu0 0.0
    %636 = vmatprep.subr.mxu0 0.0
    %637 = vmatpush1.msra.mxu0 0.0
    %638 = vmatprep.subr.mxu0 0.0
    %639 = vmatpush1.msra.mxu0 0.0
    %640 = vmatprep.subr.mxu0 0.0
    %641 = vmatpush1.msra.mxu0 0.0
    %642 = vmatprep.subr.mxu0 0.0
    %643 = vmatpush1.msra.mxu0 0.0
    %644 = vmatprep.subr.mxu0 0.0
    %645 = vmatpush1.msra.mxu0 0.0
    %646 = vmatprep.subr.mxu0 0.0
    %647 = vmatpush1.msra.mxu0 0.0
    %648 = vmatprep.subr.mxu0 0.0
    %649 = vmatpush1.msra.mxu0 0.0
    %650 = vmatprep.subr.mxu0 0.0
    %651 = vmatpush1.msra.mxu0 0.0
    %652 = vmatprep.subr.mxu0 0.0
    %653 = vmatpush1.msra.mxu0 0.0
    %654 = vmatprep.subr.mxu0 0.0
    %655 = vmatpush1.msra.mxu0 0.0
    %656 = vmatprep.subr.mxu0 0.0
    %657 = vmatpush1.msra.mxu0 0.0
    %658 = vmatprep.subr.mxu0 0.0
    %659 = vmatpush1.msra.mxu0 0.0
    %660 = vmatprep.subr.mxu0 0.0
    %661 = vmatpush1.msra.mxu0 0.0
    %662 = vmatprep.subr.mxu0 0.0
    %663 = vmatpush1.msra.mxu0 0.0
    %664 = vmatprep.subr.mxu0 0.0
    %665 = vmatpush1.msra.mxu0 0.0
    %666 = vmatprep.subr.mxu0 0.0
    %667 = vmatpush1.msra.mxu0 0.0
    %668 = vmatprep.subr.mxu0 0.0
    %669 = vmatpush1.msra.mxu0 0.0
    %670 = vmatprep.subr.mxu0 0.0
    %671 = vmatpush1.msra.mxu0 0.0
    %672 = vmatprep.subr.mxu0 0.0
    %673 = vmatpush1.msra.mxu0 0.0
    %674 = vmatprep.subr.mxu0 0.0
    %675 = vmatpush1.msra.mxu0 0.0
    %676 = vmatprep.mubr.f32.mxu0 0.0
    %677 = vmatmul.mubr.f32.gmra.mrb[0].mxu0 %v381
    %v678 = vpop.f32.mrb[0].mxu0
    %v679 = vadd.f32 0.0, %v678
    %v680 = vpop.f32.mrb[0].mxu0
    %681 = vdwg.mxu0
    %682 = vmatprep.subr.mxu0 0.0
    %683 = vmatpush1.msra.mxu0 %v191
    %684 = vmatprep.subr.mxu0 0.0
    %685 = vmatpush1.msra.mxu0 %v192
    %686 = vmatprep.subr.mxu0 0.0
    %687 = vmatpush1.msra.mxu0 %v193
    %688 = vmatprep.subr.mxu0 0.0
    %689 = vmatpush1.msra.mxu0 %v194
    %690 = vmatprep.subr.mxu0 0.0
    %691 = vmatpush1.msra.mxu0 0.0
    %692 = vmatprep.subr.mxu0 0.0
    %693 = vmatpush1.msra.mxu0 0.0
    %694 = vmatprep.subr.mxu0 0.0
    %695 = vmatpush1.msra.mxu0 0.0
    %696 = vmatprep.subr.mxu0 0.0
    %697 = vmatpush1.msra.mxu0 0.0
    %698 = vmatprep.subr.mxu0 0.0
    %699 = vmatpush1.msra.mxu0 0.0
    %700 = vmatprep.subr.mxu0 0.0
    %701 = vmatpush1.msra.mxu0 0.0
    %702 = vmatprep.subr.mxu0 0.0
    %703 = vmatpush1.msra.mxu0 0.0
    %704 = vmatprep.subr.mxu0 0.0
    %705 = vmatpush1.msra.mxu0 0.0
    %706 = vmatprep.subr.mxu0 0.0
    %707 = vmatpush1.msra.mxu0 0.0
    %708 = vmatprep.subr.mxu0 0.0
    %709 = vmatpush1.msra.mxu0 0.0
    %710 = vmatprep.subr.mxu0 0.0
    %711 = vmatpush1.msra.mxu0 0.0
    %712 = vmatprep.subr.mxu0 0.0
    %713 = vmatpush1.msra.mxu0 0.0
    %714 = vmatprep.subr.mxu0 0.0
    %715 = vmatpush1.msra.mxu0 0.0
    %716 = vmatprep.subr.mxu0 0.0
    %717 = vmatpush1.msra.mxu0 0.0
    %718 = vmatprep.subr.mxu0 0.0
    %719 = vmatpush1.msra.mxu0 0.0
    %720 = vmatprep.subr.mxu0 0.0
    %721 = vmatpush1.msra.mxu0 0.0
    %722 = vmatprep.subr.mxu0 0.0
    %723 = vmatpush1.msra.mxu0 0.0
    %724 = vmatprep.subr.mxu0 0.0
    %725 = vmatpush1.msra.mxu0 0.0
    %726 = vmatprep.subr.mxu0 0.0
    %727 = vmatpush1.msra.mxu0 0.0
    %728 = vmatprep.subr.mxu0 0.0
    %729 = vmatpush1.msra.mxu0 0.0
    %730 = vmatprep.subr.mxu0 0.0
    %731 = vmatpush1.msra.mxu0 0.0
    %732 = vmatprep.subr.mxu0 0.0
    %733 = vmatpush1.msra.mxu0 0.0
    %734 = vmatprep.subr.mxu0 0.0
    %735 = vmatpush1.msra.mxu0 0.0
    %736 = vmatprep.subr.mxu0 0.0
    %737 = vmatpush1.msra.mxu0 0.0
    %738 = vmatprep.subr.mxu0 0.0
    %739 = vmatpush1.msra.mxu0 0.0
    %740 = vmatprep.subr.mxu0 0.0
    %741 = vmatpush1.msra.mxu0 0.0
    %742 = vmatprep.subr.mxu0 0.0
    %743 = vmatpush1.msra.mxu0 0.0
    %744 = vmatprep.subr.mxu0 0.0
    %745 = vmatpush1.msra.mxu0 0.0
    %746 = vmatprep.mubr.f32.mxu0 0.0
    %747 = vmatmul.mubr.f32.gmra.mrb[0].mxu0 %v500
    %v748 = vpop.f32.mrb[0].mxu0
    %v749 = vadd.f32 0.0, %v748
    %v750 = vpop.f32.mrb[0].mxu0
    %751 = vdwg.mxu0
    %753 = vrot.lane.b32.xlu0 %v611, 32
    %v754 = vpop.permute.xlu0 %753
    %v755 = vsel %vm117, %v754, 0
    %757 = vmatprep.subr.mxu0 0.0
    %758 = vmatpush1.msra.mxu0 %v265
    %759 = vmatprep.subr.mxu0 0.0
    %760 = vmatpush1.msra.mxu0 %v266
    %761 = vmatprep.subr.mxu0 0.0
    %762 = vmatpush1.msra.mxu0 %v267
    %763 = vmatprep.subr.mxu0 0.0
    %764 = vmatpush1.msra.mxu0 %v268
    %765 = vmatprep.subr.mxu0 0.0
    %766 = vmatpush1.msra.mxu0 0.0
    %767 = vmatprep.subr.mxu0 0.0
    %768 = vmatpush1.msra.mxu0 0.0
    %769 = vmatprep.subr.mxu0 0.0
    %770 = vmatpush1.msra.mxu0 0.0
    %771 = vmatprep.subr.mxu0 0.0
    %772 = vmatpush1.msra.mxu0 0.0
    %773 = vmatprep.subr.mxu0 0.0
    %774 = vmatpush1.msra.mxu0 0.0
    %775 = vmatprep.subr.mxu0 0.0
    %776 = vmatpush1.msra.mxu0 0.0
    %777 = vmatprep.subr.mxu0 0.0
    %778 = vmatpush1.msra.mxu0 0.0
    %779 = vmatprep.subr.mxu0 0.0
    %780 = vmatpush1.msra.mxu0 0.0
    %781 = vmatprep.subr.mxu0 0.0
    %782 = vmatpush1.msra.mxu0 0.0
    %783 = vmatprep.subr.mxu0 0.0
    %784 = vmatpush1.msra.mxu0 0.0
    %785 = vmatprep.subr.mxu0 0.0
    %786 = vmatpush1.msra.mxu0 0.0
    %787 = vmatprep.subr.mxu0 0.0
    %788 = vmatpush1.msra.mxu0 0.0
    %789 = vmatprep.subr.mxu0 0.0
    %790 = vmatpush1.msra.mxu0 0.0
    %791 = vmatprep.subr.mxu0 0.0
    %792 = vmatpush1.msra.mxu0 0.0
    %793 = vmatprep.subr.mxu0 0.0
    %794 = vmatpush1.msra.mxu0 0.0
    %795 = vmatprep.subr.mxu0 0.0
    %796 = vmatpush1.msra.mxu0 0.0
    %797 = vmatprep.subr.mxu0 0.0
    %798 = vmatpush1.msra.mxu0 0.0
    %799 = vmatprep.subr.mxu0 0.0
    %800 = vmatpush1.msra.mxu0 0.0
    %801 = vmatprep.subr.mxu0 0.0
    %802 = vmatpush1.msra.mxu0 0.0
    %803 = vmatprep.subr.mxu0 0.0
    %804 = vmatpush1.msra.mxu0 0.0
    %805 = vmatprep.subr.mxu0 0.0
    %806 = vmatpush1.msra.mxu0 0.0
    %807 = vmatprep.subr.mxu0 0.0
    %808 = vmatpush1.msra.mxu0 0.0
    %809 = vmatprep.subr.mxu0 0.0
    %810 = vmatpush1.msra.mxu0 0.0
    %811 = vmatprep.subr.mxu0 0.0
    %812 = vmatpush1.msra.mxu0 0.0
    %813 = vmatprep.subr.mxu0 0.0
    %814 = vmatpush1.msra.mxu0 0.0
    %815 = vmatprep.subr.mxu0 0.0
    %816 = vmatpush1.msra.mxu0 0.0
    %817 = vmatprep.subr.mxu0 0.0
    %818 = vmatpush1.msra.mxu0 0.0
    %819 = vmatprep.subr.mxu0 0.0
    %820 = vmatpush1.msra.mxu0 0.0
    %821 = vmatprep.mubr.f32.mxu0 0.0
    %822 = vmatmul.mubr.f32.gmra.mrb[0].mxu0 %v755
    %v823 = vpop.f32.mrb[0].mxu0
    %v824 = vadd.f32 0.0, %v823
    %v825 = vpop.f32.mrb[0].mxu0
    %826 = vdwg.mxu0
    %s827 = scalar_lea.vmem [#allocation3], 2
    %v828 = vld [vmem:[%s827] sm:$0x3]
    %v829 = vadd.f32 %v828, %v679
    %v830 = vxor.u32 %v829, 2147483648
    %v831 = vmul.f32 %v830, 1.442695
    %v832 = vpow.pop %v831
    %v833 = vadd.f32 %v832, 1.0
    %v834 = vrcp.pop %v833
    %v835 = vmul.f32 1.0, %v834
    %v836 = vmul.f32 %v835, 2.0
    %v837 = vsub.f32 %v836, 1.0
    %v838 = vmul.f32 %v835, %v359
    %840 = vrot.lane.b32.xlu0 %v837, 64
    %v841 = vpop.permute.xlu0 %840
    %v843 = vmul.f32 %v835, %v841
    %845 = vrot.lane.b32.xlu0 %v843, 32
    %v846 = vpop.permute.xlu0 %845
    %v848 = vadd.f32 %v838, %v846
    %v849 = vmul.f32 %v848, 2.0
    %v850 = vxor.u32 %v849, 2147483648
    %v851 = vmul.f32 %v850, 1.442695
    %v852 = vpow.pop %v851
    %v853 = vadd.f32 %v852, 1.0
    %v854 = vrcp.pop %v853
    %v855 = vmul.f32 1.0, %v854
    %v856 = vmul.f32 %v855, 2.0
    %v857 = vsub.f32 %v856, 1.0
    %859 = vrot.lane.b32.xlu0 %v857, 64
    %v860 = vpop.permute.xlu0 %859
    %v862 = vmul.f32 %v835, %v860
    %864 = vrot.lane.b32.xlu0 %v862, 32
    %v865 = vpop.permute.xlu0 %864
    %v866 = vsel %vm117, %v865, 0
    %868 = vmatprep.subr.mxu0 0.0
    %869 = vmatpush1.msra.mxu0 %v374
    %870 = vmatprep.subr.mxu0 0.0
    %871 = vmatpush1.msra.mxu0 %v375
    %872 = vmatprep.subr.mxu0 0.0
    %873 = vmatpush1.msra.mxu0 %v376
    %874 = vmatprep.subr.mxu0 0.0
    %875 = vmatpush1.msra.mxu0 %v377
    %876 = vmatprep.subr.mxu0 0.0
    %877 = vmatpush1.msra.mxu0 0.0
    %878 = vmatprep.subr.mxu0 0.0
    %879 = vmatpush1.msra.mxu0 0.0
    %880 = vmatprep.subr.mxu0 0.0
    %881 = vmatpush1.msra.mxu0 0.0
    %882 = vmatprep.subr.mxu0 0.0
    %883 = vmatpush1.msra.mxu0 0.0
    %884 = vmatprep.subr.mxu0 0.0
    %885 = vmatpush1.msra.mxu0 0.0
    %886 = vmatprep.subr.mxu0 0.0
    %887 = vmatpush1.msra.mxu0 0.0
    %888 = vmatprep.subr.mxu0 0.0
    %889 = vmatpush1.msra.mxu0 0.0
    %890 = vmatprep.subr.mxu0 0.0
    %891 = vmatpush1.msra.mxu0 0.0
    %892 = vmatprep.subr.mxu0 0.0
    %893 = vmatpush1.msra.mxu0 0.0
    %894 = vmatprep.subr.mxu0 0.0
    %895 = vmatpush1.msra.mxu0 0.0
    %896 = vmatprep.subr.mxu0 0.0
    %897 = vmatpush1.msra.mxu0 0.0
    %898 = vmatprep.subr.mxu0 0.0
    %899 = vmatpush1.msra.mxu0 0.0
    %900 = vmatprep.subr.mxu0 0.0
    %901 = vmatpush1.msra.mxu0 0.0
    %902 = vmatprep.subr.mxu0 0.0
    %903 = vmatpush1.msra.mxu0 0.0
    %904 = vmatprep.subr.mxu0 0.0
    %905 = vmatpush1.msra.mxu0 0.0
    %906 = vmatprep.subr.mxu0 0.0
    %907 = vmatpush1.msra.mxu0 0.0
    %908 = vmatprep.subr.mxu0 0.0
    %909 = vmatpush1.msra.mxu0 0.0
    %910 = vmatprep.subr.mxu0 0.0
    %911 = vmatpush1.msra.mxu0 0.0
    %912 = vmatprep.subr.mxu0 0.0
    %913 = vmatpush1.msra.mxu0 0.0
    %914 = vmatprep.subr.mxu0 0.0
    %915 = vmatpush1.msra.mxu0 0.0
    %916 = vmatprep.subr.mxu0 0.0
    %917 = vmatpush1.msra.mxu0 0.0
    %918 = vmatprep.subr.mxu0 0.0
    %919 = vmatpush1.msra.mxu0 0.0
    %920 = vmatprep.subr.mxu0 0.0
    %921 = vmatpush1.msra.mxu0 0.0
    %922 = vmatprep.subr.mxu0 0.0
    %923 = vmatpush1.msra.mxu0 0.0
    %924 = vmatprep.subr.mxu0 0.0
    %925 = vmatpush1.msra.mxu0 0.0
    %926 = vmatprep.subr.mxu0 0.0
    %927 = vmatpush1.msra.mxu0 0.0
    %928 = vmatprep.subr.mxu0 0.0
    %929 = vmatpush1.msra.mxu0 0.0
    %930 = vmatprep.subr.mxu0 0.0
    %931 = vmatpush1.msra.mxu0 0.0
    %932 = vmatprep.mubr.f32.mxu0 0.0
    %933 = vmatmul.mubr.f32.gmra.mrb[0].mxu0 %v866
    %v934 = vpop.f32.mrb[0].mxu0
    %v935 = vadd.f32 %v749, %v934
    %v936 = vpop.f32.mrb[0].mxu0
    %937 = vdwg.mxu0
    %v938 = vadd.f32 %v935, %v457
    %v939 = vxor.u32 %v938, 2147483648
    %v940 = vmul.f32 %v939, 1.442695
    %v941 = vpow.pop %v940
    %v942 = vadd.f32 %v941, 1.0
    %v943 = vrcp.pop %v942
    %v944 = vmul.f32 1.0, %v943
    %v945 = vmul.f32 %v944, 2.0
    %v946 = vsub.f32 %v945, 1.0
    %v947 = vmul.f32 %v944, %v478
    %949 = vrot.lane.b32.xlu0 %v946, 64
    %v950 = vpop.permute.xlu0 %949
    %v952 = vmul.f32 %v944, %v950
    %954 = vrot.lane.b32.xlu0 %v952, 32
    %v955 = vpop.permute.xlu0 %954
    %v957 = vadd.f32 %v947, %v955
    %v958 = vmul.f32 %v957, 2.0
    %v959 = vxor.u32 %v958, 2147483648
    %v960 = vmul.f32 %v959, 1.442695
    %v961 = vpow.pop %v960
    %v962 = vadd.f32 %v961, 1.0
    %v963 = vrcp.pop %v962
    %v964 = vmul.f32 1.0, %v963
    %v965 = vmul.f32 %v964, 2.0
    %v966 = vsub.f32 %v965, 1.0
    %968 = vrot.lane.b32.xlu0 %v966, 64
    %v969 = vpop.permute.xlu0 %968
    %v971 = vmul.f32 %v944, %v969
    %973 = vrot.lane.b32.xlu0 %v971, 32
    %v974 = vpop.permute.xlu0 %973
    %v975 = vsel %vm117, %v974, 0
    %977 = vmatprep.subr.mxu0 0.0
    %978 = vmatpush1.msra.mxu0 %v493
    %979 = vmatprep.subr.mxu0 0.0
    %980 = vmatpush1.msra.mxu0 %v494
    %981 = vmatprep.subr.mxu0 0.0
    %982 = vmatpush1.msra.mxu0 %v495
    %983 = vmatprep.subr.mxu0 0.0
    %984 = vmatpush1.msra.mxu0 %v496
    %985 = vmatprep.subr.mxu0 0.0
    %986 = vmatpush1.msra.mxu0 0.0
    %987 = vmatprep.subr.mxu0 0.0
    %988 = vmatpush1.msra.mxu0 0.0
    %989 = vmatprep.subr.mxu0 0.0
    %990 = vmatpush1.msra.mxu0 0.0
    %991 = vmatprep.subr.mxu0 0.0
    %992 = vmatpush1.msra.mxu0 0.0
    %993 = vmatprep.subr.mxu0 0.0
    %994 = vmatpush1.msra.mxu0 0.0
    %995 = vmatprep.subr.mxu0 0.0
    %996 = vmatpush1.msra.mxu0 0.0
    %997 = vmatprep.subr.mxu0 0.0
    %998 = vmatpush1.msra.mxu0 0.0
    %999 = vmatprep.subr.mxu0 0.0
    %1000 = vmatpush1.msra.mxu0 0.0
    %1001 = vmatprep.subr.mxu0 0.0
    %1002 = vmatpush1.msra.mxu0 0.0
    %1003 = vmatprep.subr.mxu0 0.0
    %1004 = vmatpush1.msra.mxu0 0.0
    %1005 = vmatprep.subr.mxu0 0.0
    %1006 = vmatpush1.msra.mxu0 0.0
    %1007 = vmatprep.subr.mxu0 0.0
    %1008 = vmatpush1.msra.mxu0 0.0
    %1009 = vmatprep.subr.mxu0 0.0
    %1010 = vmatpush1.msra.mxu0 0.0
    %1011 = vmatprep.subr.mxu0 0.0
    %1012 = vmatpush1.msra.mxu0 0.0
    %1013 = vmatprep.subr.mxu0 0.0
    %1014 = vmatpush1.msra.mxu0 0.0
    %1015 = vmatprep.subr.mxu0 0.0
    %1016 = vmatpush1.msra.mxu0 0.0
    %1017 = vmatprep.subr.mxu0 0.0
    %1018 = vmatpush1.msra.mxu0 0.0
    %1019 = vmatprep.subr.mxu0 0.0
    %1020 = vmatpush1.msra.mxu0 0.0
    %1021 = vmatprep.subr.mxu0 0.0
    %1022 = vmatpush1.msra.mxu0 0.0
    %1023 = vmatprep.subr.mxu0 0.0
    %1024 = vmatpush1.msra.mxu0 0.0
    %1025 = vmatprep.subr.mxu0 0.0
    %1026 = vmatpush1.msra.mxu0 0.0
    %1027 = vmatprep.subr.mxu0 0.0
    %1028 = vmatpush1.msra.mxu0 0.0
    %1029 = vmatprep.subr.mxu0 0.0
    %1030 = vmatpush1.msra.mxu0 0.0
    %1031 = vmatprep.subr.mxu0 0.0
    %1032 = vmatpush1.msra.mxu0 0.0
    %1033 = vmatprep.subr.mxu0 0.0
    %1034 = vmatpush1.msra.mxu0 0.0
    %1035 = vmatprep.subr.mxu0 0.0
    %1036 = vmatpush1.msra.mxu0 0.0
    %1037 = vmatprep.subr.mxu0 0.0
    %1038 = vmatpush1.msra.mxu0 0.0
    %1039 = vmatprep.subr.mxu0 0.0
    %1040 = vmatpush1.msra.mxu0 0.0
    %1041 = vmatprep.mubr.f32.mxu0 0.0
    %1042 = vmatmul.mubr.f32.gmra.mrb[0].mxu0 %v975
    %v1043 = vpop.f32.mrb[0].mxu0
    %v1044 = vadd.f32 %v824, %v1043
    %v1045 = vpop.f32.mrb[0].mxu0
    %1046 = vdwg.mxu0
    %v1047 = vadd.f32 %v1044, %v576
    %v1048 = vxor.u32 %v1047, 2147483648
    %v1049 = vmul.f32 %v1048, 1.442695
    %v1050 = vpow.pop %v1049
    %v1051 = vadd.f32 %v1050, 1.0
    %v1052 = vrcp.pop %v1051
    %v1053 = vmul.f32 1.0, %v1052
    %v1054 = vmul.f32 %v1053, 2.0
    %v1055 = vsub.f32 %v1054, 1.0
    %v1056 = vmul.f32 %v1053, %v597
    %1058 = vrot.lane.b32.xlu0 %v1055, 64
    %v1059 = vpop.permute.xlu0 %1058
    %v1061 = vmul.f32 %v1053, %v1059
    %1063 = vrot.lane.b32.xlu0 %v1061, 32
    %v1064 = vpop.permute.xlu0 %1063
    %v1066 = vadd.f32 %v1056, %v1064
    %v1067 = vmul.f32 %v1066, 2.0
    %v1068 = vxor.u32 %v1067, 2147483648
    %v1069 = vmul.f32 %v1068, 1.442695
    %v1070 = vpow.pop %v1069
    %v1071 = vadd.f32 %v1070, 1.0
    %v1072 = vrcp.pop %v1071
    %v1073 = vmul.f32 1.0, %v1072
    %v1074 = vmul.f32 %v1073, 2.0
    %v1075 = vsub.f32 %v1074, 1.0
    %1077 = vrot.lane.b32.xlu0 %v1075, 64
    %v1078 = vpop.permute.xlu0 %1077
    %v1080 = vmul.f32 %v1053, %v1078
    %1081 = vmatprep.subr.mxu0 0.0
    %1082 = vmatpush1.msra.mxu0 %v113
    %1083 = vmatprep.subr.mxu0 0.0
    %1084 = vmatpush1.msra.mxu0 %v114
    %1085 = vmatprep.subr.mxu0 0.0
    %1086 = vmatpush1.msra.mxu0 %v115
    %1087 = vmatprep.subr.mxu0 0.0
    %1088 = vmatpush1.msra.mxu0 %v116
    %1089 = vmatprep.subr.mxu0 0.0
    %1090 = vmatpush1.msra.mxu0 0.0
    %1091 = vmatprep.subr.mxu0 0.0
    %1092 = vmatpush1.msra.mxu0 0.0
    %1093 = vmatprep.subr.mxu0 0.0
    %1094 = vmatpush1.msra.mxu0 0.0
    %1095 = vmatprep.subr.mxu0 0.0
    %1096 = vmatpush1.msra.mxu0 0.0
    %1097 = vmatprep.subr.mxu0 0.0
    %1098 = vmatpush1.msra.mxu0 0.0
    %1099 = vmatprep.subr.mxu0 0.0
    %1100 = vmatpush1.msra.mxu0 0.0
    %1101 = vmatprep.subr.mxu0 0.0
    %1102 = vmatpush1.msra.mxu0 0.0
    %1103 = vmatprep.subr.mxu0 0.0
    %1104 = vmatpush1.msra.mxu0 0.0
    %1105 = vmatprep.subr.mxu0 0.0
    %1106 = vmatpush1.msra.mxu0 0.0
    %1107 = vmatprep.subr.mxu0 0.0
    %1108 = vmatpush1.msra.mxu0 0.0
    %1109 = vmatprep.subr.mxu0 0.0
    %1110 = vmatpush1.msra.mxu0 0.0
    %1111 = vmatprep.subr.mxu0 0.0
    %1112 = vmatpush1.msra.mxu0 0.0
    %1113 = vmatprep.subr.mxu0 0.0
    %1114 = vmatpush1.msra.mxu0 0.0
    %1115 = vmatprep.subr.mxu0 0.0
    %1116 = vmatpush1.msra.mxu0 0.0
    %1117 = vmatprep.subr.mxu0 0.0
    %1118 = vmatpush1.msra.mxu0 0.0
    %1119 = vmatprep.subr.mxu0 0.0
    %1120 = vmatpush1.msra.mxu0 0.0
    %1121 = vmatprep.subr.mxu0 0.0
    %1122 = vmatpush1.msra.mxu0 0.0
    %1123 = vmatprep.subr.mxu0 0.0
    %1124 = vmatpush1.msra.mxu0 0.0
    %1125 = vmatprep.subr.mxu0 0.0
    %1126 = vmatpush1.msra.mxu0 0.0
    %1127 = vmatprep.subr.mxu0 0.0
    %1128 = vmatpush1.msra.mxu0 0.0
    %1129 = vmatprep.subr.mxu0 0.0
    %1130 = vmatpush1.msra.mxu0 0.0
    %1131 = vmatprep.subr.mxu0 0.0
    %1132 = vmatpush1.msra.mxu0 0.0
    %1133 = vmatprep.subr.mxu0 0.0
    %1134 = vmatpush1.msra.mxu0 0.0
    %1135 = vmatprep.subr.mxu0 0.0
    %1136 = vmatpush1.msra.mxu0 0.0
    %1137 = vmatprep.subr.mxu0 0.0
    %1138 = vmatpush1.msra.mxu0 0.0
    %1139 = vmatprep.subr.mxu0 0.0
    %1140 = vmatpush1.msra.mxu0 0.0
    %1141 = vmatprep.subr.mxu0 0.0
    %1142 = vmatpush1.msra.mxu0 0.0
    %1143 = vmatprep.subr.mxu0 0.0
    %1144 = vmatpush1.msra.mxu0 0.0
    %1145 = vmatprep.mubr.f32.mxu0 0.0
    %1146 = vmatmul.mubr.f32.gmra.mrb[0].mxu0 %v866
    %v1147 = vpop.f32.mrb[0].mxu0
    %v1148 = vadd.f32 0.0, %v1147
    %v1149 = vpop.f32.mrb[0].mxu0
    %1150 = vdwg.mxu0
    %1151 = vmatprep.subr.mxu0 0.0
    %1152 = vmatpush1.msra.mxu0 %v191
    %1153 = vmatprep.subr.mxu0 0.0
    %1154 = vmatpush1.msra.mxu0 %v192
    %1155 = vmatprep.subr.mxu0 0.0
    %1156 = vmatpush1.msra.mxu0 %v193
    %1157 = vmatprep.subr.mxu0 0.0
    %1158 = vmatpush1.msra.mxu0 %v194
    %1159 = vmatprep.subr.mxu0 0.0
    %1160 = vmatpush1.msra.mxu0 0.0
    %1161 = vmatprep.subr.mxu0 0.0
    %1162 = vmatpush1.msra.mxu0 0.0
    %1163 = vmatprep.subr.mxu0 0.0
    %1164 = vmatpush1.msra.mxu0 0.0
    %1165 = vmatprep.subr.mxu0 0.0
    %1166 = vmatpush1.msra.mxu0 0.0
    %1167 = vmatprep.subr.mxu0 0.0
    %1168 = vmatpush1.msra.mxu0 0.0
    %1169 = vmatprep.subr.mxu0 0.0
    %1170 = vmatpush1.msra.mxu0 0.0
    %1171 = vmatprep.subr.mxu0 0.0
    %1172 = vmatpush1.msra.mxu0 0.0
    %1173 = vmatprep.subr.mxu0 0.0
    %1174 = vmatpush1.msra.mxu0 0.0
    %1175 = vmatprep.subr.mxu0 0.0
    %1176 = vmatpush1.msra.mxu0 0.0
    %1177 = vmatprep.subr.mxu0 0.0
    %1178 = vmatpush1.msra.mxu0 0.0
    %1179 = vmatprep.subr.mxu0 0.0
    %1180 = vmatpush1.msra.mxu0 0.0
    %1181 = vmatprep.subr.mxu0 0.0
    %1182 = vmatpush1.msra.mxu0 0.0
    %1183 = vmatprep.subr.mxu0 0.0
    %1184 = vmatpush1.msra.mxu0 0.0
    %1185 = vmatprep.subr.mxu0 0.0
    %1186 = vmatpush1.msra.mxu0 0.0
    %1187 = vmatprep.subr.mxu0 0.0
    %1188 = vmatpush1.msra.mxu0 0.0
    %1189 = vmatprep.subr.mxu0 0.0
    %1190 = vmatpush1.msra.mxu0 0.0
    %1191 = vmatprep.subr.mxu0 0.0
    %1192 = vmatpush1.msra.mxu0 0.0
    %1193 = vmatprep.subr.mxu0 0.0
    %1194 = vmatpush1.msra.mxu0 0.0
    %1195 = vmatprep.subr.mxu0 0.0
    %1196 = vmatpush1.msra.mxu0 0.0
    %1197 = vmatprep.subr.mxu0 0.0
    %1198 = vmatpush1.msra.mxu0 0.0
    %1199 = vmatprep.subr.mxu0 0.0
    %1200 = vmatpush1.msra.mxu0 0.0
    %1201 = vmatprep.subr.mxu0 0.0
    %1202 = vmatpush1.msra.mxu0 0.0
    %1203 = vmatprep.subr.mxu0 0.0
    %1204 = vmatpush1.msra.mxu0 0.0
    %1205 = vmatprep.subr.mxu0 0.0
    %1206 = vmatpush1.msra.mxu0 0.0
    %1207 = vmatprep.subr.mxu0 0.0
    %1208 = vmatpush1.msra.mxu0 0.0
    %1209 = vmatprep.subr.mxu0 0.0
    %1210 = vmatpush1.msra.mxu0 0.0
    %1211 = vmatprep.subr.mxu0 0.0
    %1212 = vmatpush1.msra.mxu0 0.0
    %1213 = vmatprep.subr.mxu0 0.0
    %1214 = vmatpush1.msra.mxu0 0.0
    %1215 = vmatprep.mubr.f32.mxu0 0.0
    %1216 = vmatmul.mubr.f32.gmra.mrb[0].mxu0 %v975
    %v1217 = vpop.f32.mrb[0].mxu0
    %v1218 = vadd.f32 0.0, %v1217
    %v1219 = vpop.f32.mrb[0].mxu0
    %1220 = vdwg.mxu0
    %1222 = vrot.lane.b32.xlu0 %v1080, 32
    %v1223 = vpop.permute.xlu0 %1222
    %v1224 = vsel %vm117, %v1223, 0
    %1226 = vmatprep.subr.mxu0 0.0
    %1227 = vmatpush1.msra.mxu0 %v265
    %1228 = vmatprep.subr.mxu0 0.0
    %1229 = vmatpush1.msra.mxu0 %v266
    %1230 = vmatprep.subr.mxu0 0.0
    %1231 = vmatpush1.msra.mxu0 %v267
    %1232 = vmatprep.subr.mxu0 0.0
    %1233 = vmatpush1.msra.mxu0 %v268
    %1234 = vmatprep.subr.mxu0 0.0
    %1235 = vmatpush1.msra.mxu0 0.0
    %1236 = vmatprep.subr.mxu0 0.0
    %1237 = vmatpush1.msra.mxu0 0.0
    %1238 = vmatprep.subr.mxu0 0.0
    %1239 = vmatpush1.msra.mxu0 0.0
    %1240 = vmatprep.subr.mxu0 0.0
    %1241 = vmatpush1.msra.mxu0 0.0
    %1242 = vmatprep.subr.mxu0 0.0
    %1243 = vmatpush1.msra.mxu0 0.0
    %1244 = vmatprep.subr.mxu0 0.0
    %1245 = vmatpush1.msra.mxu0 0.0
    %1246 = vmatprep.subr.mxu0 0.0
    %1247 = vmatpush1.msra.mxu0 0.0
    %1248 = vmatprep.subr.mxu0 0.0
    %1249 = vmatpush1.msra.mxu0 0.0
    %1250 = vmatprep.subr.mxu0 0.0
    %1251 = vmatpush1.msra.mxu0 0.0
    %1252 = vmatprep.subr.mxu0 0.0
    %1253 = vmatpush1.msra.mxu0 0.0
    %1254 = vmatprep.subr.mxu0 0.0
    %1255 = vmatpush1.msra.mxu0 0.0
    %1256 = vmatprep.subr.mxu0 0.0
    %1257 = vmatpush1.msra.mxu0 0.0
    %1258 = vmatprep.subr.mxu0 0.0
    %1259 = vmatpush1.msra.mxu0 0.0
    %1260 = vmatprep.subr.mxu0 0.0
    %1261 = vmatpush1.msra.mxu0 0.0
    %1262 = vmatprep.subr.mxu0 0.0
    %1263 = vmatpush1.msra.mxu0 0.0
    %1264 = vmatprep.subr.mxu0 0.0
    %1265 = vmatpush1.msra.mxu0 0.0
    %1266 = vmatprep.subr.mxu0 0.0
    %1267 = vmatpush1.msra.mxu0 0.0
    %1268 = vmatprep.subr.mxu0 0.0
    %1269 = vmatpush1.msra.mxu0 0.0
    %1270 = vmatprep.subr.mxu0 0.0
    %1271 = vmatpush1.msra.mxu0 0.0
    %1272 = vmatprep.subr.mxu0 0.0
    %1273 = vmatpush1.msra.mxu0 0.0
    %1274 = vmatprep.subr.mxu0 0.0
    %1275 = vmatpush1.msra.mxu0 0.0
    %1276 = vmatprep.subr.mxu0 0.0
    %1277 = vmatpush1.msra.mxu0 0.0
    %1278 = vmatprep.subr.mxu0 0.0
    %1279 = vmatpush1.msra.mxu0 0.0
    %1280 = vmatprep.subr.mxu0 0.0
    %1281 = vmatpush1.msra.mxu0 0.0
    %1282 = vmatprep.subr.mxu0 0.0
    %1283 = vmatpush1.msra.mxu0 0.0
    %1284 = vmatprep.subr.mxu0 0.0
    %1285 = vmatpush1.msra.mxu0 0.0
    %1286 = vmatprep.subr.mxu0 0.0
    %1287 = vmatpush1.msra.mxu0 0.0
    %1288 = vmatprep.subr.mxu0 0.0
    %1289 = vmatpush1.msra.mxu0 0.0
    %1290 = vmatprep.mubr.f32.mxu0 0.0
    %1291 = vmatmul.mubr.f32.gmra.mrb[0].mxu0 %v1224
    %v1292 = vpop.f32.mrb[0].mxu0
    %v1293 = vadd.f32 0.0, %v1292
    %v1294 = vpop.f32.mrb[0].mxu0
    %1295 = vdwg.mxu0
    %s1296 = scalar_lea.vmem [#allocation3], 4
    %v1297 = vld [vmem:[%s1296] sm:$0x3]
    %v1298 = vadd.f32 %v1297, %v1148
    %v1299 = vxor.u32 %v1298, 2147483648
    %v1300 = vmul.f32 %v1299, 1.442695
    %v1301 = vpow.pop %v1300
    %v1302 = vadd.f32 %v1301, 1.0
    %v1303 = vrcp.pop %v1302
    %v1304 = vmul.f32 1.0, %v1303
    %v1305 = vmul.f32 %v1304, 2.0
    %v1306 = vsub.f32 %v1305, 1.0
    %v1307 = vmul.f32 %v1304, %v848
    %1309 = vrot.lane.b32.xlu0 %v1306, 64
    %v1310 = vpop.permute.xlu0 %1309
    %v1312 = vmul.f32 %v1304, %v1310
    %1314 = vrot.lane.b32.xlu0 %v1312, 32
    %v1315 = vpop.permute.xlu0 %1314
    %v1317 = vadd.f32 %v1307, %v1315
    %v1318 = vmul.f32 %v1317, 2.0
    %v1319 = vxor.u32 %v1318, 2147483648
    %v1320 = vmul.f32 %v1319, 1.442695
    %v1321 = vpow.pop %v1320
    %v1322 = vadd.f32 %v1321, 1.0
    %v1323 = vrcp.pop %v1322
    %v1324 = vmul.f32 1.0, %v1323
    %v1325 = vmul.f32 %v1324, 2.0
    %v1326 = vsub.f32 %v1325, 1.0
    %1328 = vrot.lane.b32.xlu0 %v1326, 64
    %v1329 = vpop.permute.xlu0 %1328
    %v1331 = vmul.f32 %v1304, %v1329
    %1333 = vrot.lane.b32.xlu0 %v1331, 32
    %v1334 = vpop.permute.xlu0 %1333
    %v1335 = vsel %vm117, %v1334, 0
    %1337 = vmatprep.subr.mxu0 0.0
    %1338 = vmatpush1.msra.mxu0 %v374
    %1339 = vmatprep.subr.mxu0 0.0
    %1340 = vmatpush1.msra.mxu0 %v375
    %1341 = vmatprep.subr.mxu0 0.0
    %1342 = vmatpush1.msra.mxu0 %v376
    %1343 = vmatprep.subr.mxu0 0.0
    %1344 = vmatpush1.msra.mxu0 %v377
    %1345 = vmatprep.subr.mxu0 0.0
    %1346 = vmatpush1.msra.mxu0 0.0
    %1347 = vmatprep.subr.mxu0 0.0
    %1348 = vmatpush1.msra.mxu0 0.0
    %1349 = vmatprep.subr.mxu0 0.0
    %1350 = vmatpush1.msra.mxu0 0.0
    %1351 = vmatprep.subr.mxu0 0.0
    %1352 = vmatpush1.msra.mxu0 0.0
    %1353 = vmatprep.subr.mxu0 0.0
    %1354 = vmatpush1.msra.mxu0 0.0
    %1355 = vmatprep.subr.mxu0 0.0
    %1356 = vmatpush1.msra.mxu0 0.0
    %1357 = vmatprep.subr.mxu0 0.0
    %1358 = vmatpush1.msra.mxu0 0.0
    %1359 = vmatprep.subr.mxu0 0.0
    %1360 = vmatpush1.msra.mxu0 0.0
    %1361 = vmatprep.subr.mxu0 0.0
    %1362 = vmatpush1.msra.mxu0 0.0
    %1363 = vmatprep.subr.mxu0 0.0
    %1364 = vmatpush1.msra.mxu0 0.0
    %1365 = vmatprep.subr.mxu0 0.0
    %1366 = vmatpush1.msra.mxu0 0.0
    %1367 = vmatprep.subr.mxu0 0.0
    %1368 = vmatpush1.msra.mxu0 0.0
    %1369 = vmatprep.subr.mxu0 0.0
    %1370 = vmatpush1.msra.mxu0 0.0
    %1371 = vmatprep.subr.mxu0 0.0
    %1372 = vmatpush1.msra.mxu0 0.0
    %1373 = vmatprep.subr.mxu0 0.0
    %1374 = vmatpush1.msra.mxu0 0.0
    %1375 = vmatprep.subr.mxu0 0.0
    %1376 = vmatpush1.msra.mxu0 0.0
    %1377 = vmatprep.subr.mxu0 0.0
    %1378 = vmatpush1.msra.mxu0 0.0
    %1379 = vmatprep.subr.mxu0 0.0
    %1380 = vmatpush1.msra.mxu0 0.0
    %1381 = vmatprep.subr.mxu0 0.0
    %1382 = vmatpush1.msra.mxu0 0.0
    %1383 = vmatprep.subr.mxu0 0.0
    %1384 = vmatpush1.msra.mxu0 0.0
    %1385 = vmatprep.subr.mxu0 0.0
    %1386 = vmatpush1.msra.mxu0 0.0
    %1387 = vmatprep.subr.mxu0 0.0
    %1388 = vmatpush1.msra.mxu0 0.0
    %1389 = vmatprep.subr.mxu0 0.0
    %1390 = vmatpush1.msra.mxu0 0.0
    %1391 = vmatprep.subr.mxu0 0.0
    %1392 = vmatpush1.msra.mxu0 0.0
    %1393 = vmatprep.subr.mxu0 0.0
    %1394 = vmatpush1.msra.mxu0 0.0
    %1395 = vmatprep.subr.mxu0 0.0
    %1396 = vmatpush1.msra.mxu0 0.0
    %1397 = vmatprep.subr.mxu0 0.0
    %1398 = vmatpush1.msra.mxu0 0.0
    %1399 = vmatprep.subr.mxu0 0.0
    %1400 = vmatpush1.msra.mxu0 0.0
    %1401 = vmatprep.mubr.f32.mxu0 0.0
    %1402 = vmatmul.mubr.f32.gmra.mrb[0].mxu0 %v1335
    %v1403 = vpop.f32.mrb[0].mxu0
    %v1404 = vadd.f32 %v1218, %v1403
    %v1405 = vpop.f32.mrb[0].mxu0
    %1406 = vdwg.mxu0
    %v1407 = vadd.f32 %v1404, %v457
    %v1408 = vxor.u32 %v1407, 2147483648
    %v1409 = vmul.f32 %v1408, 1.442695
    %v1410 = vpow.pop %v1409
    %v1411 = vadd.f32 %v1410, 1.0
    %v1412 = vrcp.pop %v1411
    %v1413 = vmul.f32 1.0, %v1412
    %v1414 = vmul.f32 %v1413, 2.0
    %v1415 = vsub.f32 %v1414, 1.0
    %v1416 = vmul.f32 %v1413, %v957
    %1418 = vrot.lane.b32.xlu0 %v1415, 64
    %v1419 = vpop.permute.xlu0 %1418
    %v1421 = vmul.f32 %v1413, %v1419
    %1423 = vrot.lane.b32.xlu0 %v1421, 32
    %v1424 = vpop.permute.xlu0 %1423
    %v1426 = vadd.f32 %v1416, %v1424
    %v1427 = vmul.f32 %v1426, 2.0
    %v1428 = vxor.u32 %v1427, 2147483648
    %v1429 = vmul.f32 %v1428, 1.442695
    %v1430 = vpow.pop %v1429
    %v1431 = vadd.f32 %v1430, 1.0
    %v1432 = vrcp.pop %v1431
    %v1433 = vmul.f32 1.0, %v1432
    %v1434 = vmul.f32 %v1433, 2.0
    %v1435 = vsub.f32 %v1434, 1.0
    %1437 = vrot.lane.b32.xlu0 %v1435, 64
    %v1438 = vpop.permute.xlu0 %1437
    %v1440 = vmul.f32 %v1413, %v1438
    %1442 = vrot.lane.b32.xlu0 %v1440, 32
    %v1443 = vpop.permute.xlu0 %1442
    %v1444 = vsel %vm117, %v1443, 0
    %1446 = vmatprep.subr.mxu0 0.0
    %1447 = vmatpush1.msra.mxu0 %v493
    %1448 = vmatprep.subr.mxu0 0.0
    %1449 = vmatpush1.msra.mxu0 %v494
    %1450 = vmatprep.subr.mxu0 0.0
    %1451 = vmatpush1.msra.mxu0 %v495
    %1452 = vmatprep.subr.mxu0 0.0
    %1453 = vmatpush1.msra.mxu0 %v496
    %1454 = vmatprep.subr.mxu0 0.0
    %1455 = vmatpush1.msra.mxu0 0.0
    %1456 = vmatprep.subr.mxu0 0.0
    %1457 = vmatpush1.msra.mxu0 0.0
    %1458 = vmatprep.subr.mxu0 0.0
    %1459 = vmatpush1.msra.mxu0 0.0
    %1460 = vmatprep.subr.mxu0 0.0
    %1461 = vmatpush1.msra.mxu0 0.0
    %1462 = vmatprep.subr.mxu0 0.0
    %1463 = vmatpush1.msra.mxu0 0.0
    %1464 = vmatprep.subr.mxu0 0.0
    %1465 = vmatpush1.msra.mxu0 0.0
    %1466 = vmatprep.subr.mxu0 0.0
    %1467 = vmatpush1.msra.mxu0 0.0
    %1468 = vmatprep.subr.mxu0 0.0
    %1469 = vmatpush1.msra.mxu0 0.0
    %1470 = vmatprep.subr.mxu0 0.0
    %1471 = vmatpush1.msra.mxu0 0.0
    %1472 = vmatprep.subr.mxu0 0.0
    %1473 = vmatpush1.msra.mxu0 0.0
    %1474 = vmatprep.subr.mxu0 0.0
    %1475 = vmatpush1.msra.mxu0 0.0
    %1476 = vmatprep.subr.mxu0 0.0
    %1477 = vmatpush1.msra.mxu0 0.0
    %1478 = vmatprep.subr.mxu0 0.0
    %1479 = vmatpush1.msra.mxu0 0.0
    %1480 = vmatprep.subr.mxu0 0.0
    %1481 = vmatpush1.msra.mxu0 0.0
    %1482 = vmatprep.subr.mxu0 0.0
    %1483 = vmatpush1.msra.mxu0 0.0
    %1484 = vmatprep.subr.mxu0 0.0
    %1485 = vmatpush1.msra.mxu0 0.0
    %1486 = vmatprep.subr.mxu0 0.0
    %1487 = vmatpush1.msra.mxu0 0.0
    %1488 = vmatprep.subr.mxu0 0.0
    %1489 = vmatpush1.msra.mxu0 0.0
    %1490 = vmatprep.subr.mxu0 0.0
    %1491 = vmatpush1.msra.mxu0 0.0
    %1492 = vmatprep.subr.mxu0 0.0
    %1493 = vmatpush1.msra.mxu0 0.0
    %1494 = vmatprep.subr.mxu0 0.0
    %1495 = vmatpush1.msra.mxu0 0.0
    %1496 = vmatprep.subr.mxu0 0.0
    %1497 = vmatpush1.msra.mxu0 0.0
    %1498 = vmatprep.subr.mxu0 0.0
    %1499 = vmatpush1.msra.mxu0 0.0
    %1500 = vmatprep.subr.mxu0 0.0
    %1501 = vmatpush1.msra.mxu0 0.0
    %1502 = vmatprep.subr.mxu0 0.0
    %1503 = vmatpush1.msra.mxu0 0.0
    %1504 = vmatprep.subr.mxu0 0.0
    %1505 = vmatpush1.msra.mxu0 0.0
    %1506 = vmatprep.subr.mxu0 0.0
    %1507 = vmatpush1.msra.mxu0 0.0
    %1508 = vmatprep.subr.mxu0 0.0
    %1509 = vmatpush1.msra.mxu0 0.0
    %1510 = vmatprep.mubr.f32.mxu0 0.0
    %1511 = vmatmul.mubr.f32.gmra.mrb[0].mxu0 %v1444
    %v1512 = vpop.f32.mrb[0].mxu0
    %v1513 = vadd.f32 %v1293, %v1512
    %v1514 = vpop.f32.mrb[0].mxu0
    %1515 = vdwg.mxu0
    %v1516 = vadd.f32 %v1513, %v576
    %v1517 = vxor.u32 %v1516, 2147483648
    %v1518 = vmul.f32 %v1517, 1.442695
    %v1519 = vpow.pop %v1518
    %v1520 = vadd.f32 %v1519, 1.0
    %v1521 = vrcp.pop %v1520
    %v1522 = vmul.f32 1.0, %v1521
    %v1523 = vmul.f32 %v1522, 2.0
    %v1524 = vsub.f32 %v1523, 1.0
    %v1525 = vmul.f32 %v1522, %v1066
    %1527 = vrot.lane.b32.xlu0 %v1524, 64
    %v1528 = vpop.permute.xlu0 %1527
    %v1530 = vmul.f32 %v1522, %v1528
    %1532 = vrot.lane.b32.xlu0 %v1530, 32
    %v1533 = vpop.permute.xlu0 %1532
    %v1535 = vadd.f32 %v1525, %v1533
    %v1536 = vmul.f32 %v1535, 2.0
    %v1537 = vxor.u32 %v1536, 2147483648
    %v1538 = vmul.f32 %v1537, 1.442695
    %v1539 = vpow.pop %v1538
    %v1540 = vadd.f32 %v1539, 1.0
    %v1541 = vrcp.pop %v1540
    %v1542 = vmul.f32 1.0, %v1541
    %v1543 = vmul.f32 %v1542, 2.0
    %v1544 = vsub.f32 %v1543, 1.0
    %1546 = vrot.lane.b32.xlu0 %v1544, 64
    %v1547 = vpop.permute.xlu0 %1546
    %v1549 = vmul.f32 %v1522, %v1547
    %1550 = vmatprep.subr.mxu0 0.0
    %1551 = vmatpush1.msra.mxu0 %v113
    %1552 = vmatprep.subr.mxu0 0.0
    %1553 = vmatpush1.msra.mxu0 %v114
    %1554 = vmatprep.subr.mxu0 0.0
    %1555 = vmatpush1.msra.mxu0 %v115
    %1556 = vmatprep.subr.mxu0 0.0
    %1557 = vmatpush1.msra.mxu0 %v116
    %1558 = vmatprep.subr.mxu0 0.0
    %1559 = vmatpush1.msra.mxu0 0.0
    %1560 = vmatprep.subr.mxu0 0.0
    %1561 = vmatpush1.msra.mxu0 0.0
    %1562 = vmatprep.subr.mxu0 0.0
    %1563 = vmatpush1.msra.mxu0 0.0
    %1564 = vmatprep.subr.mxu0 0.0
    %1565 = vmatpush1.msra.mxu0 0.0
    %1566 = vmatprep.subr.mxu0 0.0
    %1567 = vmatpush1.msra.mxu0 0.0
    %1568 = vmatprep.subr.mxu0 0.0
    %1569 = vmatpush1.msra.mxu0 0.0
    %1570 = vmatprep.subr.mxu0 0.0
    %1571 = vmatpush1.msra.mxu0 0.0
    %1572 = vmatprep.subr.mxu0 0.0
    %1573 = vmatpush1.msra.mxu0 0.0
    %1574 = vmatprep.subr.mxu0 0.0
    %1575 = vmatpush1.msra.mxu0 0.0
    %1576 = vmatprep.subr.mxu0 0.0
    %1577 = vmatpush1.msra.mxu0 0.0
    %1578 = vmatprep.subr.mxu0 0.0
    %1579 = vmatpush1.msra.mxu0 0.0
    %1580 = vmatprep.subr.mxu0 0.0
    %1581 = vmatpush1.msra.mxu0 0.0
    %1582 = vmatprep.subr.mxu0 0.0
    %1583 = vmatpush1.msra.mxu0 0.0
    %1584 = vmatprep.subr.mxu0 0.0
    %1585 = vmatpush1.msra.mxu0 0.0
    %1586 = vmatprep.subr.mxu0 0.0
    %1587 = vmatpush1.msra.mxu0 0.0
    %1588 = vmatprep.subr.mxu0 0.0
    %1589 = vmatpush1.msra.mxu0 0.0
    %1590 = vmatprep.subr.mxu0 0.0
    %1591 = vmatpush1.msra.mxu0 0.0
    %1592 = vmatprep.subr.mxu0 0.0
    %1593 = vmatpush1.msra.mxu0 0.0
    %1594 = vmatprep.subr.mxu0 0.0
    %1595 = vmatpush1.msra.mxu0 0.0
    %1596 = vmatprep.subr.mxu0 0.0
    %1597 = vmatpush1.msra.mxu0 0.0
    %1598 = vmatprep.subr.mxu0 0.0
    %1599 = vmatpush1.msra.mxu0 0.0
    %1600 = vmatprep.subr.mxu0 0.0
    %1601 = vmatpush1.msra.mxu0 0.0
    %1602 = vmatprep.subr.mxu0 0.0
    %1603 = vmatpush1.msra.mxu0 0.0
    %1604 = vmatprep.subr.mxu0 0.0
    %1605 = vmatpush1.msra.mxu0 0.0
    %1606 = vmatprep.subr.mxu0 0.0
    %1607 = vmatpush1.msra.mxu0 0.0
    %1608 = vmatprep.subr.mxu0 0.0
    %1609 = vmatpush1.msra.mxu0 0.0
    %1610 = vmatprep.subr.mxu0 0.0
    %1611 = vmatpush1.msra.mxu0 0.0
    %1612 = vmatprep.subr.mxu0 0.0
    %1613 = vmatpush1.msra.mxu0 0.0
    %1614 = vmatprep.mubr.f32.mxu0 0.0
    %1615 = vmatmul.mubr.f32.gmra.mrb[0].mxu0 %v1335
    %v1616 = vpop.f32.mrb[0].mxu0
    %v1617 = vadd.f32 0.0, %v1616
    %v1618 = vpop.f32.mrb[0].mxu0
    %1619 = vdwg.mxu0
    %1620 = vmatprep.subr.mxu0 0.0
    %1621 = vmatpush1.msra.mxu0 %v191
    %1622 = vmatprep.subr.mxu0 0.0
    %1623 = vmatpush1.msra.mxu0 %v192
    %1624 = vmatprep.subr.mxu0 0.0
    %1625 = vmatpush1.msra.mxu0 %v193
    %1626 = vmatprep.subr.mxu0 0.0
    %1627 = vmatpush1.msra.mxu0 %v194
    %1628 = vmatprep.subr.mxu0 0.0
    %1629 = vmatpush1.msra.mxu0 0.0
    %1630 = vmatprep.subr.mxu0 0.0
    %1631 = vmatpush1.msra.mxu0 0.0
    %1632 = vmatprep.subr.mxu0 0.0
    %1633 = vmatpush1.msra.mxu0 0.0
    %1634 = vmatprep.subr.mxu0 0.0
    %1635 = vmatpush1.msra.mxu0 0.0
    %1636 = vmatprep.subr.mxu0 0.0
    %1637 = vmatpush1.msra.mxu0 0.0
    %1638 = vmatprep.subr.mxu0 0.0
    %1639 = vmatpush1.msra.mxu0 0.0
    %1640 = vmatprep.subr.mxu0 0.0
    %1641 = vmatpush1.msra.mxu0 0.0
    %1642 = vmatprep.subr.mxu0 0.0
    %1643 = vmatpush1.msra.mxu0 0.0
    %1644 = vmatprep.subr.mxu0 0.0
    %1645 = vmatpush1.msra.mxu0 0.0
    %1646 = vmatprep.subr.mxu0 0.0
    %1647 = vmatpush1.msra.mxu0 0.0
    %1648 = vmatprep.subr.mxu0 0.0
    %1649 = vmatpush1.msra.mxu0 0.0
    %1650 = vmatprep.subr.mxu0 0.0
    %1651 = vmatpush1.msra.mxu0 0.0
    %1652 = vmatprep.subr.mxu0 0.0
    %1653 = vmatpush1.msra.mxu0 0.0
    %1654 = vmatprep.subr.mxu0 0.0
    %1655 = vmatpush1.msra.mxu0 0.0
    %1656 = vmatprep.subr.mxu0 0.0
    %1657 = vmatpush1.msra.mxu0 0.0
    %1658 = vmatprep.subr.mxu0 0.0
    %1659 = vmatpush1.msra.mxu0 0.0
    %1660 = vmatprep.subr.mxu0 0.0
    %1661 = vmatpush1.msra.mxu0 0.0
    %1662 = vmatprep.subr.mxu0 0.0
    %1663 = vmatpush1.msra.mxu0 0.0
    %1664 = vmatprep.subr.mxu0 0.0
    %1665 = vmatpush1.msra.mxu0 0.0
    %1666 = vmatprep.subr.mxu0 0.0
    %1667 = vmatpush1.msra.mxu0 0.0
    %1668 = vmatprep.subr.mxu0 0.0
    %1669 = vmatpush1.msra.mxu0 0.0
    %1670 = vmatprep.subr.mxu0 0.0
    %1671 = vmatpush1.msra.mxu0 0.0
    %1672 = vmatprep.subr.mxu0 0.0
    %1673 = vmatpush1.msra.mxu0 0.0
    %1674 = vmatprep.subr.mxu0 0.0
    %1675 = vmatpush1.msra.mxu0 0.0
    %1676 = vmatprep.subr.mxu0 0.0
    %1677 = vmatpush1.msra.mxu0 0.0
    %1678 = vmatprep.subr.mxu0 0.0
    %1679 = vmatpush1.msra.mxu0 0.0
    %1680 = vmatprep.subr.mxu0 0.0
    %1681 = vmatpush1.msra.mxu0 0.0
    %1682 = vmatprep.subr.mxu0 0.0
    %1683 = vmatpush1.msra.mxu0 0.0
    %1684 = vmatprep.mubr.f32.mxu0 0.0
    %1685 = vmatmul.mubr.f32.gmra.mrb[0].mxu0 %v1444
    %v1686 = vpop.f32.mrb[0].mxu0
    %v1687 = vadd.f32 0.0, %v1686
    %v1688 = vpop.f32.mrb[0].mxu0
    %1689 = vdwg.mxu0
    %1691 = vrot.lane.b32.xlu0 %v1549, 32
    %v1692 = vpop.permute.xlu0 %1691
    %v1693 = vsel %vm117, %v1692, 0
    %1695 = vmatprep.subr.mxu0 0.0
    %1696 = vmatpush1.msra.mxu0 %v265
    %1697 = vmatprep.subr.mxu0 0.0
    %1698 = vmatpush1.msra.mxu0 %v266
    %1699 = vmatprep.subr.mxu0 0.0
    %1700 = vmatpush1.msra.mxu0 %v267
    %1701 = vmatprep.subr.mxu0 0.0
    %1702 = vmatpush1.msra.mxu0 %v268
    %1703 = vmatprep.subr.mxu0 0.0
    %1704 = vmatpush1.msra.mxu0 0.0
    %1705 = vmatprep.subr.mxu0 0.0
    %1706 = vmatpush1.msra.mxu0 0.0
    %1707 = vmatprep.subr.mxu0 0.0
    %1708 = vmatpush1.msra.mxu0 0.0
    %1709 = vmatprep.subr.mxu0 0.0
    %1710 = vmatpush1.msra.mxu0 0.0
    %1711 = vmatprep.subr.mxu0 0.0
    %1712 = vmatpush1.msra.mxu0 0.0
    %1713 = vmatprep.subr.mxu0 0.0
    %1714 = vmatpush1.msra.mxu0 0.0
    %1715 = vmatprep.subr.mxu0 0.0
    %1716 = vmatpush1.msra.mxu0 0.0
    %1717 = vmatprep.subr.mxu0 0.0
    %1718 = vmatpush1.msra.mxu0 0.0
    %1719 = vmatprep.subr.mxu0 0.0
    %1720 = vmatpush1.msra.mxu0 0.0
    %1721 = vmatprep.subr.mxu0 0.0
    %1722 = vmatpush1.msra.mxu0 0.0
    %1723 = vmatprep.subr.mxu0 0.0
    %1724 = vmatpush1.msra.mxu0 0.0
    %1725 = vmatprep.subr.mxu0 0.0
    %1726 = vmatpush1.msra.mxu0 0.0
    %1727 = vmatprep.subr.mxu0 0.0
    %1728 = vmatpush1.msra.mxu0 0.0
    %1729 = vmatprep.subr.mxu0 0.0
    %1730 = vmatpush1.msra.mxu0 0.0
    %1731 = vmatprep.subr.mxu0 0.0
    %1732 = vmatpush1.msra.mxu0 0.0
    %1733 = vmatprep.subr.mxu0 0.0
    %1734 = vmatpush1.msra.mxu0 0.0
    %1735 = vmatprep.subr.mxu0 0.0
    %1736 = vmatpush1.msra.mxu0 0.0
    %1737 = vmatprep.subr.mxu0 0.0
    %1738 = vmatpush1.msra.mxu0 0.0
    %1739 = vmatprep.subr.mxu0 0.0
    %1740 = vmatpush1.msra.mxu0 0.0
    %1741 = vmatprep.subr.mxu0 0.0
    %1742 = vmatpush1.msra.mxu0 0.0
    %1743 = vmatprep.subr.mxu0 0.0
    %1744 = vmatpush1.msra.mxu0 0.0
    %1745 = vmatprep.subr.mxu0 0.0
    %1746 = vmatpush1.msra.mxu0 0.0
    %1747 = vmatprep.subr.mxu0 0.0
    %1748 = vmatpush1.msra.mxu0 0.0
    %1749 = vmatprep.subr.mxu0 0.0
    %1750 = vmatpush1.msra.mxu0 0.0
    %1751 = vmatprep.subr.mxu0 0.0
    %1752 = vmatpush1.msra.mxu0 0.0
    %1753 = vmatprep.subr.mxu0 0.0
    %1754 = vmatpush1.msra.mxu0 0.0
    %1755 = vmatprep.subr.mxu0 0.0
    %1756 = vmatpush1.msra.mxu0 0.0
    %1757 = vmatprep.subr.mxu0 0.0
    %1758 = vmatpush1.msra.mxu0 0.0
    %1759 = vmatprep.mubr.f32.mxu0 0.0
    %1760 = vmatmul.mubr.f32.gmra.mrb[0].mxu0 %v1693
    %v1761 = vpop.f32.mrb[0].mxu0
    %v1762 = vadd.f32 0.0, %v1761
    %v1763 = vpop.f32.mrb[0].mxu0
    %1764 = vdwg.mxu0
    %s1765 = scalar_lea.vmem [#allocation3], 6
    %v1766 = vld [vmem:[%s1765] sm:$0x3]
    %v1767 = vadd.f32 %v1766, %v1617
    %v1768 = vxor.u32 %v1767, 2147483648
    %v1769 = vmul.f32 %v1768, 1.442695
    %v1770 = vpow.pop %v1769
    %v1771 = vadd.f32 %v1770, 1.0
    %v1772 = vrcp.pop %v1771
    %v1773 = vmul.f32 1.0, %v1772
    %v1774 = vmul.f32 %v1773, 2.0
    %v1775 = vsub.f32 %v1774, 1.0
    %v1776 = vmul.f32 %v1773, %v1317
    %1778 = vrot.lane.b32.xlu0 %v1775, 64
    %v1779 = vpop.permute.xlu0 %1778
    %v1781 = vmul.f32 %v1773, %v1779
    %1783 = vrot.lane.b32.xlu0 %v1781, 32
    %v1784 = vpop.permute.xlu0 %1783
    %v1786 = vadd.f32 %v1776, %v1784
    %v1787 = vmul.f32 %v1786, 2.0
    %v1788 = vxor.u32 %v1787, 2147483648
    %v1789 = vmul.f32 %v1788, 1.442695
    %v1790 = vpow.pop %v1789
    %v1791 = vadd.f32 %v1790, 1.0
    %v1792 = vrcp.pop %v1791
    %v1793 = vmul.f32 1.0, %v1792
    %v1794 = vmul.f32 %v1793, 2.0
    %v1795 = vsub.f32 %v1794, 1.0
    %1797 = vrot.lane.b32.xlu0 %v1795, 64
    %v1798 = vpop.permute.xlu0 %1797
    %v1800 = vmul.f32 %v1773, %v1798
    %1802 = vrot.lane.b32.xlu0 %v1800, 32
    %v1803 = vpop.permute.xlu0 %1802
    %v1804 = vsel %vm117, %v1803, 0
    %1806 = vmatprep.subr.mxu0 0.0
    %1807 = vmatpush1.msra.mxu0 %v374
    %1808 = vmatprep.subr.mxu0 0.0
    %1809 = vmatpush1.msra.mxu0 %v375
    %1810 = vmatprep.subr.mxu0 0.0
    %1811 = vmatpush1.msra.mxu0 %v376
    %1812 = vmatprep.subr.mxu0 0.0
    %1813 = vmatpush1.msra.mxu0 %v377
    %1814 = vmatprep.subr.mxu0 0.0
    %1815 = vmatpush1.msra.mxu0 0.0
    %1816 = vmatprep.subr.mxu0 0.0
    %1817 = vmatpush1.msra.mxu0 0.0
    %1818 = vmatprep.subr.mxu0 0.0
    %1819 = vmatpush1.msra.mxu0 0.0
    %1820 = vmatprep.subr.mxu0 0.0
    %1821 = vmatpush1.msra.mxu0 0.0
    %1822 = vmatprep.subr.mxu0 0.0
    %1823 = vmatpush1.msra.mxu0 0.0
    %1824 = vmatprep.subr.mxu0 0.0
    %1825 = vmatpush1.msra.mxu0 0.0
    %1826 = vmatprep.subr.mxu0 0.0
    %1827 = vmatpush1.msra.mxu0 0.0
    %1828 = vmatprep.subr.mxu0 0.0
    %1829 = vmatpush1.msra.mxu0 0.0
    %1830 = vmatprep.subr.mxu0 0.0
    %1831 = vmatpush1.msra.mxu0 0.0
    %1832 = vmatprep.subr.mxu0 0.0
    %1833 = vmatpush1.msra.mxu0 0.0
    %1834 = vmatprep.subr.mxu0 0.0
    %1835 = vmatpush1.msra.mxu0 0.0
    %1836 = vmatprep.subr.mxu0 0.0
    %1837 = vmatpush1.msra.mxu0 0.0
    %1838 = vmatprep.subr.mxu0 0.0
    %1839 = vmatpush1.msra.mxu0 0.0
    %1840 = vmatprep.subr.mxu0 0.0
    %1841 = vmatpush1.msra.mxu0 0.0
    %1842 = vmatprep.subr.mxu0 0.0
    %1843 = vmatpush1.msra.mxu0 0.0
    %1844 = vmatprep.subr.mxu0 0.0
    %1845 = vmatpush1.msra.mxu0 0.0
    %1846 = vmatprep.subr.mxu0 0.0
    %1847 = vmatpush1.msra.mxu0 0.0
    %1848 = vmatprep.subr.mxu0 0.0
    %1849 = vmatpush1.msra.mxu0 0.0
    %1850 = vmatprep.subr.mxu0 0.0
    %1851 = vmatpush1.msra.mxu0 0.0
    %1852 = vmatprep.subr.mxu0 0.0
    %1853 = vmatpush1.msra.mxu0 0.0
    %1854 = vmatprep.subr.mxu0 0.0
    %1855 = vmatpush1.msra.mxu0 0.0
    %1856 = vmatprep.subr.mxu0 0.0
    %1857 = vmatpush1.msra.mxu0 0.0
    %1858 = vmatprep.subr.mxu0 0.0
    %1859 = vmatpush1.msra.mxu0 0.0
    %1860 = vmatprep.subr.mxu0 0.0
    %1861 = vmatpush1.msra.mxu0 0.0
    %1862 = vmatprep.subr.mxu0 0.0
    %1863 = vmatpush1.msra.mxu0 0.0
    %1864 = vmatprep.subr.mxu0 0.0
    %1865 = vmatpush1.msra.mxu0 0.0
    %1866 = vmatprep.subr.mxu0 0.0
    %1867 = vmatpush1.msra.mxu0 0.0
    %1868 = vmatprep.subr.mxu0 0.0
    %1869 = vmatpush1.msra.mxu0 0.0
    %1870 = vmatprep.mubr.f32.mxu0 0.0
    %1871 = vmatmul.mubr.f32.gmra.mrb[0].mxu0 %v1804
    %v1872 = vpop.f32.mrb[0].mxu0
    %v1873 = vadd.f32 %v1687, %v1872
    %v1874 = vpop.f32.mrb[0].mxu0
    %1875 = vdwg.mxu0
    %v1876 = vadd.f32 %v1873, %v457
    %v1877 = vxor.u32 %v1876, 2147483648
    %v1878 = vmul.f32 %v1877, 1.442695
    %v1879 = vpow.pop %v1878
    %v1880 = vadd.f32 %v1879, 1.0
    %v1881 = vrcp.pop %v1880
    %v1882 = vmul.f32 1.0, %v1881
    %v1883 = vmul.f32 %v1882, 2.0
    %v1884 = vsub.f32 %v1883, 1.0
    %v1885 = vmul.f32 %v1882, %v1426
    %1887 = vrot.lane.b32.xlu0 %v1884, 64
    %v1888 = vpop.permute.xlu0 %1887
    %v1890 = vmul.f32 %v1882, %v1888
    %1892 = vrot.lane.b32.xlu0 %v1890, 32
    %v1893 = vpop.permute.xlu0 %1892
    %v1895 = vadd.f32 %v1885, %v1893
    %v1896 = vmul.f32 %v1895, 2.0
    %v1897 = vxor.u32 %v1896, 2147483648
    %v1898 = vmul.f32 %v1897, 1.442695
    %v1899 = vpow.pop %v1898
    %v1900 = vadd.f32 %v1899, 1.0
    %v1901 = vrcp.pop %v1900
    %v1902 = vmul.f32 1.0, %v1901
    %v1903 = vmul.f32 %v1902, 2.0
    %v1904 = vsub.f32 %v1903, 1.0
    %1906 = vrot.lane.b32.xlu0 %v1904, 64
    %v1907 = vpop.permute.xlu0 %1906
    %v1909 = vmul.f32 %v1882, %v1907
    %1911 = vrot.lane.b32.xlu0 %v1909, 32
    %v1912 = vpop.permute.xlu0 %1911
    %v1913 = vsel %vm117, %v1912, 0
    %1915 = vmatprep.subr.mxu0 0.0
    %1916 = vmatpush1.msra.mxu0 %v493
    %1917 = vmatprep.subr.mxu0 0.0
    %1918 = vmatpush1.msra.mxu0 %v494
    %1919 = vmatprep.subr.mxu0 0.0
    %1920 = vmatpush1.msra.mxu0 %v495
    %1921 = vmatprep.subr.mxu0 0.0
    %1922 = vmatpush1.msra.mxu0 %v496
    %1923 = vmatprep.subr.mxu0 0.0
    %1924 = vmatpush1.msra.mxu0 0.0
    %1925 = vmatprep.subr.mxu0 0.0
    %1926 = vmatpush1.msra.mxu0 0.0
    %1927 = vmatprep.subr.mxu0 0.0
    %1928 = vmatpush1.msra.mxu0 0.0
    %1929 = vmatprep.subr.mxu0 0.0
    %1930 = vmatpush1.msra.mxu0 0.0
    %1931 = vmatprep.subr.mxu0 0.0
    %1932 = vmatpush1.msra.mxu0 0.0
    %1933 = vmatprep.subr.mxu0 0.0
    %1934 = vmatpush1.msra.mxu0 0.0
    %1935 = vmatprep.subr.mxu0 0.0
    %1936 = vmatpush1.msra.mxu0 0.0
    %1937 = vmatprep.subr.mxu0 0.0
    %1938 = vmatpush1.msra.mxu0 0.0
    %1939 = vmatprep.subr.mxu0 0.0
    %1940 = vmatpush1.msra.mxu0 0.0
    %1941 = vmatprep.subr.mxu0 0.0
    %1942 = vmatpush1.msra.mxu0 0.0
    %1943 = vmatprep.subr.mxu0 0.0
    %1944 = vmatpush1.msra.mxu0 0.0
    %1945 = vmatprep.subr.mxu0 0.0
    %1946 = vmatpush1.msra.mxu0 0.0
    %1947 = vmatprep.subr.mxu0 0.0
    %1948 = vmatpush1.msra.mxu0 0.0
    %1949 = vmatprep.subr.mxu0 0.0
    %1950 = vmatpush1.msra.mxu0 0.0
    %1951 = vmatprep.subr.mxu0 0.0
    %1952 = vmatpush1.msra.mxu0 0.0
    %1953 = vmatprep.subr.mxu0 0.0
    %1954 = vmatpush1.msra.mxu0 0.0
    %1955 = vmatprep.subr.mxu0 0.0
    %1956 = vmatpush1.msra.mxu0 0.0
    %1957 = vmatprep.subr.mxu0 0.0
    %1958 = vmatpush1.msra.mxu0 0.0
    %1959 = vmatprep.subr.mxu0 0.0
    %1960 = vmatpush1.msra.mxu0 0.0
    %1961 = vmatprep.subr.mxu0 0.0
    %1962 = vmatpush1.msra.mxu0 0.0
    %1963 = vmatprep.subr.mxu0 0.0
    %1964 = vmatpush1.msra.mxu0 0.0
    %1965 = vmatprep.subr.mxu0 0.0
    %1966 = vmatpush1.msra.mxu0 0.0
    %1967 = vmatprep.subr.mxu0 0.0
    %1968 = vmatpush1.msra.mxu0 0.0
    %1969 = vmatprep.subr.mxu0 0.0
    %1970 = vmatpush1.msra.mxu0 0.0
    %1971 = vmatprep.subr.mxu0 0.0
    %1972 = vmatpush1.msra.mxu0 0.0
    %1973 = vmatprep.subr.mxu0 0.0
    %1974 = vmatpush1.msra.mxu0 0.0
    %1975 = vmatprep.subr.mxu0 0.0
    %1976 = vmatpush1.msra.mxu0 0.0
    %1977 = vmatprep.subr.mxu0 0.0
    %1978 = vmatpush1.msra.mxu0 0.0
    %1979 = vmatprep.mubr.f32.mxu0 0.0
    %1980 = vmatmul.mubr.f32.gmra.mrb[0].mxu0 %v1913
    %v1981 = vpop.f32.mrb[0].mxu0
    %v1982 = vadd.f32 %v1762, %v1981
    %v1983 = vpop.f32.mrb[0].mxu0
    %1984 = vdwg.mxu0
    %v1985 = vadd.f32 %v1982, %v576
    %v1986 = vxor.u32 %v1985, 2147483648
    %v1987 = vmul.f32 %v1986, 1.442695
    %v1988 = vpow.pop %v1987
    %v1989 = vadd.f32 %v1988, 1.0
    %v1990 = vrcp.pop %v1989
    %v1991 = vmul.f32 1.0, %v1990
    %v1992 = vmul.f32 %v1991, 2.0
    %v1993 = vsub.f32 %v1992, 1.0
    %v1994 = vmul.f32 %v1991, %v1535
    %1996 = vrot.lane.b32.xlu0 %v1993, 64
    %v1997 = vpop.permute.xlu0 %1996
    %v1999 = vmul.f32 %v1991, %v1997
    %2001 = vrot.lane.b32.xlu0 %v1999, 32
    %v2002 = vpop.permute.xlu0 %2001
    %v2004 = vadd.f32 %v1994, %v2002
    %v2005 = vmul.f32 %v2004, 2.0
    %v2006 = vxor.u32 %v2005, 2147483648
    %v2007 = vmul.f32 %v2006, 1.442695
    %v2008 = vpow.pop %v2007
    %v2009 = vadd.f32 %v2008, 1.0
    %v2010 = vrcp.pop %v2009
    %v2011 = vmul.f32 1.0, %v2010
    %v2012 = vmul.f32 %v2011, 2.0
    %v2013 = vsub.f32 %v2012, 1.0
    %2015 = vrot.lane.b32.xlu0 %v2013, 64
    %v2016 = vpop.permute.xlu0 %2015
    %v2018 = vmul.f32 %v1991, %v2016
    %2019 = vmatprep.subr.mxu0 0.0
    %2020 = vmatpush1.msra.mxu0 %v113
    %2021 = vmatprep.subr.mxu0 0.0
    %2022 = vmatpush1.msra.mxu0 %v114
    %2023 = vmatprep.subr.mxu0 0.0
    %2024 = vmatpush1.msra.mxu0 %v115
    %2025 = vmatprep.subr.mxu0 0.0
    %2026 = vmatpush1.msra.mxu0 %v116
    %2027 = vmatprep.subr.mxu0 0.0
    %2028 = vmatpush1.msra.mxu0 0.0
    %2029 = vmatprep.subr.mxu0 0.0
    %2030 = vmatpush1.msra.mxu0 0.0
    %2031 = vmatprep.subr.mxu0 0.0
    %2032 = vmatpush1.msra.mxu0 0.0
    %2033 = vmatprep.subr.mxu0 0.0
    %2034 = vmatpush1.msra.mxu0 0.0
    %2035 = vmatprep.subr.mxu0 0.0
    %2036 = vmatpush1.msra.mxu0 0.0
    %2037 = vmatprep.subr.mxu0 0.0
    %2038 = vmatpush1.msra.mxu0 0.0
    %2039 = vmatprep.subr.mxu0 0.0
    %2040 = vmatpush1.msra.mxu0 0.0
    %2041 = vmatprep.subr.mxu0 0.0
    %2042 = vmatpush1.msra.mxu0 0.0
    %2043 = vmatprep.subr.mxu0 0.0
    %2044 = vmatpush1.msra.mxu0 0.0
    %2045 = vmatprep.subr.mxu0 0.0
    %2046 = vmatpush1.msra.mxu0 0.0
    %2047 = vmatprep.subr.mxu0 0.0
    %2048 = vmatpush1.msra.mxu0 0.0
    %2049 = vmatprep.subr.mxu0 0.0
    %2050 = vmatpush1.msra.mxu0 0.0
    %2051 = vmatprep.subr.mxu0 0.0
    %2052 = vmatpush1.msra.mxu0 0.0
    %2053 = vmatprep.subr.mxu0 0.0
    %2054 = vmatpush1.msra.mxu0 0.0
    %2055 = vmatprep.subr.mxu0 0.0
    %2056 = vmatpush1.msra.mxu0 0.0
    %2057 = vmatprep.subr.mxu0 0.0
    %2058 = vmatpush1.msra.mxu0 0.0
    %2059 = vmatprep.subr.mxu0 0.0
    %2060 = vmatpush1.msra.mxu0 0.0
    %2061 = vmatprep.subr.mxu0 0.0
    %2062 = vmatpush1.msra.mxu0 0.0
    %2063 = vmatprep.subr.mxu0 0.0
    %2064 = vmatpush1.msra.mxu0 0.0
    %2065 = vmatprep.subr.mxu0 0.0
    %2066 = vmatpush1.msra.mxu0 0.0
    %2067 = vmatprep.subr.mxu0 0.0
    %2068 = vmatpush1.msra.mxu0 0.0
    %2069 = vmatprep.subr.mxu0 0.0
    %2070 = vmatpush1.msra.mxu0 0.0
    %2071 = vmatprep.subr.mxu0 0.0
    %2072 = vmatpush1.msra.mxu0 0.0
    %2073 = vmatprep.subr.mxu0 0.0
    %2074 = vmatpush1.msra.mxu0 0.0
    %2075 = vmatprep.subr.mxu0 0.0
    %2076 = vmatpush1.msra.mxu0 0.0
    %2077 = vmatprep.subr.mxu0 0.0
    %2078 = vmatpush1.msra.mxu0 0.0
    %2079 = vmatprep.subr.mxu0 0.0
    %2080 = vmatpush1.msra.mxu0 0.0
    %2081 = vmatprep.subr.mxu0 0.0
    %2082 = vmatpush1.msra.mxu0 0.0
    %2083 = vmatprep.mubr.f32.mxu0 0.0
    %2084 = vmatmul.mubr.f32.gmra.mrb[0].mxu0 %v1804
    %v2085 = vpop.f32.mrb[0].mxu0
    %v2086 = vadd.f32 0.0, %v2085
    %v2087 = vpop.f32.mrb[0].mxu0
    %2088 = vdwg.mxu0
    %2089 = vmatprep.subr.mxu0 0.0
    %2090 = vmatpush1.msra.mxu0 %v191
    %2091 = vmatprep.subr.mxu0 0.0
    %2092 = vmatpush1.msra.mxu0 %v192
    %2093 = vmatprep.subr.mxu0 0.0
    %2094 = vmatpush1.msra.mxu0 %v193
    %2095 = vmatprep.subr.mxu0 0.0
    %2096 = vmatpush1.msra.mxu0 %v194
    %2097 = vmatprep.subr.mxu0 0.0
    %2098 = vmatpush1.msra.mxu0 0.0
    %2099 = vmatprep.subr.mxu0 0.0
    %2100 = vmatpush1.msra.mxu0 0.0
    %2101 = vmatprep.subr.mxu0 0.0
    %2102 = vmatpush1.msra.mxu0 0.0
    %2103 = vmatprep.subr.mxu0 0.0
    %2104 = vmatpush1.msra.mxu0 0.0
    %2105 = vmatprep.subr.mxu0 0.0
    %2106 = vmatpush1.msra.mxu0 0.0
    %2107 = vmatprep.subr.mxu0 0.0
    %2108 = vmatpush1.msra.mxu0 0.0
    %2109 = vmatprep.subr.mxu0 0.0
    %2110 = vmatpush1.msra.mxu0 0.0
    %2111 = vmatprep.subr.mxu0 0.0
    %2112 = vmatpush1.msra.mxu0 0.0
    %2113 = vmatprep.subr.mxu0 0.0
    %2114 = vmatpush1.msra.mxu0 0.0
    %2115 = vmatprep.subr.mxu0 0.0
    %2116 = vmatpush1.msra.mxu0 0.0
    %2117 = vmatprep.subr.mxu0 0.0
    %2118 = vmatpush1.msra.mxu0 0.0
    %2119 = vmatprep.subr.mxu0 0.0
    %2120 = vmatpush1.msra.mxu0 0.0
    %2121 = vmatprep.subr.mxu0 0.0
    %2122 = vmatpush1.msra.mxu0 0.0
    %2123 = vmatprep.subr.mxu0 0.0
    %2124 = vmatpush1.msra.mxu0 0.0
    %2125 = vmatprep.subr.mxu0 0.0
    %2126 = vmatpush1.msra.mxu0 0.0
    %2127 = vmatprep.subr.mxu0 0.0
    %2128 = vmatpush1.msra.mxu0 0.0
    %2129 = vmatprep.subr.mxu0 0.0
    %2130 = vmatpush1.msra.mxu0 0.0
    %2131 = vmatprep.subr.mxu0 0.0
    %2132 = vmatpush1.msra.mxu0 0.0
    %2133 = vmatprep.subr.mxu0 0.0
    %2134 = vmatpush1.msra.mxu0 0.0
    %2135 = vmatprep.subr.mxu0 0.0
    %2136 = vmatpush1.msra.mxu0 0.0
    %2137 = vmatprep.subr.mxu0 0.0
    %2138 = vmatpush1.msra.mxu0 0.0
    %2139 = vmatprep.subr.mxu0 0.0
    %2140 = vmatpush1.msra.mxu0 0.0
    %2141 = vmatprep.subr.mxu0 0.0
    %2142 = vmatpush1.msra.mxu0 0.0
    %2143 = vmatprep.subr.mxu0 0.0
    %2144 = vmatpush1.msra.mxu0 0.0
    %2145 = vmatprep.subr.mxu0 0.0
    %2146 = vmatpush1.msra.mxu0 0.0
    %2147 = vmatprep.subr.mxu0 0.0
    %2148 = vmatpush1.msra.mxu0 0.0
    %2149 = vmatprep.subr.mxu0 0.0
    %2150 = vmatpush1.msra.mxu0 0.0
    %2151 = vmatprep.subr.mxu0 0.0
    %2152 = vmatpush1.msra.mxu0 0.0
    %2153 = vmatprep.mubr.f32.mxu0 0.0
    %2154 = vmatmul.mubr.f32.gmra.mrb[0].mxu0 %v1913
    %v2155 = vpop.f32.mrb[0].mxu0
    %v2156 = vadd.f32 0.0, %v2155
    %v2157 = vpop.f32.mrb[0].mxu0
    %2158 = vdwg.mxu0
    %2160 = vrot.lane.b32.xlu0 %v2018, 32
    %v2161 = vpop.permute.xlu0 %2160
    %v2162 = vsel %vm117, %v2161, 0
    %2164 = vmatprep.subr.mxu0 0.0
    %2165 = vmatpush1.msra.mxu0 %v265
    %2166 = vmatprep.subr.mxu0 0.0
    %2167 = vmatpush1.msra.mxu0 %v266
    %2168 = vmatprep.subr.mxu0 0.0
    %2169 = vmatpush1.msra.mxu0 %v267
    %2170 = vmatprep.subr.mxu0 0.0
    %2171 = vmatpush1.msra.mxu0 %v268
    %2172 = vmatprep.subr.mxu0 0.0
    %2173 = vmatpush1.msra.mxu0 0.0
    %2174 = vmatprep.subr.mxu0 0.0
    %2175 = vmatpush1.msra.mxu0 0.0
    %2176 = vmatprep.subr.mxu0 0.0
    %2177 = vmatpush1.msra.mxu0 0.0
    %2178 = vmatprep.subr.mxu0 0.0
    %2179 = vmatpush1.msra.mxu0 0.0
    %2180 = vmatprep.subr.mxu0 0.0
    %2181 = vmatpush1.msra.mxu0 0.0
    %2182 = vmatprep.subr.mxu0 0.0
    %2183 = vmatpush1.msra.mxu0 0.0
    %2184 = vmatprep.subr.mxu0 0.0
    %2185 = vmatpush1.msra.mxu0 0.0
    %2186 = vmatprep.subr.mxu0 0.0
    %2187 = vmatpush1.msra.mxu0 0.0
    %2188 = vmatprep.subr.mxu0 0.0
    %2189 = vmatpush1.msra.mxu0 0.0
    %2190 = vmatprep.subr.mxu0 0.0
    %2191 = vmatpush1.msra.mxu0 0.0
    %2192 = vmatprep.subr.mxu0 0.0
    %2193 = vmatpush1.msra.mxu0 0.0
    %2194 = vmatprep.subr.mxu0 0.0
    %2195 = vmatpush1.msra.mxu0 0.0
    %2196 = vmatprep.subr.mxu0 0.0
    %2197 = vmatpush1.msra.mxu0 0.0
    %2198 = vmatprep.subr.mxu0 0.0
    %2199 = vmatpush1.msra.mxu0 0.0
    %2200 = vmatprep.subr.mxu0 0.0
    %2201 = vmatpush1.msra.mxu0 0.0
    %2202 = vmatprep.subr.mxu0 0.0
    %2203 = vmatpush1.msra.mxu0 0.0
    %2204 = vmatprep.subr.mxu0 0.0
    %2205 = vmatpush1.msra.mxu0 0.0
    %2206 = vmatprep.subr.mxu0 0.0
    %2207 = vmatpush1.msra.mxu0 0.0
    %2208 = vmatprep.subr.mxu0 0.0
    %2209 = vmatpush1.msra.mxu0 0.0
    %2210 = vmatprep.subr.mxu0 0.0
    %2211 = vmatpush1.msra.mxu0 0.0
    %2212 = vmatprep.subr.mxu0 0.0
    %2213 = vmatpush1.msra.mxu0 0.0
    %2214 = vmatprep.subr.mxu0 0.0
    %2215 = vmatpush1.msra.mxu0 0.0
    %2216 = vmatprep.subr.mxu0 0.0
    %2217 = vmatpush1.msra.mxu0 0.0
    %2218 = vmatprep.subr.mxu0 0.0
    %2219 = vmatpush1.msra.mxu0 0.0
    %2220 = vmatprep.subr.mxu0 0.0
    %2221 = vmatpush1.msra.mxu0 0.0
    %2222 = vmatprep.subr.mxu0 0.0
    %2223 = vmatpush1.msra.mxu0 0.0
    %2224 = vmatprep.subr.mxu0 0.0
    %2225 = vmatpush1.msra.mxu0 0.0
    %2226 = vmatprep.subr.mxu0 0.0
    %2227 = vmatpush1.msra.mxu0 0.0
    %2228 = vmatprep.mubr.f32.mxu0 0.0
    %2229 = vmatmul.mubr.f32.gmra.mrb[0].mxu0 %v2162
    %v2230 = vpop.f32.mrb[0].mxu0
    %v2231 = vadd.f32 0.0, %v2230
    %v2232 = vpop.f32.mrb[0].mxu0
    %2233 = vdwg.mxu0
    %s2234 = scalar_lea.vmem [#allocation3], 8
    %v2235 = vld [vmem:[%s2234] sm:$0x3]
    %v2236 = vadd.f32 %v2235, %v2086
    %v2237 = vxor.u32 %v2236, 2147483648
    %v2238 = vmul.f32 %v2237, 1.442695
    %v2239 = vpow.pop %v2238
    %v2240 = vadd.f32 %v2239, 1.0
    %v2241 = vrcp.pop %v2240
    %v2242 = vmul.f32 1.0, %v2241
    %v2243 = vmul.f32 %v2242, 2.0
    %v2244 = vsub.f32 %v2243, 1.0
    %v2245 = vmul.f32 %v2242, %v1786
    %2247 = vrot.lane.b32.xlu0 %v2244, 64
    %v2248 = vpop.permute.xlu0 %2247
    %v2250 = vmul.f32 %v2242, %v2248
    %2252 = vrot.lane.b32.xlu0 %v2250, 32
    %v2253 = vpop.permute.xlu0 %2252
    %v2255 = vadd.f32 %v2245, %v2253
    %v2256 = vmul.f32 %v2255, 2.0
    %v2257 = vxor.u32 %v2256, 2147483648
    %v2258 = vmul.f32 %v2257, 1.442695
    %v2259 = vpow.pop %v2258
    %v2260 = vadd.f32 %v2259, 1.0
    %v2261 = vrcp.pop %v2260
    %v2262 = vmul.f32 1.0, %v2261
    %v2263 = vmul.f32 %v2262, 2.0
    %v2264 = vsub.f32 %v2263, 1.0
    %2266 = vrot.lane.b32.xlu0 %v2264, 64
    %v2267 = vpop.permute.xlu0 %2266
    %v2269 = vmul.f32 %v2242, %v2267
    %2271 = vrot.lane.b32.xlu0 %v2269, 32
    %v2272 = vpop.permute.xlu0 %2271
    %v2273 = vsel %vm117, %v2272, 0
    %2275 = vmatprep.subr.mxu0 0.0
    %2276 = vmatpush1.msra.mxu0 %v374
    %2277 = vmatprep.subr.mxu0 0.0
    %2278 = vmatpush1.msra.mxu0 %v375
    %2279 = vmatprep.subr.mxu0 0.0
    %2280 = vmatpush1.msra.mxu0 %v376
    %2281 = vmatprep.subr.mxu0 0.0
    %2282 = vmatpush1.msra.mxu0 %v377
    %2283 = vmatprep.subr.mxu0 0.0
    %2284 = vmatpush1.msra.mxu0 0.0
    %2285 = vmatprep.subr.mxu0 0.0
    %2286 = vmatpush1.msra.mxu0 0.0
    %2287 = vmatprep.subr.mxu0 0.0
    %2288 = vmatpush1.msra.mxu0 0.0
    %2289 = vmatprep.subr.mxu0 0.0
    %2290 = vmatpush1.msra.mxu0 0.0
    %2291 = vmatprep.subr.mxu0 0.0
    %2292 = vmatpush1.msra.mxu0 0.0
    %2293 = vmatprep.subr.mxu0 0.0
    %2294 = vmatpush1.msra.mxu0 0.0
    %2295 = vmatprep.subr.mxu0 0.0
    %2296 = vmatpush1.msra.mxu0 0.0
    %2297 = vmatprep.subr.mxu0 0.0
    %2298 = vmatpush1.msra.mxu0 0.0
    %2299 = vmatprep.subr.mxu0 0.0
    %2300 = vmatpush1.msra.mxu0 0.0
    %2301 = vmatprep.subr.mxu0 0.0
    %2302 = vmatpush1.msra.mxu0 0.0
    %2303 = vmatprep.subr.mxu0 0.0
    %2304 = vmatpush1.msra.mxu0 0.0
    %2305 = vmatprep.subr.mxu0 0.0
    %2306 = vmatpush1.msra.mxu0 0.0
    %2307 = vmatprep.subr.mxu0 0.0
    %2308 = vmatpush1.msra.mxu0 0.0
    %2309 = vmatprep.subr.mxu0 0.0
    %2310 = vmatpush1.msra.mxu0 0.0
    %2311 = vmatprep.subr.mxu0 0.0
    %2312 = vmatpush1.msra.mxu0 0.0
    %2313 = vmatprep.subr.mxu0 0.0
    %2314 = vmatpush1.msra.mxu0 0.0
    %2315 = vmatprep.subr.mxu0 0.0
    %2316 = vmatpush1.msra.mxu0 0.0
    %2317 = vmatprep.subr.mxu0 0.0
    %2318 = vmatpush1.msra.mxu0 0.0
    %2319 = vmatprep.subr.mxu0 0.0
    %2320 = vmatpush1.msra.mxu0 0.0
    %2321 = vmatprep.subr.mxu0 0.0
    %2322 = vmatpush1.msra.mxu0 0.0
    %2323 = vmatprep.subr.mxu0 0.0
    %2324 = vmatpush1.msra.mxu0 0.0
    %2325 = vmatprep.subr.mxu0 0.0
    %2326 = vmatpush1.msra.mxu0 0.0
    %2327 = vmatprep.subr.mxu0 0.0
    %2328 = vmatpush1.msra.mxu0 0.0
    %2329 = vmatprep.subr.mxu0 0.0
    %2330 = vmatpush1.msra.mxu0 0.0
    %2331 = vmatprep.subr.mxu0 0.0
    %2332 = vmatpush1.msra.mxu0 0.0
    %2333 = vmatprep.subr.mxu0 0.0
    %2334 = vmatpush1.msra.mxu0 0.0
    %2335 = vmatprep.subr.mxu0 0.0
    %2336 = vmatpush1.msra.mxu0 0.0
    %2337 = vmatprep.subr.mxu0 0.0
    %2338 = vmatpush1.msra.mxu0 0.0
    %2339 = vmatprep.mubr.f32.mxu0 0.0
    %2340 = vmatmul.mubr.f32.gmra.mrb[0].mxu0 %v2273
    %v2341 = vpop.f32.mrb[0].mxu0
    %v2342 = vadd.f32 %v2156, %v2341
    %v2343 = vpop.f32.mrb[0].mxu0
    %2344 = vdwg.mxu0
    %v2345 = vadd.f32 %v2342, %v457
    %v2346 = vxor.u32 %v2345, 2147483648
    %v2347 = vmul.f32 %v2346, 1.442695
    %v2348 = vpow.pop %v2347
    %v2349 = vadd.f32 %v2348, 1.0
    %v2350 = vrcp.pop %v2349
    %v2351 = vmul.f32 1.0, %v2350
    %v2352 = vmul.f32 %v2351, 2.0
    %v2353 = vsub.f32 %v2352, 1.0
    %v2354 = vmul.f32 %v2351, %v1895
    %2356 = vrot.lane.b32.xlu0 %v2353, 64
    %v2357 = vpop.permute.xlu0 %2356
    %v2359 = vmul.f32 %v2351, %v2357
    %2361 = vrot.lane.b32.xlu0 %v2359, 32
    %v2362 = vpop.permute.xlu0 %2361
    %v2364 = vadd.f32 %v2354, %v2362
    %v2365 = vmul.f32 %v2364, 2.0
    %v2366 = vxor.u32 %v2365, 2147483648
    %v2367 = vmul.f32 %v2366, 1.442695
    %v2368 = vpow.pop %v2367
    %v2369 = vadd.f32 %v2368, 1.0
    %v2370 = vrcp.pop %v2369
    %v2371 = vmul.f32 1.0, %v2370
    %v2372 = vmul.f32 %v2371, 2.0
    %v2373 = vsub.f32 %v2372, 1.0
    %2375 = vrot.lane.b32.xlu0 %v2373, 64
    %v2376 = vpop.permute.xlu0 %2375
    %v2378 = vmul.f32 %v2351, %v2376
    %2380 = vrot.lane.b32.xlu0 %v2378, 32
    %v2381 = vpop.permute.xlu0 %2380
    %v2382 = vsel %vm117, %v2381, 0
    %2384 = vmatprep.subr.mxu0 0.0
    %2385 = vmatpush1.msra.mxu0 %v493
    %2386 = vmatprep.subr.mxu0 0.0
    %2387 = vmatpush1.msra.mxu0 %v494
    %2388 = vmatprep.subr.mxu0 0.0
    %2389 = vmatpush1.msra.mxu0 %v495
    %2390 = vmatprep.subr.mxu0 0.0
    %2391 = vmatpush1.msra.mxu0 %v496
    %2392 = vmatprep.subr.mxu0 0.0
    %2393 = vmatpush1.msra.mxu0 0.0
    %2394 = vmatprep.subr.mxu0 0.0
    %2395 = vmatpush1.msra.mxu0 0.0
    %2396 = vmatprep.subr.mxu0 0.0
    %2397 = vmatpush1.msra.mxu0 0.0
    %2398 = vmatprep.subr.mxu0 0.0
    %2399 = vmatpush1.msra.mxu0 0.0
    %2400 = vmatprep.subr.mxu0 0.0
    %2401 = vmatpush1.msra.mxu0 0.0
    %2402 = vmatprep.subr.mxu0 0.0
    %2403 = vmatpush1.msra.mxu0 0.0
    %2404 = vmatprep.subr.mxu0 0.0
    %2405 = vmatpush1.msra.mxu0 0.0
    %2406 = vmatprep.subr.mxu0 0.0
    %2407 = vmatpush1.msra.mxu0 0.0
    %2408 = vmatprep.subr.mxu0 0.0
    %2409 = vmatpush1.msra.mxu0 0.0
    %2410 = vmatprep.subr.mxu0 0.0
    %2411 = vmatpush1.msra.mxu0 0.0
    %2412 = vmatprep.subr.mxu0 0.0
    %2413 = vmatpush1.msra.mxu0 0.0
    %2414 = vmatprep.subr.mxu0 0.0
    %2415 = vmatpush1.msra.mxu0 0.0
    %2416 = vmatprep.subr.mxu0 0.0
    %2417 = vmatpush1.msra.mxu0 0.0
    %2418 = vmatprep.subr.mxu0 0.0
    %2419 = vmatpush1.msra.mxu0 0.0
    %2420 = vmatprep.subr.mxu0 0.0
    %2421 = vmatpush1.msra.mxu0 0.0
    %2422 = vmatprep.subr.mxu0 0.0
    %2423 = vmatpush1.msra.mxu0 0.0
    %2424 = vmatprep.subr.mxu0 0.0
    %2425 = vmatpush1.msra.mxu0 0.0
    %2426 = vmatprep.subr.mxu0 0.0
    %2427 = vmatpush1.msra.mxu0 0.0
    %2428 = vmatprep.subr.mxu0 0.0
    %2429 = vmatpush1.msra.mxu0 0.0
    %2430 = vmatprep.subr.mxu0 0.0
    %2431 = vmatpush1.msra.mxu0 0.0
    %2432 = vmatprep.subr.mxu0 0.0
    %2433 = vmatpush1.msra.mxu0 0.0
    %2434 = vmatprep.subr.mxu0 0.0
    %2435 = vmatpush1.msra.mxu0 0.0
    %2436 = vmatprep.subr.mxu0 0.0
    %2437 = vmatpush1.msra.mxu0 0.0
    %2438 = vmatprep.subr.mxu0 0.0
    %2439 = vmatpush1.msra.mxu0 0.0
    %2440 = vmatprep.subr.mxu0 0.0
    %2441 = vmatpush1.msra.mxu0 0.0
    %2442 = vmatprep.subr.mxu0 0.0
    %2443 = vmatpush1.msra.mxu0 0.0
    %2444 = vmatprep.subr.mxu0 0.0
    %2445 = vmatpush1.msra.mxu0 0.0
    %2446 = vmatprep.subr.mxu0 0.0
    %2447 = vmatpush1.msra.mxu0 0.0
    %2448 = vmatprep.mubr.f32.mxu0 0.0
    %2449 = vmatmul.mubr.f32.gmra.mrb[0].mxu0 %v2382
    %v2450 = vpop.f32.mrb[0].mxu0
    %v2451 = vadd.f32 %v2231, %v2450
    %v2452 = vpop.f32.mrb[0].mxu0
    %2453 = vdwg.mxu0
    %v2454 = vadd.f32 %v2451, %v576
    %v2455 = vxor.u32 %v2454, 2147483648
    %v2456 = vmul.f32 %v2455, 1.442695
    %v2457 = vpow.pop %v2456
    %v2458 = vadd.f32 %v2457, 1.0
    %v2459 = vrcp.pop %v2458
    %v2460 = vmul.f32 1.0, %v2459
    %v2461 = vmul.f32 %v2460, 2.0
    %v2462 = vsub.f32 %v2461, 1.0
    %v2463 = vmul.f32 %v2460, %v2004
    %2465 = vrot.lane.b32.xlu0 %v2462, 64
    %v2466 = vpop.permute.xlu0 %2465
    %v2468 = vmul.f32 %v2460, %v2466
    %2470 = vrot.lane.b32.xlu0 %v2468, 32
    %v2471 = vpop.permute.xlu0 %2470
    %v2473 = vadd.f32 %v2463, %v2471
    %v2474 = vmul.f32 %v2473, 2.0
    %v2475 = vxor.u32 %v2474, 2147483648
    %v2476 = vmul.f32 %v2475, 1.442695
    %v2477 = vpow.pop %v2476
    %v2478 = vadd.f32 %v2477, 1.0
    %v2479 = vrcp.pop %v2478
    %v2480 = vmul.f32 1.0, %v2479
    %v2481 = vmul.f32 %v2480, 2.0
    %v2482 = vsub.f32 %v2481, 1.0
    %2484 = vrot.lane.b32.xlu0 %v2482, 64
    %v2485 = vpop.permute.xlu0 %2484
    %v2487 = vmul.f32 %v2460, %v2485
    %2488 = vmatprep.subr.mxu0 0.0
    %2489 = vmatpush1.msra.mxu0 %v113
    %2490 = vmatprep.subr.mxu0 0.0
    %2491 = vmatpush1.msra.mxu0 %v114
    %2492 = vmatprep.subr.mxu0 0.0
    %2493 = vmatpush1.msra.mxu0 %v115
    %2494 = vmatprep.subr.mxu0 0.0
    %2495 = vmatpush1.msra.mxu0 %v116
    %2496 = vmatprep.subr.mxu0 0.0
    %2497 = vmatpush1.msra.mxu0 0.0
    %2498 = vmatprep.subr.mxu0 0.0
    %2499 = vmatpush1.msra.mxu0 0.0
    %2500 = vmatprep.subr.mxu0 0.0
    %2501 = vmatpush1.msra.mxu0 0.0
    %2502 = vmatprep.subr.mxu0 0.0
    %2503 = vmatpush1.msra.mxu0 0.0
    %2504 = vmatprep.subr.mxu0 0.0
    %2505 = vmatpush1.msra.mxu0 0.0
    %2506 = vmatprep.subr.mxu0 0.0
    %2507 = vmatpush1.msra.mxu0 0.0
    %2508 = vmatprep.subr.mxu0 0.0
    %2509 = vmatpush1.msra.mxu0 0.0
    %2510 = vmatprep.subr.mxu0 0.0
    %2511 = vmatpush1.msra.mxu0 0.0
    %2512 = vmatprep.subr.mxu0 0.0
    %2513 = vmatpush1.msra.mxu0 0.0
    %2514 = vmatprep.subr.mxu0 0.0
    %2515 = vmatpush1.msra.mxu0 0.0
    %2516 = vmatprep.subr.mxu0 0.0
    %2517 = vmatpush1.msra.mxu0 0.0
    %2518 = vmatprep.subr.mxu0 0.0
    %2519 = vmatpush1.msra.mxu0 0.0
    %2520 = vmatprep.subr.mxu0 0.0
    %2521 = vmatpush1.msra.mxu0 0.0
    %2522 = vmatprep.subr.mxu0 0.0
    %2523 = vmatpush1.msra.mxu0 0.0
    %2524 = vmatprep.subr.mxu0 0.0
    %2525 = vmatpush1.msra.mxu0 0.0
    %2526 = vmatprep.subr.mxu0 0.0
    %2527 = vmatpush1.msra.mxu0 0.0
    %2528 = vmatprep.subr.mxu0 0.0
    %2529 = vmatpush1.msra.mxu0 0.0
    %2530 = vmatprep.subr.mxu0 0.0
    %2531 = vmatpush1.msra.mxu0 0.0
    %2532 = vmatprep.subr.mxu0 0.0
    %2533 = vmatpush1.msra.mxu0 0.0
    %2534 = vmatprep.subr.mxu0 0.0
    %2535 = vmatpush1.msra.mxu0 0.0
    %2536 = vmatprep.subr.mxu0 0.0
    %2537 = vmatpush1.msra.mxu0 0.0
    %2538 = vmatprep.subr.mxu0 0.0
    %2539 = vmatpush1.msra.mxu0 0.0
    %2540 = vmatprep.subr.mxu0 0.0
    %2541 = vmatpush1.msra.mxu0 0.0
    %2542 = vmatprep.subr.mxu0 0.0
    %2543 = vmatpush1.msra.mxu0 0.0
    %2544 = vmatprep.subr.mxu0 0.0
    %2545 = vmatpush1.msra.mxu0 0.0
    %2546 = vmatprep.subr.mxu0 0.0
    %2547 = vmatpush1.msra.mxu0 0.0
    %2548 = vmatprep.subr.mxu0 0.0
    %2549 = vmatpush1.msra.mxu0 0.0
    %2550 = vmatprep.subr.mxu0 0.0
    %2551 = vmatpush1.msra.mxu0 0.0
    %2552 = vmatprep.mubr.f32.mxu0 0.0
    %2553 = vmatmul.mubr.f32.gmra.mrb[0].mxu0 %v2273
    %v2554 = vpop.f32.mrb[0].mxu0
    %v2555 = vadd.f32 0.0, %v2554
    %v2556 = vpop.f32.mrb[0].mxu0
    %2557 = vdwg.mxu0
    %2558 = vmatprep.subr.mxu0 0.0
    %2559 = vmatpush1.msra.mxu0 %v191
    %2560 = vmatprep.subr.mxu0 0.0
    %2561 = vmatpush1.msra.mxu0 %v192
    %2562 = vmatprep.subr.mxu0 0.0
    %2563 = vmatpush1.msra.mxu0 %v193
    %2564 = vmatprep.subr.mxu0 0.0
    %2565 = vmatpush1.msra.mxu0 %v194
    %2566 = vmatprep.subr.mxu0 0.0
    %2567 = vmatpush1.msra.mxu0 0.0
    %2568 = vmatprep.subr.mxu0 0.0
    %2569 = vmatpush1.msra.mxu0 0.0
    %2570 = vmatprep.subr.mxu0 0.0
    %2571 = vmatpush1.msra.mxu0 0.0
    %2572 = vmatprep.subr.mxu0 0.0
    %2573 = vmatpush1.msra.mxu0 0.0
    %2574 = vmatprep.subr.mxu0 0.0
    %2575 = vmatpush1.msra.mxu0 0.0
    %2576 = vmatprep.subr.mxu0 0.0
    %2577 = vmatpush1.msra.mxu0 0.0
    %2578 = vmatprep.subr.mxu0 0.0
    %2579 = vmatpush1.msra.mxu0 0.0
    %2580 = vmatprep.subr.mxu0 0.0
    %2581 = vmatpush1.msra.mxu0 0.0
    %2582 = vmatprep.subr.mxu0 0.0
    %2583 = vmatpush1.msra.mxu0 0.0
    %2584 = vmatprep.subr.mxu0 0.0
    %2585 = vmatpush1.msra.mxu0 0.0
    %2586 = vmatprep.subr.mxu0 0.0
    %2587 = vmatpush1.msra.mxu0 0.0
    %2588 = vmatprep.subr.mxu0 0.0
    %2589 = vmatpush1.msra.mxu0 0.0
    %2590 = vmatprep.subr.mxu0 0.0
    %2591 = vmatpush1.msra.mxu0 0.0
    %2592 = vmatprep.subr.mxu0 0.0
    %2593 = vmatpush1.msra.mxu0 0.0
    %2594 = vmatprep.subr.mxu0 0.0
    %2595 = vmatpush1.msra.mxu0 0.0
    %2596 = vmatprep.subr.mxu0 0.0
    %2597 = vmatpush1.msra.mxu0 0.0
    %2598 = vmatprep.subr.mxu0 0.0
    %2599 = vmatpush1.msra.mxu0 0.0
    %2600 = vmatprep.subr.mxu0 0.0
    %2601 = vmatpush1.msra.mxu0 0.0
    %2602 = vmatprep.subr.mxu0 0.0
    %2603 = vmatpush1.msra.mxu0 0.0
    %2604 = vmatprep.subr.mxu0 0.0
    %2605 = vmatpush1.msra.mxu0 0.0
    %2606 = vmatprep.subr.mxu0 0.0
    %2607 = vmatpush1.msra.mxu0 0.0
    %2608 = vmatprep.subr.mxu0 0.0
    %2609 = vmatpush1.msra.mxu0 0.0
    %2610 = vmatprep.subr.mxu0 0.0
    %2611 = vmatpush1.msra.mxu0 0.0
    %2612 = vmatprep.subr.mxu0 0.0
    %2613 = vmatpush1.msra.mxu0 0.0
    %2614 = vmatprep.subr.mxu0 0.0
    %2615 = vmatpush1.msra.mxu0 0.0
    %2616 = vmatprep.subr.mxu0 0.0
    %2617 = vmatpush1.msra.mxu0 0.0
    %2618 = vmatprep.subr.mxu0 0.0
    %2619 = vmatpush1.msra.mxu0 0.0
    %2620 = vmatprep.subr.mxu0 0.0
    %2621 = vmatpush1.msra.mxu0 0.0
    %2622 = vmatprep.mubr.f32.mxu0 0.0
    %2623 = vmatmul.mubr.f32.gmra.mrb[0].mxu0 %v2382
    %v2624 = vpop.f32.mrb[0].mxu0
    %v2625 = vadd.f32 0.0, %v2624
    %v2626 = vpop.f32.mrb[0].mxu0
    %2627 = vdwg.mxu0
    %2629 = vrot.lane.b32.xlu0 %v2487, 32
    %v2630 = vpop.permute.xlu0 %2629
    %v2631 = vsel %vm117, %v2630, 0
    %2633 = vmatprep.subr.mxu0 0.0
    %2634 = vmatpush1.msra.mxu0 %v265
    %2635 = vmatprep.subr.mxu0 0.0
    %2636 = vmatpush1.msra.mxu0 %v266
    %2637 = vmatprep.subr.mxu0 0.0
    %2638 = vmatpush1.msra.mxu0 %v267
    %2639 = vmatprep.subr.mxu0 0.0
    %2640 = vmatpush1.msra.mxu0 %v268
    %2641 = vmatprep.subr.mxu0 0.0
    %2642 = vmatpush1.msra.mxu0 0.0
    %2643 = vmatprep.subr.mxu0 0.0
    %2644 = vmatpush1.msra.mxu0 0.0
    %2645 = vmatprep.subr.mxu0 0.0
    %2646 = vmatpush1.msra.mxu0 0.0
    %2647 = vmatprep.subr.mxu0 0.0
    %2648 = vmatpush1.msra.mxu0 0.0
    %2649 = vmatprep.subr.mxu0 0.0
    %2650 = vmatpush1.msra.mxu0 0.0
    %2651 = vmatprep.subr.mxu0 0.0
    %2652 = vmatpush1.msra.mxu0 0.0
    %2653 = vmatprep.subr.mxu0 0.0
    %2654 = vmatpush1.msra.mxu0 0.0
    %2655 = vmatprep.subr.mxu0 0.0
    %2656 = vmatpush1.msra.mxu0 0.0
    %2657 = vmatprep.subr.mxu0 0.0
    %2658 = vmatpush1.msra.mxu0 0.0
    %2659 = vmatprep.subr.mxu0 0.0
    %2660 = vmatpush1.msra.mxu0 0.0
    %2661 = vmatprep.subr.mxu0 0.0
    %2662 = vmatpush1.msra.mxu0 0.0
    %2663 = vmatprep.subr.mxu0 0.0
    %2664 = vmatpush1.msra.mxu0 0.0
    %2665 = vmatprep.subr.mxu0 0.0
    %2666 = vmatpush1.msra.mxu0 0.0
    %2667 = vmatprep.subr.mxu0 0.0
    %2668 = vmatpush1.msra.mxu0 0.0
    %2669 = vmatprep.subr.mxu0 0.0
    %2670 = vmatpush1.msra.mxu0 0.0
    %2671 = vmatprep.subr.mxu0 0.0
    %2672 = vmatpush1.msra.mxu0 0.0
    %2673 = vmatprep.subr.mxu0 0.0
    %2674 = vmatpush1.msra.mxu0 0.0
    %2675 = vmatprep.subr.mxu0 0.0
    %2676 = vmatpush1.msra.mxu0 0.0
    %2677 = vmatprep.subr.mxu0 0.0
    %2678 = vmatpush1.msra.mxu0 0.0
    %2679 = vmatprep.subr.mxu0 0.0
    %2680 = vmatpush1.msra.mxu0 0.0
    %2681 = vmatprep.subr.mxu0 0.0
    %2682 = vmatpush1.msra.mxu0 0.0
    %2683 = vmatprep.subr.mxu0 0.0
    %2684 = vmatpush1.msra.mxu0 0.0
    %2685 = vmatprep.subr.mxu0 0.0
    %2686 = vmatpush1.msra.mxu0 0.0
    %2687 = vmatprep.subr.mxu0 0.0
    %2688 = vmatpush1.msra.mxu0 0.0
    %2689 = vmatprep.subr.mxu0 0.0
    %2690 = vmatpush1.msra.mxu0 0.0
    %2691 = vmatprep.subr.mxu0 0.0
    %2692 = vmatpush1.msra.mxu0 0.0
    %2693 = vmatprep.subr.mxu0 0.0
    %2694 = vmatpush1.msra.mxu0 0.0
    %2695 = vmatprep.subr.mxu0 0.0
    %2696 = vmatpush1.msra.mxu0 0.0
    %2697 = vmatprep.mubr.f32.mxu0 0.0
    %2698 = vmatmul.mubr.f32.gmra.mrb[0].mxu0 %v2631
    %v2699 = vpop.f32.mrb[0].mxu0
    %v2700 = vadd.f32 0.0, %v2699
    %v2701 = vpop.f32.mrb[0].mxu0
    %2702 = vdwg.mxu0
    %s2703 = scalar_lea.vmem [#allocation3], 10
    %v2704 = vld [vmem:[%s2703] sm:$0x3]
    %v2705 = vadd.f32 %v2704, %v2555
    %v2706 = vxor.u32 %v2705, 2147483648
    %v2707 = vmul.f32 %v2706, 1.442695
    %v2708 = vpow.pop %v2707
    %v2709 = vadd.f32 %v2708, 1.0
    %v2710 = vrcp.pop %v2709
    %v2711 = vmul.f32 1.0, %v2710
    %v2712 = vmul.f32 %v2711, 2.0
    %v2713 = vsub.f32 %v2712, 1.0
    %v2714 = vmul.f32 %v2711, %v2255
    %2716 = vrot.lane.b32.xlu0 %v2713, 64
    %v2717 = vpop.permute.xlu0 %2716
    %v2719 = vmul.f32 %v2711, %v2717
    %2721 = vrot.lane.b32.xlu0 %v2719, 32
    %v2722 = vpop.permute.xlu0 %2721
    %v2724 = vadd.f32 %v2714, %v2722
    %v2725 = vmul.f32 %v2724, 2.0
    %v2726 = vxor.u32 %v2725, 2147483648
    %v2727 = vmul.f32 %v2726, 1.442695
    %v2728 = vpow.pop %v2727
    %v2729 = vadd.f32 %v2728, 1.0
    %v2730 = vrcp.pop %v2729
    %v2731 = vmul.f32 1.0, %v2730
    %v2732 = vmul.f32 %v2731, 2.0
    %v2733 = vsub.f32 %v2732, 1.0
    %2735 = vrot.lane.b32.xlu0 %v2733, 64
    %v2736 = vpop.permute.xlu0 %2735
    %v2738 = vmul.f32 %v2711, %v2736
    %2740 = vrot.lane.b32.xlu0 %v2738, 32
    %v2741 = vpop.permute.xlu0 %2740
    %v2742 = vsel %vm117, %v2741, 0
    %2744 = vmatprep.subr.mxu0 0.0
    %2745 = vmatpush1.msra.mxu0 %v374
    %2746 = vmatprep.subr.mxu0 0.0
    %2747 = vmatpush1.msra.mxu0 %v375
    %2748 = vmatprep.subr.mxu0 0.0
    %2749 = vmatpush1.msra.mxu0 %v376
    %2750 = vmatprep.subr.mxu0 0.0
    %2751 = vmatpush1.msra.mxu0 %v377
    %2752 = vmatprep.subr.mxu0 0.0
    %2753 = vmatpush1.msra.mxu0 0.0
    %2754 = vmatprep.subr.mxu0 0.0
    %2755 = vmatpush1.msra.mxu0 0.0
    %2756 = vmatprep.subr.mxu0 0.0
    %2757 = vmatpush1.msra.mxu0 0.0
    %2758 = vmatprep.subr.mxu0 0.0
    %2759 = vmatpush1.msra.mxu0 0.0
    %2760 = vmatprep.subr.mxu0 0.0
    %2761 = vmatpush1.msra.mxu0 0.0
    %2762 = vmatprep.subr.mxu0 0.0
    %2763 = vmatpush1.msra.mxu0 0.0
    %2764 = vmatprep.subr.mxu0 0.0
    %2765 = vmatpush1.msra.mxu0 0.0
    %2766 = vmatprep.subr.mxu0 0.0
    %2767 = vmatpush1.msra.mxu0 0.0
    %2768 = vmatprep.subr.mxu0 0.0
    %2769 = vmatpush1.msra.mxu0 0.0
    %2770 = vmatprep.subr.mxu0 0.0
    %2771 = vmatpush1.msra.mxu0 0.0
    %2772 = vmatprep.subr.mxu0 0.0
    %2773 = vmatpush1.msra.mxu0 0.0
    %2774 = vmatprep.subr.mxu0 0.0
    %2775 = vmatpush1.msra.mxu0 0.0
    %2776 = vmatprep.subr.mxu0 0.0
    %2777 = vmatpush1.msra.mxu0 0.0
    %2778 = vmatprep.subr.mxu0 0.0
    %2779 = vmatpush1.msra.mxu0 0.0
    %2780 = vmatprep.subr.mxu0 0.0
    %2781 = vmatpush1.msra.mxu0 0.0
    %2782 = vmatprep.subr.mxu0 0.0
    %2783 = vmatpush1.msra.mxu0 0.0
    %2784 = vmatprep.subr.mxu0 0.0
    %2785 = vmatpush1.msra.mxu0 0.0
    %2786 = vmatprep.subr.mxu0 0.0
    %2787 = vmatpush1.msra.mxu0 0.0
    %2788 = vmatprep.subr.mxu0 0.0
    %2789 = vmatpush1.msra.mxu0 0.0
    %2790 = vmatprep.subr.mxu0 0.0
    %2791 = vmatpush1.msra.mxu0 0.0
    %2792 = vmatprep.subr.mxu0 0.0
    %2793 = vmatpush1.msra.mxu0 0.0
    %2794 = vmatprep.subr.mxu0 0.0
    %2795 = vmatpush1.msra.mxu0 0.0
    %2796 = vmatprep.subr.mxu0 0.0
    %2797 = vmatpush1.msra.mxu0 0.0
    %2798 = vmatprep.subr.mxu0 0.0
    %2799 = vmatpush1.msra.mxu0 0.0
    %2800 = vmatprep.subr.mxu0 0.0
    %2801 = vmatpush1.msra.mxu0 0.0
    %2802 = vmatprep.subr.mxu0 0.0
    %2803 = vmatpush1.msra.mxu0 0.0
    %2804 = vmatprep.subr.mxu0 0.0
    %2805 = vmatpush1.msra.mxu0 0.0
    %2806 = vmatprep.subr.mxu0 0.0
    %2807 = vmatpush1.msra.mxu0 0.0
    %2808 = vmatprep.mubr.f32.mxu0 0.0
    %2809 = vmatmul.mubr.f32.gmra.mrb[0].mxu0 %v2742
    %v2810 = vpop.f32.mrb[0].mxu0
    %v2811 = vadd.f32 %v2625, %v2810
    %v2812 = vpop.f32.mrb[0].mxu0
    %2813 = vdwg.mxu0
    %v2814 = vadd.f32 %v2811, %v457
    %v2815 = vxor.u32 %v2814, 2147483648
    %v2816 = vmul.f32 %v2815, 1.442695
    %v2817 = vpow.pop %v2816
    %v2818 = vadd.f32 %v2817, 1.0
    %v2819 = vrcp.pop %v2818
    %v2820 = vmul.f32 1.0, %v2819
    %v2821 = vmul.f32 %v2820, 2.0
    %v2822 = vsub.f32 %v2821, 1.0
    %v2823 = vmul.f32 %v2820, %v2364
    %2825 = vrot.lane.b32.xlu0 %v2822, 64
    %v2826 = vpop.permute.xlu0 %2825
    %v2828 = vmul.f32 %v2820, %v2826
    %2830 = vrot.lane.b32.xlu0 %v2828, 32
    %v2831 = vpop.permute.xlu0 %2830
    %v2833 = vadd.f32 %v2823, %v2831
    %v2834 = vmul.f32 %v2833, 2.0
    %v2835 = vxor.u32 %v2834, 2147483648
    %v2836 = vmul.f32 %v2835, 1.442695
    %v2837 = vpow.pop %v2836
    %v2838 = vadd.f32 %v2837, 1.0
    %v2839 = vrcp.pop %v2838
    %v2840 = vmul.f32 1.0, %v2839
    %v2841 = vmul.f32 %v2840, 2.0
    %v2842 = vsub.f32 %v2841, 1.0
    %2844 = vrot.lane.b32.xlu0 %v2842, 64
    %v2845 = vpop.permute.xlu0 %2844
    %v2847 = vmul.f32 %v2820, %v2845
    %2849 = vrot.lane.b32.xlu0 %v2847, 32
    %v2850 = vpop.permute.xlu0 %2849
    %v2851 = vsel %vm117, %v2850, 0
    %2853 = vmatprep.subr.mxu0 0.0
    %2854 = vmatpush1.msra.mxu0 %v493
    %2855 = vmatprep.subr.mxu0 0.0
    %2856 = vmatpush1.msra.mxu0 %v494
    %2857 = vmatprep.subr.mxu0 0.0
    %2858 = vmatpush1.msra.mxu0 %v495
    %2859 = vmatprep.subr.mxu0 0.0
    %2860 = vmatpush1.msra.mxu0 %v496
    %2861 = vmatprep.subr.mxu0 0.0
    %2862 = vmatpush1.msra.mxu0 0.0
    %2863 = vmatprep.subr.mxu0 0.0
    %2864 = vmatpush1.msra.mxu0 0.0
    %2865 = vmatprep.subr.mxu0 0.0
    %2866 = vmatpush1.msra.mxu0 0.0
    %2867 = vmatprep.subr.mxu0 0.0
    %2868 = vmatpush1.msra.mxu0 0.0
    %2869 = vmatprep.subr.mxu0 0.0
    %2870 = vmatpush1.msra.mxu0 0.0
    %2871 = vmatprep.subr.mxu0 0.0
    %2872 = vmatpush1.msra.mxu0 0.0
    %2873 = vmatprep.subr.mxu0 0.0
    %2874 = vmatpush1.msra.mxu0 0.0
    %2875 = vmatprep.subr.mxu0 0.0
    %2876 = vmatpush1.msra.mxu0 0.0
    %2877 = vmatprep.subr.mxu0 0.0
    %2878 = vmatpush1.msra.mxu0 0.0
    %2879 = vmatprep.subr.mxu0 0.0
    %2880 = vmatpush1.msra.mxu0 0.0
    %2881 = vmatprep.subr.mxu0 0.0
    %2882 = vmatpush1.msra.mxu0 0.0
    %2883 = vmatprep.subr.mxu0 0.0
    %2884 = vmatpush1.msra.mxu0 0.0
    %2885 = vmatprep.subr.mxu0 0.0
    %2886 = vmatpush1.msra.mxu0 0.0
    %2887 = vmatprep.subr.mxu0 0.0
    %2888 = vmatpush1.msra.mxu0 0.0
    %2889 = vmatprep.subr.mxu0 0.0
    %2890 = vmatpush1.msra.mxu0 0.0
    %2891 = vmatprep.subr.mxu0 0.0
    %2892 = vmatpush1.msra.mxu0 0.0
    %2893 = vmatprep.subr.mxu0 0.0
    %2894 = vmatpush1.msra.mxu0 0.0
    %2895 = vmatprep.subr.mxu0 0.0
    %2896 = vmatpush1.msra.mxu0 0.0
    %2897 = vmatprep.subr.mxu0 0.0
    %2898 = vmatpush1.msra.mxu0 0.0
    %2899 = vmatprep.subr.mxu0 0.0
    %2900 = vmatpush1.msra.mxu0 0.0
    %2901 = vmatprep.subr.mxu0 0.0
    %2902 = vmatpush1.msra.mxu0 0.0
    %2903 = vmatprep.subr.mxu0 0.0
    %2904 = vmatpush1.msra.mxu0 0.0
    %2905 = vmatprep.subr.mxu0 0.0
    %2906 = vmatpush1.msra.mxu0 0.0
    %2907 = vmatprep.subr.mxu0 0.0
    %2908 = vmatpush1.msra.mxu0 0.0
    %2909 = vmatprep.subr.mxu0 0.0
    %2910 = vmatpush1.msra.mxu0 0.0
    %2911 = vmatprep.subr.mxu0 0.0
    %2912 = vmatpush1.msra.mxu0 0.0
    %2913 = vmatprep.subr.mxu0 0.0
    %2914 = vmatpush1.msra.mxu0 0.0
    %2915 = vmatprep.subr.mxu0 0.0
    %2916 = vmatpush1.msra.mxu0 0.0
    %2917 = vmatprep.mubr.f32.mxu0 0.0
    %2918 = vmatmul.mubr.f32.gmra.mrb[0].mxu0 %v2851
    %v2919 = vpop.f32.mrb[0].mxu0
    %v2920 = vadd.f32 %v2700, %v2919
    %v2921 = vpop.f32.mrb[0].mxu0
    %2922 = vdwg.mxu0
    %v2923 = vadd.f32 %v2920, %v576
    %v2924 = vxor.u32 %v2923, 2147483648
    %v2925 = vmul.f32 %v2924, 1.442695
    %v2926 = vpow.pop %v2925
    %v2927 = vadd.f32 %v2926, 1.0
    %v2928 = vrcp.pop %v2927
    %v2929 = vmul.f32 1.0, %v2928
    %v2930 = vmul.f32 %v2929, 2.0
    %v2931 = vsub.f32 %v2930, 1.0
    %v2932 = vmul.f32 %v2929, %v2473
    %2934 = vrot.lane.b32.xlu0 %v2931, 64
    %v2935 = vpop.permute.xlu0 %2934
    %v2937 = vmul.f32 %v2929, %v2935
    %2939 = vrot.lane.b32.xlu0 %v2937, 32
    %v2940 = vpop.permute.xlu0 %2939
    %v2942 = vadd.f32 %v2932, %v2940
    %v2943 = vmul.f32 %v2942, 2.0
    %v2944 = vxor.u32 %v2943, 2147483648
    %v2945 = vmul.f32 %v2944, 1.442695
    %v2946 = vpow.pop %v2945
    %v2947 = vadd.f32 %v2946, 1.0
    %v2948 = vrcp.pop %v2947
    %v2949 = vmul.f32 1.0, %v2948
    %v2950 = vmul.f32 %v2949, 2.0
    %v2951 = vsub.f32 %v2950, 1.0
    %2953 = vrot.lane.b32.xlu0 %v2951, 64
    %v2954 = vpop.permute.xlu0 %2953
    %v2956 = vmul.f32 %v2929, %v2954
    %2957 = vmatprep.subr.mxu0 0.0
    %2958 = vmatpush1.msra.mxu0 %v113
    %2959 = vmatprep.subr.mxu0 0.0
    %2960 = vmatpush1.msra.mxu0 %v114
    %2961 = vmatprep.subr.mxu0 0.0
    %2962 = vmatpush1.msra.mxu0 %v115
    %2963 = vmatprep.subr.mxu0 0.0
    %2964 = vmatpush1.msra.mxu0 %v116
    %2965 = vmatprep.subr.mxu0 0.0
    %2966 = vmatpush1.msra.mxu0 0.0
    %2967 = vmatprep.subr.mxu0 0.0
    %2968 = vmatpush1.msra.mxu0 0.0
    %2969 = vmatprep.subr.mxu0 0.0
    %2970 = vmatpush1.msra.mxu0 0.0
    %2971 = vmatprep.subr.mxu0 0.0
    %2972 = vmatpush1.msra.mxu0 0.0
    %2973 = vmatprep.subr.mxu0 0.0
    %2974 = vmatpush1.msra.mxu0 0.0
    %2975 = vmatprep.subr.mxu0 0.0
    %2976 = vmatpush1.msra.mxu0 0.0
    %2977 = vmatprep.subr.mxu0 0.0
    %2978 = vmatpush1.msra.mxu0 0.0
    %2979 = vmatprep.subr.mxu0 0.0
    %2980 = vmatpush1.msra.mxu0 0.0
    %2981 = vmatprep.subr.mxu0 0.0
    %2982 = vmatpush1.msra.mxu0 0.0
    %2983 = vmatprep.subr.mxu0 0.0
    %2984 = vmatpush1.msra.mxu0 0.0
    %2985 = vmatprep.subr.mxu0 0.0
    %2986 = vmatpush1.msra.mxu0 0.0
    %2987 = vmatprep.subr.mxu0 0.0
    %2988 = vmatpush1.msra.mxu0 0.0
    %2989 = vmatprep.subr.mxu0 0.0
    %2990 = vmatpush1.msra.mxu0 0.0
    %2991 = vmatprep.subr.mxu0 0.0
    %2992 = vmatpush1.msra.mxu0 0.0
    %2993 = vmatprep.subr.mxu0 0.0
    %2994 = vmatpush1.msra.mxu0 0.0
    %2995 = vmatprep.subr.mxu0 0.0
    %2996 = vmatpush1.msra.mxu0 0.0
    %2997 = vmatprep.subr.mxu0 0.0
    %2998 = vmatpush1.msra.mxu0 0.0
    %2999 = vmatprep.subr.mxu0 0.0
    %3000 = vmatpush1.msra.mxu0 0.0
    %3001 = vmatprep.subr.mxu0 0.0
    %3002 = vmatpush1.msra.mxu0 0.0
    %3003 = vmatprep.subr.mxu0 0.0
    %3004 = vmatpush1.msra.mxu0 0.0
    %3005 = vmatprep.subr.mxu0 0.0
    %3006 = vmatpush1.msra.mxu0 0.0
    %3007 = vmatprep.subr.mxu0 0.0
    %3008 = vmatpush1.msra.mxu0 0.0
    %3009 = vmatprep.subr.mxu0 0.0
    %3010 = vmatpush1.msra.mxu0 0.0
    %3011 = vmatprep.subr.mxu0 0.0
    %3012 = vmatpush1.msra.mxu0 0.0
    %3013 = vmatprep.subr.mxu0 0.0
    %3014 = vmatpush1.msra.mxu0 0.0
    %3015 = vmatprep.subr.mxu0 0.0
    %3016 = vmatpush1.msra.mxu0 0.0
    %3017 = vmatprep.subr.mxu0 0.0
    %3018 = vmatpush1.msra.mxu0 0.0
    %3019 = vmatprep.subr.mxu0 0.0
    %3020 = vmatpush1.msra.mxu0 0.0
    %3021 = vmatprep.mubr.f32.mxu0 0.0
    %3022 = vmatmul.mubr.f32.gmra.mrb[0].mxu0 %v2742
    %v3023 = vpop.f32.mrb[0].mxu0
    %v3024 = vadd.f32 0.0, %v3023
    %v3025 = vpop.f32.mrb[0].mxu0
    %3026 = vdwg.mxu0
    %3027 = vmatprep.subr.mxu0 0.0
    %3028 = vmatpush1.msra.mxu0 %v191
    %3029 = vmatprep.subr.mxu0 0.0
    %3030 = vmatpush1.msra.mxu0 %v192
    %3031 = vmatprep.subr.mxu0 0.0
    %3032 = vmatpush1.msra.mxu0 %v193
    %3033 = vmatprep.subr.mxu0 0.0
    %3034 = vmatpush1.msra.mxu0 %v194
    %3035 = vmatprep.subr.mxu0 0.0
    %3036 = vmatpush1.msra.mxu0 0.0
    %3037 = vmatprep.subr.mxu0 0.0
    %3038 = vmatpush1.msra.mxu0 0.0
    %3039 = vmatprep.subr.mxu0 0.0
    %3040 = vmatpush1.msra.mxu0 0.0
    %3041 = vmatprep.subr.mxu0 0.0
    %3042 = vmatpush1.msra.mxu0 0.0
    %3043 = vmatprep.subr.mxu0 0.0
    %3044 = vmatpush1.msra.mxu0 0.0
    %3045 = vmatprep.subr.mxu0 0.0
    %3046 = vmatpush1.msra.mxu0 0.0
    %3047 = vmatprep.subr.mxu0 0.0
    %3048 = vmatpush1.msra.mxu0 0.0
    %3049 = vmatprep.subr.mxu0 0.0
    %3050 = vmatpush1.msra.mxu0 0.0
    %3051 = vmatprep.subr.mxu0 0.0
    %3052 = vmatpush1.msra.mxu0 0.0
    %3053 = vmatprep.subr.mxu0 0.0
    %3054 = vmatpush1.msra.mxu0 0.0
    %3055 = vmatprep.subr.mxu0 0.0
    %3056 = vmatpush1.msra.mxu0 0.0
    %3057 = vmatprep.subr.mxu0 0.0
    %3058 = vmatpush1.msra.mxu0 0.0
    %3059 = vmatprep.subr.mxu0 0.0
    %3060 = vmatpush1.msra.mxu0 0.0
    %3061 = vmatprep.subr.mxu0 0.0
    %3062 = vmatpush1.msra.mxu0 0.0
    %3063 = vmatprep.subr.mxu0 0.0
    %3064 = vmatpush1.msra.mxu0 0.0
    %3065 = vmatprep.subr.mxu0 0.0
    %3066 = vmatpush1.msra.mxu0 0.0
    %3067 = vmatprep.subr.mxu0 0.0
    %3068 = vmatpush1.msra.mxu0 0.0
    %3069 = vmatprep.subr.mxu0 0.0
    %3070 = vmatpush1.msra.mxu0 0.0
    %3071 = vmatprep.subr.mxu0 0.0
    %3072 = vmatpush1.msra.mxu0 0.0
    %3073 = vmatprep.subr.mxu0 0.0
    %3074 = vmatpush1.msra.mxu0 0.0
    %3075 = vmatprep.subr.mxu0 0.0
    %3076 = vmatpush1.msra.mxu0 0.0
    %3077 = vmatprep.subr.mxu0 0.0
    %3078 = vmatpush1.msra.mxu0 0.0
    %3079 = vmatprep.subr.mxu0 0.0
    %3080 = vmatpush1.msra.mxu0 0.0
    %3081 = vmatprep.subr.mxu0 0.0
    %3082 = vmatpush1.msra.mxu0 0.0
    %3083 = vmatprep.subr.mxu0 0.0
    %3084 = vmatpush1.msra.mxu0 0.0
    %3085 = vmatprep.subr.mxu0 0.0
    %3086 = vmatpush1.msra.mxu0 0.0
    %3087 = vmatprep.subr.mxu0 0.0
    %3088 = vmatpush1.msra.mxu0 0.0
    %3089 = vmatprep.subr.mxu0 0.0
    %3090 = vmatpush1.msra.mxu0 0.0
    %3091 = vmatprep.mubr.f32.mxu0 0.0
    %3092 = vmatmul.mubr.f32.gmra.mrb[0].mxu0 %v2851
    %v3093 = vpop.f32.mrb[0].mxu0
    %v3094 = vadd.f32 0.0, %v3093
    %v3095 = vpop.f32.mrb[0].mxu0
    %3096 = vdwg.mxu0
    %3098 = vrot.lane.b32.xlu0 %v2956, 32
    %v3099 = vpop.permute.xlu0 %3098
    %v3100 = vsel %vm117, %v3099, 0
    %3102 = vmatprep.subr.mxu0 0.0
    %3103 = vmatpush1.msra.mxu0 %v265
    %3104 = vmatprep.subr.mxu0 0.0
    %3105 = vmatpush1.msra.mxu0 %v266
    %3106 = vmatprep.subr.mxu0 0.0
    %3107 = vmatpush1.msra.mxu0 %v267
    %3108 = vmatprep.subr.mxu0 0.0
    %3109 = vmatpush1.msra.mxu0 %v268
    %3110 = vmatprep.subr.mxu0 0.0
    %3111 = vmatpush1.msra.mxu0 0.0
    %3112 = vmatprep.subr.mxu0 0.0
    %3113 = vmatpush1.msra.mxu0 0.0
    %3114 = vmatprep.subr.mxu0 0.0
    %3115 = vmatpush1.msra.mxu0 0.0
    %3116 = vmatprep.subr.mxu0 0.0
    %3117 = vmatpush1.msra.mxu0 0.0
    %3118 = vmatprep.subr.mxu0 0.0
    %3119 = vmatpush1.msra.mxu0 0.0
    %3120 = vmatprep.subr.mxu0 0.0
    %3121 = vmatpush1.msra.mxu0 0.0
    %3122 = vmatprep.subr.mxu0 0.0
    %3123 = vmatpush1.msra.mxu0 0.0
    %3124 = vmatprep.subr.mxu0 0.0
    %3125 = vmatpush1.msra.mxu0 0.0
    %3126 = vmatprep.subr.mxu0 0.0
    %3127 = vmatpush1.msra.mxu0 0.0
    %3128 = vmatprep.subr.mxu0 0.0
    %3129 = vmatpush1.msra.mxu0 0.0
    %3130 = vmatprep.subr.mxu0 0.0
    %3131 = vmatpush1.msra.mxu0 0.0
    %3132 = vmatprep.subr.mxu0 0.0
    %3133 = vmatpush1.msra.mxu0 0.0
    %3134 = vmatprep.subr.mxu0 0.0
    %3135 = vmatpush1.msra.mxu0 0.0
    %3136 = vmatprep.subr.mxu0 0.0
    %3137 = vmatpush1.msra.mxu0 0.0
    %3138 = vmatprep.subr.mxu0 0.0
    %3139 = vmatpush1.msra.mxu0 0.0
    %3140 = vmatprep.subr.mxu0 0.0
    %3141 = vmatpush1.msra.mxu0 0.0
    %3142 = vmatprep.subr.mxu0 0.0
    %3143 = vmatpush1.msra.mxu0 0.0
    %3144 = vmatprep.subr.mxu0 0.0
    %3145 = vmatpush1.msra.mxu0 0.0
    %3146 = vmatprep.subr.mxu0 0.0
    %3147 = vmatpush1.msra.mxu0 0.0
    %3148 = vmatprep.subr.mxu0 0.0
    %3149 = vmatpush1.msra.mxu0 0.0
    %3150 = vmatprep.subr.mxu0 0.0
    %3151 = vmatpush1.msra.mxu0 0.0
    %3152 = vmatprep.subr.mxu0 0.0
    %3153 = vmatpush1.msra.mxu0 0.0
    %3154 = vmatprep.subr.mxu0 0.0
    %3155 = vmatpush1.msra.mxu0 0.0
    %3156 = vmatprep.subr.mxu0 0.0
    %3157 = vmatpush1.msra.mxu0 0.0
    %3158 = vmatprep.subr.mxu0 0.0
    %3159 = vmatpush1.msra.mxu0 0.0
    %3160 = vmatprep.subr.mxu0 0.0
    %3161 = vmatpush1.msra.mxu0 0.0
    %3162 = vmatprep.subr.mxu0 0.0
    %3163 = vmatpush1.msra.mxu0 0.0
    %3164 = vmatprep.subr.mxu0 0.0
    %3165 = vmatpush1.msra.mxu0 0.0
    %3166 = vmatprep.mubr.f32.mxu0 0.0
    %3167 = vmatmul.mubr.f32.gmra.mrb[0].mxu0 %v3100
    %v3168 = vpop.f32.mrb[0].mxu0
    %v3169 = vadd.f32 0.0, %v3168
    %v3170 = vpop.f32.mrb[0].mxu0
    %3171 = vdwg.mxu0
    %s3172 = scalar_lea.vmem [#allocation3], 12
    %v3173 = vld [vmem:[%s3172] sm:$0x3]
    %v3174 = vadd.f32 %v3173, %v3024
    %v3175 = vxor.u32 %v3174, 2147483648
    %v3176 = vmul.f32 %v3175, 1.442695
    %v3177 = vpow.pop %v3176
    %v3178 = vadd.f32 %v3177, 1.0
    %v3179 = vrcp.pop %v3178
    %v3180 = vmul.f32 1.0, %v3179
    %v3181 = vmul.f32 %v3180, 2.0
    %v3182 = vsub.f32 %v3181, 1.0
    %v3183 = vmul.f32 %v3180, %v2724
    %3185 = vrot.lane.b32.xlu0 %v3182, 64
    %v3186 = vpop.permute.xlu0 %3185
    %v3188 = vmul.f32 %v3180, %v3186
    %3190 = vrot.lane.b32.xlu0 %v3188, 32
    %v3191 = vpop.permute.xlu0 %3190
    %v3193 = vadd.f32 %v3183, %v3191
    %v3194 = vmul.f32 %v3193, 2.0
    %v3195 = vxor.u32 %v3194, 2147483648
    %v3196 = vmul.f32 %v3195, 1.442695
    %v3197 = vpow.pop %v3196
    %v3198 = vadd.f32 %v3197, 1.0
    %v3199 = vrcp.pop %v3198
    %v3200 = vmul.f32 1.0, %v3199
    %v3201 = vmul.f32 %v3200, 2.0
    %v3202 = vsub.f32 %v3201, 1.0
    %3204 = vrot.lane.b32.xlu0 %v3202, 64
    %v3205 = vpop.permute.xlu0 %3204
    %v3207 = vmul.f32 %v3180, %v3205
    %3209 = vrot.lane.b32.xlu0 %v3207, 32
    %v3210 = vpop.permute.xlu0 %3209
    %v3211 = vsel %vm117, %v3210, 0
    %3213 = vmatprep.subr.mxu0 0.0
    %3214 = vmatpush1.msra.mxu0 %v374
    %3215 = vmatprep.subr.mxu0 0.0
    %3216 = vmatpush1.msra.mxu0 %v375
    %3217 = vmatprep.subr.mxu0 0.0
    %3218 = vmatpush1.msra.mxu0 %v376
    %3219 = vmatprep.subr.mxu0 0.0
    %3220 = vmatpush1.msra.mxu0 %v377
    %3221 = vmatprep.subr.mxu0 0.0
    %3222 = vmatpush1.msra.mxu0 0.0
    %3223 = vmatprep.subr.mxu0 0.0
    %3224 = vmatpush1.msra.mxu0 0.0
    %3225 = vmatprep.subr.mxu0 0.0
    %3226 = vmatpush1.msra.mxu0 0.0
    %3227 = vmatprep.subr.mxu0 0.0
    %3228 = vmatpush1.msra.mxu0 0.0
    %3229 = vmatprep.subr.mxu0 0.0
    %3230 = vmatpush1.msra.mxu0 0.0
    %3231 = vmatprep.subr.mxu0 0.0
    %3232 = vmatpush1.msra.mxu0 0.0
    %3233 = vmatprep.subr.mxu0 0.0
    %3234 = vmatpush1.msra.mxu0 0.0
    %3235 = vmatprep.subr.mxu0 0.0
    %3236 = vmatpush1.msra.mxu0 0.0
    %3237 = vmatprep.subr.mxu0 0.0
    %3238 = vmatpush1.msra.mxu0 0.0
    %3239 = vmatprep.subr.mxu0 0.0
    %3240 = vmatpush1.msra.mxu0 0.0
    %3241 = vmatprep.subr.mxu0 0.0
    %3242 = vmatpush1.msra.mxu0 0.0
    %3243 = vmatprep.subr.mxu0 0.0
    %3244 = vmatpush1.msra.mxu0 0.0
    %3245 = vmatprep.subr.mxu0 0.0
    %3246 = vmatpush1.msra.mxu0 0.0
    %3247 = vmatprep.subr.mxu0 0.0
    %3248 = vmatpush1.msra.mxu0 0.0
    %3249 = vmatprep.subr.mxu0 0.0
    %3250 = vmatpush1.msra.mxu0 0.0
    %3251 = vmatprep.subr.mxu0 0.0
    %3252 = vmatpush1.msra.mxu0 0.0
    %3253 = vmatprep.subr.mxu0 0.0
    %3254 = vmatpush1.msra.mxu0 0.0
    %3255 = vmatprep.subr.mxu0 0.0
    %3256 = vmatpush1.msra.mxu0 0.0
    %3257 = vmatprep.subr.mxu0 0.0
    %3258 = vmatpush1.msra.mxu0 0.0
    %3259 = vmatprep.subr.mxu0 0.0
    %3260 = vmatpush1.msra.mxu0 0.0
    %3261 = vmatprep.subr.mxu0 0.0
    %3262 = vmatpush1.msra.mxu0 0.0
    %3263 = vmatprep.subr.mxu0 0.0
    %3264 = vmatpush1.msra.mxu0 0.0
    %3265 = vmatprep.subr.mxu0 0.0
    %3266 = vmatpush1.msra.mxu0 0.0
    %3267 = vmatprep.subr.mxu0 0.0
    %3268 = vmatpush1.msra.mxu0 0.0
    %3269 = vmatprep.subr.mxu0 0.0
    %3270 = vmatpush1.msra.mxu0 0.0
    %3271 = vmatprep.subr.mxu0 0.0
    %3272 = vmatpush1.msra.mxu0 0.0
    %3273 = vmatprep.subr.mxu0 0.0
    %3274 = vmatpush1.msra.mxu0 0.0
    %3275 = vmatprep.subr.mxu0 0.0
    %3276 = vmatpush1.msra.mxu0 0.0
    %3277 = vmatprep.mubr.f32.mxu0 0.0
    %3278 = vmatmul.mubr.f32.gmra.mrb[0].mxu0 %v3211
    %v3279 = vpop.f32.mrb[0].mxu0
    %v3280 = vadd.f32 %v3094, %v3279
    %v3281 = vpop.f32.mrb[0].mxu0
    %3282 = vdwg.mxu0
    %v3283 = vadd.f32 %v3280, %v457
    %v3284 = vxor.u32 %v3283, 2147483648
    %v3285 = vmul.f32 %v3284, 1.442695
    %v3286 = vpow.pop %v3285
    %v3287 = vadd.f32 %v3286, 1.0
    %v3288 = vrcp.pop %v3287
    %v3289 = vmul.f32 1.0, %v3288
    %v3290 = vmul.f32 %v3289, 2.0
    %v3291 = vsub.f32 %v3290, 1.0
    %v3292 = vmul.f32 %v3289, %v2833
    %3294 = vrot.lane.b32.xlu0 %v3291, 64
    %v3295 = vpop.permute.xlu0 %3294
    %v3297 = vmul.f32 %v3289, %v3295
    %3299 = vrot.lane.b32.xlu0 %v3297, 32
    %v3300 = vpop.permute.xlu0 %3299
    %v3302 = vadd.f32 %v3292, %v3300
    %v3303 = vmul.f32 %v3302, 2.0
    %v3304 = vxor.u32 %v3303, 2147483648
    %v3305 = vmul.f32 %v3304, 1.442695
    %v3306 = vpow.pop %v3305
    %v3307 = vadd.f32 %v3306, 1.0
    %v3308 = vrcp.pop %v3307
    %v3309 = vmul.f32 1.0, %v3308
    %v3310 = vmul.f32 %v3309, 2.0
    %v3311 = vsub.f32 %v3310, 1.0
    %3313 = vrot.lane.b32.xlu0 %v3311, 64
    %v3314 = vpop.permute.xlu0 %3313
    %v3316 = vmul.f32 %v3289, %v3314
    %3318 = vrot.lane.b32.xlu0 %v3316, 32
    %v3319 = vpop.permute.xlu0 %3318
    %v3320 = vsel %vm117, %v3319, 0
    %3322 = vmatprep.subr.mxu0 0.0
    %3323 = vmatpush1.msra.mxu0 %v493
    %3324 = vmatprep.subr.mxu0 0.0
    %3325 = vmatpush1.msra.mxu0 %v494
    %3326 = vmatprep.subr.mxu0 0.0
    %3327 = vmatpush1.msra.mxu0 %v495
    %3328 = vmatprep.subr.mxu0 0.0
    %3329 = vmatpush1.msra.mxu0 %v496
    %3330 = vmatprep.subr.mxu0 0.0
    %3331 = vmatpush1.msra.mxu0 0.0
    %3332 = vmatprep.subr.mxu0 0.0
    %3333 = vmatpush1.msra.mxu0 0.0
    %3334 = vmatprep.subr.mxu0 0.0
    %3335 = vmatpush1.msra.mxu0 0.0
    %3336 = vmatprep.subr.mxu0 0.0
    %3337 = vmatpush1.msra.mxu0 0.0
    %3338 = vmatprep.subr.mxu0 0.0
    %3339 = vmatpush1.msra.mxu0 0.0
    %3340 = vmatprep.subr.mxu0 0.0
    %3341 = vmatpush1.msra.mxu0 0.0
    %3342 = vmatprep.subr.mxu0 0.0
    %3343 = vmatpush1.msra.mxu0 0.0
    %3344 = vmatprep.subr.mxu0 0.0
    %3345 = vmatpush1.msra.mxu0 0.0
    %3346 = vmatprep.subr.mxu0 0.0
    %3347 = vmatpush1.msra.mxu0 0.0
    %3348 = vmatprep.subr.mxu0 0.0
    %3349 = vmatpush1.msra.mxu0 0.0
    %3350 = vmatprep.subr.mxu0 0.0
    %3351 = vmatpush1.msra.mxu0 0.0
    %3352 = vmatprep.subr.mxu0 0.0
    %3353 = vmatpush1.msra.mxu0 0.0
    %3354 = vmatprep.subr.mxu0 0.0
    %3355 = vmatpush1.msra.mxu0 0.0
    %3356 = vmatprep.subr.mxu0 0.0
    %3357 = vmatpush1.msra.mxu0 0.0
    %3358 = vmatprep.subr.mxu0 0.0
    %3359 = vmatpush1.msra.mxu0 0.0
    %3360 = vmatprep.subr.mxu0 0.0
    %3361 = vmatpush1.msra.mxu0 0.0
    %3362 = vmatprep.subr.mxu0 0.0
    %3363 = vmatpush1.msra.mxu0 0.0
    %3364 = vmatprep.subr.mxu0 0.0
    %3365 = vmatpush1.msra.mxu0 0.0
    %3366 = vmatprep.subr.mxu0 0.0
    %3367 = vmatpush1.msra.mxu0 0.0
    %3368 = vmatprep.subr.mxu0 0.0
    %3369 = vmatpush1.msra.mxu0 0.0
    %3370 = vmatprep.subr.mxu0 0.0
    %3371 = vmatpush1.msra.mxu0 0.0
    %3372 = vmatprep.subr.mxu0 0.0
    %3373 = vmatpush1.msra.mxu0 0.0
    %3374 = vmatprep.subr.mxu0 0.0
    %3375 = vmatpush1.msra.mxu0 0.0
    %3376 = vmatprep.subr.mxu0 0.0
    %3377 = vmatpush1.msra.mxu0 0.0
    %3378 = vmatprep.subr.mxu0 0.0
    %3379 = vmatpush1.msra.mxu0 0.0
    %3380 = vmatprep.subr.mxu0 0.0
    %3381 = vmatpush1.msra.mxu0 0.0
    %3382 = vmatprep.subr.mxu0 0.0
    %3383 = vmatpush1.msra.mxu0 0.0
    %3384 = vmatprep.subr.mxu0 0.0
    %3385 = vmatpush1.msra.mxu0 0.0
    %3386 = vmatprep.mubr.f32.mxu0 0.0
    %3387 = vmatmul.mubr.f32.gmra.mrb[0].mxu0 %v3320
    %v3388 = vpop.f32.mrb[0].mxu0
    %v3389 = vadd.f32 %v3169, %v3388
    %v3390 = vpop.f32.mrb[0].mxu0
    %3391 = vdwg.mxu0
    %v3392 = vadd.f32 %v3389, %v576
    %v3393 = vxor.u32 %v3392, 2147483648
    %v3394 = vmul.f32 %v3393, 1.442695
    %v3395 = vpow.pop %v3394
    %v3396 = vadd.f32 %v3395, 1.0
    %v3397 = vrcp.pop %v3396
    %v3398 = vmul.f32 1.0, %v3397
    %v3399 = vmul.f32 %v3398, 2.0
    %v3400 = vsub.f32 %v3399, 1.0
    %v3401 = vmul.f32 %v3398, %v2942
    %3403 = vrot.lane.b32.xlu0 %v3400, 64
    %v3404 = vpop.permute.xlu0 %3403
    %v3406 = vmul.f32 %v3398, %v3404
    %3408 = vrot.lane.b32.xlu0 %v3406, 32
    %v3409 = vpop.permute.xlu0 %3408
    %v3411 = vadd.f32 %v3401, %v3409
    %v3412 = vmul.f32 %v3411, 2.0
    %v3413 = vxor.u32 %v3412, 2147483648
    %v3414 = vmul.f32 %v3413, 1.442695
    %v3415 = vpow.pop %v3414
    %v3416 = vadd.f32 %v3415, 1.0
    %v3417 = vrcp.pop %v3416
    %v3418 = vmul.f32 1.0, %v3417
    %v3419 = vmul.f32 %v3418, 2.0
    %v3420 = vsub.f32 %v3419, 1.0
    %3422 = vrot.lane.b32.xlu0 %v3420, 64
    %v3423 = vpop.permute.xlu0 %3422
    %v3425 = vmul.f32 %v3398, %v3423
    %3426 = vmatprep.subr.mxu0 0.0
    %3427 = vmatpush1.msra.mxu0 %v113
    %3428 = vmatprep.subr.mxu0 0.0
    %3429 = vmatpush1.msra.mxu0 %v114
    %3430 = vmatprep.subr.mxu0 0.0
    %3431 = vmatpush1.msra.mxu0 %v115
    %3432 = vmatprep.subr.mxu0 0.0
    %3433 = vmatpush1.msra.mxu0 %v116
    %3434 = vmatprep.subr.mxu0 0.0
    %3435 = vmatpush1.msra.mxu0 0.0
    %3436 = vmatprep.subr.mxu0 0.0
    %3437 = vmatpush1.msra.mxu0 0.0
    %3438 = vmatprep.subr.mxu0 0.0
    %3439 = vmatpush1.msra.mxu0 0.0
    %3440 = vmatprep.subr.mxu0 0.0
    %3441 = vmatpush1.msra.mxu0 0.0
    %3442 = vmatprep.subr.mxu0 0.0
    %3443 = vmatpush1.msra.mxu0 0.0
    %3444 = vmatprep.subr.mxu0 0.0
    %3445 = vmatpush1.msra.mxu0 0.0
    %3446 = vmatprep.subr.mxu0 0.0
    %3447 = vmatpush1.msra.mxu0 0.0
    %3448 = vmatprep.subr.mxu0 0.0
    %3449 = vmatpush1.msra.mxu0 0.0
    %3450 = vmatprep.subr.mxu0 0.0
    %3451 = vmatpush1.msra.mxu0 0.0
    %3452 = vmatprep.subr.mxu0 0.0
    %3453 = vmatpush1.msra.mxu0 0.0
    %3454 = vmatprep.subr.mxu0 0.0
    %3455 = vmatpush1.msra.mxu0 0.0
    %3456 = vmatprep.subr.mxu0 0.0
    %3457 = vmatpush1.msra.mxu0 0.0
    %3458 = vmatprep.subr.mxu0 0.0
    %3459 = vmatpush1.msra.mxu0 0.0
    %3460 = vmatprep.subr.mxu0 0.0
    %3461 = vmatpush1.msra.mxu0 0.0
    %3462 = vmatprep.subr.mxu0 0.0
    %3463 = vmatpush1.msra.mxu0 0.0
    %3464 = vmatprep.subr.mxu0 0.0
    %3465 = vmatpush1.msra.mxu0 0.0
    %3466 = vmatprep.subr.mxu0 0.0
    %3467 = vmatpush1.msra.mxu0 0.0
    %3468 = vmatprep.subr.mxu0 0.0
    %3469 = vmatpush1.msra.mxu0 0.0
    %3470 = vmatprep.subr.mxu0 0.0
    %3471 = vmatpush1.msra.mxu0 0.0
    %3472 = vmatprep.subr.mxu0 0.0
    %3473 = vmatpush1.msra.mxu0 0.0
    %3474 = vmatprep.subr.mxu0 0.0
    %3475 = vmatpush1.msra.mxu0 0.0
    %3476 = vmatprep.subr.mxu0 0.0
    %3477 = vmatpush1.msra.mxu0 0.0
    %3478 = vmatprep.subr.mxu0 0.0
    %3479 = vmatpush1.msra.mxu0 0.0
    %3480 = vmatprep.subr.mxu0 0.0
    %3481 = vmatpush1.msra.mxu0 0.0
    %3482 = vmatprep.subr.mxu0 0.0
    %3483 = vmatpush1.msra.mxu0 0.0
    %3484 = vmatprep.subr.mxu0 0.0
    %3485 = vmatpush1.msra.mxu0 0.0
    %3486 = vmatprep.subr.mxu0 0.0
    %3487 = vmatpush1.msra.mxu0 0.0
    %3488 = vmatprep.subr.mxu0 0.0
    %3489 = vmatpush1.msra.mxu0 0.0
    %3490 = vmatprep.mubr.f32.mxu0 0.0
    %3491 = vmatmul.mubr.f32.gmra.mrb[0].mxu0 %v3211
    %v3492 = vpop.f32.mrb[0].mxu0
    %v3493 = vadd.f32 0.0, %v3492
    %v3494 = vpop.f32.mrb[0].mxu0
    %3495 = vdwg.mxu0
    %3496 = vmatprep.subr.mxu0 0.0
    %3497 = vmatpush1.msra.mxu0 %v191
    %3498 = vmatprep.subr.mxu0 0.0
    %3499 = vmatpush1.msra.mxu0 %v192
    %3500 = vmatprep.subr.mxu0 0.0
    %3501 = vmatpush1.msra.mxu0 %v193
    %3502 = vmatprep.subr.mxu0 0.0
    %3503 = vmatpush1.msra.mxu0 %v194
    %3504 = vmatprep.subr.mxu0 0.0
    %3505 = vmatpush1.msra.mxu0 0.0
    %3506 = vmatprep.subr.mxu0 0.0
    %3507 = vmatpush1.msra.mxu0 0.0
    %3508 = vmatprep.subr.mxu0 0.0
    %3509 = vmatpush1.msra.mxu0 0.0
    %3510 = vmatprep.subr.mxu0 0.0
    %3511 = vmatpush1.msra.mxu0 0.0
    %3512 = vmatprep.subr.mxu0 0.0
    %3513 = vmatpush1.msra.mxu0 0.0
    %3514 = vmatprep.subr.mxu0 0.0
    %3515 = vmatpush1.msra.mxu0 0.0
    %3516 = vmatprep.subr.mxu0 0.0
    %3517 = vmatpush1.msra.mxu0 0.0
    %3518 = vmatprep.subr.mxu0 0.0
    %3519 = vmatpush1.msra.mxu0 0.0
    %3520 = vmatprep.subr.mxu0 0.0
    %3521 = vmatpush1.msra.mxu0 0.0
    %3522 = vmatprep.subr.mxu0 0.0
    %3523 = vmatpush1.msra.mxu0 0.0
    %3524 = vmatprep.subr.mxu0 0.0
    %3525 = vmatpush1.msra.mxu0 0.0
    %3526 = vmatprep.subr.mxu0 0.0
    %3527 = vmatpush1.msra.mxu0 0.0
    %3528 = vmatprep.subr.mxu0 0.0
    %3529 = vmatpush1.msra.mxu0 0.0
    %3530 = vmatprep.subr.mxu0 0.0
    %3531 = vmatpush1.msra.mxu0 0.0
    %3532 = vmatprep.subr.mxu0 0.0
    %3533 = vmatpush1.msra.mxu0 0.0
    %3534 = vmatprep.subr.mxu0 0.0
    %3535 = vmatpush1.msra.mxu0 0.0
    %3536 = vmatprep.subr.mxu0 0.0
    %3537 = vmatpush1.msra.mxu0 0.0
    %3538 = vmatprep.subr.mxu0 0.0
    %3539 = vmatpush1.msra.mxu0 0.0
    %3540 = vmatprep.subr.mxu0 0.0
    %3541 = vmatpush1.msra.mxu0 0.0
    %3542 = vmatprep.subr.mxu0 0.0
    %3543 = vmatpush1.msra.mxu0 0.0
    %3544 = vmatprep.subr.mxu0 0.0
    %3545 = vmatpush1.msra.mxu0 0.0
    %3546 = vmatprep.subr.mxu0 0.0
    %3547 = vmatpush1.msra.mxu0 0.0
    %3548 = vmatprep.subr.mxu0 0.0
    %3549 = vmatpush1.msra.mxu0 0.0
    %3550 = vmatprep.subr.mxu0 0.0
    %3551 = vmatpush1.msra.mxu0 0.0
    %3552 = vmatprep.subr.mxu0 0.0
    %3553 = vmatpush1.msra.mxu0 0.0
    %3554 = vmatprep.subr.mxu0 0.0
    %3555 = vmatpush1.msra.mxu0 0.0
    %3556 = vmatprep.subr.mxu0 0.0
    %3557 = vmatpush1.msra.mxu0 0.0
    %3558 = vmatprep.subr.mxu0 0.0
    %3559 = vmatpush1.msra.mxu0 0.0
    %3560 = vmatprep.mubr.f32.mxu0 0.0
    %3561 = vmatmul.mubr.f32.gmra.mrb[0].mxu0 %v3320
    %v3562 = vpop.f32.mrb[0].mxu0
    %v3563 = vadd.f32 0.0, %v3562
    %v3564 = vpop.f32.mrb[0].mxu0
    %3565 = vdwg.mxu0
    %3567 = vrot.lane.b32.xlu0 %v3425, 32
    %v3568 = vpop.permute.xlu0 %3567
    %v3569 = vsel %vm117, %v3568, 0
    %3571 = vmatprep.subr.mxu0 0.0
    %3572 = vmatpush1.msra.mxu0 %v265
    %3573 = vmatprep.subr.mxu0 0.0
    %3574 = vmatpush1.msra.mxu0 %v266
    %3575 = vmatprep.subr.mxu0 0.0
    %3576 = vmatpush1.msra.mxu0 %v267
    %3577 = vmatprep.subr.mxu0 0.0
    %3578 = vmatpush1.msra.mxu0 %v268
    %3579 = vmatprep.subr.mxu0 0.0
    %3580 = vmatpush1.msra.mxu0 0.0
    %3581 = vmatprep.subr.mxu0 0.0
    %3582 = vmatpush1.msra.mxu0 0.0
    %3583 = vmatprep.subr.mxu0 0.0
    %3584 = vmatpush1.msra.mxu0 0.0
    %3585 = vmatprep.subr.mxu0 0.0
    %3586 = vmatpush1.msra.mxu0 0.0
    %3587 = vmatprep.subr.mxu0 0.0
    %3588 = vmatpush1.msra.mxu0 0.0
    %3589 = vmatprep.subr.mxu0 0.0
    %3590 = vmatpush1.msra.mxu0 0.0
    %3591 = vmatprep.subr.mxu0 0.0
    %3592 = vmatpush1.msra.mxu0 0.0
    %3593 = vmatprep.subr.mxu0 0.0
    %3594 = vmatpush1.msra.mxu0 0.0
    %3595 = vmatprep.subr.mxu0 0.0
    %3596 = vmatpush1.msra.mxu0 0.0
    %3597 = vmatprep.subr.mxu0 0.0
    %3598 = vmatpush1.msra.mxu0 0.0
    %3599 = vmatprep.subr.mxu0 0.0
    %3600 = vmatpush1.msra.mxu0 0.0
    %3601 = vmatprep.subr.mxu0 0.0
    %3602 = vmatpush1.msra.mxu0 0.0
    %3603 = vmatprep.subr.mxu0 0.0
    %3604 = vmatpush1.msra.mxu0 0.0
    %3605 = vmatprep.subr.mxu0 0.0
    %3606 = vmatpush1.msra.mxu0 0.0
    %3607 = vmatprep.subr.mxu0 0.0
    %3608 = vmatpush1.msra.mxu0 0.0
    %3609 = vmatprep.subr.mxu0 0.0
    %3610 = vmatpush1.msra.mxu0 0.0
    %3611 = vmatprep.subr.mxu0 0.0
    %3612 = vmatpush1.msra.mxu0 0.0
    %3613 = vmatprep.subr.mxu0 0.0
    %3614 = vmatpush1.msra.mxu0 0.0
    %3615 = vmatprep.subr.mxu0 0.0
    %3616 = vmatpush1.msra.mxu0 0.0
    %3617 = vmatprep.subr.mxu0 0.0
    %3618 = vmatpush1.msra.mxu0 0.0
    %3619 = vmatprep.subr.mxu0 0.0
    %3620 = vmatpush1.msra.mxu0 0.0
    %3621 = vmatprep.subr.mxu0 0.0
    %3622 = vmatpush1.msra.mxu0 0.0
    %3623 = vmatprep.subr.mxu0 0.0
    %3624 = vmatpush1.msra.mxu0 0.0
    %3625 = vmatprep.subr.mxu0 0.0
    %3626 = vmatpush1.msra.mxu0 0.0
    %3627 = vmatprep.subr.mxu0 0.0
    %3628 = vmatpush1.msra.mxu0 0.0
    %3629 = vmatprep.subr.mxu0 0.0
    %3630 = vmatpush1.msra.mxu0 0.0
    %3631 = vmatprep.subr.mxu0 0.0
    %3632 = vmatpush1.msra.mxu0 0.0
    %3633 = vmatprep.subr.mxu0 0.0
    %3634 = vmatpush1.msra.mxu0 0.0
    %3635 = vmatprep.mubr.f32.mxu0 0.0
    %3636 = vmatmul.mubr.f32.gmra.mrb[0].mxu0 %v3569
    %v3637 = vpop.f32.mrb[0].mxu0
    %v3638 = vadd.f32 0.0, %v3637
    %v3639 = vpop.f32.mrb[0].mxu0
    %3640 = vdwg.mxu0
    %s3641 = scalar_lea.vmem [#allocation3], 14
    %v3642 = vld [vmem:[%s3641] sm:$0x3]
    %v3643 = vadd.f32 %v3642, %v3493
    %v3644 = vxor.u32 %v3643, 2147483648
    %v3645 = vmul.f32 %v3644, 1.442695
    %v3646 = vpow.pop %v3645
    %v3647 = vadd.f32 %v3646, 1.0
    %v3648 = vrcp.pop %v3647
    %v3649 = vmul.f32 1.0, %v3648
    %v3650 = vmul.f32 %v3649, 2.0
    %v3651 = vsub.f32 %v3650, 1.0
    %v3652 = vmul.f32 %v3649, %v3193
    %3654 = vrot.lane.b32.xlu0 %v3651, 64
    %v3655 = vpop.permute.xlu0 %3654
    %v3657 = vmul.f32 %v3649, %v3655
    %3659 = vrot.lane.b32.xlu0 %v3657, 32
    %v3660 = vpop.permute.xlu0 %3659
    %v3662 = vadd.f32 %v3652, %v3660
    %v3663 = vmul.f32 %v3662, 2.0
    %v3664 = vxor.u32 %v3663, 2147483648
    %v3665 = vmul.f32 %v3664, 1.442695
    %v3666 = vpow.pop %v3665
    %v3667 = vadd.f32 %v3666, 1.0
    %v3668 = vrcp.pop %v3667
    %v3669 = vmul.f32 1.0, %v3668
    %v3670 = vmul.f32 %v3669, 2.0
    %v3671 = vsub.f32 %v3670, 1.0
    %3673 = vrot.lane.b32.xlu0 %v3671, 64
    %v3674 = vpop.permute.xlu0 %3673
    %v3676 = vmul.f32 %v3649, %v3674
    %3678 = vrot.lane.b32.xlu0 %v3676, 32
    %v3679 = vpop.permute.xlu0 %3678
    %v3680 = vsel %vm117, %v3679, 0
    %3682 = vmatprep.subr.mxu0 0.0
    %3683 = vmatpush1.msra.mxu0 %v374
    %3684 = vmatprep.subr.mxu0 0.0
    %3685 = vmatpush1.msra.mxu0 %v375
    %3686 = vmatprep.subr.mxu0 0.0
    %3687 = vmatpush1.msra.mxu0 %v376
    %3688 = vmatprep.subr.mxu0 0.0
    %3689 = vmatpush1.msra.mxu0 %v377
    %3690 = vmatprep.subr.mxu0 0.0
    %3691 = vmatpush1.msra.mxu0 0.0
    %3692 = vmatprep.subr.mxu0 0.0
    %3693 = vmatpush1.msra.mxu0 0.0
    %3694 = vmatprep.subr.mxu0 0.0
    %3695 = vmatpush1.msra.mxu0 0.0
    %3696 = vmatprep.subr.mxu0 0.0
    %3697 = vmatpush1.msra.mxu0 0.0
    %3698 = vmatprep.subr.mxu0 0.0
    %3699 = vmatpush1.msra.mxu0 0.0
    %3700 = vmatprep.subr.mxu0 0.0
    %3701 = vmatpush1.msra.mxu0 0.0
    %3702 = vmatprep.subr.mxu0 0.0
    %3703 = vmatpush1.msra.mxu0 0.0
    %3704 = vmatprep.subr.mxu0 0.0
    %3705 = vmatpush1.msra.mxu0 0.0
    %3706 = vmatprep.subr.mxu0 0.0
    %3707 = vmatpush1.msra.mxu0 0.0
    %3708 = vmatprep.subr.mxu0 0.0
    %3709 = vmatpush1.msra.mxu0 0.0
    %3710 = vmatprep.subr.mxu0 0.0
    %3711 = vmatpush1.msra.mxu0 0.0
    %3712 = vmatprep.subr.mxu0 0.0
    %3713 = vmatpush1.msra.mxu0 0.0
    %3714 = vmatprep.subr.mxu0 0.0
    %3715 = vmatpush1.msra.mxu0 0.0
    %3716 = vmatprep.subr.mxu0 0.0
    %3717 = vmatpush1.msra.mxu0 0.0
    %3718 = vmatprep.subr.mxu0 0.0
    %3719 = vmatpush1.msra.mxu0 0.0
    %3720 = vmatprep.subr.mxu0 0.0
    %3721 = vmatpush1.msra.mxu0 0.0
    %3722 = vmatprep.subr.mxu0 0.0
    %3723 = vmatpush1.msra.mxu0 0.0
    %3724 = vmatprep.subr.mxu0 0.0
    %3725 = vmatpush1.msra.mxu0 0.0
    %3726 = vmatprep.subr.mxu0 0.0
    %3727 = vmatpush1.msra.mxu0 0.0
    %3728 = vmatprep.subr.mxu0 0.0
    %3729 = vmatpush1.msra.mxu0 0.0
    %3730 = vmatprep.subr.mxu0 0.0
    %3731 = vmatpush1.msra.mxu0 0.0
    %3732 = vmatprep.subr.mxu0 0.0
    %3733 = vmatpush1.msra.mxu0 0.0
    %3734 = vmatprep.subr.mxu0 0.0
    %3735 = vmatpush1.msra.mxu0 0.0
    %3736 = vmatprep.subr.mxu0 0.0
    %3737 = vmatpush1.msra.mxu0 0.0
    %3738 = vmatprep.subr.mxu0 0.0
    %3739 = vmatpush1.msra.mxu0 0.0
    %3740 = vmatprep.subr.mxu0 0.0
    %3741 = vmatpush1.msra.mxu0 0.0
    %3742 = vmatprep.subr.mxu0 0.0
    %3743 = vmatpush1.msra.mxu0 0.0
    %3744 = vmatprep.subr.mxu0 0.0
    %3745 = vmatpush1.msra.mxu0 0.0
    %3746 = vmatprep.mubr.f32.mxu0 0.0
    %3747 = vmatmul.mubr.f32.gmra.mrb[0].mxu0 %v3680
    %v3748 = vpop.f32.mrb[0].mxu0
    %v3749 = vadd.f32 %v3563, %v3748
    %v3750 = vpop.f32.mrb[0].mxu0
    %3751 = vdwg.mxu0
    %v3752 = vadd.f32 %v3749, %v457
    %v3753 = vxor.u32 %v3752, 2147483648
    %v3754 = vmul.f32 %v3753, 1.442695
    %v3755 = vpow.pop %v3754
    %v3756 = vadd.f32 %v3755, 1.0
    %v3757 = vrcp.pop %v3756
    %v3758 = vmul.f32 1.0, %v3757
    %v3759 = vmul.f32 %v3758, 2.0
    %v3760 = vsub.f32 %v3759, 1.0
    %v3761 = vmul.f32 %v3758, %v3302
    %3763 = vrot.lane.b32.xlu0 %v3760, 64
    %v3764 = vpop.permute.xlu0 %3763
    %v3766 = vmul.f32 %v3758, %v3764
    %3768 = vrot.lane.b32.xlu0 %v3766, 32
    %v3769 = vpop.permute.xlu0 %3768
    %v3771 = vadd.f32 %v3761, %v3769
    %v3772 = vmul.f32 %v3771, 2.0
    %v3773 = vxor.u32 %v3772, 2147483648
    %v3774 = vmul.f32 %v3773, 1.442695
    %v3775 = vpow.pop %v3774
    %v3776 = vadd.f32 %v3775, 1.0
    %v3777 = vrcp.pop %v3776
    %v3778 = vmul.f32 1.0, %v3777
    %v3779 = vmul.f32 %v3778, 2.0
    %v3780 = vsub.f32 %v3779, 1.0
    %3782 = vrot.lane.b32.xlu0 %v3780, 64
    %v3783 = vpop.permute.xlu0 %3782
    %v3785 = vmul.f32 %v3758, %v3783
    %3787 = vrot.lane.b32.xlu0 %v3785, 32
    %v3788 = vpop.permute.xlu0 %3787
    %v3789 = vsel %vm117, %v3788, 0
    %3791 = vmatprep.subr.mxu0 0.0
    %3792 = vmatpush1.msra.mxu0 %v493
    %3793 = vmatprep.subr.mxu0 0.0
    %3794 = vmatpush1.msra.mxu0 %v494
    %3795 = vmatprep.subr.mxu0 0.0
    %3796 = vmatpush1.msra.mxu0 %v495
    %3797 = vmatprep.subr.mxu0 0.0
    %3798 = vmatpush1.msra.mxu0 %v496
    %3799 = vmatprep.subr.mxu0 0.0
    %3800 = vmatpush1.msra.mxu0 0.0
    %3801 = vmatprep.subr.mxu0 0.0
    %3802 = vmatpush1.msra.mxu0 0.0
    %3803 = vmatprep.subr.mxu0 0.0
    %3804 = vmatpush1.msra.mxu0 0.0
    %3805 = vmatprep.subr.mxu0 0.0
    %3806 = vmatpush1.msra.mxu0 0.0
    %3807 = vmatprep.subr.mxu0 0.0
    %3808 = vmatpush1.msra.mxu0 0.0
    %3809 = vmatprep.subr.mxu0 0.0
    %3810 = vmatpush1.msra.mxu0 0.0
    %3811 = vmatprep.subr.mxu0 0.0
    %3812 = vmatpush1.msra.mxu0 0.0
    %3813 = vmatprep.subr.mxu0 0.0
    %3814 = vmatpush1.msra.mxu0 0.0
    %3815 = vmatprep.subr.mxu0 0.0
    %3816 = vmatpush1.msra.mxu0 0.0
    %3817 = vmatprep.subr.mxu0 0.0
    %3818 = vmatpush1.msra.mxu0 0.0
    %3819 = vmatprep.subr.mxu0 0.0
    %3820 = vmatpush1.msra.mxu0 0.0
    %3821 = vmatprep.subr.mxu0 0.0
    %3822 = vmatpush1.msra.mxu0 0.0
    %3823 = vmatprep.subr.mxu0 0.0
    %3824 = vmatpush1.msra.mxu0 0.0
    %3825 = vmatprep.subr.mxu0 0.0
    %3826 = vmatpush1.msra.mxu0 0.0
    %3827 = vmatprep.subr.mxu0 0.0
    %3828 = vmatpush1.msra.mxu0 0.0
    %3829 = vmatprep.subr.mxu0 0.0
    %3830 = vmatpush1.msra.mxu0 0.0
    %3831 = vmatprep.subr.mxu0 0.0
    %3832 = vmatpush1.msra.mxu0 0.0
    %3833 = vmatprep.subr.mxu0 0.0
    %3834 = vmatpush1.msra.mxu0 0.0
    %3835 = vmatprep.subr.mxu0 0.0
    %3836 = vmatpush1.msra.mxu0 0.0
    %3837 = vmatprep.subr.mxu0 0.0
    %3838 = vmatpush1.msra.mxu0 0.0
    %3839 = vmatprep.subr.mxu0 0.0
    %3840 = vmatpush1.msra.mxu0 0.0
    %3841 = vmatprep.subr.mxu0 0.0
    %3842 = vmatpush1.msra.mxu0 0.0
    %3843 = vmatprep.subr.mxu0 0.0
    %3844 = vmatpush1.msra.mxu0 0.0
    %3845 = vmatprep.subr.mxu0 0.0
    %3846 = vmatpush1.msra.mxu0 0.0
    %3847 = vmatprep.subr.mxu0 0.0
    %3848 = vmatpush1.msra.mxu0 0.0
    %3849 = vmatprep.subr.mxu0 0.0
    %3850 = vmatpush1.msra.mxu0 0.0
    %3851 = vmatprep.subr.mxu0 0.0
    %3852 = vmatpush1.msra.mxu0 0.0
    %3853 = vmatprep.subr.mxu0 0.0
    %3854 = vmatpush1.msra.mxu0 0.0
    %3855 = vmatprep.mubr.f32.mxu0 0.0
    %3856 = vmatmul.mubr.f32.gmra.mrb[0].mxu0 %v3789
    %v3857 = vpop.f32.mrb[0].mxu0
    %v3858 = vadd.f32 %v3638, %v3857
    %v3859 = vpop.f32.mrb[0].mxu0
    %3860 = vdwg.mxu0
    %v3861 = vadd.f32 %v3858, %v576
    %v3862 = vxor.u32 %v3861, 2147483648
    %v3863 = vmul.f32 %v3862, 1.442695
    %v3864 = vpow.pop %v3863
    %v3865 = vadd.f32 %v3864, 1.0
    %v3866 = vrcp.pop %v3865
    %v3867 = vmul.f32 1.0, %v3866
    %v3868 = vmul.f32 %v3867, 2.0
    %v3869 = vsub.f32 %v3868, 1.0
    %v3870 = vmul.f32 %v3867, %v3411
    %3872 = vrot.lane.b32.xlu0 %v3869, 64
    %v3873 = vpop.permute.xlu0 %3872
    %v3875 = vmul.f32 %v3867, %v3873
    %3877 = vrot.lane.b32.xlu0 %v3875, 32
    %v3878 = vpop.permute.xlu0 %3877
    %v3880 = vadd.f32 %v3870, %v3878
    %v3881 = vmul.f32 %v3880, 2.0
    %v3882 = vxor.u32 %v3881, 2147483648
    %v3883 = vmul.f32 %v3882, 1.442695
    %v3884 = vpow.pop %v3883
    %v3885 = vadd.f32 %v3884, 1.0
    %v3886 = vrcp.pop %v3885
    %v3887 = vmul.f32 1.0, %v3886
    %v3888 = vmul.f32 %v3887, 2.0
    %v3889 = vsub.f32 %v3888, 1.0
    %3891 = vrot.lane.b32.xlu0 %v3889, 64
    %v3892 = vpop.permute.xlu0 %3891
    %v3894 = vmul.f32 %v3867, %v3892
    %3895 = vmatprep.subr.mxu0 0.0
    %3896 = vmatpush1.msra.mxu0 %v113
    %3897 = vmatprep.subr.mxu0 0.0
    %3898 = vmatpush1.msra.mxu0 %v114
    %3899 = vmatprep.subr.mxu0 0.0
    %3900 = vmatpush1.msra.mxu0 %v115
    %3901 = vmatprep.subr.mxu0 0.0
    %3902 = vmatpush1.msra.mxu0 %v116
    %3903 = vmatprep.subr.mxu0 0.0
    %3904 = vmatpush1.msra.mxu0 0.0
    %3905 = vmatprep.subr.mxu0 0.0
    %3906 = vmatpush1.msra.mxu0 0.0
    %3907 = vmatprep.subr.mxu0 0.0
    %3908 = vmatpush1.msra.mxu0 0.0
    %3909 = vmatprep.subr.mxu0 0.0
    %3910 = vmatpush1.msra.mxu0 0.0
    %3911 = vmatprep.subr.mxu0 0.0
    %3912 = vmatpush1.msra.mxu0 0.0
    %3913 = vmatprep.subr.mxu0 0.0
    %3914 = vmatpush1.msra.mxu0 0.0
    %3915 = vmatprep.subr.mxu0 0.0
    %3916 = vmatpush1.msra.mxu0 0.0
    %3917 = vmatprep.subr.mxu0 0.0
    %3918 = vmatpush1.msra.mxu0 0.0
    %3919 = vmatprep.subr.mxu0 0.0
    %3920 = vmatpush1.msra.mxu0 0.0
    %3921 = vmatprep.subr.mxu0 0.0
    %3922 = vmatpush1.msra.mxu0 0.0
    %3923 = vmatprep.subr.mxu0 0.0
    %3924 = vmatpush1.msra.mxu0 0.0
    %3925 = vmatprep.subr.mxu0 0.0
    %3926 = vmatpush1.msra.mxu0 0.0
    %3927 = vmatprep.subr.mxu0 0.0
    %3928 = vmatpush1.msra.mxu0 0.0
    %3929 = vmatprep.subr.mxu0 0.0
    %3930 = vmatpush1.msra.mxu0 0.0
    %3931 = vmatprep.subr.mxu0 0.0
    %3932 = vmatpush1.msra.mxu0 0.0
    %3933 = vmatprep.subr.mxu0 0.0
    %3934 = vmatpush1.msra.mxu0 0.0
    %3935 = vmatprep.subr.mxu0 0.0
    %3936 = vmatpush1.msra.mxu0 0.0
    %3937 = vmatprep.subr.mxu0 0.0
    %3938 = vmatpush1.msra.mxu0 0.0
    %3939 = vmatprep.subr.mxu0 0.0
    %3940 = vmatpush1.msra.mxu0 0.0
    %3941 = vmatprep.subr.mxu0 0.0
    %3942 = vmatpush1.msra.mxu0 0.0
    %3943 = vmatprep.subr.mxu0 0.0
    %3944 = vmatpush1.msra.mxu0 0.0
    %3945 = vmatprep.subr.mxu0 0.0
    %3946 = vmatpush1.msra.mxu0 0.0
    %3947 = vmatprep.subr.mxu0 0.0
    %3948 = vmatpush1.msra.mxu0 0.0
    %3949 = vmatprep.subr.mxu0 0.0
    %3950 = vmatpush1.msra.mxu0 0.0
    %3951 = vmatprep.subr.mxu0 0.0
    %3952 = vmatpush1.msra.mxu0 0.0
    %3953 = vmatprep.subr.mxu0 0.0
    %3954 = vmatpush1.msra.mxu0 0.0
    %3955 = vmatprep.subr.mxu0 0.0
    %3956 = vmatpush1.msra.mxu0 0.0
    %3957 = vmatprep.subr.mxu0 0.0
    %3958 = vmatpush1.msra.mxu0 0.0
    %3959 = vmatprep.mubr.f32.mxu0 0.0
    %3960 = vmatmul.mubr.f32.gmra.mrb[0].mxu0 %v3680
    %v3961 = vpop.f32.mrb[0].mxu0
    %v3962 = vadd.f32 0.0, %v3961
    %v3963 = vpop.f32.mrb[0].mxu0
    %3964 = vdwg.mxu0
    %3965 = vmatprep.subr.mxu0 0.0
    %3966 = vmatpush1.msra.mxu0 %v191
    %3967 = vmatprep.subr.mxu0 0.0
    %3968 = vmatpush1.msra.mxu0 %v192
    %3969 = vmatprep.subr.mxu0 0.0
    %3970 = vmatpush1.msra.mxu0 %v193
    %3971 = vmatprep.subr.mxu0 0.0
    %3972 = vmatpush1.msra.mxu0 %v194
    %3973 = vmatprep.subr.mxu0 0.0
    %3974 = vmatpush1.msra.mxu0 0.0
    %3975 = vmatprep.subr.mxu0 0.0
    %3976 = vmatpush1.msra.mxu0 0.0
    %3977 = vmatprep.subr.mxu0 0.0
    %3978 = vmatpush1.msra.mxu0 0.0
    %3979 = vmatprep.subr.mxu0 0.0
    %3980 = vmatpush1.msra.mxu0 0.0
    %3981 = vmatprep.subr.mxu0 0.0
    %3982 = vmatpush1.msra.mxu0 0.0
    %3983 = vmatprep.subr.mxu0 0.0
    %3984 = vmatpush1.msra.mxu0 0.0
    %3985 = vmatprep.subr.mxu0 0.0
    %3986 = vmatpush1.msra.mxu0 0.0
    %3987 = vmatprep.subr.mxu0 0.0
    %3988 = vmatpush1.msra.mxu0 0.0
    %3989 = vmatprep.subr.mxu0 0.0
    %3990 = vmatpush1.msra.mxu0 0.0
    %3991 = vmatprep.subr.mxu0 0.0
    %3992 = vmatpush1.msra.mxu0 0.0
    %3993 = vmatprep.subr.mxu0 0.0
    %3994 = vmatpush1.msra.mxu0 0.0
    %3995 = vmatprep.subr.mxu0 0.0
    %3996 = vmatpush1.msra.mxu0 0.0
    %3997 = vmatprep.subr.mxu0 0.0
    %3998 = vmatpush1.msra.mxu0 0.0
    %3999 = vmatprep.subr.mxu0 0.0
    %4000 = vmatpush1.msra.mxu0 0.0
    %4001 = vmatprep.subr.mxu0 0.0
    %4002 = vmatpush1.msra.mxu0 0.0
    %4003 = vmatprep.subr.mxu0 0.0
    %4004 = vmatpush1.msra.mxu0 0.0
    %4005 = vmatprep.subr.mxu0 0.0
    %4006 = vmatpush1.msra.mxu0 0.0
    %4007 = vmatprep.subr.mxu0 0.0
    %4008 = vmatpush1.msra.mxu0 0.0
    %4009 = vmatprep.subr.mxu0 0.0
    %4010 = vmatpush1.msra.mxu0 0.0
    %4011 = vmatprep.subr.mxu0 0.0
    %4012 = vmatpush1.msra.mxu0 0.0
    %4013 = vmatprep.subr.mxu0 0.0
    %4014 = vmatpush1.msra.mxu0 0.0
    %4015 = vmatprep.subr.mxu0 0.0
    %4016 = vmatpush1.msra.mxu0 0.0
    %4017 = vmatprep.subr.mxu0 0.0
    %4018 = vmatpush1.msra.mxu0 0.0
    %4019 = vmatprep.subr.mxu0 0.0
    %4020 = vmatpush1.msra.mxu0 0.0
    %4021 = vmatprep.subr.mxu0 0.0
    %4022 = vmatpush1.msra.mxu0 0.0
    %4023 = vmatprep.subr.mxu0 0.0
    %4024 = vmatpush1.msra.mxu0 0.0
    %4025 = vmatprep.subr.mxu0 0.0
    %4026 = vmatpush1.msra.mxu0 0.0
    %4027 = vmatprep.subr.mxu0 0.0
    %4028 = vmatpush1.msra.mxu0 0.0
    %4029 = vmatprep.mubr.f32.mxu0 0.0
    %4030 = vmatmul.mubr.f32.gmra.mrb[0].mxu0 %v3789
    %v4031 = vpop.f32.mrb[0].mxu0
    %v4032 = vadd.f32 0.0, %v4031
    %v4033 = vpop.f32.mrb[0].mxu0
    %4034 = vdwg.mxu0
    %4036 = vrot.lane.b32.xlu0 %v3894, 32
    %v4037 = vpop.permute.xlu0 %4036
    %v4038 = vsel %vm117, %v4037, 0
    %4040 = vmatprep.subr.mxu0 0.0
    %4041 = vmatpush1.msra.mxu0 %v265
    %4042 = vmatprep.subr.mxu0 0.0
    %4043 = vmatpush1.msra.mxu0 %v266
    %4044 = vmatprep.subr.mxu0 0.0
    %4045 = vmatpush1.msra.mxu0 %v267
    %4046 = vmatprep.subr.mxu0 0.0
    %4047 = vmatpush1.msra.mxu0 %v268
    %4048 = vmatprep.subr.mxu0 0.0
    %4049 = vmatpush1.msra.mxu0 0.0
    %4050 = vmatprep.subr.mxu0 0.0
    %4051 = vmatpush1.msra.mxu0 0.0
    %4052 = vmatprep.subr.mxu0 0.0
    %4053 = vmatpush1.msra.mxu0 0.0
    %4054 = vmatprep.subr.mxu0 0.0
    %4055 = vmatpush1.msra.mxu0 0.0
    %4056 = vmatprep.subr.mxu0 0.0
    %4057 = vmatpush1.msra.mxu0 0.0
    %4058 = vmatprep.subr.mxu0 0.0
    %4059 = vmatpush1.msra.mxu0 0.0
    %4060 = vmatprep.subr.mxu0 0.0
    %4061 = vmatpush1.msra.mxu0 0.0
    %4062 = vmatprep.subr.mxu0 0.0
    %4063 = vmatpush1.msra.mxu0 0.0
    %4064 = vmatprep.subr.mxu0 0.0
    %4065 = vmatpush1.msra.mxu0 0.0
    %4066 = vmatprep.subr.mxu0 0.0
    %4067 = vmatpush1.msra.mxu0 0.0
    %4068 = vmatprep.subr.mxu0 0.0
    %4069 = vmatpush1.msra.mxu0 0.0
    %4070 = vmatprep.subr.mxu0 0.0
    %4071 = vmatpush1.msra.mxu0 0.0
    %4072 = vmatprep.subr.mxu0 0.0
    %4073 = vmatpush1.msra.mxu0 0.0
    %4074 = vmatprep.subr.mxu0 0.0
    %4075 = vmatpush1.msra.mxu0 0.0
    %4076 = vmatprep.subr.mxu0 0.0
    %4077 = vmatpush1.msra.mxu0 0.0
    %4078 = vmatprep.subr.mxu0 0.0
    %4079 = vmatpush1.msra.mxu0 0.0
    %4080 = vmatprep.subr.mxu0 0.0
    %4081 = vmatpush1.msra.mxu0 0.0
    %4082 = vmatprep.subr.mxu0 0.0
    %4083 = vmatpush1.msra.mxu0 0.0
    %4084 = vmatprep.subr.mxu0 0.0
    %4085 = vmatpush1.msra.mxu0 0.0
    %4086 = vmatprep.subr.mxu0 0.0
    %4087 = vmatpush1.msra.mxu0 0.0
    %4088 = vmatprep.subr.mxu0 0.0
    %4089 = vmatpush1.msra.mxu0 0.0
    %4090 = vmatprep.subr.mxu0 0.0
    %4091 = vmatpush1.msra.mxu0 0.0
    %4092 = vmatprep.subr.mxu0 0.0
    %4093 = vmatpush1.msra.mxu0 0.0
    %4094 = vmatprep.subr.mxu0 0.0
    %4095 = vmatpush1.msra.mxu0 0.0
    %4096 = vmatprep.subr.mxu0 0.0
    %4097 = vmatpush1.msra.mxu0 0.0
    %4098 = vmatprep.subr.mxu0 0.0
    %4099 = vmatpush1.msra.mxu0 0.0
    %4100 = vmatprep.subr.mxu0 0.0
    %4101 = vmatpush1.msra.mxu0 0.0
    %4102 = vmatprep.subr.mxu0 0.0
    %4103 = vmatpush1.msra.mxu0 0.0
    %4104 = vmatprep.mubr.f32.mxu0 0.0
    %4105 = vmatmul.mubr.f32.gmra.mrb[0].mxu0 %v4038
    %v4106 = vpop.f32.mrb[0].mxu0
    %v4107 = vadd.f32 0.0, %v4106
    %v4108 = vpop.f32.mrb[0].mxu0
    %4109 = vdwg.mxu0
    %v4110 = vld [vmem:[%s8] sm:$0xff]
    %v4111 = vld [vmem:[%s8 + $0x8] sm:$0xff]
    %v4112 = vld [vmem:[%s8 + $0x10] sm:$0xff]
    %v4113 = vld [vmem:[%s8 + $0x18] sm:$0xff]
    %4114 = vmatprep.subr.mxu0 0.0
    %4115 = vmatpush1.msra.mxu0 %v4110
    %4116 = vmatprep.subr.mxu0 0.0
    %4117 = vmatpush1.msra.mxu0 %v4111
    %4118 = vmatprep.subr.mxu0 0.0
    %4119 = vmatpush1.msra.mxu0 %v4112
    %4120 = vmatprep.subr.mxu0 0.0
    %4121 = vmatpush1.msra.mxu0 %v4113
    %4122 = vmatprep.subr.mxu0 0.0
    %4123 = vmatpush1.msra.mxu0 0.0
    %4124 = vmatprep.subr.mxu0 0.0
    %4125 = vmatpush1.msra.mxu0 0.0
    %4126 = vmatprep.subr.mxu0 0.0
    %4127 = vmatpush1.msra.mxu0 0.0
    %4128 = vmatprep.subr.mxu0 0.0
    %4129 = vmatpush1.msra.mxu0 0.0
    %4130 = vmatprep.subr.mxu0 0.0
    %4131 = vmatpush1.msra.mxu0 0.0
    %4132 = vmatprep.subr.mxu0 0.0
    %4133 = vmatpush1.msra.mxu0 0.0
    %4134 = vmatprep.subr.mxu0 0.0
    %4135 = vmatpush1.msra.mxu0 0.0
    %4136 = vmatprep.subr.mxu0 0.0
    %4137 = vmatpush1.msra.mxu0 0.0
    %4138 = vmatprep.subr.mxu0 0.0
    %4139 = vmatpush1.msra.mxu0 0.0
    %4140 = vmatprep.subr.mxu0 0.0
    %4141 = vmatpush1.msra.mxu0 0.0
    %4142 = vmatprep.subr.mxu0 0.0
    %4143 = vmatpush1.msra.mxu0 0.0
    %4144 = vmatprep.subr.mxu0 0.0
    %4145 = vmatpush1.msra.mxu0 0.0
    %4146 = vmatprep.subr.mxu0 0.0
    %4147 = vmatpush1.msra.mxu0 0.0
    %4148 = vmatprep.subr.mxu0 0.0
    %4149 = vmatpush1.msra.mxu0 0.0
    %4150 = vmatprep.subr.mxu0 0.0
    %4151 = vmatpush1.msra.mxu0 0.0
    %4152 = vmatprep.subr.mxu0 0.0
    %4153 = vmatpush1.msra.mxu0 0.0
    %4154 = vmatprep.subr.mxu0 0.0
    %4155 = vmatpush1.msra.mxu0 0.0
    %4156 = vmatprep.subr.mxu0 0.0
    %4157 = vmatpush1.msra.mxu0 0.0
    %4158 = vmatprep.subr.mxu0 0.0
    %4159 = vmatpush1.msra.mxu0 0.0
    %4160 = vmatprep.subr.mxu0 0.0
    %4161 = vmatpush1.msra.mxu0 0.0
    %4162 = vmatprep.subr.mxu0 0.0
    %4163 = vmatpush1.msra.mxu0 0.0
    %4164 = vmatprep.subr.mxu0 0.0
    %4165 = vmatpush1.msra.mxu0 0.0
    %4166 = vmatprep.subr.mxu0 0.0
    %4167 = vmatpush1.msra.mxu0 0.0
    %4168 = vmatprep.subr.mxu0 0.0
    %4169 = vmatpush1.msra.mxu0 0.0
    %4170 = vmatprep.subr.mxu0 0.0
    %4171 = vmatpush1.msra.mxu0 0.0
    %4172 = vmatprep.subr.mxu0 0.0
    %4173 = vmatpush1.msra.mxu0 0.0
    %4174 = vmatprep.subr.mxu0 0.0
    %4175 = vmatpush1.msra.mxu0 0.0
    %4176 = vmatprep.subr.mxu0 0.0
    %4177 = vmatpush1.msra.mxu0 0.0
    %4178 = vmatprep.mubr.f32.mxu0 0.0
    %4179 = vmatmul.mubr.f32.gmra.mrb[0].mxu0 %v4038
    %v4180 = vpop.f32.mrb[0].mxu0
    %v4181 = vadd.f32 %v3962, %v4180
    %v4182 = vpop.f32.mrb[0].mxu0
    %4183 = vdwg.mxu0
    %v4184 = vld [vmem:[%s9] sm:$0x1]
    %v4186 = vlaneseq
    %v4187 = vshrl.u32 %v4186, 7
    %v4188 = vsub.s32 0, %v4187
    %v4189 = vrot.slane %v4184, %v4188
    %v4191 = vadd.f32 %v4181, %v4189
    %v4192 = vxor.u32 %v4191, 2147483648
    %v4193 = vmul.f32 %v4192, 1.442695
    %v4194 = vpow.pop %v4193
    %v4195 = vadd.f32 %v4194, 1.0
    %v4196 = vrcp.pop %v4195
    %v4197 = vmul.f32 1.0, %v4196
    %v4198 = vmul.f32 %v4197, 2.0
    %v4199 = vsub.f32 %v4198, 1.0
    %v4200 = vmul.f32 %v4197, %v3662
    %4202 = vrot.lane.b32.xlu0 %v4199, 64
    %v4203 = vpop.permute.xlu0 %4202
    %v4205 = vmul.f32 %v4197, %v4203
    %4207 = vrot.lane.b32.xlu0 %v4205, 32
    %v4208 = vpop.permute.xlu0 %4207
    %v4210 = vadd.f32 %v4200, %v4208
    %v4211 = vmul.f32 %v4210, 2.0
    %v4212 = vxor.u32 %v4211, 2147483648
    %v4213 = vmul.f32 %v4212, 1.442695
    %v4214 = vpow.pop %v4213
    %v4215 = vadd.f32 %v4214, 1.0
    %v4216 = vrcp.pop %v4215
    %v4217 = vmul.f32 1.0, %v4216
    %v4218 = vmul.f32 %v4217, 2.0
    %v4219 = vsub.f32 %v4218, 1.0
    %4221 = vrot.lane.b32.xlu0 %v4219, 64
    %v4222 = vpop.permute.xlu0 %4221
    %v4224 = vmul.f32 %v4197, %v4222
    %4226 = vrot.lane.b32.xlu0 %v4224, 32
    %v4227 = vpop.permute.xlu0 %4226
    %v4228 = vsel %vm117, %v4227, 0
    %4230 = vmatprep.subr.mxu0 0.0
    %4231 = vmatpush1.msra.mxu0 %v374
    %4232 = vmatprep.subr.mxu0 0.0
    %4233 = vmatpush1.msra.mxu0 %v375
    %4234 = vmatprep.subr.mxu0 0.0
    %4235 = vmatpush1.msra.mxu0 %v376
    %4236 = vmatprep.subr.mxu0 0.0
    %4237 = vmatpush1.msra.mxu0 %v377
    %4238 = vmatprep.subr.mxu0 0.0
    %4239 = vmatpush1.msra.mxu0 0.0
    %4240 = vmatprep.subr.mxu0 0.0
    %4241 = vmatpush1.msra.mxu0 0.0
    %4242 = vmatprep.subr.mxu0 0.0
    %4243 = vmatpush1.msra.mxu0 0.0
    %4244 = vmatprep.subr.mxu0 0.0
    %4245 = vmatpush1.msra.mxu0 0.0
    %4246 = vmatprep.subr.mxu0 0.0
    %4247 = vmatpush1.msra.mxu0 0.0
    %4248 = vmatprep.subr.mxu0 0.0
    %4249 = vmatpush1.msra.mxu0 0.0
    %4250 = vmatprep.subr.mxu0 0.0
    %4251 = vmatpush1.msra.mxu0 0.0
    %4252 = vmatprep.subr.mxu0 0.0
    %4253 = vmatpush1.msra.mxu0 0.0
    %4254 = vmatprep.subr.mxu0 0.0
    %4255 = vmatpush1.msra.mxu0 0.0
    %4256 = vmatprep.subr.mxu0 0.0
    %4257 = vmatpush1.msra.mxu0 0.0
    %4258 = vmatprep.subr.mxu0 0.0
    %4259 = vmatpush1.msra.mxu0 0.0
    %4260 = vmatprep.subr.mxu0 0.0
    %4261 = vmatpush1.msra.mxu0 0.0
    %4262 = vmatprep.subr.mxu0 0.0
    %4263 = vmatpush1.msra.mxu0 0.0
    %4264 = vmatprep.subr.mxu0 0.0
    %4265 = vmatpush1.msra.mxu0 0.0
    %4266 = vmatprep.subr.mxu0 0.0
    %4267 = vmatpush1.msra.mxu0 0.0
    %4268 = vmatprep.subr.mxu0 0.0
    %4269 = vmatpush1.msra.mxu0 0.0
    %4270 = vmatprep.subr.mxu0 0.0
    %4271 = vmatpush1.msra.mxu0 0.0
    %4272 = vmatprep.subr.mxu0 0.0
    %4273 = vmatpush1.msra.mxu0 0.0
    %4274 = vmatprep.subr.mxu0 0.0
    %4275 = vmatpush1.msra.mxu0 0.0
    %4276 = vmatprep.subr.mxu0 0.0
    %4277 = vmatpush1.msra.mxu0 0.0
    %4278 = vmatprep.subr.mxu0 0.0
    %4279 = vmatpush1.msra.mxu0 0.0
    %4280 = vmatprep.subr.mxu0 0.0
    %4281 = vmatpush1.msra.mxu0 0.0
    %4282 = vmatprep.subr.mxu0 0.0
    %4283 = vmatpush1.msra.mxu0 0.0
    %4284 = vmatprep.subr.mxu0 0.0
    %4285 = vmatpush1.msra.mxu0 0.0
    %4286 = vmatprep.subr.mxu0 0.0
    %4287 = vmatpush1.msra.mxu0 0.0
    %4288 = vmatprep.subr.mxu0 0.0
    %4289 = vmatpush1.msra.mxu0 0.0
    %4290 = vmatprep.subr.mxu0 0.0
    %4291 = vmatpush1.msra.mxu0 0.0
    %4292 = vmatprep.subr.mxu0 0.0
    %4293 = vmatpush1.msra.mxu0 0.0
    %4294 = vmatprep.mubr.f32.mxu0 0.0
    %4295 = vmatmul.mubr.f32.gmra.mrb[0].mxu0 %v4228
    %v4296 = vpop.f32.mrb[0].mxu0
    %v4297 = vadd.f32 %v4032, %v4296
    %v4298 = vpop.f32.mrb[0].mxu0
    %4299 = vdwg.mxu0
    %v4300 = vadd.f32 %v4297, %v457
    %v4301 = vxor.u32 %v4300, 2147483648
    %v4302 = vmul.f32 %v4301, 1.442695
    %v4303 = vpow.pop %v4302
    %v4304 = vadd.f32 %v4303, 1.0
    %v4305 = vrcp.pop %v4304
    %v4306 = vmul.f32 1.0, %v4305
    %v4307 = vmul.f32 %v4306, 2.0
    %v4308 = vsub.f32 %v4307, 1.0
    %v4309 = vmul.f32 %v4306, %v3771
    %4311 = vrot.lane.b32.xlu0 %v4308, 64
    %v4312 = vpop.permute.xlu0 %4311
    %v4314 = vmul.f32 %v4306, %v4312
    %4316 = vrot.lane.b32.xlu0 %v4314, 32
    %v4317 = vpop.permute.xlu0 %4316
    %v4319 = vadd.f32 %v4309, %v4317
    %v4320 = vmul.f32 %v4319, 2.0
    %v4321 = vxor.u32 %v4320, 2147483648
    %v4322 = vmul.f32 %v4321, 1.442695
    %v4323 = vpow.pop %v4322
    %v4324 = vadd.f32 %v4323, 1.0
    %v4325 = vrcp.pop %v4324
    %v4326 = vmul.f32 1.0, %v4325
    %v4327 = vmul.f32 %v4326, 2.0
    %v4328 = vsub.f32 %v4327, 1.0
    %4330 = vrot.lane.b32.xlu0 %v4328, 64
    %v4331 = vpop.permute.xlu0 %4330
    %v4333 = vmul.f32 %v4306, %v4331
    %4335 = vrot.lane.b32.xlu0 %v4333, 32
    %v4336 = vpop.permute.xlu0 %4335
    %v4337 = vsel %vm117, %v4336, 0
    %4339 = vmatprep.subr.mxu0 0.0
    %4340 = vmatpush1.msra.mxu0 %v493
    %4341 = vmatprep.subr.mxu0 0.0
    %4342 = vmatpush1.msra.mxu0 %v494
    %4343 = vmatprep.subr.mxu0 0.0
    %4344 = vmatpush1.msra.mxu0 %v495
    %4345 = vmatprep.subr.mxu0 0.0
    %4346 = vmatpush1.msra.mxu0 %v496
    %4347 = vmatprep.subr.mxu0 0.0
    %4348 = vmatpush1.msra.mxu0 0.0
    %4349 = vmatprep.subr.mxu0 0.0
    %4350 = vmatpush1.msra.mxu0 0.0
    %4351 = vmatprep.subr.mxu0 0.0
    %4352 = vmatpush1.msra.mxu0 0.0
    %4353 = vmatprep.subr.mxu0 0.0
    %4354 = vmatpush1.msra.mxu0 0.0
    %4355 = vmatprep.subr.mxu0 0.0
    %4356 = vmatpush1.msra.mxu0 0.0
    %4357 = vmatprep.subr.mxu0 0.0
    %4358 = vmatpush1.msra.mxu0 0.0
    %4359 = vmatprep.subr.mxu0 0.0
    %4360 = vmatpush1.msra.mxu0 0.0
    %4361 = vmatprep.subr.mxu0 0.0
    %4362 = vmatpush1.msra.mxu0 0.0
    %4363 = vmatprep.subr.mxu0 0.0
    %4364 = vmatpush1.msra.mxu0 0.0
    %4365 = vmatprep.subr.mxu0 0.0
    %4366 = vmatpush1.msra.mxu0 0.0
    %4367 = vmatprep.subr.mxu0 0.0
    %4368 = vmatpush1.msra.mxu0 0.0
    %4369 = vmatprep.subr.mxu0 0.0
    %4370 = vmatpush1.msra.mxu0 0.0
    %4371 = vmatprep.subr.mxu0 0.0
    %4372 = vmatpush1.msra.mxu0 0.0
    %4373 = vmatprep.subr.mxu0 0.0
    %4374 = vmatpush1.msra.mxu0 0.0
    %4375 = vmatprep.subr.mxu0 0.0
    %4376 = vmatpush1.msra.mxu0 0.0
    %4377 = vmatprep.subr.mxu0 0.0
    %4378 = vmatpush1.msra.mxu0 0.0
    %4379 = vmatprep.subr.mxu0 0.0
    %4380 = vmatpush1.msra.mxu0 0.0
    %4381 = vmatprep.subr.mxu0 0.0
    %4382 = vmatpush1.msra.mxu0 0.0
    %4383 = vmatprep.subr.mxu0 0.0
    %4384 = vmatpush1.msra.mxu0 0.0
    %4385 = vmatprep.subr.mxu0 0.0
    %4386 = vmatpush1.msra.mxu0 0.0
    %4387 = vmatprep.subr.mxu0 0.0
    %4388 = vmatpush1.msra.mxu0 0.0
    %4389 = vmatprep.subr.mxu0 0.0
    %4390 = vmatpush1.msra.mxu0 0.0
    %4391 = vmatprep.subr.mxu0 0.0
    %4392 = vmatpush1.msra.mxu0 0.0
    %4393 = vmatprep.subr.mxu0 0.0
    %4394 = vmatpush1.msra.mxu0 0.0
    %4395 = vmatprep.subr.mxu0 0.0
    %4396 = vmatpush1.msra.mxu0 0.0
    %4397 = vmatprep.subr.mxu0 0.0
    %4398 = vmatpush1.msra.mxu0 0.0
    %4399 = vmatprep.subr.mxu0 0.0
    %4400 = vmatpush1.msra.mxu0 0.0
    %4401 = vmatprep.subr.mxu0 0.0
    %4402 = vmatpush1.msra.mxu0 0.0
    %4403 = vmatprep.mubr.f32.mxu0 0.0
    %4404 = vmatmul.mubr.f32.gmra.mrb[0].mxu0 %v4337
    %v4405 = vpop.f32.mrb[0].mxu0
    %v4406 = vadd.f32 %v4107, %v4405
    %v4407 = vpop.f32.mrb[0].mxu0
    %4408 = vdwg.mxu0
    %v4409 = vadd.f32 %v4406, %v576
    %v4410 = vxor.u32 %v4409, 2147483648
    %v4411 = vmul.f32 %v4410, 1.442695
    %v4412 = vpow.pop %v4411
    %v4413 = vadd.f32 %v4412, 1.0
    %v4414 = vrcp.pop %v4413
    %v4415 = vmul.f32 1.0, %v4414
    %v4416 = vmul.f32 %v4415, 2.0
    %v4417 = vsub.f32 %v4416, 1.0
    %v4418 = vmul.f32 %v4415, %v3880
    %4420 = vrot.lane.b32.xlu0 %v4417, 64
    %v4421 = vpop.permute.xlu0 %4420
    %v4423 = vmul.f32 %v4415, %v4421
    %4425 = vrot.lane.b32.xlu0 %v4423, 32
    %v4426 = vpop.permute.xlu0 %4425
    %v4428 = vadd.f32 %v4418, %v4426
    %v4429 = vmul.f32 %v4428, 2.0
    %v4430 = vxor.u32 %v4429, 2147483648
    %v4431 = vmul.f32 %v4430, 1.442695
    %v4432 = vpow.pop %v4431
    %v4433 = vadd.f32 %v4432, 1.0
    %v4434 = vrcp.pop %v4433
    %v4435 = vmul.f32 1.0, %v4434
    %v4436 = vmul.f32 %v4435, 2.0
    %v4437 = vsub.f32 %v4436, 1.0
    %4439 = vrot.lane.b32.xlu0 %v4437, 64
    %v4440 = vpop.permute.xlu0 %4439
    %v4442 = vmul.f32 %v4415, %v4440
    %4443 = vmatprep.subr.mxu0 0.0
    %4444 = vmatpush1.msra.mxu0 %v113
    %4445 = vmatprep.subr.mxu0 0.0
    %4446 = vmatpush1.msra.mxu0 %v114
    %4447 = vmatprep.subr.mxu0 0.0
    %4448 = vmatpush1.msra.mxu0 %v115
    %4449 = vmatprep.subr.mxu0 0.0
    %4450 = vmatpush1.msra.mxu0 %v116
    %4451 = vmatprep.subr.mxu0 0.0
    %4452 = vmatpush1.msra.mxu0 0.0
    %4453 = vmatprep.subr.mxu0 0.0
    %4454 = vmatpush1.msra.mxu0 0.0
    %4455 = vmatprep.subr.mxu0 0.0
    %4456 = vmatpush1.msra.mxu0 0.0
    %4457 = vmatprep.subr.mxu0 0.0
    %4458 = vmatpush1.msra.mxu0 0.0
    %4459 = vmatprep.subr.mxu0 0.0
    %4460 = vmatpush1.msra.mxu0 0.0
    %4461 = vmatprep.subr.mxu0 0.0
    %4462 = vmatpush1.msra.mxu0 0.0
    %4463 = vmatprep.subr.mxu0 0.0
    %4464 = vmatpush1.msra.mxu0 0.0
    %4465 = vmatprep.subr.mxu0 0.0
    %4466 = vmatpush1.msra.mxu0 0.0
    %4467 = vmatprep.subr.mxu0 0.0
    %4468 = vmatpush1.msra.mxu0 0.0
    %4469 = vmatprep.subr.mxu0 0.0
    %4470 = vmatpush1.msra.mxu0 0.0
    %4471 = vmatprep.subr.mxu0 0.0
    %4472 = vmatpush1.msra.mxu0 0.0
    %4473 = vmatprep.subr.mxu0 0.0
    %4474 = vmatpush1.msra.mxu0 0.0
    %4475 = vmatprep.subr.mxu0 0.0
    %4476 = vmatpush1.msra.mxu0 0.0
    %4477 = vmatprep.subr.mxu0 0.0
    %4478 = vmatpush1.msra.mxu0 0.0
    %4479 = vmatprep.subr.mxu0 0.0
    %4480 = vmatpush1.msra.mxu0 0.0
    %4481 = vmatprep.subr.mxu0 0.0
    %4482 = vmatpush1.msra.mxu0 0.0
    %4483 = vmatprep.subr.mxu0 0.0
    %4484 = vmatpush1.msra.mxu0 0.0
    %4485 = vmatprep.subr.mxu0 0.0
    %4486 = vmatpush1.msra.mxu0 0.0
    %4487 = vmatprep.subr.mxu0 0.0
    %4488 = vmatpush1.msra.mxu0 0.0
    %4489 = vmatprep.subr.mxu0 0.0
    %4490 = vmatpush1.msra.mxu0 0.0
    %4491 = vmatprep.subr.mxu0 0.0
    %4492 = vmatpush1.msra.mxu0 0.0
    %4493 = vmatprep.subr.mxu0 0.0
    %4494 = vmatpush1.msra.mxu0 0.0
    %4495 = vmatprep.subr.mxu0 0.0
    %4496 = vmatpush1.msra.mxu0 0.0
    %4497 = vmatprep.subr.mxu0 0.0
    %4498 = vmatpush1.msra.mxu0 0.0
    %4499 = vmatprep.subr.mxu0 0.0
    %4500 = vmatpush1.msra.mxu0 0.0
    %4501 = vmatprep.subr.mxu0 0.0
    %4502 = vmatpush1.msra.mxu0 0.0
    %4503 = vmatprep.subr.mxu0 0.0
    %4504 = vmatpush1.msra.mxu0 0.0
    %4505 = vmatprep.subr.mxu0 0.0
    %4506 = vmatpush1.msra.mxu0 0.0
    %4507 = vmatprep.mubr.f32.mxu0 0.0
    %4508 = vmatmul.mubr.f32.gmra.mrb[0].mxu0 %v4228
    %v4509 = vpop.f32.mrb[0].mxu0
    %v4510 = vadd.f32 0.0, %v4509
    %v4511 = vpop.f32.mrb[0].mxu0
    %4512 = vdwg.mxu0
    %4513 = vmatprep.subr.mxu0 0.0
    %4514 = vmatpush1.msra.mxu0 %v191
    %4515 = vmatprep.subr.mxu0 0.0
    %4516 = vmatpush1.msra.mxu0 %v192
    %4517 = vmatprep.subr.mxu0 0.0
    %4518 = vmatpush1.msra.mxu0 %v193
    %4519 = vmatprep.subr.mxu0 0.0
    %4520 = vmatpush1.msra.mxu0 %v194
    %4521 = vmatprep.subr.mxu0 0.0
    %4522 = vmatpush1.msra.mxu0 0.0
    %4523 = vmatprep.subr.mxu0 0.0
    %4524 = vmatpush1.msra.mxu0 0.0
    %4525 = vmatprep.subr.mxu0 0.0
    %4526 = vmatpush1.msra.mxu0 0.0
    %4527 = vmatprep.subr.mxu0 0.0
    %4528 = vmatpush1.msra.mxu0 0.0
    %4529 = vmatprep.subr.mxu0 0.0
    %4530 = vmatpush1.msra.mxu0 0.0
    %4531 = vmatprep.subr.mxu0 0.0
    %4532 = vmatpush1.msra.mxu0 0.0
    %4533 = vmatprep.subr.mxu0 0.0
    %4534 = vmatpush1.msra.mxu0 0.0
    %4535 = vmatprep.subr.mxu0 0.0
    %4536 = vmatpush1.msra.mxu0 0.0
    %4537 = vmatprep.subr.mxu0 0.0
    %4538 = vmatpush1.msra.mxu0 0.0
    %4539 = vmatprep.subr.mxu0 0.0
    %4540 = vmatpush1.msra.mxu0 0.0
    %4541 = vmatprep.subr.mxu0 0.0
    %4542 = vmatpush1.msra.mxu0 0.0
    %4543 = vmatprep.subr.mxu0 0.0
    %4544 = vmatpush1.msra.mxu0 0.0
    %4545 = vmatprep.subr.mxu0 0.0
    %4546 = vmatpush1.msra.mxu0 0.0
    %4547 = vmatprep.subr.mxu0 0.0
    %4548 = vmatpush1.msra.mxu0 0.0
    %4549 = vmatprep.subr.mxu0 0.0
    %4550 = vmatpush1.msra.mxu0 0.0
    %4551 = vmatprep.subr.mxu0 0.0
    %4552 = vmatpush1.msra.mxu0 0.0
    %4553 = vmatprep.subr.mxu0 0.0
    %4554 = vmatpush1.msra.mxu0 0.0
    %4555 = vmatprep.subr.mxu0 0.0
    %4556 = vmatpush1.msra.mxu0 0.0
    %4557 = vmatprep.subr.mxu0 0.0
    %4558 = vmatpush1.msra.mxu0 0.0
    %4559 = vmatprep.subr.mxu0 0.0
    %4560 = vmatpush1.msra.mxu0 0.0
    %4561 = vmatprep.subr.mxu0 0.0
    %4562 = vmatpush1.msra.mxu0 0.0
    %4563 = vmatprep.subr.mxu0 0.0
    %4564 = vmatpush1.msra.mxu0 0.0
    %4565 = vmatprep.subr.mxu0 0.0
    %4566 = vmatpush1.msra.mxu0 0.0
    %4567 = vmatprep.subr.mxu0 0.0
    %4568 = vmatpush1.msra.mxu0 0.0
    %4569 = vmatprep.subr.mxu0 0.0
    %4570 = vmatpush1.msra.mxu0 0.0
    %4571 = vmatprep.subr.mxu0 0.0
    %4572 = vmatpush1.msra.mxu0 0.0
    %4573 = vmatprep.subr.mxu0 0.0
    %4574 = vmatpush1.msra.mxu0 0.0
    %4575 = vmatprep.subr.mxu0 0.0
    %4576 = vmatpush1.msra.mxu0 0.0
    %4577 = vmatprep.mubr.f32.mxu0 0.0
    %4578 = vmatmul.mubr.f32.gmra.mrb[0].mxu0 %v4337
    %v4579 = vpop.f32.mrb[0].mxu0
    %v4580 = vadd.f32 0.0, %v4579
    %v4581 = vpop.f32.mrb[0].mxu0
    %4582 = vdwg.mxu0
    %4584 = vrot.lane.b32.xlu0 %v4442, 32
    %v4585 = vpop.permute.xlu0 %4584
    %v4586 = vsel %vm117, %v4585, 0
    %4588 = vmatprep.subr.mxu0 0.0
    %4589 = vmatpush1.msra.mxu0 %v265
    %4590 = vmatprep.subr.mxu0 0.0
    %4591 = vmatpush1.msra.mxu0 %v266
    %4592 = vmatprep.subr.mxu0 0.0
    %4593 = vmatpush1.msra.mxu0 %v267
    %4594 = vmatprep.subr.mxu0 0.0
    %4595 = vmatpush1.msra.mxu0 %v268
    %4596 = vmatprep.subr.mxu0 0.0
    %4597 = vmatpush1.msra.mxu0 0.0
    %4598 = vmatprep.subr.mxu0 0.0
    %4599 = vmatpush1.msra.mxu0 0.0
    %4600 = vmatprep.subr.mxu0 0.0
    %4601 = vmatpush1.msra.mxu0 0.0
    %4602 = vmatprep.subr.mxu0 0.0
    %4603 = vmatpush1.msra.mxu0 0.0
    %4604 = vmatprep.subr.mxu0 0.0
    %4605 = vmatpush1.msra.mxu0 0.0
    %4606 = vmatprep.subr.mxu0 0.0
    %4607 = vmatpush1.msra.mxu0 0.0
    %4608 = vmatprep.subr.mxu0 0.0
    %4609 = vmatpush1.msra.mxu0 0.0
    %4610 = vmatprep.subr.mxu0 0.0
    %4611 = vmatpush1.msra.mxu0 0.0
    %4612 = vmatprep.subr.mxu0 0.0
    %4613 = vmatpush1.msra.mxu0 0.0
    %4614 = vmatprep.subr.mxu0 0.0
    %4615 = vmatpush1.msra.mxu0 0.0
    %4616 = vmatprep.subr.mxu0 0.0
    %4617 = vmatpush1.msra.mxu0 0.0
    %4618 = vmatprep.subr.mxu0 0.0
    %4619 = vmatpush1.msra.mxu0 0.0
    %4620 = vmatprep.subr.mxu0 0.0
    %4621 = vmatpush1.msra.mxu0 0.0
    %4622 = vmatprep.subr.mxu0 0.0
    %4623 = vmatpush1.msra.mxu0 0.0
    %4624 = vmatprep.subr.mxu0 0.0
    %4625 = vmatpush1.msra.mxu0 0.0
    %4626 = vmatprep.subr.mxu0 0.0
    %4627 = vmatpush1.msra.mxu0 0.0
    %4628 = vmatprep.subr.mxu0 0.0
    %4629 = vmatpush1.msra.mxu0 0.0
    %4630 = vmatprep.subr.mxu0 0.0
    %4631 = vmatpush1.msra.mxu0 0.0
    %4632 = vmatprep.subr.mxu0 0.0
    %4633 = vmatpush1.msra.mxu0 0.0
    %4634 = vmatprep.subr.mxu0 0.0
    %4635 = vmatpush1.msra.mxu0 0.0
    %4636 = vmatprep.subr.mxu0 0.0
    %4637 = vmatpush1.msra.mxu0 0.0
    %4638 = vmatprep.subr.mxu0 0.0
    %4639 = vmatpush1.msra.mxu0 0.0
    %4640 = vmatprep.subr.mxu0 0.0
    %4641 = vmatpush1.msra.mxu0 0.0
    %4642 = vmatprep.subr.mxu0 0.0
    %4643 = vmatpush1.msra.mxu0 0.0
    %4644 = vmatprep.subr.mxu0 0.0
    %4645 = vmatpush1.msra.mxu0 0.0
    %4646 = vmatprep.subr.mxu0 0.0
    %4647 = vmatpush1.msra.mxu0 0.0
    %4648 = vmatprep.subr.mxu0 0.0
    %4649 = vmatpush1.msra.mxu0 0.0
    %4650 = vmatprep.subr.mxu0 0.0
    %4651 = vmatpush1.msra.mxu0 0.0
    %4652 = vmatprep.mubr.f32.mxu0 0.0
    %4653 = vmatmul.mubr.f32.gmra.mrb[0].mxu0 %v4586
    %v4654 = vpop.f32.mrb[0].mxu0
    %v4655 = vadd.f32 0.0, %v4654
    %v4656 = vpop.f32.mrb[0].mxu0
    %4657 = vdwg.mxu0
    %4658 = vmatprep.subr.mxu0 0.0
    %4659 = vmatpush1.msra.mxu0 %v4110
    %4660 = vmatprep.subr.mxu0 0.0
    %4661 = vmatpush1.msra.mxu0 %v4111
    %4662 = vmatprep.subr.mxu0 0.0
    %4663 = vmatpush1.msra.mxu0 %v4112
    %4664 = vmatprep.subr.mxu0 0.0
    %4665 = vmatpush1.msra.mxu0 %v4113
    %4666 = vmatprep.subr.mxu0 0.0
    %4667 = vmatpush1.msra.mxu0 0.0
    %4668 = vmatprep.subr.mxu0 0.0
    %4669 = vmatpush1.msra.mxu0 0.0
    %4670 = vmatprep.subr.mxu0 0.0
    %4671 = vmatpush1.msra.mxu0 0.0
    %4672 = vmatprep.subr.mxu0 0.0
    %4673 = vmatpush1.msra.mxu0 0.0
    %4674 = vmatprep.subr.mxu0 0.0
    %4675 = vmatpush1.msra.mxu0 0.0
    %4676 = vmatprep.subr.mxu0 0.0
    %4677 = vmatpush1.msra.mxu0 0.0
    %4678 = vmatprep.subr.mxu0 0.0
    %4679 = vmatpush1.msra.mxu0 0.0
    %4680 = vmatprep.subr.mxu0 0.0
    %4681 = vmatpush1.msra.mxu0 0.0
    %4682 = vmatprep.subr.mxu0 0.0
    %4683 = vmatpush1.msra.mxu0 0.0
    %4684 = vmatprep.subr.mxu0 0.0
    %4685 = vmatpush1.msra.mxu0 0.0
    %4686 = vmatprep.subr.mxu0 0.0
    %4687 = vmatpush1.msra.mxu0 0.0
    %4688 = vmatprep.subr.mxu0 0.0
    %4689 = vmatpush1.msra.mxu0 0.0
    %4690 = vmatprep.subr.mxu0 0.0
    %4691 = vmatpush1.msra.mxu0 0.0
    %4692 = vmatprep.subr.mxu0 0.0
    %4693 = vmatpush1.msra.mxu0 0.0
    %4694 = vmatprep.subr.mxu0 0.0
    %4695 = vmatpush1.msra.mxu0 0.0
    %4696 = vmatprep.subr.mxu0 0.0
    %4697 = vmatpush1.msra.mxu0 0.0
    %4698 = vmatprep.subr.mxu0 0.0
    %4699 = vmatpush1.msra.mxu0 0.0
    %4700 = vmatprep.subr.mxu0 0.0
    %4701 = vmatpush1.msra.mxu0 0.0
    %4702 = vmatprep.subr.mxu0 0.0
    %4703 = vmatpush1.msra.mxu0 0.0
    %4704 = vmatprep.subr.mxu0 0.0
    %4705 = vmatpush1.msra.mxu0 0.0
    %4706 = vmatprep.subr.mxu0 0.0
    %4707 = vmatpush1.msra.mxu0 0.0
    %4708 = vmatprep.subr.mxu0 0.0
    %4709 = vmatpush1.msra.mxu0 0.0
    %4710 = vmatprep.subr.mxu0 0.0
    %4711 = vmatpush1.msra.mxu0 0.0
    %4712 = vmatprep.subr.mxu0 0.0
    %4713 = vmatpush1.msra.mxu0 0.0
    %4714 = vmatprep.subr.mxu0 0.0
    %4715 = vmatpush1.msra.mxu0 0.0
    %4716 = vmatprep.subr.mxu0 0.0
    %4717 = vmatpush1.msra.mxu0 0.0
    %4718 = vmatprep.subr.mxu0 0.0
    %4719 = vmatpush1.msra.mxu0 0.0
    %4720 = vmatprep.subr.mxu0 0.0
    %4721 = vmatpush1.msra.mxu0 0.0
    %4722 = vmatprep.mubr.f32.mxu0 0.0
    %4723 = vmatmul.mubr.f32.gmra.mrb[0].mxu0 %v4586
    %v4724 = vpop.f32.mrb[0].mxu0
    %v4725 = vadd.f32 %v4510, %v4724
    %v4726 = vpop.f32.mrb[0].mxu0
    %4727 = vdwg.mxu0
    %v4728 = vadd.f32 %v4725, %v4189
    %v4729 = vxor.u32 %v4728, 2147483648
    %v4730 = vmul.f32 %v4729, 1.442695
    %v4731 = vpow.pop %v4730
    %v4732 = vadd.f32 %v4731, 1.0
    %v4733 = vrcp.pop %v4732
    %v4734 = vmul.f32 1.0, %v4733
    %v4735 = vmul.f32 %v4734, 2.0
    %v4736 = vsub.f32 %v4735, 1.0
    %v4737 = vmul.f32 %v4734, %v4210
    %4739 = vrot.lane.b32.xlu0 %v4736, 64
    %v4740 = vpop.permute.xlu0 %4739
    %v4742 = vmul.f32 %v4734, %v4740
    %4744 = vrot.lane.b32.xlu0 %v4742, 32
    %v4745 = vpop.permute.xlu0 %4744
    %v4747 = vadd.f32 %v4737, %v4745
    %v4748 = vmul.f32 %v4747, 2.0
    %v4749 = vxor.u32 %v4748, 2147483648
    %v4750 = vmul.f32 %v4749, 1.442695
    %v4751 = vpow.pop %v4750
    %v4752 = vadd.f32 %v4751, 1.0
    %v4753 = vrcp.pop %v4752
    %v4754 = vmul.f32 1.0, %v4753
    %v4755 = vmul.f32 %v4754, 2.0
    %v4756 = vsub.f32 %v4755, 1.0
    %4758 = vrot.lane.b32.xlu0 %v4756, 64
    %v4759 = vpop.permute.xlu0 %4758
    %v4761 = vmul.f32 %v4734, %v4759
    %4763 = vrot.lane.b32.xlu0 %v4761, 32
    %v4764 = vpop.permute.xlu0 %4763
    %v4765 = vsel %vm117, %v4764, 0
    %4767 = vmatprep.subr.mxu0 0.0
    %4768 = vmatpush1.msra.mxu0 %v374
    %4769 = vmatprep.subr.mxu0 0.0
    %4770 = vmatpush1.msra.mxu0 %v375
    %4771 = vmatprep.subr.mxu0 0.0
    %4772 = vmatpush1.msra.mxu0 %v376
    %4773 = vmatprep.subr.mxu0 0.0
    %4774 = vmatpush1.msra.mxu0 %v377
    %4775 = vmatprep.subr.mxu0 0.0
    %4776 = vmatpush1.msra.mxu0 0.0
    %4777 = vmatprep.subr.mxu0 0.0
    %4778 = vmatpush1.msra.mxu0 0.0
    %4779 = vmatprep.subr.mxu0 0.0
    %4780 = vmatpush1.msra.mxu0 0.0
    %4781 = vmatprep.subr.mxu0 0.0
    %4782 = vmatpush1.msra.mxu0 0.0
    %4783 = vmatprep.subr.mxu0 0.0
    %4784 = vmatpush1.msra.mxu0 0.0
    %4785 = vmatprep.subr.mxu0 0.0
    %4786 = vmatpush1.msra.mxu0 0.0
    %4787 = vmatprep.subr.mxu0 0.0
    %4788 = vmatpush1.msra.mxu0 0.0
    %4789 = vmatprep.subr.mxu0 0.0
    %4790 = vmatpush1.msra.mxu0 0.0
    %4791 = vmatprep.subr.mxu0 0.0
    %4792 = vmatpush1.msra.mxu0 0.0
    %4793 = vmatprep.subr.mxu0 0.0
    %4794 = vmatpush1.msra.mxu0 0.0
    %4795 = vmatprep.subr.mxu0 0.0
    %4796 = vmatpush1.msra.mxu0 0.0
    %4797 = vmatprep.subr.mxu0 0.0
    %4798 = vmatpush1.msra.mxu0 0.0
    %4799 = vmatprep.subr.mxu0 0.0
    %4800 = vmatpush1.msra.mxu0 0.0
    %4801 = vmatprep.subr.mxu0 0.0
    %4802 = vmatpush1.msra.mxu0 0.0
    %4803 = vmatprep.subr.mxu0 0.0
    %4804 = vmatpush1.msra.mxu0 0.0
    %4805 = vmatprep.subr.mxu0 0.0
    %4806 = vmatpush1.msra.mxu0 0.0
    %4807 = vmatprep.subr.mxu0 0.0
    %4808 = vmatpush1.msra.mxu0 0.0
    %4809 = vmatprep.subr.mxu0 0.0
    %4810 = vmatpush1.msra.mxu0 0.0
    %4811 = vmatprep.subr.mxu0 0.0
    %4812 = vmatpush1.msra.mxu0 0.0
    %4813 = vmatprep.subr.mxu0 0.0
    %4814 = vmatpush1.msra.mxu0 0.0
    %4815 = vmatprep.subr.mxu0 0.0
    %4816 = vmatpush1.msra.mxu0 0.0
    %4817 = vmatprep.subr.mxu0 0.0
    %4818 = vmatpush1.msra.mxu0 0.0
    %4819 = vmatprep.subr.mxu0 0.0
    %4820 = vmatpush1.msra.mxu0 0.0
    %4821 = vmatprep.subr.mxu0 0.0
    %4822 = vmatpush1.msra.mxu0 0.0
    %4823 = vmatprep.subr.mxu0 0.0
    %4824 = vmatpush1.msra.mxu0 0.0
    %4825 = vmatprep.subr.mxu0 0.0
    %4826 = vmatpush1.msra.mxu0 0.0
    %4827 = vmatprep.subr.mxu0 0.0
    %4828 = vmatpush1.msra.mxu0 0.0
    %4829 = vmatprep.subr.mxu0 0.0
    %4830 = vmatpush1.msra.mxu0 0.0
    %4831 = vmatprep.mubr.f32.mxu0 0.0
    %4832 = vmatmul.mubr.f32.gmra.mrb[0].mxu0 %v4765
    %v4833 = vpop.f32.mrb[0].mxu0
    %v4834 = vadd.f32 %v4580, %v4833
    %v4835 = vpop.f32.mrb[0].mxu0
    %4836 = vdwg.mxu0
    %v4837 = vadd.f32 %v4834, %v457
    %v4838 = vxor.u32 %v4837, 2147483648
    %v4839 = vmul.f32 %v4838, 1.442695
    %v4840 = vpow.pop %v4839
    %v4841 = vadd.f32 %v4840, 1.0
    %v4842 = vrcp.pop %v4841
    %v4843 = vmul.f32 1.0, %v4842
    %v4844 = vmul.f32 %v4843, 2.0
    %v4845 = vsub.f32 %v4844, 1.0
    %v4846 = vmul.f32 %v4843, %v4319
    %4848 = vrot.lane.b32.xlu0 %v4845, 64
    %v4849 = vpop.permute.xlu0 %4848
    %v4851 = vmul.f32 %v4843, %v4849
    %4853 = vrot.lane.b32.xlu0 %v4851, 32
    %v4854 = vpop.permute.xlu0 %4853
    %v4856 = vadd.f32 %v4846, %v4854
    %v4857 = vmul.f32 %v4856, 2.0
    %v4858 = vxor.u32 %v4857, 2147483648
    %v4859 = vmul.f32 %v4858, 1.442695
    %v4860 = vpow.pop %v4859
    %v4861 = vadd.f32 %v4860, 1.0
    %v4862 = vrcp.pop %v4861
    %v4863 = vmul.f32 1.0, %v4862
    %v4864 = vmul.f32 %v4863, 2.0
    %v4865 = vsub.f32 %v4864, 1.0
    %4867 = vrot.lane.b32.xlu0 %v4865, 64
    %v4868 = vpop.permute.xlu0 %4867
    %v4870 = vmul.f32 %v4843, %v4868
    %4872 = vrot.lane.b32.xlu0 %v4870, 32
    %v4873 = vpop.permute.xlu0 %4872
    %v4874 = vsel %vm117, %v4873, 0
    %4876 = vmatprep.subr.mxu0 0.0
    %4877 = vmatpush1.msra.mxu0 %v493
    %4878 = vmatprep.subr.mxu0 0.0
    %4879 = vmatpush1.msra.mxu0 %v494
    %4880 = vmatprep.subr.mxu0 0.0
    %4881 = vmatpush1.msra.mxu0 %v495
    %4882 = vmatprep.subr.mxu0 0.0
    %4883 = vmatpush1.msra.mxu0 %v496
    %4884 = vmatprep.subr.mxu0 0.0
    %4885 = vmatpush1.msra.mxu0 0.0
    %4886 = vmatprep.subr.mxu0 0.0
    %4887 = vmatpush1.msra.mxu0 0.0
    %4888 = vmatprep.subr.mxu0 0.0
    %4889 = vmatpush1.msra.mxu0 0.0
    %4890 = vmatprep.subr.mxu0 0.0
    %4891 = vmatpush1.msra.mxu0 0.0
    %4892 = vmatprep.subr.mxu0 0.0
    %4893 = vmatpush1.msra.mxu0 0.0
    %4894 = vmatprep.subr.mxu0 0.0
    %4895 = vmatpush1.msra.mxu0 0.0
    %4896 = vmatprep.subr.mxu0 0.0
    %4897 = vmatpush1.msra.mxu0 0.0
    %4898 = vmatprep.subr.mxu0 0.0
    %4899 = vmatpush1.msra.mxu0 0.0
    %4900 = vmatprep.subr.mxu0 0.0
    %4901 = vmatpush1.msra.mxu0 0.0
    %4902 = vmatprep.subr.mxu0 0.0
    %4903 = vmatpush1.msra.mxu0 0.0
    %4904 = vmatprep.subr.mxu0 0.0
    %4905 = vmatpush1.msra.mxu0 0.0
    %4906 = vmatprep.subr.mxu0 0.0
    %4907 = vmatpush1.msra.mxu0 0.0
    %4908 = vmatprep.subr.mxu0 0.0
    %4909 = vmatpush1.msra.mxu0 0.0
    %4910 = vmatprep.subr.mxu0 0.0
    %4911 = vmatpush1.msra.mxu0 0.0
    %4912 = vmatprep.subr.mxu0 0.0
    %4913 = vmatpush1.msra.mxu0 0.0
    %4914 = vmatprep.subr.mxu0 0.0
    %4915 = vmatpush1.msra.mxu0 0.0
    %4916 = vmatprep.subr.mxu0 0.0
    %4917 = vmatpush1.msra.mxu0 0.0
    %4918 = vmatprep.subr.mxu0 0.0
    %4919 = vmatpush1.msra.mxu0 0.0
    %4920 = vmatprep.subr.mxu0 0.0
    %4921 = vmatpush1.msra.mxu0 0.0
    %4922 = vmatprep.subr.mxu0 0.0
    %4923 = vmatpush1.msra.mxu0 0.0
    %4924 = vmatprep.subr.mxu0 0.0
    %4925 = vmatpush1.msra.mxu0 0.0
    %4926 = vmatprep.subr.mxu0 0.0
    %4927 = vmatpush1.msra.mxu0 0.0
    %4928 = vmatprep.subr.mxu0 0.0
    %4929 = vmatpush1.msra.mxu0 0.0
    %4930 = vmatprep.subr.mxu0 0.0
    %4931 = vmatpush1.msra.mxu0 0.0
    %4932 = vmatprep.subr.mxu0 0.0
    %4933 = vmatpush1.msra.mxu0 0.0
    %4934 = vmatprep.subr.mxu0 0.0
    %4935 = vmatpush1.msra.mxu0 0.0
    %4936 = vmatprep.subr.mxu0 0.0
    %4937 = vmatpush1.msra.mxu0 0.0
    %4938 = vmatprep.subr.mxu0 0.0
    %4939 = vmatpush1.msra.mxu0 0.0
    %4940 = vmatprep.mubr.f32.mxu0 0.0
    %4941 = vmatmul.mubr.f32.gmra.mrb[0].mxu0 %v4874
    %v4942 = vpop.f32.mrb[0].mxu0
    %v4943 = vadd.f32 %v4655, %v4942
    %v4944 = vpop.f32.mrb[0].mxu0
    %4945 = vdwg.mxu0
    %v4946 = vadd.f32 %v4943, %v576
    %v4947 = vxor.u32 %v4946, 2147483648
    %v4948 = vmul.f32 %v4947, 1.442695
    %v4949 = vpow.pop %v4948
    %v4950 = vadd.f32 %v4949, 1.0
    %v4951 = vrcp.pop %v4950
    %v4952 = vmul.f32 1.0, %v4951
    %v4953 = vmul.f32 %v4952, 2.0
    %v4954 = vsub.f32 %v4953, 1.0
    %v4955 = vmul.f32 %v4952, %v4428
    %4957 = vrot.lane.b32.xlu0 %v4954, 64
    %v4958 = vpop.permute.xlu0 %4957
    %v4960 = vmul.f32 %v4952, %v4958
    %4962 = vrot.lane.b32.xlu0 %v4960, 32
    %v4963 = vpop.permute.xlu0 %4962
    %v4965 = vadd.f32 %v4955, %v4963
    %v4966 = vmul.f32 %v4965, 2.0
    %v4967 = vxor.u32 %v4966, 2147483648
    %v4968 = vmul.f32 %v4967, 1.442695
    %v4969 = vpow.pop %v4968
    %v4970 = vadd.f32 %v4969, 1.0
    %v4971 = vrcp.pop %v4970
    %v4972 = vmul.f32 1.0, %v4971
    %v4973 = vmul.f32 %v4972, 2.0
    %v4974 = vsub.f32 %v4973, 1.0
    %4976 = vrot.lane.b32.xlu0 %v4974, 64
    %v4977 = vpop.permute.xlu0 %4976
    %v4979 = vmul.f32 %v4952, %v4977
    %4980 = vmatprep.subr.mxu0 0.0
    %4981 = vmatpush1.msra.mxu0 %v113
    %4982 = vmatprep.subr.mxu0 0.0
    %4983 = vmatpush1.msra.mxu0 %v114
    %4984 = vmatprep.subr.mxu0 0.0
    %4985 = vmatpush1.msra.mxu0 %v115
    %4986 = vmatprep.subr.mxu0 0.0
    %4987 = vmatpush1.msra.mxu0 %v116
    %4988 = vmatprep.subr.mxu0 0.0
    %4989 = vmatpush1.msra.mxu0 0.0
    %4990 = vmatprep.subr.mxu0 0.0
    %4991 = vmatpush1.msra.mxu0 0.0
    %4992 = vmatprep.subr.mxu0 0.0
    %4993 = vmatpush1.msra.mxu0 0.0
    %4994 = vmatprep.subr.mxu0 0.0
    %4995 = vmatpush1.msra.mxu0 0.0
    %4996 = vmatprep.subr.mxu0 0.0
    %4997 = vmatpush1.msra.mxu0 0.0
    %4998 = vmatprep.subr.mxu0 0.0
    %4999 = vmatpush1.msra.mxu0 0.0
    %5000 = vmatprep.subr.mxu0 0.0
    %5001 = vmatpush1.msra.mxu0 0.0
    %5002 = vmatprep.subr.mxu0 0.0
    %5003 = vmatpush1.msra.mxu0 0.0
    %5004 = vmatprep.subr.mxu0 0.0
    %5005 = vmatpush1.msra.mxu0 0.0
    %5006 = vmatprep.subr.mxu0 0.0
    %5007 = vmatpush1.msra.mxu0 0.0
    %5008 = vmatprep.subr.mxu0 0.0
    %5009 = vmatpush1.msra.mxu0 0.0
    %5010 = vmatprep.subr.mxu0 0.0
    %5011 = vmatpush1.msra.mxu0 0.0
    %5012 = vmatprep.subr.mxu0 0.0
    %5013 = vmatpush1.msra.mxu0 0.0
    %5014 = vmatprep.subr.mxu0 0.0
    %5015 = vmatpush1.msra.mxu0 0.0
    %5016 = vmatprep.subr.mxu0 0.0
    %5017 = vmatpush1.msra.mxu0 0.0
    %5018 = vmatprep.subr.mxu0 0.0
    %5019 = vmatpush1.msra.mxu0 0.0
    %5020 = vmatprep.subr.mxu0 0.0
    %5021 = vmatpush1.msra.mxu0 0.0
    %5022 = vmatprep.subr.mxu0 0.0
    %5023 = vmatpush1.msra.mxu0 0.0
    %5024 = vmatprep.subr.mxu0 0.0
    %5025 = vmatpush1.msra.mxu0 0.0
    %5026 = vmatprep.subr.mxu0 0.0
    %5027 = vmatpush1.msra.mxu0 0.0
    %5028 = vmatprep.subr.mxu0 0.0
    %5029 = vmatpush1.msra.mxu0 0.0
    %5030 = vmatprep.subr.mxu0 0.0
    %5031 = vmatpush1.msra.mxu0 0.0
    %5032 = vmatprep.subr.mxu0 0.0
    %5033 = vmatpush1.msra.mxu0 0.0
    %5034 = vmatprep.subr.mxu0 0.0
    %5035 = vmatpush1.msra.mxu0 0.0
    %5036 = vmatprep.subr.mxu0 0.0
    %5037 = vmatpush1.msra.mxu0 0.0
    %5038 = vmatprep.subr.mxu0 0.0
    %5039 = vmatpush1.msra.mxu0 0.0
    %5040 = vmatprep.subr.mxu0 0.0
    %5041 = vmatpush1.msra.mxu0 0.0
    %5042 = vmatprep.subr.mxu0 0.0
    %5043 = vmatpush1.msra.mxu0 0.0
    %5044 = vmatprep.mubr.f32.mxu0 0.0
    %5045 = vmatmul.mubr.f32.gmra.mrb[0].mxu0 %v4765
    %v5046 = vpop.f32.mrb[0].mxu0
    %v5047 = vadd.f32 0.0, %v5046
    %v5048 = vpop.f32.mrb[0].mxu0
    %5049 = vdwg.mxu0
    %5050 = vmatprep.subr.mxu0 0.0
    %5051 = vmatpush1.msra.mxu0 %v191
    %5052 = vmatprep.subr.mxu0 0.0
    %5053 = vmatpush1.msra.mxu0 %v192
    %5054 = vmatprep.subr.mxu0 0.0
    %5055 = vmatpush1.msra.mxu0 %v193
    %5056 = vmatprep.subr.mxu0 0.0
    %5057 = vmatpush1.msra.mxu0 %v194
    %5058 = vmatprep.subr.mxu0 0.0
    %5059 = vmatpush1.msra.mxu0 0.0
    %5060 = vmatprep.subr.mxu0 0.0
    %5061 = vmatpush1.msra.mxu0 0.0
    %5062 = vmatprep.subr.mxu0 0.0
    %5063 = vmatpush1.msra.mxu0 0.0
    %5064 = vmatprep.subr.mxu0 0.0
    %5065 = vmatpush1.msra.mxu0 0.0
    %5066 = vmatprep.subr.mxu0 0.0
    %5067 = vmatpush1.msra.mxu0 0.0
    %5068 = vmatprep.subr.mxu0 0.0
    %5069 = vmatpush1.msra.mxu0 0.0
    %5070 = vmatprep.subr.mxu0 0.0
    %5071 = vmatpush1.msra.mxu0 0.0
    %5072 = vmatprep.subr.mxu0 0.0
    %5073 = vmatpush1.msra.mxu0 0.0
    %5074 = vmatprep.subr.mxu0 0.0
    %5075 = vmatpush1.msra.mxu0 0.0
    %5076 = vmatprep.subr.mxu0 0.0
    %5077 = vmatpush1.msra.mxu0 0.0
    %5078 = vmatprep.subr.mxu0 0.0
    %5079 = vmatpush1.msra.mxu0 0.0
    %5080 = vmatprep.subr.mxu0 0.0
    %5081 = vmatpush1.msra.mxu0 0.0
    %5082 = vmatprep.subr.mxu0 0.0
    %5083 = vmatpush1.msra.mxu0 0.0
    %5084 = vmatprep.subr.mxu0 0.0
    %5085 = vmatpush1.msra.mxu0 0.0
    %5086 = vmatprep.subr.mxu0 0.0
    %5087 = vmatpush1.msra.mxu0 0.0
    %5088 = vmatprep.subr.mxu0 0.0
    %5089 = vmatpush1.msra.mxu0 0.0
    %5090 = vmatprep.subr.mxu0 0.0
    %5091 = vmatpush1.msra.mxu0 0.0
    %5092 = vmatprep.subr.mxu0 0.0
    %5093 = vmatpush1.msra.mxu0 0.0
    %5094 = vmatprep.subr.mxu0 0.0
    %5095 = vmatpush1.msra.mxu0 0.0
    %5096 = vmatprep.subr.mxu0 0.0
    %5097 = vmatpush1.msra.mxu0 0.0
    %5098 = vmatprep.subr.mxu0 0.0
    %5099 = vmatpush1.msra.mxu0 0.0
    %5100 = vmatprep.subr.mxu0 0.0
    %5101 = vmatpush1.msra.mxu0 0.0
    %5102 = vmatprep.subr.mxu0 0.0
    %5103 = vmatpush1.msra.mxu0 0.0
    %5104 = vmatprep.subr.mxu0 0.0
    %5105 = vmatpush1.msra.mxu0 0.0
    %5106 = vmatprep.subr.mxu0 0.0
    %5107 = vmatpush1.msra.mxu0 0.0
    %5108 = vmatprep.subr.mxu0 0.0
    %5109 = vmatpush1.msra.mxu0 0.0
    %5110 = vmatprep.subr.mxu0 0.0
    %5111 = vmatpush1.msra.mxu0 0.0
    %5112 = vmatprep.subr.mxu0 0.0
    %5113 = vmatpush1.msra.mxu0 0.0
    %5114 = vmatprep.mubr.f32.mxu0 0.0
    %5115 = vmatmul.mubr.f32.gmra.mrb[0].mxu0 %v4874
    %v5116 = vpop.f32.mrb[0].mxu0
    %v5117 = vadd.f32 0.0, %v5116
    %v5118 = vpop.f32.mrb[0].mxu0
    %5119 = vdwg.mxu0
    %5121 = vrot.lane.b32.xlu0 %v4979, 32
    %v5122 = vpop.permute.xlu0 %5121
    %v5123 = vsel %vm117, %v5122, 0
    %5125 = vmatprep.subr.mxu0 0.0
    %5126 = vmatpush1.msra.mxu0 %v265
    %5127 = vmatprep.subr.mxu0 0.0
    %5128 = vmatpush1.msra.mxu0 %v266
    %5129 = vmatprep.subr.mxu0 0.0
    %5130 = vmatpush1.msra.mxu0 %v267
    %5131 = vmatprep.subr.mxu0 0.0
    %5132 = vmatpush1.msra.mxu0 %v268
    %5133 = vmatprep.subr.mxu0 0.0
    %5134 = vmatpush1.msra.mxu0 0.0
    %5135 = vmatprep.subr.mxu0 0.0
    %5136 = vmatpush1.msra.mxu0 0.0
    %5137 = vmatprep.subr.mxu0 0.0
    %5138 = vmatpush1.msra.mxu0 0.0
    %5139 = vmatprep.subr.mxu0 0.0
    %5140 = vmatpush1.msra.mxu0 0.0
    %5141 = vmatprep.subr.mxu0 0.0
    %5142 = vmatpush1.msra.mxu0 0.0
    %5143 = vmatprep.subr.mxu0 0.0
    %5144 = vmatpush1.msra.mxu0 0.0
    %5145 = vmatprep.subr.mxu0 0.0
    %5146 = vmatpush1.msra.mxu0 0.0
    %5147 = vmatprep.subr.mxu0 0.0
    %5148 = vmatpush1.msra.mxu0 0.0
    %5149 = vmatprep.subr.mxu0 0.0
    %5150 = vmatpush1.msra.mxu0 0.0
    %5151 = vmatprep.subr.mxu0 0.0
    %5152 = vmatpush1.msra.mxu0 0.0
    %5153 = vmatprep.subr.mxu0 0.0
    %5154 = vmatpush1.msra.mxu0 0.0
    %5155 = vmatprep.subr.mxu0 0.0
    %5156 = vmatpush1.msra.mxu0 0.0
    %5157 = vmatprep.subr.mxu0 0.0
    %5158 = vmatpush1.msra.mxu0 0.0
    %5159 = vmatprep.subr.mxu0 0.0
    %5160 = vmatpush1.msra.mxu0 0.0
    %5161 = vmatprep.subr.mxu0 0.0
    %5162 = vmatpush1.msra.mxu0 0.0
    %5163 = vmatprep.subr.mxu0 0.0
    %5164 = vmatpush1.msra.mxu0 0.0
    %5165 = vmatprep.subr.mxu0 0.0
    %5166 = vmatpush1.msra.mxu0 0.0
    %5167 = vmatprep.subr.mxu0 0.0
    %5168 = vmatpush1.msra.mxu0 0.0
    %5169 = vmatprep.subr.mxu0 0.0
    %5170 = vmatpush1.msra.mxu0 0.0
    %5171 = vmatprep.subr.mxu0 0.0
    %5172 = vmatpush1.msra.mxu0 0.0
    %5173 = vmatprep.subr.mxu0 0.0
    %5174 = vmatpush1.msra.mxu0 0.0
    %5175 = vmatprep.subr.mxu0 0.0
    %5176 = vmatpush1.msra.mxu0 0.0
    %5177 = vmatprep.subr.mxu0 0.0
    %5178 = vmatpush1.msra.mxu0 0.0
    %5179 = vmatprep.subr.mxu0 0.0
    %5180 = vmatpush1.msra.mxu0 0.0
    %5181 = vmatprep.subr.mxu0 0.0
    %5182 = vmatpush1.msra.mxu0 0.0
    %5183 = vmatprep.subr.mxu0 0.0
    %5184 = vmatpush1.msra.mxu0 0.0
    %5185 = vmatprep.subr.mxu0 0.0
    %5186 = vmatpush1.msra.mxu0 0.0
    %5187 = vmatprep.subr.mxu0 0.0
    %5188 = vmatpush1.msra.mxu0 0.0
    %5189 = vmatprep.mubr.f32.mxu0 0.0
    %5190 = vmatmul.mubr.f32.gmra.mrb[0].mxu0 %v5123
    %v5191 = vpop.f32.mrb[0].mxu0
    %v5192 = vadd.f32 0.0, %v5191
    %v5193 = vpop.f32.mrb[0].mxu0
    %5194 = vdwg.mxu0
    %5195 = vmatprep.subr.mxu0 0.0
    %5196 = vmatpush1.msra.mxu0 %v4110
    %5197 = vmatprep.subr.mxu0 0.0
    %5198 = vmatpush1.msra.mxu0 %v4111
    %5199 = vmatprep.subr.mxu0 0.0
    %5200 = vmatpush1.msra.mxu0 %v4112
    %5201 = vmatprep.subr.mxu0 0.0
    %5202 = vmatpush1.msra.mxu0 %v4113
    %5203 = vmatprep.subr.mxu0 0.0
    %5204 = vmatpush1.msra.mxu0 0.0
    %5205 = vmatprep.subr.mxu0 0.0
    %5206 = vmatpush1.msra.mxu0 0.0
    %5207 = vmatprep.subr.mxu0 0.0
    %5208 = vmatpush1.msra.mxu0 0.0
    %5209 = vmatprep.subr.mxu0 0.0
    %5210 = vmatpush1.msra.mxu0 0.0
    %5211 = vmatprep.subr.mxu0 0.0
    %5212 = vmatpush1.msra.mxu0 0.0
    %5213 = vmatprep.subr.mxu0 0.0
    %5214 = vmatpush1.msra.mxu0 0.0
    %5215 = vmatprep.subr.mxu0 0.0
    %5216 = vmatpush1.msra.mxu0 0.0
    %5217 = vmatprep.subr.mxu0 0.0
    %5218 = vmatpush1.msra.mxu0 0.0
    %5219 = vmatprep.subr.mxu0 0.0
    %5220 = vmatpush1.msra.mxu0 0.0
    %5221 = vmatprep.subr.mxu0 0.0
    %5222 = vmatpush1.msra.mxu0 0.0
    %5223 = vmatprep.subr.mxu0 0.0
    %5224 = vmatpush1.msra.mxu0 0.0
    %5225 = vmatprep.subr.mxu0 0.0
    %5226 = vmatpush1.msra.mxu0 0.0
    %5227 = vmatprep.subr.mxu0 0.0
    %5228 = vmatpush1.msra.mxu0 0.0
    %5229 = vmatprep.subr.mxu0 0.0
    %5230 = vmatpush1.msra.mxu0 0.0
    %5231 = vmatprep.subr.mxu0 0.0
    %5232 = vmatpush1.msra.mxu0 0.0
    %5233 = vmatprep.subr.mxu0 0.0
    %5234 = vmatpush1.msra.mxu0 0.0
    %5235 = vmatprep.subr.mxu0 0.0
    %5236 = vmatpush1.msra.mxu0 0.0
    %5237 = vmatprep.subr.mxu0 0.0
    %5238 = vmatpush1.msra.mxu0 0.0
    %5239 = vmatprep.subr.mxu0 0.0
    %5240 = vmatpush1.msra.mxu0 0.0
    %5241 = vmatprep.subr.mxu0 0.0
    %5242 = vmatpush1.msra.mxu0 0.0
    %5243 = vmatprep.subr.mxu0 0.0
    %5244 = vmatpush1.msra.mxu0 0.0
    %5245 = vmatprep.subr.mxu0 0.0
    %5246 = vmatpush1.msra.mxu0 0.0
    %5247 = vmatprep.subr.mxu0 0.0
    %5248 = vmatpush1.msra.mxu0 0.0
    %5249 = vmatprep.subr.mxu0 0.0
    %5250 = vmatpush1.msra.mxu0 0.0
    %5251 = vmatprep.subr.mxu0 0.0
    %5252 = vmatpush1.msra.mxu0 0.0
    %5253 = vmatprep.subr.mxu0 0.0
    %5254 = vmatpush1.msra.mxu0 0.0
    %5255 = vmatprep.subr.mxu0 0.0
    %5256 = vmatpush1.msra.mxu0 0.0
    %5257 = vmatprep.subr.mxu0 0.0
    %5258 = vmatpush1.msra.mxu0 0.0
    %5259 = vmatprep.mubr.f32.mxu0 0.0
    %5260 = vmatmul.mubr.f32.gmra.mrb[0].mxu0 %v5123
    %v5261 = vpop.f32.mrb[0].mxu0
    %v5262 = vadd.f32 %v5047, %v5261
    %v5263 = vpop.f32.mrb[0].mxu0
    %5264 = vdwg.mxu0
    %v5265 = vadd.f32 %v5262, %v4189
    %v5266 = vxor.u32 %v5265, 2147483648
    %v5267 = vmul.f32 %v5266, 1.442695
    %v5268 = vpow.pop %v5267
    %v5269 = vadd.f32 %v5268, 1.0
    %v5270 = vrcp.pop %v5269
    %v5271 = vmul.f32 1.0, %v5270
    %v5272 = vmul.f32 %v5271, 2.0
    %v5273 = vsub.f32 %v5272, 1.0
    %v5274 = vmul.f32 %v5271, %v4747
    %5276 = vrot.lane.b32.xlu0 %v5273, 64
    %v5277 = vpop.permute.xlu0 %5276
    %v5279 = vmul.f32 %v5271, %v5277
    %5281 = vrot.lane.b32.xlu0 %v5279, 32
    %v5282 = vpop.permute.xlu0 %5281
    %v5284 = vadd.f32 %v5274, %v5282
    %v5285 = vmul.f32 %v5284, 2.0
    %v5286 = vxor.u32 %v5285, 2147483648
    %v5287 = vmul.f32 %v5286, 1.442695
    %v5288 = vpow.pop %v5287
    %v5289 = vadd.f32 %v5288, 1.0
    %v5290 = vrcp.pop %v5289
    %v5291 = vmul.f32 1.0, %v5290
    %v5292 = vmul.f32 %v5291, 2.0
    %v5293 = vsub.f32 %v5292, 1.0
    %5295 = vrot.lane.b32.xlu0 %v5293, 64
    %v5296 = vpop.permute.xlu0 %5295
    %v5298 = vmul.f32 %v5271, %v5296
    %5300 = vrot.lane.b32.xlu0 %v5298, 32
    %v5301 = vpop.permute.xlu0 %5300
    %v5302 = vsel %vm117, %v5301, 0
    %5304 = vmatprep.subr.mxu0 0.0
    %5305 = vmatpush1.msra.mxu0 %v374
    %5306 = vmatprep.subr.mxu0 0.0
    %5307 = vmatpush1.msra.mxu0 %v375
    %5308 = vmatprep.subr.mxu0 0.0
    %5309 = vmatpush1.msra.mxu0 %v376
    %5310 = vmatprep.subr.mxu0 0.0
    %5311 = vmatpush1.msra.mxu0 %v377
    %5312 = vmatprep.subr.mxu0 0.0
    %5313 = vmatpush1.msra.mxu0 0.0
    %5314 = vmatprep.subr.mxu0 0.0
    %5315 = vmatpush1.msra.mxu0 0.0
    %5316 = vmatprep.subr.mxu0 0.0
    %5317 = vmatpush1.msra.mxu0 0.0
    %5318 = vmatprep.subr.mxu0 0.0
    %5319 = vmatpush1.msra.mxu0 0.0
    %5320 = vmatprep.subr.mxu0 0.0
    %5321 = vmatpush1.msra.mxu0 0.0
    %5322 = vmatprep.subr.mxu0 0.0
    %5323 = vmatpush1.msra.mxu0 0.0
    %5324 = vmatprep.subr.mxu0 0.0
    %5325 = vmatpush1.msra.mxu0 0.0
    %5326 = vmatprep.subr.mxu0 0.0
    %5327 = vmatpush1.msra.mxu0 0.0
    %5328 = vmatprep.subr.mxu0 0.0
    %5329 = vmatpush1.msra.mxu0 0.0
    %5330 = vmatprep.subr.mxu0 0.0
    %5331 = vmatpush1.msra.mxu0 0.0
    %5332 = vmatprep.subr.mxu0 0.0
    %5333 = vmatpush1.msra.mxu0 0.0
    %5334 = vmatprep.subr.mxu0 0.0
    %5335 = vmatpush1.msra.mxu0 0.0
    %5336 = vmatprep.subr.mxu0 0.0
    %5337 = vmatpush1.msra.mxu0 0.0
    %5338 = vmatprep.subr.mxu0 0.0
    %5339 = vmatpush1.msra.mxu0 0.0
    %5340 = vmatprep.subr.mxu0 0.0
    %5341 = vmatpush1.msra.mxu0 0.0
    %5342 = vmatprep.subr.mxu0 0.0
    %5343 = vmatpush1.msra.mxu0 0.0
    %5344 = vmatprep.subr.mxu0 0.0
    %5345 = vmatpush1.msra.mxu0 0.0
    %5346 = vmatprep.subr.mxu0 0.0
    %5347 = vmatpush1.msra.mxu0 0.0
    %5348 = vmatprep.subr.mxu0 0.0
    %5349 = vmatpush1.msra.mxu0 0.0
    %5350 = vmatprep.subr.mxu0 0.0
    %5351 = vmatpush1.msra.mxu0 0.0
    %5352 = vmatprep.subr.mxu0 0.0
    %5353 = vmatpush1.msra.mxu0 0.0
    %5354 = vmatprep.subr.mxu0 0.0
    %5355 = vmatpush1.msra.mxu0 0.0
    %5356 = vmatprep.subr.mxu0 0.0
    %5357 = vmatpush1.msra.mxu0 0.0
    %5358 = vmatprep.subr.mxu0 0.0
    %5359 = vmatpush1.msra.mxu0 0.0
    %5360 = vmatprep.subr.mxu0 0.0
    %5361 = vmatpush1.msra.mxu0 0.0
    %5362 = vmatprep.subr.mxu0 0.0
    %5363 = vmatpush1.msra.mxu0 0.0
    %5364 = vmatprep.subr.mxu0 0.0
    %5365 = vmatpush1.msra.mxu0 0.0
    %5366 = vmatprep.subr.mxu0 0.0
    %5367 = vmatpush1.msra.mxu0 0.0
    %5368 = vmatprep.mubr.f32.mxu0 0.0
    %5369 = vmatmul.mubr.f32.gmra.mrb[0].mxu0 %v5302
    %v5370 = vpop.f32.mrb[0].mxu0
    %v5371 = vadd.f32 %v5117, %v5370
    %v5372 = vpop.f32.mrb[0].mxu0
    %5373 = vdwg.mxu0
    %v5374 = vadd.f32 %v5371, %v457
    %v5375 = vxor.u32 %v5374, 2147483648
    %v5376 = vmul.f32 %v5375, 1.442695
    %v5377 = vpow.pop %v5376
    %v5378 = vadd.f32 %v5377, 1.0
    %v5379 = vrcp.pop %v5378
    %v5380 = vmul.f32 1.0, %v5379
    %v5381 = vmul.f32 %v5380, 2.0
    %v5382 = vsub.f32 %v5381, 1.0
    %v5383 = vmul.f32 %v5380, %v4856
    %5385 = vrot.lane.b32.xlu0 %v5382, 64
    %v5386 = vpop.permute.xlu0 %5385
    %v5388 = vmul.f32 %v5380, %v5386
    %5390 = vrot.lane.b32.xlu0 %v5388, 32
    %v5391 = vpop.permute.xlu0 %5390
    %v5393 = vadd.f32 %v5383, %v5391
    %v5394 = vmul.f32 %v5393, 2.0
    %v5395 = vxor.u32 %v5394, 2147483648
    %v5396 = vmul.f32 %v5395, 1.442695
    %v5397 = vpow.pop %v5396
    %v5398 = vadd.f32 %v5397, 1.0
    %v5399 = vrcp.pop %v5398
    %v5400 = vmul.f32 1.0, %v5399
    %v5401 = vmul.f32 %v5400, 2.0
    %v5402 = vsub.f32 %v5401, 1.0
    %5404 = vrot.lane.b32.xlu0 %v5402, 64
    %v5405 = vpop.permute.xlu0 %5404
    %v5407 = vmul.f32 %v5380, %v5405
    %5409 = vrot.lane.b32.xlu0 %v5407, 32
    %v5410 = vpop.permute.xlu0 %5409
    %v5411 = vsel %vm117, %v5410, 0
    %5413 = vmatprep.subr.mxu0 0.0
    %5414 = vmatpush1.msra.mxu0 %v493
    %5415 = vmatprep.subr.mxu0 0.0
    %5416 = vmatpush1.msra.mxu0 %v494
    %5417 = vmatprep.subr.mxu0 0.0
    %5418 = vmatpush1.msra.mxu0 %v495
    %5419 = vmatprep.subr.mxu0 0.0
    %5420 = vmatpush1.msra.mxu0 %v496
    %5421 = vmatprep.subr.mxu0 0.0
    %5422 = vmatpush1.msra.mxu0 0.0
    %5423 = vmatprep.subr.mxu0 0.0
    %5424 = vmatpush1.msra.mxu0 0.0
    %5425 = vmatprep.subr.mxu0 0.0
    %5426 = vmatpush1.msra.mxu0 0.0
    %5427 = vmatprep.subr.mxu0 0.0
    %5428 = vmatpush1.msra.mxu0 0.0
    %5429 = vmatprep.subr.mxu0 0.0
    %5430 = vmatpush1.msra.mxu0 0.0
    %5431 = vmatprep.subr.mxu0 0.0
    %5432 = vmatpush1.msra.mxu0 0.0
    %5433 = vmatprep.subr.mxu0 0.0
    %5434 = vmatpush1.msra.mxu0 0.0
    %5435 = vmatprep.subr.mxu0 0.0
    %5436 = vmatpush1.msra.mxu0 0.0
    %5437 = vmatprep.subr.mxu0 0.0
    %5438 = vmatpush1.msra.mxu0 0.0
    %5439 = vmatprep.subr.mxu0 0.0
    %5440 = vmatpush1.msra.mxu0 0.0
    %5441 = vmatprep.subr.mxu0 0.0
    %5442 = vmatpush1.msra.mxu0 0.0
    %5443 = vmatprep.subr.mxu0 0.0
    %5444 = vmatpush1.msra.mxu0 0.0
    %5445 = vmatprep.subr.mxu0 0.0
    %5446 = vmatpush1.msra.mxu0 0.0
    %5447 = vmatprep.subr.mxu0 0.0
    %5448 = vmatpush1.msra.mxu0 0.0
    %5449 = vmatprep.subr.mxu0 0.0
    %5450 = vmatpush1.msra.mxu0 0.0
    %5451 = vmatprep.subr.mxu0 0.0
    %5452 = vmatpush1.msra.mxu0 0.0
    %5453 = vmatprep.subr.mxu0 0.0
    %5454 = vmatpush1.msra.mxu0 0.0
    %5455 = vmatprep.subr.mxu0 0.0
    %5456 = vmatpush1.msra.mxu0 0.0
    %5457 = vmatprep.subr.mxu0 0.0
    %5458 = vmatpush1.msra.mxu0 0.0
    %5459 = vmatprep.subr.mxu0 0.0
    %5460 = vmatpush1.msra.mxu0 0.0
    %5461 = vmatprep.subr.mxu0 0.0
    %5462 = vmatpush1.msra.mxu0 0.0
    %5463 = vmatprep.subr.mxu0 0.0
    %5464 = vmatpush1.msra.mxu0 0.0
    %5465 = vmatprep.subr.mxu0 0.0
    %5466 = vmatpush1.msra.mxu0 0.0
    %5467 = vmatprep.subr.mxu0 0.0
    %5468 = vmatpush1.msra.mxu0 0.0
    %5469 = vmatprep.subr.mxu0 0.0
    %5470 = vmatpush1.msra.mxu0 0.0
    %5471 = vmatprep.subr.mxu0 0.0
    %5472 = vmatpush1.msra.mxu0 0.0
    %5473 = vmatprep.subr.mxu0 0.0
    %5474 = vmatpush1.msra.mxu0 0.0
    %5475 = vmatprep.subr.mxu0 0.0
    %5476 = vmatpush1.msra.mxu0 0.0
    %5477 = vmatprep.mubr.f32.mxu0 0.0
    %5478 = vmatmul.mubr.f32.gmra.mrb[0].mxu0 %v5411
    %v5479 = vpop.f32.mrb[0].mxu0
    %v5480 = vadd.f32 %v5192, %v5479
    %v5481 = vpop.f32.mrb[0].mxu0
    %5482 = vdwg.mxu0
    %v5483 = vadd.f32 %v5480, %v576
    %v5484 = vxor.u32 %v5483, 2147483648
    %v5485 = vmul.f32 %v5484, 1.442695
    %v5486 = vpow.pop %v5485
    %v5487 = vadd.f32 %v5486, 1.0
    %v5488 = vrcp.pop %v5487
    %v5489 = vmul.f32 1.0, %v5488
    %v5490 = vmul.f32 %v5489, 2.0
    %v5491 = vsub.f32 %v5490, 1.0
    %v5492 = vmul.f32 %v5489, %v4965
    %5494 = vrot.lane.b32.xlu0 %v5491, 64
    %v5495 = vpop.permute.xlu0 %5494
    %v5497 = vmul.f32 %v5489, %v5495
    %5499 = vrot.lane.b32.xlu0 %v5497, 32
    %v5500 = vpop.permute.xlu0 %5499
    %v5502 = vadd.f32 %v5492, %v5500
    %v5503 = vmul.f32 %v5502, 2.0
    %v5504 = vxor.u32 %v5503, 2147483648
    %v5505 = vmul.f32 %v5504, 1.442695
    %v5506 = vpow.pop %v5505
    %v5507 = vadd.f32 %v5506, 1.0
    %v5508 = vrcp.pop %v5507
    %v5509 = vmul.f32 1.0, %v5508
    %v5510 = vmul.f32 %v5509, 2.0
    %v5511 = vsub.f32 %v5510, 1.0
    %5513 = vrot.lane.b32.xlu0 %v5511, 64
    %v5514 = vpop.permute.xlu0 %5513
    %v5516 = vmul.f32 %v5489, %v5514
    %5517 = vmatprep.subr.mxu0 0.0
    %5518 = vmatpush1.msra.mxu0 %v113
    %5519 = vmatprep.subr.mxu0 0.0
    %5520 = vmatpush1.msra.mxu0 %v114
    %5521 = vmatprep.subr.mxu0 0.0
    %5522 = vmatpush1.msra.mxu0 %v115
    %5523 = vmatprep.subr.mxu0 0.0
    %5524 = vmatpush1.msra.mxu0 %v116
    %5525 = vmatprep.subr.mxu0 0.0
    %5526 = vmatpush1.msra.mxu0 0.0
    %5527 = vmatprep.subr.mxu0 0.0
    %5528 = vmatpush1.msra.mxu0 0.0
    %5529 = vmatprep.subr.mxu0 0.0
    %5530 = vmatpush1.msra.mxu0 0.0
    %5531 = vmatprep.subr.mxu0 0.0
    %5532 = vmatpush1.msra.mxu0 0.0
    %5533 = vmatprep.subr.mxu0 0.0
    %5534 = vmatpush1.msra.mxu0 0.0
    %5535 = vmatprep.subr.mxu0 0.0
    %5536 = vmatpush1.msra.mxu0 0.0
    %5537 = vmatprep.subr.mxu0 0.0
    %5538 = vmatpush1.msra.mxu0 0.0
    %5539 = vmatprep.subr.mxu0 0.0
    %5540 = vmatpush1.msra.mxu0 0.0
    %5541 = vmatprep.subr.mxu0 0.0
    %5542 = vmatpush1.msra.mxu0 0.0
    %5543 = vmatprep.subr.mxu0 0.0
    %5544 = vmatpush1.msra.mxu0 0.0
    %5545 = vmatprep.subr.mxu0 0.0
    %5546 = vmatpush1.msra.mxu0 0.0
    %5547 = vmatprep.subr.mxu0 0.0
    %5548 = vmatpush1.msra.mxu0 0.0
    %5549 = vmatprep.subr.mxu0 0.0
    %5550 = vmatpush1.msra.mxu0 0.0
    %5551 = vmatprep.subr.mxu0 0.0
    %5552 = vmatpush1.msra.mxu0 0.0
    %5553 = vmatprep.subr.mxu0 0.0
    %5554 = vmatpush1.msra.mxu0 0.0
    %5555 = vmatprep.subr.mxu0 0.0
    %5556 = vmatpush1.msra.mxu0 0.0
    %5557 = vmatprep.subr.mxu0 0.0
    %5558 = vmatpush1.msra.mxu0 0.0
    %5559 = vmatprep.subr.mxu0 0.0
    %5560 = vmatpush1.msra.mxu0 0.0
    %5561 = vmatprep.subr.mxu0 0.0
    %5562 = vmatpush1.msra.mxu0 0.0
    %5563 = vmatprep.subr.mxu0 0.0
    %5564 = vmatpush1.msra.mxu0 0.0
    %5565 = vmatprep.subr.mxu0 0.0
    %5566 = vmatpush1.msra.mxu0 0.0
    %5567 = vmatprep.subr.mxu0 0.0
    %5568 = vmatpush1.msra.mxu0 0.0
    %5569 = vmatprep.subr.mxu0 0.0
    %5570 = vmatpush1.msra.mxu0 0.0
    %5571 = vmatprep.subr.mxu0 0.0
    %5572 = vmatpush1.msra.mxu0 0.0
    %5573 = vmatprep.subr.mxu0 0.0
    %5574 = vmatpush1.msra.mxu0 0.0
    %5575 = vmatprep.subr.mxu0 0.0
    %5576 = vmatpush1.msra.mxu0 0.0
    %5577 = vmatprep.subr.mxu0 0.0
    %5578 = vmatpush1.msra.mxu0 0.0
    %5579 = vmatprep.subr.mxu0 0.0
    %5580 = vmatpush1.msra.mxu0 0.0
    %5581 = vmatprep.mubr.f32.mxu0 0.0
    %5582 = vmatmul.mubr.f32.gmra.mrb[0].mxu0 %v5302
    %v5583 = vpop.f32.mrb[0].mxu0
    %v5584 = vadd.f32 0.0, %v5583
    %v5585 = vpop.f32.mrb[0].mxu0
    %5586 = vdwg.mxu0
    %5587 = vmatprep.subr.mxu0 0.0
    %5588 = vmatpush1.msra.mxu0 %v191
    %5589 = vmatprep.subr.mxu0 0.0
    %5590 = vmatpush1.msra.mxu0 %v192
    %5591 = vmatprep.subr.mxu0 0.0
    %5592 = vmatpush1.msra.mxu0 %v193
    %5593 = vmatprep.subr.mxu0 0.0
    %5594 = vmatpush1.msra.mxu0 %v194
    %5595 = vmatprep.subr.mxu0 0.0
    %5596 = vmatpush1.msra.mxu0 0.0
    %5597 = vmatprep.subr.mxu0 0.0
    %5598 = vmatpush1.msra.mxu0 0.0
    %5599 = vmatprep.subr.mxu0 0.0
    %5600 = vmatpush1.msra.mxu0 0.0
    %5601 = vmatprep.subr.mxu0 0.0
    %5602 = vmatpush1.msra.mxu0 0.0
    %5603 = vmatprep.subr.mxu0 0.0
    %5604 = vmatpush1.msra.mxu0 0.0
    %5605 = vmatprep.subr.mxu0 0.0
    %5606 = vmatpush1.msra.mxu0 0.0
    %5607 = vmatprep.subr.mxu0 0.0
    %5608 = vmatpush1.msra.mxu0 0.0
    %5609 = vmatprep.subr.mxu0 0.0
    %5610 = vmatpush1.msra.mxu0 0.0
    %5611 = vmatprep.subr.mxu0 0.0
    %5612 = vmatpush1.msra.mxu0 0.0
    %5613 = vmatprep.subr.mxu0 0.0
    %5614 = vmatpush1.msra.mxu0 0.0
    %5615 = vmatprep.subr.mxu0 0.0
    %5616 = vmatpush1.msra.mxu0 0.0
    %5617 = vmatprep.subr.mxu0 0.0
    %5618 = vmatpush1.msra.mxu0 0.0
    %5619 = vmatprep.subr.mxu0 0.0
    %5620 = vmatpush1.msra.mxu0 0.0
    %5621 = vmatprep.subr.mxu0 0.0
    %5622 = vmatpush1.msra.mxu0 0.0
    %5623 = vmatprep.subr.mxu0 0.0
    %5624 = vmatpush1.msra.mxu0 0.0
    %5625 = vmatprep.subr.mxu0 0.0
    %5626 = vmatpush1.msra.mxu0 0.0
    %5627 = vmatprep.subr.mxu0 0.0
    %5628 = vmatpush1.msra.mxu0 0.0
    %5629 = vmatprep.subr.mxu0 0.0
    %5630 = vmatpush1.msra.mxu0 0.0
    %5631 = vmatprep.subr.mxu0 0.0
    %5632 = vmatpush1.msra.mxu0 0.0
    %5633 = vmatprep.subr.mxu0 0.0
    %5634 = vmatpush1.msra.mxu0 0.0
    %5635 = vmatprep.subr.mxu0 0.0
    %5636 = vmatpush1.msra.mxu0 0.0
    %5637 = vmatprep.subr.mxu0 0.0
    %5638 = vmatpush1.msra.mxu0 0.0
    %5639 = vmatprep.subr.mxu0 0.0
    %5640 = vmatpush1.msra.mxu0 0.0
    %5641 = vmatprep.subr.mxu0 0.0
    %5642 = vmatpush1.msra.mxu0 0.0
    %5643 = vmatprep.subr.mxu0 0.0
    %5644 = vmatpush1.msra.mxu0 0.0
    %5645 = vmatprep.subr.mxu0 0.0
    %5646 = vmatpush1.msra.mxu0 0.0
    %5647 = vmatprep.subr.mxu0 0.0
    %5648 = vmatpush1.msra.mxu0 0.0
    %5649 = vmatprep.subr.mxu0 0.0
    %5650 = vmatpush1.msra.mxu0 0.0
    %5651 = vmatprep.mubr.f32.mxu0 0.0
    %5652 = vmatmul.mubr.f32.gmra.mrb[0].mxu0 %v5411
    %v5653 = vpop.f32.mrb[0].mxu0
    %v5654 = vadd.f32 0.0, %v5653
    %v5655 = vpop.f32.mrb[0].mxu0
    %5656 = vdwg.mxu0
    %5658 = vrot.lane.b32.xlu0 %v5516, 32
    %v5659 = vpop.permute.xlu0 %5658
    %v5660 = vsel %vm117, %v5659, 0
    %5662 = vmatprep.subr.mxu0 0.0
    %5663 = vmatpush1.msra.mxu0 %v265
    %5664 = vmatprep.subr.mxu0 0.0
    %5665 = vmatpush1.msra.mxu0 %v266
    %5666 = vmatprep.subr.mxu0 0.0
    %5667 = vmatpush1.msra.mxu0 %v267
    %5668 = vmatprep.subr.mxu0 0.0
    %5669 = vmatpush1.msra.mxu0 %v268
    %5670 = vmatprep.subr.mxu0 0.0
    %5671 = vmatpush1.msra.mxu0 0.0
    %5672 = vmatprep.subr.mxu0 0.0
    %5673 = vmatpush1.msra.mxu0 0.0
    %5674 = vmatprep.subr.mxu0 0.0
    %5675 = vmatpush1.msra.mxu0 0.0
    %5676 = vmatprep.subr.mxu0 0.0
    %5677 = vmatpush1.msra.mxu0 0.0
    %5678 = vmatprep.subr.mxu0 0.0
    %5679 = vmatpush1.msra.mxu0 0.0
    %5680 = vmatprep.subr.mxu0 0.0
    %5681 = vmatpush1.msra.mxu0 0.0
    %5682 = vmatprep.subr.mxu0 0.0
    %5683 = vmatpush1.msra.mxu0 0.0
    %5684 = vmatprep.subr.mxu0 0.0
    %5685 = vmatpush1.msra.mxu0 0.0
    %5686 = vmatprep.subr.mxu0 0.0
    %5687 = vmatpush1.msra.mxu0 0.0
    %5688 = vmatprep.subr.mxu0 0.0
    %5689 = vmatpush1.msra.mxu0 0.0
    %5690 = vmatprep.subr.mxu0 0.0
    %5691 = vmatpush1.msra.mxu0 0.0
    %5692 = vmatprep.subr.mxu0 0.0
    %5693 = vmatpush1.msra.mxu0 0.0
    %5694 = vmatprep.subr.mxu0 0.0
    %5695 = vmatpush1.msra.mxu0 0.0
    %5696 = vmatprep.subr.mxu0 0.0
    %5697 = vmatpush1.msra.mxu0 0.0
    %5698 = vmatprep.subr.mxu0 0.0
    %5699 = vmatpush1.msra.mxu0 0.0
    %5700 = vmatprep.subr.mxu0 0.0
    %5701 = vmatpush1.msra.mxu0 0.0
    %5702 = vmatprep.subr.mxu0 0.0
    %5703 = vmatpush1.msra.mxu0 0.0
    %5704 = vmatprep.subr.mxu0 0.0
    %5705 = vmatpush1.msra.mxu0 0.0
    %5706 = vmatprep.subr.mxu0 0.0
    %5707 = vmatpush1.msra.mxu0 0.0
    %5708 = vmatprep.subr.mxu0 0.0
    %5709 = vmatpush1.msra.mxu0 0.0
    %5710 = vmatprep.subr.mxu0 0.0
    %5711 = vmatpush1.msra.mxu0 0.0
    %5712 = vmatprep.subr.mxu0 0.0
    %5713 = vmatpush1.msra.mxu0 0.0
    %5714 = vmatprep.subr.mxu0 0.0
    %5715 = vmatpush1.msra.mxu0 0.0
    %5716 = vmatprep.subr.mxu0 0.0
    %5717 = vmatpush1.msra.mxu0 0.0
    %5718 = vmatprep.subr.mxu0 0.0
    %5719 = vmatpush1.msra.mxu0 0.0
    %5720 = vmatprep.subr.mxu0 0.0
    %5721 = vmatpush1.msra.mxu0 0.0
    %5722 = vmatprep.subr.mxu0 0.0
    %5723 = vmatpush1.msra.mxu0 0.0
    %5724 = vmatprep.subr.mxu0 0.0
    %5725 = vmatpush1.msra.mxu0 0.0
    %5726 = vmatprep.mubr.f32.mxu0 0.0
    %5727 = vmatmul.mubr.f32.gmra.mrb[0].mxu0 %v5660
    %v5728 = vpop.f32.mrb[0].mxu0
    %v5729 = vadd.f32 0.0, %v5728
    %v5730 = vpop.f32.mrb[0].mxu0
    %5731 = vdwg.mxu0
    %5732 = vmatprep.subr.mxu0 0.0
    %5733 = vmatpush1.msra.mxu0 %v4110
    %5734 = vmatprep.subr.mxu0 0.0
    %5735 = vmatpush1.msra.mxu0 %v4111
    %5736 = vmatprep.subr.mxu0 0.0
    %5737 = vmatpush1.msra.mxu0 %v4112
    %5738 = vmatprep.subr.mxu0 0.0
    %5739 = vmatpush1.msra.mxu0 %v4113
    %5740 = vmatprep.subr.mxu0 0.0
    %5741 = vmatpush1.msra.mxu0 0.0
    %5742 = vmatprep.subr.mxu0 0.0
    %5743 = vmatpush1.msra.mxu0 0.0
    %5744 = vmatprep.subr.mxu0 0.0
    %5745 = vmatpush1.msra.mxu0 0.0
    %5746 = vmatprep.subr.mxu0 0.0
    %5747 = vmatpush1.msra.mxu0 0.0
    %5748 = vmatprep.subr.mxu0 0.0
    %5749 = vmatpush1.msra.mxu0 0.0
    %5750 = vmatprep.subr.mxu0 0.0
    %5751 = vmatpush1.msra.mxu0 0.0
    %5752 = vmatprep.subr.mxu0 0.0
    %5753 = vmatpush1.msra.mxu0 0.0
    %5754 = vmatprep.subr.mxu0 0.0
    %5755 = vmatpush1.msra.mxu0 0.0
    %5756 = vmatprep.subr.mxu0 0.0
    %5757 = vmatpush1.msra.mxu0 0.0
    %5758 = vmatprep.subr.mxu0 0.0
    %5759 = vmatpush1.msra.mxu0 0.0
    %5760 = vmatprep.subr.mxu0 0.0
    %5761 = vmatpush1.msra.mxu0 0.0
    %5762 = vmatprep.subr.mxu0 0.0
    %5763 = vmatpush1.msra.mxu0 0.0
    %5764 = vmatprep.subr.mxu0 0.0
    %5765 = vmatpush1.msra.mxu0 0.0
    %5766 = vmatprep.subr.mxu0 0.0
    %5767 = vmatpush1.msra.mxu0 0.0
    %5768 = vmatprep.subr.mxu0 0.0
    %5769 = vmatpush1.msra.mxu0 0.0
    %5770 = vmatprep.subr.mxu0 0.0
    %5771 = vmatpush1.msra.mxu0 0.0
    %5772 = vmatprep.subr.mxu0 0.0
    %5773 = vmatpush1.msra.mxu0 0.0
    %5774 = vmatprep.subr.mxu0 0.0
    %5775 = vmatpush1.msra.mxu0 0.0
    %5776 = vmatprep.subr.mxu0 0.0
    %5777 = vmatpush1.msra.mxu0 0.0
    %5778 = vmatprep.subr.mxu0 0.0
    %5779 = vmatpush1.msra.mxu0 0.0
    %5780 = vmatprep.subr.mxu0 0.0
    %5781 = vmatpush1.msra.mxu0 0.0
    %5782 = vmatprep.subr.mxu0 0.0
    %5783 = vmatpush1.msra.mxu0 0.0
    %5784 = vmatprep.subr.mxu0 0.0
    %5785 = vmatpush1.msra.mxu0 0.0
    %5786 = vmatprep.subr.mxu0 0.0
    %5787 = vmatpush1.msra.mxu0 0.0
    %5788 = vmatprep.subr.mxu0 0.0
    %5789 = vmatpush1.msra.mxu0 0.0
    %5790 = vmatprep.subr.mxu0 0.0
    %5791 = vmatpush1.msra.mxu0 0.0
    %5792 = vmatprep.subr.mxu0 0.0
    %5793 = vmatpush1.msra.mxu0 0.0
    %5794 = vmatprep.subr.mxu0 0.0
    %5795 = vmatpush1.msra.mxu0 0.0
    %5796 = vmatprep.mubr.f32.mxu0 0.0
    %5797 = vmatmul.mubr.f32.gmra.mrb[0].mxu0 %v5660
    %v5798 = vpop.f32.mrb[0].mxu0
    %v5799 = vadd.f32 %v5584, %v5798
    %v5800 = vpop.f32.mrb[0].mxu0
    %5801 = vdwg.mxu0
    %v5802 = vadd.f32 %v5799, %v4189
    %v5803 = vxor.u32 %v5802, 2147483648
    %v5804 = vmul.f32 %v5803, 1.442695
    %v5805 = vpow.pop %v5804
    %v5806 = vadd.f32 %v5805, 1.0
    %v5807 = vrcp.pop %v5806
    %v5808 = vmul.f32 1.0, %v5807
    %v5809 = vmul.f32 %v5808, 2.0
    %v5810 = vsub.f32 %v5809, 1.0
    %v5811 = vmul.f32 %v5808, %v5284
    %5813 = vrot.lane.b32.xlu0 %v5810, 64
    %v5814 = vpop.permute.xlu0 %5813
    %v5816 = vmul.f32 %v5808, %v5814
    %5818 = vrot.lane.b32.xlu0 %v5816, 32
    %v5819 = vpop.permute.xlu0 %5818
    %v5821 = vadd.f32 %v5811, %v5819
    %v5822 = vmul.f32 %v5821, 2.0
    %v5823 = vxor.u32 %v5822, 2147483648
    %v5824 = vmul.f32 %v5823, 1.442695
    %v5825 = vpow.pop %v5824
    %v5826 = vadd.f32 %v5825, 1.0
    %v5827 = vrcp.pop %v5826
    %v5828 = vmul.f32 1.0, %v5827
    %v5829 = vmul.f32 %v5828, 2.0
    %v5830 = vsub.f32 %v5829, 1.0
    %5832 = vrot.lane.b32.xlu0 %v5830, 64
    %v5833 = vpop.permute.xlu0 %5832
    %v5835 = vmul.f32 %v5808, %v5833
    %5837 = vrot.lane.b32.xlu0 %v5835, 32
    %v5838 = vpop.permute.xlu0 %5837
    %v5839 = vsel %vm117, %v5838, 0
    %5841 = vmatprep.subr.mxu0 0.0
    %5842 = vmatpush1.msra.mxu0 %v374
    %5843 = vmatprep.subr.mxu0 0.0
    %5844 = vmatpush1.msra.mxu0 %v375
    %5845 = vmatprep.subr.mxu0 0.0
    %5846 = vmatpush1.msra.mxu0 %v376
    %5847 = vmatprep.subr.mxu0 0.0
    %5848 = vmatpush1.msra.mxu0 %v377
    %5849 = vmatprep.subr.mxu0 0.0
    %5850 = vmatpush1.msra.mxu0 0.0
    %5851 = vmatprep.subr.mxu0 0.0
    %5852 = vmatpush1.msra.mxu0 0.0
    %5853 = vmatprep.subr.mxu0 0.0
    %5854 = vmatpush1.msra.mxu0 0.0
    %5855 = vmatprep.subr.mxu0 0.0
    %5856 = vmatpush1.msra.mxu0 0.0
    %5857 = vmatprep.subr.mxu0 0.0
    %5858 = vmatpush1.msra.mxu0 0.0
    %5859 = vmatprep.subr.mxu0 0.0
    %5860 = vmatpush1.msra.mxu0 0.0
    %5861 = vmatprep.subr.mxu0 0.0
    %5862 = vmatpush1.msra.mxu0 0.0
    %5863 = vmatprep.subr.mxu0 0.0
    %5864 = vmatpush1.msra.mxu0 0.0
    %5865 = vmatprep.subr.mxu0 0.0
    %5866 = vmatpush1.msra.mxu0 0.0
    %5867 = vmatprep.subr.mxu0 0.0
    %5868 = vmatpush1.msra.mxu0 0.0
    %5869 = vmatprep.subr.mxu0 0.0
    %5870 = vmatpush1.msra.mxu0 0.0
    %5871 = vmatprep.subr.mxu0 0.0
    %5872 = vmatpush1.msra.mxu0 0.0
    %5873 = vmatprep.subr.mxu0 0.0
    %5874 = vmatpush1.msra.mxu0 0.0
    %5875 = vmatprep.subr.mxu0 0.0
    %5876 = vmatpush1.msra.mxu0 0.0
    %5877 = vmatprep.subr.mxu0 0.0
    %5878 = vmatpush1.msra.mxu0 0.0
    %5879 = vmatprep.subr.mxu0 0.0
    %5880 = vmatpush1.msra.mxu0 0.0
    %5881 = vmatprep.subr.mxu0 0.0
    %5882 = vmatpush1.msra.mxu0 0.0
    %5883 = vmatprep.subr.mxu0 0.0
    %5884 = vmatpush1.msra.mxu0 0.0
    %5885 = vmatprep.subr.mxu0 0.0
    %5886 = vmatpush1.msra.mxu0 0.0
    %5887 = vmatprep.subr.mxu0 0.0
    %5888 = vmatpush1.msra.mxu0 0.0
    %5889 = vmatprep.subr.mxu0 0.0
    %5890 = vmatpush1.msra.mxu0 0.0
    %5891 = vmatprep.subr.mxu0 0.0
    %5892 = vmatpush1.msra.mxu0 0.0
    %5893 = vmatprep.subr.mxu0 0.0
    %5894 = vmatpush1.msra.mxu0 0.0
    %5895 = vmatprep.subr.mxu0 0.0
    %5896 = vmatpush1.msra.mxu0 0.0
    %5897 = vmatprep.subr.mxu0 0.0
    %5898 = vmatpush1.msra.mxu0 0.0
    %5899 = vmatprep.subr.mxu0 0.0
    %5900 = vmatpush1.msra.mxu0 0.0
    %5901 = vmatprep.subr.mxu0 0.0
    %5902 = vmatpush1.msra.mxu0 0.0
    %5903 = vmatprep.subr.mxu0 0.0
    %5904 = vmatpush1.msra.mxu0 0.0
    %5905 = vmatprep.mubr.f32.mxu0 0.0
    %5906 = vmatmul.mubr.f32.gmra.mrb[0].mxu0 %v5839
    %v5907 = vpop.f32.mrb[0].mxu0
    %v5908 = vadd.f32 %v5654, %v5907
    %v5909 = vpop.f32.mrb[0].mxu0
    %5910 = vdwg.mxu0
    %v5911 = vadd.f32 %v5908, %v457
    %v5912 = vxor.u32 %v5911, 2147483648
    %v5913 = vmul.f32 %v5912, 1.442695
    %v5914 = vpow.pop %v5913
    %v5915 = vadd.f32 %v5914, 1.0
    %v5916 = vrcp.pop %v5915
    %v5917 = vmul.f32 1.0, %v5916
    %v5918 = vmul.f32 %v5917, 2.0
    %v5919 = vsub.f32 %v5918, 1.0
    %v5920 = vmul.f32 %v5917, %v5393
    %5922 = vrot.lane.b32.xlu0 %v5919, 64
    %v5923 = vpop.permute.xlu0 %5922
    %v5925 = vmul.f32 %v5917, %v5923
    %5927 = vrot.lane.b32.xlu0 %v5925, 32
    %v5928 = vpop.permute.xlu0 %5927
    %v5930 = vadd.f32 %v5920, %v5928
    %v5931 = vmul.f32 %v5930, 2.0
    %v5932 = vxor.u32 %v5931, 2147483648
    %v5933 = vmul.f32 %v5932, 1.442695
    %v5934 = vpow.pop %v5933
    %v5935 = vadd.f32 %v5934, 1.0
    %v5936 = vrcp.pop %v5935
    %v5937 = vmul.f32 1.0, %v5936
    %v5938 = vmul.f32 %v5937, 2.0
    %v5939 = vsub.f32 %v5938, 1.0
    %5941 = vrot.lane.b32.xlu0 %v5939, 64
    %v5942 = vpop.permute.xlu0 %5941
    %v5944 = vmul.f32 %v5917, %v5942
    %5946 = vrot.lane.b32.xlu0 %v5944, 32
    %v5947 = vpop.permute.xlu0 %5946
    %v5948 = vsel %vm117, %v5947, 0
    %5950 = vmatprep.subr.mxu0 0.0
    %5951 = vmatpush1.msra.mxu0 %v493
    %5952 = vmatprep.subr.mxu0 0.0
    %5953 = vmatpush1.msra.mxu0 %v494
    %5954 = vmatprep.subr.mxu0 0.0
    %5955 = vmatpush1.msra.mxu0 %v495
    %5956 = vmatprep.subr.mxu0 0.0
    %5957 = vmatpush1.msra.mxu0 %v496
    %5958 = vmatprep.subr.mxu0 0.0
    %5959 = vmatpush1.msra.mxu0 0.0
    %5960 = vmatprep.subr.mxu0 0.0
    %5961 = vmatpush1.msra.mxu0 0.0
    %5962 = vmatprep.subr.mxu0 0.0
    %5963 = vmatpush1.msra.mxu0 0.0
    %5964 = vmatprep.subr.mxu0 0.0
    %5965 = vmatpush1.msra.mxu0 0.0
    %5966 = vmatprep.subr.mxu0 0.0
    %5967 = vmatpush1.msra.mxu0 0.0
    %5968 = vmatprep.subr.mxu0 0.0
    %5969 = vmatpush1.msra.mxu0 0.0
    %5970 = vmatprep.subr.mxu0 0.0
    %5971 = vmatpush1.msra.mxu0 0.0
    %5972 = vmatprep.subr.mxu0 0.0
    %5973 = vmatpush1.msra.mxu0 0.0
    %5974 = vmatprep.subr.mxu0 0.0
    %5975 = vmatpush1.msra.mxu0 0.0
    %5976 = vmatprep.subr.mxu0 0.0
    %5977 = vmatpush1.msra.mxu0 0.0
    %5978 = vmatprep.subr.mxu0 0.0
    %5979 = vmatpush1.msra.mxu0 0.0
    %5980 = vmatprep.subr.mxu0 0.0
    %5981 = vmatpush1.msra.mxu0 0.0
    %5982 = vmatprep.subr.mxu0 0.0
    %5983 = vmatpush1.msra.mxu0 0.0
    %5984 = vmatprep.subr.mxu0 0.0
    %5985 = vmatpush1.msra.mxu0 0.0
    %5986 = vmatprep.subr.mxu0 0.0
    %5987 = vmatpush1.msra.mxu0 0.0
    %5988 = vmatprep.subr.mxu0 0.0
    %5989 = vmatpush1.msra.mxu0 0.0
    %5990 = vmatprep.subr.mxu0 0.0
    %5991 = vmatpush1.msra.mxu0 0.0
    %5992 = vmatprep.subr.mxu0 0.0
    %5993 = vmatpush1.msra.mxu0 0.0
    %5994 = vmatprep.subr.mxu0 0.0
    %5995 = vmatpush1.msra.mxu0 0.0
    %5996 = vmatprep.subr.mxu0 0.0
    %5997 = vmatpush1.msra.mxu0 0.0
    %5998 = vmatprep.subr.mxu0 0.0
    %5999 = vmatpush1.msra.mxu0 0.0
    %6000 = vmatprep.subr.mxu0 0.0
    %6001 = vmatpush1.msra.mxu0 0.0
    %6002 = vmatprep.subr.mxu0 0.0
    %6003 = vmatpush1.msra.mxu0 0.0
    %6004 = vmatprep.subr.mxu0 0.0
    %6005 = vmatpush1.msra.mxu0 0.0
    %6006 = vmatprep.subr.mxu0 0.0
    %6007 = vmatpush1.msra.mxu0 0.0
    %6008 = vmatprep.subr.mxu0 0.0
    %6009 = vmatpush1.msra.mxu0 0.0
    %6010 = vmatprep.subr.mxu0 0.0
    %6011 = vmatpush1.msra.mxu0 0.0
    %6012 = vmatprep.subr.mxu0 0.0
    %6013 = vmatpush1.msra.mxu0 0.0
    %6014 = vmatprep.mubr.f32.mxu0 0.0
    %6015 = vmatmul.mubr.f32.gmra.mrb[0].mxu0 %v5948
    %v6016 = vpop.f32.mrb[0].mxu0
    %v6017 = vadd.f32 %v5729, %v6016
    %v6018 = vpop.f32.mrb[0].mxu0
    %6019 = vdwg.mxu0
    %v6020 = vadd.f32 %v6017, %v576
    %v6021 = vxor.u32 %v6020, 2147483648
    %v6022 = vmul.f32 %v6021, 1.442695
    %v6023 = vpow.pop %v6022
    %v6024 = vadd.f32 %v6023, 1.0
    %v6025 = vrcp.pop %v6024
    %v6026 = vmul.f32 1.0, %v6025
    %v6027 = vmul.f32 %v6026, 2.0
    %v6028 = vsub.f32 %v6027, 1.0
    %v6029 = vmul.f32 %v6026, %v5502
    %6031 = vrot.lane.b32.xlu0 %v6028, 64
    %v6032 = vpop.permute.xlu0 %6031
    %v6034 = vmul.f32 %v6026, %v6032
    %6036 = vrot.lane.b32.xlu0 %v6034, 32
    %v6037 = vpop.permute.xlu0 %6036
    %v6039 = vadd.f32 %v6029, %v6037
    %v6040 = vmul.f32 %v6039, 2.0
    %v6041 = vxor.u32 %v6040, 2147483648
    %v6042 = vmul.f32 %v6041, 1.442695
    %v6043 = vpow.pop %v6042
    %v6044 = vadd.f32 %v6043, 1.0
    %v6045 = vrcp.pop %v6044
    %v6046 = vmul.f32 1.0, %v6045
    %v6047 = vmul.f32 %v6046, 2.0
    %v6048 = vsub.f32 %v6047, 1.0
    %6050 = vrot.lane.b32.xlu0 %v6048, 64
    %v6051 = vpop.permute.xlu0 %6050
    %v6053 = vmul.f32 %v6026, %v6051
    %v6054 = vrot.slane %v1080, 6
    %v6056 = vrot.slane %v1549, 4
    %v6058 = vrot.slane %v2018, 2
    %v6060 = vrot.slane %v2956, 6
    %v6062 = vrot.slane %v3425, 4
    %v6064 = vrot.slane %v3894, 2
    %v6066 = vrot.slane %v4979, 6
    %v6068 = vrot.slane %v5516, 4
    %v6071 = vrot.slane %v6053, 2
    %vm6073 = vcmask 1041408
    %v6074 = vsel %vm6073, %v611, %v6054
    %vm6075 = vcmask 1043456
    %v6076 = vsel %vm6075, %v6074, %v6056
    %vm6077 = vcmask 1045504
    %v6078 = vsel %vm6077, %v6076, %v6058
    %v6079 = vsel %vm6073, %v2487, %v6060
    %v6080 = vsel %vm6075, %v6079, %v6062
    %v6081 = vsel %vm6077, %v6080, %v6064
    %v6082 = vsel %vm6073, %v4442, %v6066
    %v6083 = vsel %vm6075, %v6082, %v6068
    %v6084 = vsel %vm6077, %v6083, %v6071
    %v6085 = vld [vmem:[%s10] sm:$0xff]
    %v6086 = vld [vmem:[%s10 + $0x8] sm:$0xff]
    %v6087 = vld [vmem:[%s10 + $0x10] sm:$0xff]
    %v6088 = vld [vmem:[%s10 + $0x18] sm:$0xff]
    %v6089 = vld [vmem:[#allocation2] sm:$0x1]
    %v6091 = vlaneseq
    %v6092 = vshrl.u32 %v6091, 7
    %v6093 = vsub.s32 0, %v6092
    %v6094 = vrot.slane %v6089, %v6093
    %6099 = vrot.lane.b32.xlu0 %v6078, 32
    %v6100 = vpop.permute.xlu0 %6099
    %6101 = vrot.lane.b32.xlu0 %v6081, 32
    %v6102 = vpop.permute.xlu0 %6101
    %6103 = vrot.lane.b32.xlu0 %v6084, 32
    %v6104 = vpop.permute.xlu0 %6103
    %v6105 = vsel %vm117, %v6100, 0
    %v6107 = vsel %vm117, %v6102, 0
    %v6109 = vsel %vm117, %v6104, 0
    %6111 = vmatprep.subr.mxu0 0.0
    %6112 = vmatpush1.msra.mxu0 %v6085
    %6113 = vmatprep.subr.mxu0 0.0
    %6114 = vmatpush1.msra.mxu0 %v6086
    %6115 = vmatprep.subr.mxu0 0.0
    %6116 = vmatpush1.msra.mxu0 %v6087
    %6117 = vmatprep.subr.mxu0 0.0
    %6118 = vmatpush1.msra.mxu0 %v6088
    %6119 = vmatprep.subr.mxu0 0.0
    %6120 = vmatpush1.msra.mxu0 0.0
    %6121 = vmatprep.subr.mxu0 0.0
    %6122 = vmatpush1.msra.mxu0 0.0
    %6123 = vmatprep.subr.mxu0 0.0
    %6124 = vmatpush1.msra.mxu0 0.0
    %6125 = vmatprep.subr.mxu0 0.0
    %6126 = vmatpush1.msra.mxu0 0.0
    %6127 = vmatprep.subr.mxu0 0.0
    %6128 = vmatpush1.msra.mxu0 0.0
    %6129 = vmatprep.subr.mxu0 0.0
    %6130 = vmatpush1.msra.mxu0 0.0
    %6131 = vmatprep.subr.mxu0 0.0
    %6132 = vmatpush1.msra.mxu0 0.0
    %6133 = vmatprep.subr.mxu0 0.0
    %6134 = vmatpush1.msra.mxu0 0.0
    %6135 = vmatprep.subr.mxu0 0.0
    %6136 = vmatpush1.msra.mxu0 0.0
    %6137 = vmatprep.subr.mxu0 0.0
    %6138 = vmatpush1.msra.mxu0 0.0
    %6139 = vmatprep.subr.mxu0 0.0
    %6140 = vmatpush1.msra.mxu0 0.0
    %6141 = vmatprep.subr.mxu0 0.0
    %6142 = vmatpush1.msra.mxu0 0.0
    %6143 = vmatprep.subr.mxu0 0.0
    %6144 = vmatpush1.msra.mxu0 0.0
    %6145 = vmatprep.subr.mxu0 0.0
    %6146 = vmatpush1.msra.mxu0 0.0
    %6147 = vmatprep.subr.mxu0 0.0
    %6148 = vmatpush1.msra.mxu0 0.0
    %6149 = vmatprep.subr.mxu0 0.0
    %6150 = vmatpush1.msra.mxu0 0.0
    %6151 = vmatprep.subr.mxu0 0.0
    %6152 = vmatpush1.msra.mxu0 0.0
    %6153 = vmatprep.subr.mxu0 0.0
    %6154 = vmatpush1.msra.mxu0 0.0
    %6155 = vmatprep.subr.mxu0 0.0
    %6156 = vmatpush1.msra.mxu0 0.0
    %6157 = vmatprep.subr.mxu0 0.0
    %6158 = vmatpush1.msra.mxu0 0.0
    %6159 = vmatprep.subr.mxu0 0.0
    %6160 = vmatpush1.msra.mxu0 0.0
    %6161 = vmatprep.subr.mxu0 0.0
    %6162 = vmatpush1.msra.mxu0 0.0
    %6163 = vmatprep.subr.mxu0 0.0
    %6164 = vmatpush1.msra.mxu0 0.0
    %6165 = vmatprep.subr.mxu0 0.0
    %6166 = vmatpush1.msra.mxu0 0.0
    %6167 = vmatprep.subr.mxu0 0.0
    %6168 = vmatpush1.msra.mxu0 0.0
    %6169 = vmatprep.subr.mxu0 0.0
    %6170 = vmatpush1.msra.mxu0 0.0
    %6171 = vmatprep.subr.mxu0 0.0
    %6172 = vmatpush1.msra.mxu0 0.0
    %6173 = vmatprep.subr.mxu0 0.0
    %6174 = vmatpush1.msra.mxu0 0.0
    %6175 = vmatprep.mubr.f32.mxu0 0.0
    %6176 = vmatmul.mubr.f32.gmra.mrb[0].mxu0 %v6105
    %v6177 = vpop.f32.mrb[0].mxu0
    %v6178 = vadd.f32 %v6094, %v6177
    %v6179 = vpop.f32.mrb[0].mxu0
    %6180 = vmatprep.mubr.f32.mxu0 0.0
    %6181 = vmatmul.mubr.f32.gmra.mrb[0].mxu0 %v6107
    %v6182 = vpop.f32.mrb[0].mxu0
    %v6183 = vadd.f32 %v6094, %v6182
    %v6184 = vpop.f32.mrb[0].mxu0
    %6185 = vmatprep.mubr.f32.mxu0 0.0
    %6186 = vmatmul.mubr.f32.gmra.mrb[0].mxu0 %v6109
    %v6187 = vpop.f32.mrb[0].mxu0
    %v6188 = vadd.f32 %v6094, %v6187
    %v6189 = vpop.f32.mrb[0].mxu0
    %6190 = vdwg.mxu0
    %vm6191 = vcmask 7168
    %6192 = vst.msk [vmem:[%s12] sm:$0xff] %vm6191, %v6178
    %6193 = vst.msk [vmem:[%s12 + $0x8] sm:$0xff] %vm6191, %v6183
    %6194 = vst.msk [vmem:[%s12 + $0x10] sm:$0xff] %vm6191, %v6188
    // Predicated region
    $region70: #{tpu_custom_call.1} parent=1 // pred_check
      _
    $region71: #{tpu_custom_call.1} parent=1 // pred_check_branch
      %6196 = sbr.rel (0) target = $region73
    $region72: #{tpu_custom_call.1} parent=1 // pred_region
      _
    $region73: #{tpu_custom_call.1} parent=1 // pred_fallthru
      _
    // Predicated region
    $region74: #{tpu_custom_call.1} parent=1 // pred_check
      _
    $region75: #{tpu_custom_call.1} parent=1 // pred_check_branch
      %6198 = sbr.rel (0) target = $region77
    $region76: #{tpu_custom_call.1} parent=1 // pred_region
      _
    $region77: #{tpu_custom_call.1} parent=1 // pred_fallthru
      _
    %6199 = vsyncpa [#allocation4], 1
    %6200 = vsyncpa [#allocation6], 1
    %6201 = vsyncpa [#allocation9], 1

</llo_original>
